<compile_context>
chip_gen: v7x
topology: tpu7x:2x2x1
jax: 0.10.0
libtpu: 0.0.40
codegen_flags: <defaults>
</compile_context>

<pallas_src>
import jax
import jax.numpy as jnp
from jax import lax
from jax.experimental import pallas as pl
from jax.experimental.pallas import tpu as pltpu

# Problem configuration (matches the PyTorch module defaults / test shapes).
IN_C, HID, OUT_C = 4, 32, 10
N, H, W = 2, 16, 16

CP = 32                    # channel padding (>= max channel count); zero padded
BN_EPS = 1e-5              # nn.BatchNorm2d default eps
N_LAYERS = 9               # 3 bottlenecks x 3 convs
RES_SAVE_LAYER = 3         # input of bottleneck_b (the only in_size == out_size block)
RES_ADD_LAYER = 5          # residual added after bottleneck_b's conv_c ReLU
PAD_L = 8                  # interior starts at sublane-aligned column 8
W_PAD = PAD_L + W + PAD_L  # padded width (halo columns 7 and 8+W are zero)
HW = H * W
R = N * HW                 # rows per layer over which BN statistics are taken

assert W % 8 == 0 and HW % 8 == 0, "aligned-store layout assumes W % 8 == 0"


def _fused_kernel(x_ref, w_ref, g_ref, b_ref, o_ref,
                  pad_ref, xsh_ref, y_ref, res_ref):
    """One grid step == one conv+BN+ReLU layer; activations stay in VMEM."""
    l = pl.program_id(0)

    # ---- layer 0: establish zero halo and load the channel-padded input ----
    @pl.when(l == 0)
    def _():
        pad_ref[...] = jnp.zeros_like(pad_ref)
        pad_ref[:, 1:H + 1, PAD_L:PAD_L + W, :] = x_ref[...]

    # ---- build the two w-shifted copies (dx = 0 and dx = 2) once per layer;
    #      dx = 1 is the aligned interior and is read straight from pad_ref ----
    for sidx, dx in enumerate((0, 2)):
        off = PAD_L - 1 + dx
        for n in range(N):
            xsh_ref[sidx, n] = pad_ref[n, :, off:off + W, :]

    # ---- save the residual = input of bottleneck_b --------------------------
    @pl.when(l == RES_SAVE_LAYER)
    def _():
        res_ref[...] = pad_ref[:, 1:H + 1, PAD_L:PAD_L + W, :]

    # ---- 3x3 conv as 9 MXU matmuls per image + one-pass BN statistics -------
    s1 = jnp.zeros((1, CP), jnp.float32)
    s2 = jnp.zeros((1, CP), jnp.float32)
    for n in range(N):
        acc = jnp.zeros((HW, CP), jnp.float32)
        for tap in range(9):
            dy, dx = tap // 3, tap % 3
            if dx == 1:
                patch = pad_ref[n, dy:dy + H, PAD_L:PAD_L + W, :]
            else:
                sidx = 0 if dx == 0 else 1
                patch = xsh_ref[sidx, n, dy:dy + H, :, :]
            patch = patch.reshape(HW, CP).astype(jnp.bfloat16)
            acc = acc + jnp.dot(patch, w_ref[0, tap],
                                preferred_element_type=jnp.float32)
        s1 = s1 + jnp.sum(acc, axis=0, keepdims=True)
        s2 = s2 + jnp.sum(acc * acc, axis=0, keepdims=True)
        y_ref[n * HW:(n + 1) * HW, :] = acc

    # ---- BatchNorm affine parameters from the single-pass stats -------------
    inv_r = 1.0 / float(R)
    mean = s1 * inv_r
    var = s2 * inv_r - mean * mean          # biased batch variance (train mode)
    scale = g_ref[0] * lax.rsqrt(var + BN_EPS)          # [1, CP]
    shift = b_ref[0] - mean * scale                     # [1, CP]

    # ---- normalize + ReLU; write the next layer's padded input --------------
    for n in range(N):
        y = y_ref[n * HW:(n + 1) * HW, :]
        y = jnp.maximum(y * scale + shift, 0.0)
        pad_ref[n, 1:H + 1, PAD_L:PAD_L + W, :] = y.reshape(H, W, CP)

    # ---- bottleneck_b residual (added after the ReLU, as in the reference) --
    @pl.when(l == RES_ADD_LAYER)
    def _():
        for n in range(N):
            pad_ref[n, 1:H + 1, PAD_L:PAD_L + W, :] = (
                pad_ref[n, 1:H + 1, PAD_L:PAD_L + W, :] + res_ref[n])

    # ---- last layer: emit the final activation ------------------------------
    @pl.when(l == N_LAYERS - 1)
    def _():
        for n in range(N):
            o_ref[n] = pad_ref[n, 1:H + 1, PAD_L:PAD_L + W, :]


@jax.jit
def bottleneck_stack_forward(x_nchw, w_all, g_all, b_all):
    batch = x_nchw.shape[0]
    cin = x_nchw.shape[1]
    x = jnp.transpose(x_nchw, (0, 2, 3, 1)).astype(jnp.float32)   # NCHW -> NHWC
    x = jnp.pad(x, ((0, 0), (0, 0), (0, 0), (0, CP - cin)))       # pad channels once

    out = pl.pallas_call(
        _fused_kernel,
        out_shape=jax.ShapeDtypeStruct((N, H, W, CP), jnp.float32),
        grid=(N_LAYERS,),
        in_specs=[
            pl.BlockSpec((N, H, W, CP), lambda l: (0, 0, 0, 0)),   # input image
            pl.BlockSpec((1, 9, CP, CP), lambda l: (l, 0, 0, 0)),  # layer weights
            pl.BlockSpec((1, 1, CP), lambda l: (l, 0, 0)),         # BN gamma
            pl.BlockSpec((1, 1, CP), lambda l: (l, 0, 0)),         # BN beta
        ],
        out_specs=pl.BlockSpec((N, H, W, CP), lambda l: (0, 0, 0, 0)),
        scratch_shapes=[
            pltpu.VMEM((N, H + 2, W_PAD, CP), jnp.float32),  # padded activation
            pltpu.VMEM((2, N, H + 2, W, CP), jnp.float32),   # dx-shifted copies
            pltpu.VMEM((R, CP), jnp.float32),                # pre-BN conv output
            pltpu.VMEM((N, H, W, CP), jnp.float32),          # bottleneck residual
        ],
        compiler_params=pltpu.CompilerParams(
            dimension_semantics=("arbitrary",),
            vmem_limit_bytes=32 * 1024 * 1024,
        ),
    )(x, w_all, g_all, b_all)

    out = out[..., :OUT_C]                    # strip channel padding
    out = jnp.transpose(out, (0, 3, 1, 2))    # NHWC -> NCHW
    return out.reshape(batch, -1)             # x.view(x.size(0), -1)


def init_params(key):
    """Deterministic synthetic parameters, stacked over the 9 layers."""
    layer_channels = [(IN_C, HID), (HID, HID), (HID, HID),   # bottleneck_a
                      (HID, HID), (HID, HID), (HID, HID),    # bottleneck_b
                      (HID, HID), (HID, HID), (HID, OUT_C)]  # bottleneck_c
    ws, gs, bs = [], [], []
    for k, (cin, cout) in zip(jax.random.split(key, N_LAYERS), layer_channels):
        k1, k2, k3 = jax.random.split(k, 3)
        wt = jax.random.normal(k1, (3, 3, cin, cout), jnp.float32)
        wt = wt * (1.0 / jnp.sqrt(jnp.float32(9 * cin)))
        gamma = 1.0 + 0.1 * jax.random.normal(k2, (cout,), jnp.float32)
        beta = 0.1 * jax.random.normal(k3, (cout,), jnp.float32)
        # zero-pad channels to CP; padded channels stay exactly zero through
        # conv / BN / ReLU so they never contaminate real channels.
        wp = jnp.zeros((9, CP, CP), jnp.float32)
        wp = wp.at[:, :cin, :cout].set(wt.reshape(9, cin, cout))
        gp = jnp.zeros((1, CP), jnp.float32).at[0, :cout].set(gamma)
        bp = jnp.zeros((1, CP), jnp.float32).at[0, :cout].set(beta)
        ws.append(wp)
        gs.append(gp)
        bs.append(bp)
    # Conv2d bias is intentionally omitted: training-mode BatchNorm subtracts
    # the per-channel mean, cancelling the bias exactly.
    w_all = jnp.stack(ws).astype(jnp.bfloat16)    # [9, 9, CP, CP] MXU operand
    g_all = jnp.stack(gs)                         # [9, 1, CP]
    b_all = jnp.stack(bs)                         # [9, 1, CP]
    return w_all, g_all, b_all


if __name__ == "__main__":
    key = jax.random.PRNGKey(0)
    kx, kp = jax.random.split(key)
    x = jax.random.normal(kx, (N, IN_C, H, W), jnp.float32)       # NCHW input
    w_all, g_all, b_all = init_params(kp)

    y = bottleneck_stack_forward(x, w_all, g_all, b_all)
    jax.block_until_ready(y)

    assert y.shape == (N, OUT_C * H * W), y.shape
    assert bool(jnp.isfinite(y).all())
    print("KERNEL_OK")
</pallas_src>

<mosaic_0001>
module attributes {stable_mosaic.version = 11 : i64} {
  func.func @_fused_kernel(%arg0: i32, %arg1: memref<2x16x16x32xf32, #tpu.memory_space<vmem>>, %arg2: memref<1x9x32x32xbf16, #tpu.memory_space<vmem>>, %arg3: memref<1x1x32xf32, #tpu.memory_space<vmem>>, %arg4: memref<1x1x32xf32, #tpu.memory_space<vmem>>, %arg5: memref<2x16x16x32xf32, #tpu.memory_space<vmem>>, %arg6: memref<2x18x32x32xf32, #tpu.memory_space<vmem>>, %arg7: memref<2x2x18x16x32xf32, #tpu.memory_space<vmem>>, %arg8: memref<512x32xf32, #tpu.memory_space<vmem>>, %arg9: memref<2x16x16x32xf32, #tpu.memory_space<vmem>>) attributes {dimension_semantics = [#tpu.dimension_semantics<arbitrary>], iteration_bounds = array<i64: 9>, scalar_prefetch = 0 : i64, scratch_operands = 4 : i64, tpu.core_type = #tpu.core_type<tc>, window_params = [{pipeline_mode = #tpu.pipeline_mode<synchronous>, transform_indices = @transform_0, window_bounds = array<i64: 2, 16, 16, 32>}, {transform_indices = @transform_1, window_bounds = array<i64: 1, 9, 32, 32>}, {transform_indices = @transform_2, window_bounds = array<i64: 1, 1, 32>}, {transform_indices = @transform_3, window_bounds = array<i64: 1, 1, 32>}, {pipeline_mode = #tpu.pipeline_mode<synchronous>, transform_indices = @transform_4, window_bounds = array<i64: 2, 16, 16, 32>}]} {
    %c0_i32 = arith.constant 0 : i32
    %0 = arith.cmpi eq, %arg0, %c0_i32 : i32
    %1 = arith.extui %0 : i1 to i32
    %c0_i32_0 = arith.constant 0 : i32
    %2 = arith.cmpi ne, %1, %c0_i32_0 : i32
    scf.if %2 {
      %cst_237 = arith.constant 0.000000e+00 : f32
      %234 = vector.broadcast %cst_237 : f32 to vector<2x18x32x32xf32>
      %c0_238 = arith.constant 0 : index
      %c0_239 = arith.constant 0 : index
      %c0_240 = arith.constant 0 : index
      %c0_241 = arith.constant 0 : index
      %235 = vector.load %arg6[%c0_238, %c0_239, %c0_240, %c0_241] : memref<2x18x32x32xf32, #tpu.memory_space<vmem>>, vector<2x18x32x32xf32>
      tpu.vector_store %arg6[%c0_238, %c0_239, %c0_240, %c0_241], %234 {strides = array<i32>} : memref<2x18x32x32xf32, #tpu.memory_space<vmem>>, vector<2x18x32x32xf32>,
      %c0_242 = arith.constant 0 : index
      %c0_243 = arith.constant 0 : index
      %c0_244 = arith.constant 0 : index
      %c0_245 = arith.constant 0 : index
      %236 = vector.load %arg1[%c0_242, %c0_243, %c0_244, %c0_245] : memref<2x16x16x32xf32, #tpu.memory_space<vmem>>, vector<2x16x16x32xf32>
      %c0_246 = arith.constant 0 : index
      %c1_247 = arith.constant 1 : index
      %c8_248 = arith.constant 8 : index
      %c0_249 = arith.constant 0 : index
      %237 = vector.load %arg6[%c0_246, %c1_247, %c8_248, %c0_249] : memref<2x18x32x32xf32, #tpu.memory_space<vmem>>, vector<2x16x16x32xf32>
      tpu.vector_store %arg6[%c0_246, %c1_247, %c8_248, %c0_249], %236 {strides = array<i32>} : memref<2x18x32x32xf32, #tpu.memory_space<vmem>>, vector<2x16x16x32xf32>,
    } else {
    }
    %c0 = arith.constant 0 : index
    %c0_1 = arith.constant 0 : index
    %c7 = arith.constant 7 : index
    %c0_2 = arith.constant 0 : index
    %3 = vector.load %arg6[%c0, %c0_1, %c7, %c0_2] : memref<2x18x32x32xf32, #tpu.memory_space<vmem>>, vector<1x18x16x32xf32>
    %4 = vector.shape_cast %3 : vector<1x18x16x32xf32> to vector<18x16x32xf32>
    %c0_3 = arith.constant 0 : index
    %c0_4 = arith.constant 0 : index
    %c0_5 = arith.constant 0 : index
    %c0_6 = arith.constant 0 : index
    %c0_7 = arith.constant 0 : index
    %5 = vector.load %arg7[%c0_3, %c0_4, %c0_5, %c0_6, %c0_7] : memref<2x2x18x16x32xf32, #tpu.memory_space<vmem>>, vector<1x1x18x16x32xf32>
    %6 = vector.shape_cast %5 : vector<1x1x18x16x32xf32> to vector<18x16x32xf32>
    %7 = vector.shape_cast %4 : vector<18x16x32xf32> to vector<1x1x18x16x32xf32>
    tpu.vector_store %arg7[%c0_3, %c0_4, %c0_5, %c0_6, %c0_7], %7 {strides = array<i32>} : memref<2x2x18x16x32xf32, #tpu.memory_space<vmem>>, vector<1x1x18x16x32xf32>,
    %c1 = arith.constant 1 : index
    %c0_8 = arith.constant 0 : index
    %c7_9 = arith.constant 7 : index
    %c0_10 = arith.constant 0 : index
    %8 = vector.load %arg6[%c1, %c0_8, %c7_9, %c0_10] : memref<2x18x32x32xf32, #tpu.memory_space<vmem>>, vector<1x18x16x32xf32>
    %9 = vector.shape_cast %8 : vector<1x18x16x32xf32> to vector<18x16x32xf32>
    %c0_11 = arith.constant 0 : index
    %c1_12 = arith.constant 1 : index
    %c0_13 = arith.constant 0 : index
    %c0_14 = arith.constant 0 : index
    %c0_15 = arith.constant 0 : index
    %10 = vector.load %arg7[%c0_11, %c1_12, %c0_13, %c0_14, %c0_15] : memref<2x2x18x16x32xf32, #tpu.memory_space<vmem>>, vector<1x1x18x16x32xf32>
    %11 = vector.shape_cast %10 : vector<1x1x18x16x32xf32> to vector<18x16x32xf32>
    %12 = vector.shape_cast %9 : vector<18x16x32xf32> to vector<1x1x18x16x32xf32>
    tpu.vector_store %arg7[%c0_11, %c1_12, %c0_13, %c0_14, %c0_15], %12 {strides = array<i32>} : memref<2x2x18x16x32xf32, #tpu.memory_space<vmem>>, vector<1x1x18x16x32xf32>,
    %c0_16 = arith.constant 0 : index
    %c0_17 = arith.constant 0 : index
    %c9 = arith.constant 9 : index
    %c0_18 = arith.constant 0 : index
    %13 = vector.load %arg6[%c0_16, %c0_17, %c9, %c0_18] : memref<2x18x32x32xf32, #tpu.memory_space<vmem>>, vector<1x18x16x32xf32>
    %14 = vector.shape_cast %13 : vector<1x18x16x32xf32> to vector<18x16x32xf32>
    %c1_19 = arith.constant 1 : index
    %c0_20 = arith.constant 0 : index
    %c0_21 = arith.constant 0 : index
    %c0_22 = arith.constant 0 : index
    %c0_23 = arith.constant 0 : index
    %15 = vector.load %arg7[%c1_19, %c0_20, %c0_21, %c0_22, %c0_23] : memref<2x2x18x16x32xf32, #tpu.memory_space<vmem>>, vector<1x1x18x16x32xf32>
    %16 = vector.shape_cast %15 : vector<1x1x18x16x32xf32> to vector<18x16x32xf32>
    %17 = vector.shape_cast %14 : vector<18x16x32xf32> to vector<1x1x18x16x32xf32>
    tpu.vector_store %arg7[%c1_19, %c0_20, %c0_21, %c0_22, %c0_23], %17 {strides = array<i32>} : memref<2x2x18x16x32xf32, #tpu.memory_space<vmem>>, vector<1x1x18x16x32xf32>,
    %c1_24 = arith.constant 1 : index
    %c0_25 = arith.constant 0 : index
    %c9_26 = arith.constant 9 : index
    %c0_27 = arith.constant 0 : index
    %18 = vector.load %arg6[%c1_24, %c0_25, %c9_26, %c0_27] : memref<2x18x32x32xf32, #tpu.memory_space<vmem>>, vector<1x18x16x32xf32>
    %19 = vector.shape_cast %18 : vector<1x18x16x32xf32> to vector<18x16x32xf32>
    %c1_28 = arith.constant 1 : index
    %c1_29 = arith.constant 1 : index
    %c0_30 = arith.constant 0 : index
    %c0_31 = arith.constant 0 : index
    %c0_32 = arith.constant 0 : index
    %20 = vector.load %arg7[%c1_28, %c1_29, %c0_30, %c0_31, %c0_32] : memref<2x2x18x16x32xf32, #tpu.memory_space<vmem>>, vector<1x1x18x16x32xf32>
    %21 = vector.shape_cast %20 : vector<1x1x18x16x32xf32> to vector<18x16x32xf32>
    %22 = vector.shape_cast %19 : vector<18x16x32xf32> to vector<1x1x18x16x32xf32>
    tpu.vector_store %arg7[%c1_28, %c1_29, %c0_30, %c0_31, %c0_32], %22 {strides = array<i32>} : memref<2x2x18x16x32xf32, #tpu.memory_space<vmem>>, vector<1x1x18x16x32xf32>,
    %c3_i32 = arith.constant 3 : i32
    %23 = arith.cmpi eq, %arg0, %c3_i32 : i32
    %24 = arith.extui %23 : i1 to i32
    %c0_i32_33 = arith.constant 0 : i32
    %25 = arith.cmpi ne, %24, %c0_i32_33 : i32
    scf.if %25 {
      %c0_237 = arith.constant 0 : index
      %c1_238 = arith.constant 1 : index
      %c8_239 = arith.constant 8 : index
      %c0_240 = arith.constant 0 : index
      %234 = vector.load %arg6[%c0_237, %c1_238, %c8_239, %c0_240] : memref<2x18x32x32xf32, #tpu.memory_space<vmem>>, vector<2x16x16x32xf32>
      %c0_241 = arith.constant 0 : index
      %c0_242 = arith.constant 0 : index
      %c0_243 = arith.constant 0 : index
      %c0_244 = arith.constant 0 : index
      %235 = vector.load %arg9[%c0_241, %c0_242, %c0_243, %c0_244] : memref<2x16x16x32xf32, #tpu.memory_space<vmem>>, vector<2x16x16x32xf32>
      tpu.vector_store %arg9[%c0_241, %c0_242, %c0_243, %c0_244], %234 {strides = array<i32>} : memref<2x16x16x32xf32, #tpu.memory_space<vmem>>, vector<2x16x16x32xf32>,
    } else {
    }
    %cst = arith.constant 0.000000e+00 : f32
    %26 = vector.broadcast %cst : f32 to vector<1x32xf32>
    %cst_34 = arith.constant 0.000000e+00 : f32
    %27 = vector.broadcast %cst_34 : f32 to vector<1x32xf32>
    %cst_35 = arith.constant 0.000000e+00 : f32
    %28 = vector.broadcast %cst_35 : f32 to vector<256x32xf32>
    %c0_36 = arith.constant 0 : index
    %c0_37 = arith.constant 0 : index
    %c0_38 = arith.constant 0 : index
    %c0_39 = arith.constant 0 : index
    %c0_40 = arith.constant 0 : index
    %29 = vector.load %arg7[%c0_36, %c0_37, %c0_38, %c0_39, %c0_40] : memref<2x2x18x16x32xf32, #tpu.memory_space<vmem>>, vector<1x1x16x16x32xf32>
    %30 = vector.shape_cast %29 : vector<1x1x16x16x32xf32> to vector<16x16x32xf32>
    %31 = vector.shape_cast %30 : vector<16x16x32xf32> to vector<256x32xf32>
    %32 = arith.truncf %31 : vector<256x32xf32> to vector<256x32xbf16>
    %c0_41 = arith.constant 0 : index
    %c0_42 = arith.constant 0 : index
    %c0_43 = arith.constant 0 : index
    %c0_44 = arith.constant 0 : index
    %33 = vector.load %arg2[%c0_41, %c0_42, %c0_43, %c0_44] : memref<1x9x32x32xbf16, #tpu.memory_space<vmem>>, vector<1x1x32x32xbf16>
    %34 = vector.shape_cast %33 : vector<1x1x32x32xbf16> to vector<32x32xbf16>
    %cst_45 = arith.constant dense<0.000000e+00> : vector<256x32xf32>
    %35 = tpu.matmul %32, %34, %cst_45 {dimension_numbers = #tpu.dot_dimension_numbers<[1], [0], [0], [1], [0, 0, 1, 1], [], []>} : vector<256x32xbf16>, vector<32x32xbf16>, vector<256x32xf32> -> vector<256x32xf32>
    %36 = arith.addf %28, %35 : vector<256x32xf32>
    %c0_46 = arith.constant 0 : index
    %c0_47 = arith.constant 0 : index
    %c8 = arith.constant 8 : index
    %c0_48 = arith.constant 0 : index
    %37 = vector.load %arg6[%c0_46, %c0_47, %c8, %c0_48] : memref<2x18x32x32xf32, #tpu.memory_space<vmem>>, vector<1x16x16x32xf32>
    %38 = vector.shape_cast %37 : vector<1x16x16x32xf32> to vector<16x16x32xf32>
    %39 = vector.shape_cast %38 : vector<16x16x32xf32> to vector<256x32xf32>
    %40 = arith.truncf %39 : vector<256x32xf32> to vector<256x32xbf16>
    %c0_49 = arith.constant 0 : index
    %c1_50 = arith.constant 1 : index
    %c0_51 = arith.constant 0 : index
    %c0_52 = arith.constant 0 : index
    %41 = vector.load %arg2[%c0_49, %c1_50, %c0_51, %c0_52] : memref<1x9x32x32xbf16, #tpu.memory_space<vmem>>, vector<1x1x32x32xbf16>
    %42 = vector.shape_cast %41 : vector<1x1x32x32xbf16> to vector<32x32xbf16>
    %cst_53 = arith.constant dense<0.000000e+00> : vector<256x32xf32>
    %43 = tpu.matmul %40, %42, %cst_53 {dimension_numbers = #tpu.dot_dimension_numbers<[1], [0], [0], [1], [0, 0, 1, 1], [], []>} : vector<256x32xbf16>, vector<32x32xbf16>, vector<256x32xf32> -> vector<256x32xf32>
    %44 = arith.addf %36, %43 : vector<256x32xf32>
    %c1_54 = arith.constant 1 : index
    %c0_55 = arith.constant 0 : index
    %c0_56 = arith.constant 0 : index
    %c0_57 = arith.constant 0 : index
    %c0_58 = arith.constant 0 : index
    %45 = vector.load %arg7[%c1_54, %c0_55, %c0_56, %c0_57, %c0_58] : memref<2x2x18x16x32xf32, #tpu.memory_space<vmem>>, vector<1x1x16x16x32xf32>
    %46 = vector.shape_cast %45 : vector<1x1x16x16x32xf32> to vector<16x16x32xf32>
    %47 = vector.shape_cast %46 : vector<16x16x32xf32> to vector<256x32xf32>
    %48 = arith.truncf %47 : vector<256x32xf32> to vector<256x32xbf16>
    %c0_59 = arith.constant 0 : index
    %c2 = arith.constant 2 : index
    %c0_60 = arith.constant 0 : index
    %c0_61 = arith.constant 0 : index
    %49 = vector.load %arg2[%c0_59, %c2, %c0_60, %c0_61] : memref<1x9x32x32xbf16, #tpu.memory_space<vmem>>, vector<1x1x32x32xbf16>
    %50 = vector.shape_cast %49 : vector<1x1x32x32xbf16> to vector<32x32xbf16>
    %cst_62 = arith.constant dense<0.000000e+00> : vector<256x32xf32>
    %51 = tpu.matmul %48, %50, %cst_62 {dimension_numbers = #tpu.dot_dimension_numbers<[1], [0], [0], [1], [0, 0, 1, 1], [], []>} : vector<256x32xbf16>, vector<32x32xbf16>, vector<256x32xf32> -> vector<256x32xf32>
    %52 = arith.addf %44, %51 : vector<256x32xf32>
    %c0_63 = arith.constant 0 : index
    %c0_64 = arith.constant 0 : index
    %c1_65 = arith.constant 1 : index
    %c0_66 = arith.constant 0 : index
    %c0_67 = arith.constant 0 : index
    %53 = vector.load %arg7[%c0_63, %c0_64, %c1_65, %c0_66, %c0_67] : memref<2x2x18x16x32xf32, #tpu.memory_space<vmem>>, vector<1x1x16x16x32xf32>
    %54 = vector.shape_cast %53 : vector<1x1x16x16x32xf32> to vector<16x16x32xf32>
    %55 = vector.shape_cast %54 : vector<16x16x32xf32> to vector<256x32xf32>
    %56 = arith.truncf %55 : vector<256x32xf32> to vector<256x32xbf16>
    %c0_68 = arith.constant 0 : index
    %c3 = arith.constant 3 : index
    %c0_69 = arith.constant 0 : index
    %c0_70 = arith.constant 0 : index
    %57 = vector.load %arg2[%c0_68, %c3, %c0_69, %c0_70] : memref<1x9x32x32xbf16, #tpu.memory_space<vmem>>, vector<1x1x32x32xbf16>
    %58 = vector.shape_cast %57 : vector<1x1x32x32xbf16> to vector<32x32xbf16>
    %cst_71 = arith.constant dense<0.000000e+00> : vector<256x32xf32>
    %59 = tpu.matmul %56, %58, %cst_71 {dimension_numbers = #tpu.dot_dimension_numbers<[1], [0], [0], [1], [0, 0, 1, 1], [], []>} : vector<256x32xbf16>, vector<32x32xbf16>, vector<256x32xf32> -> vector<256x32xf32>
    %60 = arith.addf %52, %59 : vector<256x32xf32>
    %c0_72 = arith.constant 0 : index
    %c1_73 = arith.constant 1 : index
    %c8_74 = arith.constant 8 : index
    %c0_75 = arith.constant 0 : index
    %61 = vector.load %arg6[%c0_72, %c1_73, %c8_74, %c0_75] : memref<2x18x32x32xf32, #tpu.memory_space<vmem>>, vector<1x16x16x32xf32>
    %62 = vector.shape_cast %61 : vector<1x16x16x32xf32> to vector<16x16x32xf32>
    %63 = vector.shape_cast %62 : vector<16x16x32xf32> to vector<256x32xf32>
    %64 = arith.truncf %63 : vector<256x32xf32> to vector<256x32xbf16>
    %c0_76 = arith.constant 0 : index
    %c4 = arith.constant 4 : index
    %c0_77 = arith.constant 0 : index
    %c0_78 = arith.constant 0 : index
    %65 = vector.load %arg2[%c0_76, %c4, %c0_77, %c0_78] : memref<1x9x32x32xbf16, #tpu.memory_space<vmem>>, vector<1x1x32x32xbf16>
    %66 = vector.shape_cast %65 : vector<1x1x32x32xbf16> to vector<32x32xbf16>
    %cst_79 = arith.constant dense<0.000000e+00> : vector<256x32xf32>
    %67 = tpu.matmul %64, %66, %cst_79 {dimension_numbers = #tpu.dot_dimension_numbers<[1], [0], [0], [1], [0, 0, 1, 1], [], []>} : vector<256x32xbf16>, vector<32x32xbf16>, vector<256x32xf32> -> vector<256x32xf32>
    %68 = arith.addf %60, %67 : vector<256x32xf32>
    %c1_80 = arith.constant 1 : index
    %c0_81 = arith.constant 0 : index
    %c1_82 = arith.constant 1 : index
    %c0_83 = arith.constant 0 : index
    %c0_84 = arith.constant 0 : index
    %69 = vector.load %arg7[%c1_80, %c0_81, %c1_82, %c0_83, %c0_84] : memref<2x2x18x16x32xf32, #tpu.memory_space<vmem>>, vector<1x1x16x16x32xf32>
    %70 = vector.shape_cast %69 : vector<1x1x16x16x32xf32> to vector<16x16x32xf32>
    %71 = vector.shape_cast %70 : vector<16x16x32xf32> to vector<256x32xf32>
    %72 = arith.truncf %71 : vector<256x32xf32> to vector<256x32xbf16>
    %c0_85 = arith.constant 0 : index
    %c5 = arith.constant 5 : index
    %c0_86 = arith.constant 0 : index
    %c0_87 = arith.constant 0 : index
    %73 = vector.load %arg2[%c0_85, %c5, %c0_86, %c0_87] : memref<1x9x32x32xbf16, #tpu.memory_space<vmem>>, vector<1x1x32x32xbf16>
    %74 = vector.shape_cast %73 : vector<1x1x32x32xbf16> to vector<32x32xbf16>
    %cst_88 = arith.constant dense<0.000000e+00> : vector<256x32xf32>
    %75 = tpu.matmul %72, %74, %cst_88 {dimension_numbers = #tpu.dot_dimension_numbers<[1], [0], [0], [1], [0, 0, 1, 1], [], []>} : vector<256x32xbf16>, vector<32x32xbf16>, vector<256x32xf32> -> vector<256x32xf32>
    %76 = arith.addf %68, %75 : vector<256x32xf32>
    %c0_89 = arith.constant 0 : index
    %c0_90 = arith.constant 0 : index
    %c2_91 = arith.constant 2 : index
    %c0_92 = arith.constant 0 : index
    %c0_93 = arith.constant 0 : index
    %77 = vector.load %arg7[%c0_89, %c0_90, %c2_91, %c0_92, %c0_93] : memref<2x2x18x16x32xf32, #tpu.memory_space<vmem>>, vector<1x1x16x16x32xf32>
    %78 = vector.shape_cast %77 : vector<1x1x16x16x32xf32> to vector<16x16x32xf32>
    %79 = vector.shape_cast %78 : vector<16x16x32xf32> to vector<256x32xf32>
    %80 = arith.truncf %79 : vector<256x32xf32> to vector<256x32xbf16>
    %c0_94 = arith.constant 0 : index
    %c6 = arith.constant 6 : index
    %c0_95 = arith.constant 0 : index
    %c0_96 = arith.constant 0 : index
    %81 = vector.load %arg2[%c0_94, %c6, %c0_95, %c0_96] : memref<1x9x32x32xbf16, #tpu.memory_space<vmem>>, vector<1x1x32x32xbf16>
    %82 = vector.shape_cast %81 : vector<1x1x32x32xbf16> to vector<32x32xbf16>
    %cst_97 = arith.constant dense<0.000000e+00> : vector<256x32xf32>
    %83 = tpu.matmul %80, %82, %cst_97 {dimension_numbers = #tpu.dot_dimension_numbers<[1], [0], [0], [1], [0, 0, 1, 1], [], []>} : vector<256x32xbf16>, vector<32x32xbf16>, vector<256x32xf32> -> vector<256x32xf32>
    %84 = arith.addf %76, %83 : vector<256x32xf32>
    %c0_98 = arith.constant 0 : index
    %c2_99 = arith.constant 2 : index
    %c8_100 = arith.constant 8 : index
    %c0_101 = arith.constant 0 : index
    %85 = vector.load %arg6[%c0_98, %c2_99, %c8_100, %c0_101] : memref<2x18x32x32xf32, #tpu.memory_space<vmem>>, vector<1x16x16x32xf32>
    %86 = vector.shape_cast %85 : vector<1x16x16x32xf32> to vector<16x16x32xf32>
    %87 = vector.shape_cast %86 : vector<16x16x32xf32> to vector<256x32xf32>
    %88 = arith.truncf %87 : vector<256x32xf32> to vector<256x32xbf16>
    %c0_102 = arith.constant 0 : index
    %c7_103 = arith.constant 7 : index
    %c0_104 = arith.constant 0 : index
    %c0_105 = arith.constant 0 : index
    %89 = vector.load %arg2[%c0_102, %c7_103, %c0_104, %c0_105] : memref<1x9x32x32xbf16, #tpu.memory_space<vmem>>, vector<1x1x32x32xbf16>
    %90 = vector.shape_cast %89 : vector<1x1x32x32xbf16> to vector<32x32xbf16>
    %cst_106 = arith.constant dense<0.000000e+00> : vector<256x32xf32>
    %91 = tpu.matmul %88, %90, %cst_106 {dimension_numbers = #tpu.dot_dimension_numbers<[1], [0], [0], [1], [0, 0, 1, 1], [], []>} : vector<256x32xbf16>, vector<32x32xbf16>, vector<256x32xf32> -> vector<256x32xf32>
    %92 = arith.addf %84, %91 : vector<256x32xf32>
    %c1_107 = arith.constant 1 : index
    %c0_108 = arith.constant 0 : index
    %c2_109 = arith.constant 2 : index
    %c0_110 = arith.constant 0 : index
    %c0_111 = arith.constant 0 : index
    %93 = vector.load %arg7[%c1_107, %c0_108, %c2_109, %c0_110, %c0_111] : memref<2x2x18x16x32xf32, #tpu.memory_space<vmem>>, vector<1x1x16x16x32xf32>
    %94 = vector.shape_cast %93 : vector<1x1x16x16x32xf32> to vector<16x16x32xf32>
    %95 = vector.shape_cast %94 : vector<16x16x32xf32> to vector<256x32xf32>
    %96 = arith.truncf %95 : vector<256x32xf32> to vector<256x32xbf16>
    %c0_112 = arith.constant 0 : index
    %c8_113 = arith.constant 8 : index
    %c0_114 = arith.constant 0 : index
    %c0_115 = arith.constant 0 : index
    %97 = vector.load %arg2[%c0_112, %c8_113, %c0_114, %c0_115] : memref<1x9x32x32xbf16, #tpu.memory_space<vmem>>, vector<1x1x32x32xbf16>
    %98 = vector.shape_cast %97 : vector<1x1x32x32xbf16> to vector<32x32xbf16>
    %cst_116 = arith.constant dense<0.000000e+00> : vector<256x32xf32>
    %99 = tpu.matmul %96, %98, %cst_116 {dimension_numbers = #tpu.dot_dimension_numbers<[1], [0], [0], [1], [0, 0, 1, 1], [], []>} : vector<256x32xbf16>, vector<32x32xbf16>, vector<256x32xf32> -> vector<256x32xf32>
    %100 = arith.addf %92, %99 : vector<256x32xf32>
    %cst_117 = arith.constant dense<0.000000e+00> : vector<32xf32>
    %101 = vector.multi_reduction <add>, %100, %cst_117 [0] : vector<256x32xf32> to vector<32xf32>
    %102 = vector.shape_cast %101 : vector<32xf32> to vector<1x32xf32>
    %103 = arith.addf %26, %102 : vector<1x32xf32>
    %104 = arith.mulf %100, %100 : vector<256x32xf32>
    %cst_118 = arith.constant dense<0.000000e+00> : vector<32xf32>
    %105 = vector.multi_reduction <add>, %104, %cst_118 [0] : vector<256x32xf32> to vector<32xf32>
    %106 = vector.shape_cast %105 : vector<32xf32> to vector<1x32xf32>
    %107 = arith.addf %27, %106 : vector<1x32xf32>
    %c0_119 = arith.constant 0 : index
    %c0_120 = arith.constant 0 : index
    %108 = vector.load %arg8[%c0_119, %c0_120] : memref<512x32xf32, #tpu.memory_space<vmem>>, vector<256x32xf32>
    tpu.vector_store %arg8[%c0_119, %c0_120], %100 {strides = array<i32>} : memref<512x32xf32, #tpu.memory_space<vmem>>, vector<256x32xf32>,
    %cst_121 = arith.constant 0.000000e+00 : f32
    %109 = vector.broadcast %cst_121 : f32 to vector<256x32xf32>
    %c0_122 = arith.constant 0 : index
    %c1_123 = arith.constant 1 : index
    %c0_124 = arith.constant 0 : index
    %c0_125 = arith.constant 0 : index
    %c0_126 = arith.constant 0 : index
    %110 = vector.load %arg7[%c0_122, %c1_123, %c0_124, %c0_125, %c0_126] : memref<2x2x18x16x32xf32, #tpu.memory_space<vmem>>, vector<1x1x16x16x32xf32>
    %111 = vector.shape_cast %110 : vector<1x1x16x16x32xf32> to vector<16x16x32xf32>
    %112 = vector.shape_cast %111 : vector<16x16x32xf32> to vector<256x32xf32>
    %113 = arith.truncf %112 : vector<256x32xf32> to vector<256x32xbf16>
    %c0_127 = arith.constant 0 : index
    %c0_128 = arith.constant 0 : index
    %c0_129 = arith.constant 0 : index
    %c0_130 = arith.constant 0 : index
    %114 = vector.load %arg2[%c0_127, %c0_128, %c0_129, %c0_130] : memref<1x9x32x32xbf16, #tpu.memory_space<vmem>>, vector<1x1x32x32xbf16>
    %115 = vector.shape_cast %114 : vector<1x1x32x32xbf16> to vector<32x32xbf16>
    %cst_131 = arith.constant dense<0.000000e+00> : vector<256x32xf32>
    %116 = tpu.matmul %113, %115, %cst_131 {dimension_numbers = #tpu.dot_dimension_numbers<[1], [0], [0], [1], [0, 0, 1, 1], [], []>} : vector<256x32xbf16>, vector<32x32xbf16>, vector<256x32xf32> -> vector<256x32xf32>
    %117 = arith.addf %109, %116 : vector<256x32xf32>
    %c1_132 = arith.constant 1 : index
    %c0_133 = arith.constant 0 : index
    %c8_134 = arith.constant 8 : index
    %c0_135 = arith.constant 0 : index
    %118 = vector.load %arg6[%c1_132, %c0_133, %c8_134, %c0_135] : memref<2x18x32x32xf32, #tpu.memory_space<vmem>>, vector<1x16x16x32xf32>
    %119 = vector.shape_cast %118 : vector<1x16x16x32xf32> to vector<16x16x32xf32>
    %120 = vector.shape_cast %119 : vector<16x16x32xf32> to vector<256x32xf32>
    %121 = arith.truncf %120 : vector<256x32xf32> to vector<256x32xbf16>
    %c0_136 = arith.constant 0 : index
    %c1_137 = arith.constant 1 : index
    %c0_138 = arith.constant 0 : index
    %c0_139 = arith.constant 0 : index
    %122 = vector.load %arg2[%c0_136, %c1_137, %c0_138, %c0_139] : memref<1x9x32x32xbf16, #tpu.memory_space<vmem>>, vector<1x1x32x32xbf16>
    %123 = vector.shape_cast %122 : vector<1x1x32x32xbf16> to vector<32x32xbf16>
    %cst_140 = arith.constant dense<0.000000e+00> : vector<256x32xf32>
    %124 = tpu.matmul %121, %123, %cst_140 {dimension_numbers = #tpu.dot_dimension_numbers<[1], [0], [0], [1], [0, 0, 1, 1], [], []>} : vector<256x32xbf16>, vector<32x32xbf16>, vector<256x32xf32> -> vector<256x32xf32>
    %125 = arith.addf %117, %124 : vector<256x32xf32>
    %c1_141 = arith.constant 1 : index
    %c1_142 = arith.constant 1 : index
    %c0_143 = arith.constant 0 : index
    %c0_144 = arith.constant 0 : index
    %c0_145 = arith.constant 0 : index
    %126 = vector.load %arg7[%c1_141, %c1_142, %c0_143, %c0_144, %c0_145] : memref<2x2x18x16x32xf32, #tpu.memory_space<vmem>>, vector<1x1x16x16x32xf32>
    %127 = vector.shape_cast %126 : vector<1x1x16x16x32xf32> to vector<16x16x32xf32>
    %128 = vector.shape_cast %127 : vector<16x16x32xf32> to vector<256x32xf32>
    %129 = arith.truncf %128 : vector<256x32xf32> to vector<256x32xbf16>
    %c0_146 = arith.constant 0 : index
    %c2_147 = arith.constant 2 : index
    %c0_148 = arith.constant 0 : index
    %c0_149 = arith.constant 0 : index
    %130 = vector.load %arg2[%c0_146, %c2_147, %c0_148, %c0_149] : memref<1x9x32x32xbf16, #tpu.memory_space<vmem>>, vector<1x1x32x32xbf16>
    %131 = vector.shape_cast %130 : vector<1x1x32x32xbf16> to vector<32x32xbf16>
    %cst_150 = arith.constant dense<0.000000e+00> : vector<256x32xf32>
    %132 = tpu.matmul %129, %131, %cst_150 {dimension_numbers = #tpu.dot_dimension_numbers<[1], [0], [0], [1], [0, 0, 1, 1], [], []>} : vector<256x32xbf16>, vector<32x32xbf16>, vector<256x32xf32> -> vector<256x32xf32>
    %133 = arith.addf %125, %132 : vector<256x32xf32>
    %c0_151 = arith.constant 0 : index
    %c1_152 = arith.constant 1 : index
    %c1_153 = arith.constant 1 : index
    %c0_154 = arith.constant 0 : index
    %c0_155 = arith.constant 0 : index
    %134 = vector.load %arg7[%c0_151, %c1_152, %c1_153, %c0_154, %c0_155] : memref<2x2x18x16x32xf32, #tpu.memory_space<vmem>>, vector<1x1x16x16x32xf32>
    %135 = vector.shape_cast %134 : vector<1x1x16x16x32xf32> to vector<16x16x32xf32>
    %136 = vector.shape_cast %135 : vector<16x16x32xf32> to vector<256x32xf32>
    %137 = arith.truncf %136 : vector<256x32xf32> to vector<256x32xbf16>
    %c0_156 = arith.constant 0 : index
    %c3_157 = arith.constant 3 : index
    %c0_158 = arith.constant 0 : index
    %c0_159 = arith.constant 0 : index
    %138 = vector.load %arg2[%c0_156, %c3_157, %c0_158, %c0_159] : memref<1x9x32x32xbf16, #tpu.memory_space<vmem>>, vector<1x1x32x32xbf16>
    %139 = vector.shape_cast %138 : vector<1x1x32x32xbf16> to vector<32x32xbf16>
    %cst_160 = arith.constant dense<0.000000e+00> : vector<256x32xf32>
    %140 = tpu.matmul %137, %139, %cst_160 {dimension_numbers = #tpu.dot_dimension_numbers<[1], [0], [0], [1], [0, 0, 1, 1], [], []>} : vector<256x32xbf16>, vector<32x32xbf16>, vector<256x32xf32> -> vector<256x32xf32>
    %141 = arith.addf %133, %140 : vector<256x32xf32>
    %c1_161 = arith.constant 1 : index
    %c1_162 = arith.constant 1 : index
    %c8_163 = arith.constant 8 : index
    %c0_164 = arith.constant 0 : index
    %142 = vector.load %arg6[%c1_161, %c1_162, %c8_163, %c0_164] : memref<2x18x32x32xf32, #tpu.memory_space<vmem>>, vector<1x16x16x32xf32>
    %143 = vector.shape_cast %142 : vector<1x16x16x32xf32> to vector<16x16x32xf32>
    %144 = vector.shape_cast %143 : vector<16x16x32xf32> to vector<256x32xf32>
    %145 = arith.truncf %144 : vector<256x32xf32> to vector<256x32xbf16>
    %c0_165 = arith.constant 0 : index
    %c4_166 = arith.constant 4 : index
    %c0_167 = arith.constant 0 : index
    %c0_168 = arith.constant 0 : index
    %146 = vector.load %arg2[%c0_165, %c4_166, %c0_167, %c0_168] : memref<1x9x32x32xbf16, #tpu.memory_space<vmem>>, vector<1x1x32x32xbf16>
    %147 = vector.shape_cast %146 : vector<1x1x32x32xbf16> to vector<32x32xbf16>
    %cst_169 = arith.constant dense<0.000000e+00> : vector<256x32xf32>
    %148 = tpu.matmul %145, %147, %cst_169 {dimension_numbers = #tpu.dot_dimension_numbers<[1], [0], [0], [1], [0, 0, 1, 1], [], []>} : vector<256x32xbf16>, vector<32x32xbf16>, vector<256x32xf32> -> vector<256x32xf32>
    %149 = arith.addf %141, %148 : vector<256x32xf32>
    %c1_170 = arith.constant 1 : index
    %c1_171 = arith.constant 1 : index
    %c1_172 = arith.constant 1 : index
    %c0_173 = arith.constant 0 : index
    %c0_174 = arith.constant 0 : index
    %150 = vector.load %arg7[%c1_170, %c1_171, %c1_172, %c0_173, %c0_174] : memref<2x2x18x16x32xf32, #tpu.memory_space<vmem>>, vector<1x1x16x16x32xf32>
    %151 = vector.shape_cast %150 : vector<1x1x16x16x32xf32> to vector<16x16x32xf32>
    %152 = vector.shape_cast %151 : vector<16x16x32xf32> to vector<256x32xf32>
    %153 = arith.truncf %152 : vector<256x32xf32> to vector<256x32xbf16>
    %c0_175 = arith.constant 0 : index
    %c5_176 = arith.constant 5 : index
    %c0_177 = arith.constant 0 : index
    %c0_178 = arith.constant 0 : index
    %154 = vector.load %arg2[%c0_175, %c5_176, %c0_177, %c0_178] : memref<1x9x32x32xbf16, #tpu.memory_space<vmem>>, vector<1x1x32x32xbf16>
    %155 = vector.shape_cast %154 : vector<1x1x32x32xbf16> to vector<32x32xbf16>
    %cst_179 = arith.constant dense<0.000000e+00> : vector<256x32xf32>
    %156 = tpu.matmul %153, %155, %cst_179 {dimension_numbers = #tpu.dot_dimension_numbers<[1], [0], [0], [1], [0, 0, 1, 1], [], []>} : vector<256x32xbf16>, vector<32x32xbf16>, vector<256x32xf32> -> vector<256x32xf32>
    %157 = arith.addf %149, %156 : vector<256x32xf32>
    %c0_180 = arith.constant 0 : index
    %c1_181 = arith.constant 1 : index
    %c2_182 = arith.constant 2 : index
    %c0_183 = arith.constant 0 : index
    %c0_184 = arith.constant 0 : index
    %158 = vector.load %arg7[%c0_180, %c1_181, %c2_182, %c0_183, %c0_184] : memref<2x2x18x16x32xf32, #tpu.memory_space<vmem>>, vector<1x1x16x16x32xf32>
    %159 = vector.shape_cast %158 : vector<1x1x16x16x32xf32> to vector<16x16x32xf32>
    %160 = vector.shape_cast %159 : vector<16x16x32xf32> to vector<256x32xf32>
    %161 = arith.truncf %160 : vector<256x32xf32> to vector<256x32xbf16>
    %c0_185 = arith.constant 0 : index
    %c6_186 = arith.constant 6 : index
    %c0_187 = arith.constant 0 : index
    %c0_188 = arith.constant 0 : index
    %162 = vector.load %arg2[%c0_185, %c6_186, %c0_187, %c0_188] : memref<1x9x32x32xbf16, #tpu.memory_space<vmem>>, vector<1x1x32x32xbf16>
    %163 = vector.shape_cast %162 : vector<1x1x32x32xbf16> to vector<32x32xbf16>
    %cst_189 = arith.constant dense<0.000000e+00> : vector<256x32xf32>
    %164 = tpu.matmul %161, %163, %cst_189 {dimension_numbers = #tpu.dot_dimension_numbers<[1], [0], [0], [1], [0, 0, 1, 1], [], []>} : vector<256x32xbf16>, vector<32x32xbf16>, vector<256x32xf32> -> vector<256x32xf32>
    %165 = arith.addf %157, %164 : vector<256x32xf32>
    %c1_190 = arith.constant 1 : index
    %c2_191 = arith.constant 2 : index
    %c8_192 = arith.constant 8 : index
    %c0_193 = arith.constant 0 : index
    %166 = vector.load %arg6[%c1_190, %c2_191, %c8_192, %c0_193] : memref<2x18x32x32xf32, #tpu.memory_space<vmem>>, vector<1x16x16x32xf32>
    %167 = vector.shape_cast %166 : vector<1x16x16x32xf32> to vector<16x16x32xf32>
    %168 = vector.shape_cast %167 : vector<16x16x32xf32> to vector<256x32xf32>
    %169 = arith.truncf %168 : vector<256x32xf32> to vector<256x32xbf16>
    %c0_194 = arith.constant 0 : index
    %c7_195 = arith.constant 7 : index
    %c0_196 = arith.constant 0 : index
    %c0_197 = arith.constant 0 : index
    %170 = vector.load %arg2[%c0_194, %c7_195, %c0_196, %c0_197] : memref<1x9x32x32xbf16, #tpu.memory_space<vmem>>, vector<1x1x32x32xbf16>
    %171 = vector.shape_cast %170 : vector<1x1x32x32xbf16> to vector<32x32xbf16>
    %cst_198 = arith.constant dense<0.000000e+00> : vector<256x32xf32>
    %172 = tpu.matmul %169, %171, %cst_198 {dimension_numbers = #tpu.dot_dimension_numbers<[1], [0], [0], [1], [0, 0, 1, 1], [], []>} : vector<256x32xbf16>, vector<32x32xbf16>, vector<256x32xf32> -> vector<256x32xf32>
    %173 = arith.addf %165, %172 : vector<256x32xf32>
    %c1_199 = arith.constant 1 : index
    %c1_200 = arith.constant 1 : index
    %c2_201 = arith.constant 2 : index
    %c0_202 = arith.constant 0 : index
    %c0_203 = arith.constant 0 : index
    %174 = vector.load %arg7[%c1_199, %c1_200, %c2_201, %c0_202, %c0_203] : memref<2x2x18x16x32xf32, #tpu.memory_space<vmem>>, vector<1x1x16x16x32xf32>
    %175 = vector.shape_cast %174 : vector<1x1x16x16x32xf32> to vector<16x16x32xf32>
    %176 = vector.shape_cast %175 : vector<16x16x32xf32> to vector<256x32xf32>
    %177 = arith.truncf %176 : vector<256x32xf32> to vector<256x32xbf16>
    %c0_204 = arith.constant 0 : index
    %c8_205 = arith.constant 8 : index
    %c0_206 = arith.constant 0 : index
    %c0_207 = arith.constant 0 : index
    %178 = vector.load %arg2[%c0_204, %c8_205, %c0_206, %c0_207] : memref<1x9x32x32xbf16, #tpu.memory_space<vmem>>, vector<1x1x32x32xbf16>
    %179 = vector.shape_cast %178 : vector<1x1x32x32xbf16> to vector<32x32xbf16>
    %cst_208 = arith.constant dense<0.000000e+00> : vector<256x32xf32>
    %180 = tpu.matmul %177, %179, %cst_208 {dimension_numbers = #tpu.dot_dimension_numbers<[1], [0], [0], [1], [0, 0, 1, 1], [], []>} : vector<256x32xbf16>, vector<32x32xbf16>, vector<256x32xf32> -> vector<256x32xf32>
    %181 = arith.addf %173, %180 : vector<256x32xf32>
    %cst_209 = arith.constant dense<0.000000e+00> : vector<32xf32>
    %182 = vector.multi_reduction <add>, %181, %cst_209 [0] : vector<256x32xf32> to vector<32xf32>
    %183 = vector.shape_cast %182 : vector<32xf32> to vector<1x32xf32>
    %184 = arith.addf %103, %183 : vector<1x32xf32>
    %185 = arith.mulf %181, %181 : vector<256x32xf32>
    %cst_210 = arith.constant dense<0.000000e+00> : vector<32xf32>
    %186 = vector.multi_reduction <add>, %185, %cst_210 [0] : vector<256x32xf32> to vector<32xf32>
    %187 = vector.shape_cast %186 : vector<32xf32> to vector<1x32xf32>
    %188 = arith.addf %107, %187 : vector<1x32xf32>
    %c256 = arith.constant 256 : index
    %c0_211 = arith.constant 0 : index
    %189 = vector.load %arg8[%c256, %c0_211] : memref<512x32xf32, #tpu.memory_space<vmem>>, vector<256x32xf32>
    tpu.vector_store %arg8[%c256, %c0_211], %181 {strides = array<i32>} : memref<512x32xf32, #tpu.memory_space<vmem>>, vector<256x32xf32>,
    %cst_212 = arith.constant 0.001953125 : f32
    %190 = vector.broadcast %cst_212 : f32 to vector<1x32xf32>
    %191 = arith.mulf %184, %190 : vector<1x32xf32>
    %cst_213 = arith.constant 0.001953125 : f32
    %192 = vector.broadcast %cst_213 : f32 to vector<1x32xf32>
    %193 = arith.mulf %188, %192 : vector<1x32xf32>
    %194 = arith.mulf %191, %191 : vector<1x32xf32>
    %195 = arith.subf %193, %194 : vector<1x32xf32>
    %c0_214 = arith.constant 0 : index
    %c0_215 = arith.constant 0 : index
    %c0_216 = arith.constant 0 : index
    %196 = vector.load %arg3[%c0_214, %c0_215, %c0_216] : memref<1x1x32xf32, #tpu.memory_space<vmem>>, vector<1x1x32xf32>
    %197 = vector.shape_cast %196 : vector<1x1x32xf32> to vector<1x32xf32>
    %cst_217 = arith.constant 9.99999974E-6 : f32
    %198 = vector.broadcast %cst_217 : f32 to vector<1x32xf32>
    %199 = arith.addf %195, %198 : vector<1x32xf32>
    %200 = math.rsqrt %199 : vector<1x32xf32>
    %201 = arith.mulf %197, %200 : vector<1x32xf32>
    %c0_218 = arith.constant 0 : index
    %c0_219 = arith.constant 0 : index
    %c0_220 = arith.constant 0 : index
    %202 = vector.load %arg4[%c0_218, %c0_219, %c0_220] : memref<1x1x32xf32, #tpu.memory_space<vmem>>, vector<1x1x32xf32>
    %203 = vector.shape_cast %202 : vector<1x1x32xf32> to vector<1x32xf32>
    %204 = arith.mulf %191, %201 : vector<1x32xf32>
    %205 = arith.subf %203, %204 : vector<1x32xf32>
    %c0_221 = arith.constant 0 : index
    %c0_222 = arith.constant 0 : index
    %206 = vector.load %arg8[%c0_221, %c0_222] : memref<512x32xf32, #tpu.memory_space<vmem>>, vector<256x32xf32>
    %207 = vector.broadcast %201 : vector<1x32xf32> to vector<256x32xf32>
    %208 = arith.mulf %206, %207 : vector<256x32xf32>
    %209 = vector.broadcast %205 : vector<1x32xf32> to vector<256x32xf32>
    %210 = arith.addf %208, %209 : vector<256x32xf32>
    %cst_223 = arith.constant 0.000000e+00 : f32
    %211 = vector.broadcast %cst_223 : f32 to vector<256x32xf32>
    %212 = arith.maximumf %210, %211 : vector<256x32xf32>
    %213 = vector.shape_cast %212 : vector<256x32xf32> to vector<16x16x32xf32>
    %c0_224 = arith.constant 0 : index
    %c1_225 = arith.constant 1 : index
    %c8_226 = arith.constant 8 : index
    %c0_227 = arith.constant 0 : index
    %214 = vector.load %arg6[%c0_224, %c1_225, %c8_226, %c0_227] : memref<2x18x32x32xf32, #tpu.memory_space<vmem>>, vector<1x16x16x32xf32>
    %215 = vector.shape_cast %214 : vector<1x16x16x32xf32> to vector<16x16x32xf32>
    %216 = vector.shape_cast %213 : vector<16x16x32xf32> to vector<1x16x16x32xf32>
    tpu.vector_store %arg6[%c0_224, %c1_225, %c8_226, %c0_227], %216 {strides = array<i32>} : memref<2x18x32x32xf32, #tpu.memory_space<vmem>>, vector<1x16x16x32xf32>,
    %c256_228 = arith.constant 256 : index
    %c0_229 = arith.constant 0 : index
    %217 = vector.load %arg8[%c256_228, %c0_229] : memref<512x32xf32, #tpu.memory_space<vmem>>, vector<256x32xf32>
    %218 = vector.broadcast %201 : vector<1x32xf32> to vector<256x32xf32>
    %219 = arith.mulf %217, %218 : vector<256x32xf32>
    %220 = vector.broadcast %205 : vector<1x32xf32> to vector<256x32xf32>
    %221 = arith.addf %219, %220 : vector<256x32xf32>
    %cst_230 = arith.constant 0.000000e+00 : f32
    %222 = vector.broadcast %cst_230 : f32 to vector<256x32xf32>
    %223 = arith.maximumf %221, %222 : vector<256x32xf32>
    %224 = vector.shape_cast %223 : vector<256x32xf32> to vector<16x16x32xf32>
    %c1_231 = arith.constant 1 : index
    %c1_232 = arith.constant 1 : index
    %c8_233 = arith.constant 8 : index
    %c0_234 = arith.constant 0 : index
    %225 = vector.load %arg6[%c1_231, %c1_232, %c8_233, %c0_234] : memref<2x18x32x32xf32, #tpu.memory_space<vmem>>, vector<1x16x16x32xf32>
    %226 = vector.shape_cast %225 : vector<1x16x16x32xf32> to vector<16x16x32xf32>
    %227 = vector.shape_cast %224 : vector<16x16x32xf32> to vector<1x16x16x32xf32>
    tpu.vector_store %arg6[%c1_231, %c1_232, %c8_233, %c0_234], %227 {strides = array<i32>} : memref<2x18x32x32xf32, #tpu.memory_space<vmem>>, vector<1x16x16x32xf32>,
    %c5_i32 = arith.constant 5 : i32
    %228 = arith.cmpi eq, %arg0, %c5_i32 : i32
    %229 = arith.extui %228 : i1 to i32
    %c0_i32_235 = arith.constant 0 : i32
    %230 = arith.cmpi ne, %229, %c0_i32_235 : i32
    scf.if %230 {
      %c0_237 = arith.constant 0 : index
      %c1_238 = arith.constant 1 : index
      %c8_239 = arith.constant 8 : index
      %c0_240 = arith.constant 0 : index
      %234 = vector.load %arg6[%c0_237, %c1_238, %c8_239, %c0_240] : memref<2x18x32x32xf32, #tpu.memory_space<vmem>>, vector<1x16x16x32xf32>
      %235 = vector.shape_cast %234 : vector<1x16x16x32xf32> to vector<16x16x32xf32>
      %c0_241 = arith.constant 0 : index
      %c0_242 = arith.constant 0 : index
      %c0_243 = arith.constant 0 : index
      %c0_244 = arith.constant 0 : index
      %236 = vector.load %arg9[%c0_241, %c0_242, %c0_243, %c0_244] : memref<2x16x16x32xf32, #tpu.memory_space<vmem>>, vector<1x16x16x32xf32>
      %237 = vector.shape_cast %236 : vector<1x16x16x32xf32> to vector<16x16x32xf32>
      %238 = arith.addf %235, %237 : vector<16x16x32xf32>
      %c0_245 = arith.constant 0 : index
      %c1_246 = arith.constant 1 : index
      %c8_247 = arith.constant 8 : index
      %c0_248 = arith.constant 0 : index
      %239 = vector.load %arg6[%c0_245, %c1_246, %c8_247, %c0_248] : memref<2x18x32x32xf32, #tpu.memory_space<vmem>>, vector<1x16x16x32xf32>
      %240 = vector.shape_cast %239 : vector<1x16x16x32xf32> to vector<16x16x32xf32>
      %241 = vector.shape_cast %238 : vector<16x16x32xf32> to vector<1x16x16x32xf32>
      tpu.vector_store %arg6[%c0_245, %c1_246, %c8_247, %c0_248], %241 {strides = array<i32>} : memref<2x18x32x32xf32, #tpu.memory_space<vmem>>, vector<1x16x16x32xf32>,
      %c1_249 = arith.constant 1 : index
      %c1_250 = arith.constant 1 : index
      %c8_251 = arith.constant 8 : index
      %c0_252 = arith.constant 0 : index
      %242 = vector.load %arg6[%c1_249, %c1_250, %c8_251, %c0_252] : memref<2x18x32x32xf32, #tpu.memory_space<vmem>>, vector<1x16x16x32xf32>
      %243 = vector.shape_cast %242 : vector<1x16x16x32xf32> to vector<16x16x32xf32>
      %c1_253 = arith.constant 1 : index
      %c0_254 = arith.constant 0 : index
      %c0_255 = arith.constant 0 : index
      %c0_256 = arith.constant 0 : index
      %244 = vector.load %arg9[%c1_253, %c0_254, %c0_255, %c0_256] : memref<2x16x16x32xf32, #tpu.memory_space<vmem>>, vector<1x16x16x32xf32>
      %245 = vector.shape_cast %244 : vector<1x16x16x32xf32> to vector<16x16x32xf32>
      %246 = arith.addf %243, %245 : vector<16x16x32xf32>
      %c1_257 = arith.constant 1 : index
      %c1_258 = arith.constant 1 : index
      %c8_259 = arith.constant 8 : index
      %c0_260 = arith.constant 0 : index
      %247 = vector.load %arg6[%c1_257, %c1_258, %c8_259, %c0_260] : memref<2x18x32x32xf32, #tpu.memory_space<vmem>>, vector<1x16x16x32xf32>
      %248 = vector.shape_cast %247 : vector<1x16x16x32xf32> to vector<16x16x32xf32>
      %249 = vector.shape_cast %246 : vector<16x16x32xf32> to vector<1x16x16x32xf32>
      tpu.vector_store %arg6[%c1_257, %c1_258, %c8_259, %c0_260], %249 {strides = array<i32>} : memref<2x18x32x32xf32, #tpu.memory_space<vmem>>, vector<1x16x16x32xf32>,
    } else {
    }
    %c8_i32 = arith.constant 8 : i32
    %231 = arith.cmpi eq, %arg0, %c8_i32 : i32
    %232 = arith.extui %231 : i1 to i32
    %c0_i32_236 = arith.constant 0 : i32
    %233 = arith.cmpi ne, %232, %c0_i32_236 : i32
    scf.if %233 {
      %c0_237 = arith.constant 0 : index
      %c1_238 = arith.constant 1 : index
      %c8_239 = arith.constant 8 : index
      %c0_240 = arith.constant 0 : index
      %234 = vector.load %arg6[%c0_237, %c1_238, %c8_239, %c0_240] : memref<2x18x32x32xf32, #tpu.memory_space<vmem>>, vector<1x16x16x32xf32>
      %235 = vector.shape_cast %234 : vector<1x16x16x32xf32> to vector<16x16x32xf32>
      %c0_241 = arith.constant 0 : index
      %c0_242 = arith.constant 0 : index
      %c0_243 = arith.constant 0 : index
      %c0_244 = arith.constant 0 : index
      %236 = vector.load %arg5[%c0_241, %c0_242, %c0_243, %c0_244] : memref<2x16x16x32xf32, #tpu.memory_space<vmem>>, vector<1x16x16x32xf32>
      %237 = vector.shape_cast %236 : vector<1x16x16x32xf32> to vector<16x16x32xf32>
      %238 = vector.shape_cast %235 : vector<16x16x32xf32> to vector<1x16x16x32xf32>
      tpu.vector_store %arg5[%c0_241, %c0_242, %c0_243, %c0_244], %238 {strides = array<i32>} : memref<2x16x16x32xf32, #tpu.memory_space<vmem>>, vector<1x16x16x32xf32>,
      %c1_245 = arith.constant 1 : index
      %c1_246 = arith.constant 1 : index
      %c8_247 = arith.constant 8 : index
      %c0_248 = arith.constant 0 : index
      %239 = vector.load %arg6[%c1_245, %c1_246, %c8_247, %c0_248] : memref<2x18x32x32xf32, #tpu.memory_space<vmem>>, vector<1x16x16x32xf32>
      %240 = vector.shape_cast %239 : vector<1x16x16x32xf32> to vector<16x16x32xf32>
      %c1_249 = arith.constant 1 : index
      %c0_250 = arith.constant 0 : index
      %c0_251 = arith.constant 0 : index
      %c0_252 = arith.constant 0 : index
      %241 = vector.load %arg5[%c1_249, %c0_250, %c0_251, %c0_252] : memref<2x16x16x32xf32, #tpu.memory_space<vmem>>, vector<1x16x16x32xf32>
      %242 = vector.shape_cast %241 : vector<1x16x16x32xf32> to vector<16x16x32xf32>
      %243 = vector.shape_cast %240 : vector<16x16x32xf32> to vector<1x16x16x32xf32>
      tpu.vector_store %arg5[%c1_249, %c0_250, %c0_251, %c0_252], %243 {strides = array<i32>} : memref<2x16x16x32xf32, #tpu.memory_space<vmem>>, vector<1x16x16x32xf32>,
    } else {
    }
    return
  }
  func.func @transform_0(%arg0: i32) -> (i32, i32, i32, i32) {
    %c0_i32 = arith.constant 0 : i32
    %c0_i32_0 = arith.constant 0 : i32
    %c0_i32_1 = arith.constant 0 : i32
    %c0_i32_2 = arith.constant 0 : i32
    %c0_i32_3 = arith.constant 0 : i32
    return %c0_i32, %c0_i32_0, %c0_i32_1, %c0_i32_2 : i32, i32, i32, i32
  }
  func.func @transform_1(%arg0: i32) -> (i32, i32, i32, i32) {
    %c0_i32 = arith.constant 0 : i32
    %c0_i32_0 = arith.constant 0 : i32
    %c0_i32_1 = arith.constant 0 : i32
    %c0_i32_2 = arith.constant 0 : i32
    return %arg0, %c0_i32, %c0_i32_0, %c0_i32_1 : i32, i32, i32, i32
  }
  func.func @transform_2(%arg0: i32) -> (i32, i32, i32) {
    %c0_i32 = arith.constant 0 : i32
    %c0_i32_0 = arith.constant 0 : i32
    %c0_i32_1 = arith.constant 0 : i32
    return %arg0, %c0_i32, %c0_i32_0 : i32, i32, i32
  }
  func.func @transform_3(%arg0: i32) -> (i32, i32, i32) {
    %c0_i32 = arith.constant 0 : i32
    %c0_i32_0 = arith.constant 0 : i32
    %c0_i32_1 = arith.constant 0 : i32
    return %arg0, %c0_i32, %c0_i32_0 : i32, i32, i32
  }
  func.func @transform_4(%arg0: i32) -> (i32, i32, i32, i32) {
    %c0_i32 = arith.constant 0 : i32
    %c0_i32_0 = arith.constant 0 : i32
    %c0_i32_1 = arith.constant 0 : i32
    %c0_i32_2 = arith.constant 0 : i32
    %c0_i32_3 = arith.constant 0 : i32
    return %c0_i32, %c0_i32_0, %c0_i32_1, %c0_i32_2 : i32, i32, i32, i32
  }
}

</mosaic_0001>

<llo_original>
// kernel: bottleneck_stack_forward.1
$region0: #{bottleneck_stack_forward.1}
  #allocation0 [shape = 'u32[]', space=smem, size = 0x4, offset = 0x4, fixed_abs, tag = 'smem constant byte address 0x4 - core index']
  #allocation1 [shape = 'u32[144,128]{1,0:T(1,128)}', space=vmem, size = 0x12000, scoped, tag = 'internal scratch']
  #allocation2 [shape = 'f32[2,18,32,32]{3,2,1,0:T(8,128)}', space=vmem, size = 0x90000, scoped, tag = 'scratch operand']
  #allocation3 [shape = 'f32[2,2,18,16,32]{4,3,2,1,0:T(8,128)}', space=vmem, size = 0x90000, scoped, tag = 'scratch operand']
  #allocation4 [shape = 'f32[512,32]{1,0:T(8,128)}', space=vmem, size = 0x40000, scoped, tag = 'scratch operand']
  #allocation5 [shape = 'f32[2,16,16,32]{3,2,1,0:T(8,128)}', space=vmem, size = 0x40000, scoped, tag = 'scratch operand']
  %s0 = inlined_call_operand.vmem [shape: f32[2,16,16,32], index: 0, kind: input, shape index: {}]
  %s1 = inlined_call_operand.vmem [shape: bf16[9,9,32,32], index: 1, kind: input, shape index: {}]
  %s2 = inlined_call_operand.vmem [shape: f32[9,1,32], index: 2, kind: input, shape index: {}]
  %s3 = inlined_call_operand.vmem [shape: f32[9,1,32], index: 3, kind: input, shape index: {}]
  %s4 = inlined_call_operand.vmem [shape: f32[2,16,16,32], index: 4, kind: output, shape index: {}]
  %s5 = sld [smem:[#allocation0]]
  $region65: #{bottleneck_stack_forward.1} parent=0
    _
  %s7 = ssub.s32 1, %s5
  %s8 = scalar_select 0, %s7, %s5
  loop: start=0, step=1, limit=11
  $region2: #{bottleneck_stack_forward.1} parent=0 // loop_pre_header
    _
  $region3: #{bottleneck_stack_forward.1} parent=0 // loop_header
    %s10 = sphi 0, %s14
    %p11 = scmp.ge.s32.totalorder %s10, 11
    %s18 = sphi 0, %s18
    %s20 = sphi 0, %s18
    %s21 = sphi 0, %s20
    %s35 = sphi 0, %s21
    %s41 = sphi 0, %s43
    %s44 = sphi 0, %s41
    %s45 = sphi 0, %s44
    %s61 = sphi 0, %s45
    %s67 = sphi 0, %s69
    %s70 = sphi 0, %s67
    %s71 = sphi 0, %s70
    %s87 = sphi 0, %s71
    %s93 = sphi 0, %s95
    %s96 = sphi 0, %s93
    %s97 = sphi 0, %s96
    %s113 = sphi 0, %s97
    %s117 = sphi 0, %s117
    %s119 = sphi 0, %s117
    %s120 = sphi 0, %s119
    %s134 = sphi 0, %s120
  $region4: #{bottleneck_stack_forward.1} parent=0 // loop_header_branch
    %13 = sbr.rel (%p11) target = $region8
  $region5: #{bottleneck_stack_forward.1} parent=0 // loop_body
    %s15 = ssub.s32 %s10, 1
    %s16 = ssub.s32 %s10, 2
    %s17 = sadd.s32 %s10, 1
    %s19 = sadd.s32 %s18, 1
    %p22 = scmp.eq.s32.totalorder %s10, 8
    %p23 = scmp.ne.s32.totalorder %s18, %s20
    %p24 = scmp.eq.s32.totalorder %s10, 0
    %p25 = por %p23, %p24
    %p26 = scmp.ne.s32.totalorder %s18, %s20
    %p27 = scmp.eq.s32.totalorder %s15, 8
    %p28 = por %p26, %p27
    %p29 = scmp.ne.s32.totalorder %s20, %s21
    %p30 = scmp.eq.s32.totalorder %s15, 0
    %p31 = por %p29, %p30
    %p32 = scmp.ne.s32.totalorder %s20, %s21
    %p33 = scmp.eq.s32.totalorder %s16, 8
    %p34 = por %p32, %p33
    %p36 = scmp.ne.s32.totalorder %s21, %s35
    %p37 = scmp.eq.s32.totalorder %s16, 0
    %p38 = por %p36, %p37
    %s39 = ssub.s32 %s10, %s17
    %p40 = scmp.eq.s32.totalorder %s39, 0
    %s42 = sadd.s32 %s41, 1
    %s43 = scalar_select %p40, %s41, %s42
    %p46 = pneg %p40
    %p47 = scmp.eq.s32.totalorder %s10, 8
    %p48 = por %p46, %p47
    %p49 = scmp.ne.s32.totalorder %s41, %s44
    %p50 = scmp.eq.s32.totalorder %s10, 0
    %p51 = por %p49, %p50
    %p52 = scmp.ne.s32.totalorder %s41, %s44
    %p53 = scmp.eq.s32.totalorder %s15, 8
    %p54 = por %p52, %p53
    %p55 = scmp.ne.s32.totalorder %s44, %s45
    %p56 = scmp.eq.s32.totalorder %s15, 0
    %p57 = por %p55, %p56
    %p58 = scmp.ne.s32.totalorder %s44, %s45
    %p59 = scmp.eq.s32.totalorder %s16, 8
    %p60 = por %p58, %p59
    %p62 = scmp.ne.s32.totalorder %s45, %s61
    %p63 = scmp.eq.s32.totalorder %s16, 0
    %p64 = por %p62, %p63
    %s65 = ssub.s32 %s10, %s17
    %p66 = scmp.eq.s32.totalorder %s65, 0
    %s68 = sadd.s32 %s67, 1
    %s69 = scalar_select %p66, %s67, %s68
    %p72 = pneg %p66
    %p73 = scmp.eq.s32.totalorder %s10, 8
    %p74 = por %p72, %p73
    %p75 = scmp.ne.s32.totalorder %s67, %s70
    %p76 = scmp.eq.s32.totalorder %s10, 0
    %p77 = por %p75, %p76
    %p78 = scmp.ne.s32.totalorder %s67, %s70
    %p79 = scmp.eq.s32.totalorder %s15, 8
    %p80 = por %p78, %p79
    %p81 = scmp.ne.s32.totalorder %s70, %s71
    %p82 = scmp.eq.s32.totalorder %s15, 0
    %p83 = por %p81, %p82
    %p84 = scmp.ne.s32.totalorder %s70, %s71
    %p85 = scmp.eq.s32.totalorder %s16, 8
    %p86 = por %p84, %p85
    %p88 = scmp.ne.s32.totalorder %s71, %s87
    %p89 = scmp.eq.s32.totalorder %s16, 0
    %p90 = por %p88, %p89
    %s91 = ssub.s32 %s10, %s17
    %p92 = scmp.eq.s32.totalorder %s91, 0
    %s94 = sadd.s32 %s93, 1
    %s95 = scalar_select %p92, %s93, %s94
    %p98 = pneg %p92
    %p99 = scmp.eq.s32.totalorder %s10, 8
    %p100 = por %p98, %p99
    %p101 = scmp.ne.s32.totalorder %s93, %s96
    %p102 = scmp.eq.s32.totalorder %s10, 0
    %p103 = por %p101, %p102
    %p104 = scmp.ne.s32.totalorder %s93, %s96
    %p105 = scmp.eq.s32.totalorder %s15, 8
    %p106 = por %p104, %p105
    %p107 = scmp.ne.s32.totalorder %s96, %s97
    %p108 = scmp.eq.s32.totalorder %s15, 0
    %p109 = por %p107, %p108
    %p110 = scmp.ne.s32.totalorder %s96, %s97
    %p111 = scmp.eq.s32.totalorder %s16, 8
    %p112 = por %p110, %p111
    %p114 = scmp.ne.s32.totalorder %s97, %s113
    %p115 = scmp.eq.s32.totalorder %s16, 0
    %p116 = por %p114, %p115
    %s118 = sadd.s32 %s117, 1
    %p121 = scmp.eq.s32.totalorder %s10, 8
    %p122 = scmp.ne.s32.totalorder %s117, %s119
    %p123 = scmp.eq.s32.totalorder %s10, 0
    %p124 = por %p122, %p123
    %p125 = scmp.ne.s32.totalorder %s117, %s119
    %p126 = scmp.eq.s32.totalorder %s15, 8
    %p127 = por %p125, %p126
    %p128 = scmp.ne.s32.totalorder %s119, %s120
    %p129 = scmp.eq.s32.totalorder %s15, 0
    %p130 = por %p128, %p129
    %p131 = scmp.ne.s32.totalorder %s119, %s120
    %p132 = scmp.eq.s32.totalorder %s16, 8
    %p133 = por %p131, %p132
    %p135 = scmp.ne.s32.totalorder %s120, %s134
    %p136 = scmp.eq.s32.totalorder %s16, 0
    %p137 = por %p135, %p136
    %p138 = scmp.le.s32.totalorder 1, %s10
    %p139 = scmp.lt.s32.totalorder %s10, 10
    %p140 = pnand %p138, %p139
    %p141 = pneg %p140
    // Predicated region
    $region9: #{bottleneck_stack_forward.1} parent=5 // pred_check
      _
    $region10: #{bottleneck_stack_forward.1} parent=5 // pred_check_branch
      %143 = sbr.rel (%p140) target = $region12
    $region11: #{bottleneck_stack_forward.1} parent=5 // pred_region
      %s144 = ssub.s32 %s10, 1
      // Predicated region
      $region13: #{bottleneck_stack_forward.1} parent=11 // pred_check
        %p145 = pneg %p31
      $region14: #{bottleneck_stack_forward.1} parent=11 // pred_check_branch
        %147 = sbr.rel (%p145) target = $region16
      $region15: #{bottleneck_stack_forward.1} parent=11 // pred_region
        _
      $region16: #{bottleneck_stack_forward.1} parent=11 // pred_fallthru
        _
    $region12: #{bottleneck_stack_forward.1} parent=5 // pred_fallthru
      _
    %p148 = scmp.lt.s32.totalorder %s10, 9
    // Predicated region
    $region17: #{bottleneck_stack_forward.1} parent=5 // pred_check
      %p149 = pneg %p148
    $region18: #{bottleneck_stack_forward.1} parent=5 // pred_check_branch
      %151 = sbr.rel (%p149) target = $region20
    $region19: #{bottleneck_stack_forward.1} parent=5 // pred_region
      // Predicated region
      $region21: #{bottleneck_stack_forward.1} parent=19 // pred_check
        %p152 = pneg %p51
      $region22: #{bottleneck_stack_forward.1} parent=19 // pred_check_branch
        %154 = sbr.rel (%p152) target = $region24
      $region23: #{bottleneck_stack_forward.1} parent=19 // pred_region
        %p155 = scmp.lt.s32.totalorder %s10, 8
        %s156 = scalar_select %p155, %s10, 8
        %s157 = smul.addr %s156, 36
        %s158 = smul.addr %s157, 4
        %s159 = scalar_lea.vmem %s1, %s158
      $region24: #{bottleneck_stack_forward.1} parent=19 // pred_fallthru
        _
      // Predicated region
      $region25: #{bottleneck_stack_forward.1} parent=19 // pred_check
        %p160 = pneg %p77
      $region26: #{bottleneck_stack_forward.1} parent=19 // pred_check_branch
        %162 = sbr.rel (%p160) target = $region28
      $region27: #{bottleneck_stack_forward.1} parent=19 // pred_region
        %p163 = scmp.lt.s32.totalorder %s10, 8
        %s164 = scalar_select %p163, %s10, 8
        %s165 = scalar_lea.vmem %s2, %s164
      $region28: #{bottleneck_stack_forward.1} parent=19 // pred_fallthru
        _
      // Predicated region
      $region29: #{bottleneck_stack_forward.1} parent=19 // pred_check
        %p166 = pneg %p103
      $region30: #{bottleneck_stack_forward.1} parent=19 // pred_check_branch
        %168 = sbr.rel (%p166) target = $region32
      $region31: #{bottleneck_stack_forward.1} parent=19 // pred_region
        %p169 = scmp.lt.s32.totalorder %s10, 8
        %s170 = scalar_select %p169, %s10, 8
        %s171 = scalar_lea.vmem %s3, %s170
      $region32: #{bottleneck_stack_forward.1} parent=19 // pred_fallthru
        _
    $region20: #{bottleneck_stack_forward.1} parent=5 // pred_fallthru
      _
    %p172 = scmp.le.s32.totalorder 1, %s10
    %p173 = scmp.lt.s32.totalorder %s10, 10
    %p174 = pnand %p172, %p173
    %p175 = pneg %p174
    // Predicated region
    $region33: #{bottleneck_stack_forward.1} parent=5 // pred_check
      _
    $region34: #{bottleneck_stack_forward.1} parent=5 // pred_check_branch
      %177 = sbr.rel (%p174) target = $region36
    $region35: #{bottleneck_stack_forward.1} parent=5 // pred_region
      %s178 = ssub.s32 %s10, 1
      %p179 = pneg %p31
      %p180 = pneg %p28
      %p181 = scmp.lt.s32.totalorder %s15, 8
      %s182 = scalar_select %p181, %s15, 8
      %s183 = smul.addr %s182, 36
      %s184 = smul.addr %s183, 4
      %s185 = scalar_lea.vmem %s1, %s184
      %p186 = pneg %p57
      %p187 = pneg %p54
      %p188 = scmp.lt.s32.totalorder %s15, 8
      %s189 = scalar_select %p188, %s15, 8
      %s190 = scalar_lea.vmem %s2, %s189
      %p191 = pneg %p83
      %p192 = pneg %p80
      %p193 = scmp.lt.s32.totalorder %s15, 8
      %s194 = scalar_select %p193, %s15, 8
      %s195 = scalar_lea.vmem %s3, %s194
      %p196 = pneg %p109
      %p197 = pneg %p106
      %p198 = pneg %p130
      %p199 = pneg %p127
      %p200 = scmp.lt.s32.totalorder %s15, 8
      %s201 = scalar_select %p200, %s15, 8
      %s202 = smul.addr %s201, 36
      %s203 = smul.addr %s202, 4
      %s204 = scalar_lea.vmem %s1, %s203
      %p205 = scmp.lt.s32.totalorder %s15, 8
      %s206 = scalar_select %p205, %s15, 8
      %s207 = scalar_lea.vmem %s2, %s206
      %p208 = scmp.lt.s32.totalorder %s15, 8
      %s209 = scalar_select %p208, %s15, 8
      %s210 = scalar_lea.vmem %s3, %s209
      %p212 = scmp.eq.s32.totalorder %s15, 0
      // Predicated region
      $region37: #{bottleneck_stack_forward.1} parent=35 // pred_check
        %p213 = pneg %p212
      $region38: #{bottleneck_stack_forward.1} parent=35 // pred_check_branch
        %215 = sbr.rel (%p213) target = $region40
      $region39: #{bottleneck_stack_forward.1} parent=35 // pred_region
        %vm216 = vcmask 261120
        %217 = vst.msk [vmem:[#allocation2] sm:$0xff] %vm216, 0.0
        %218 = vst.msk [vmem:[#allocation2 + $0x8] sm:$0xff] %vm216, 0.0
        %219 = vst.msk [vmem:[#allocation2 + $0x10] sm:$0xff] %vm216, 0.0
        %220 = vst.msk [vmem:[#allocation2 + $0x18] sm:$0xff] %vm216, 0.0
        %221 = vst.msk [vmem:[#allocation2 + $0x20] sm:$0xff] %vm216, 0.0
        %222 = vst.msk [vmem:[#allocation2 + $0x28] sm:$0xff] %vm216, 0.0
        %223 = vst.msk [vmem:[#allocation2 + $0x30] sm:$0xff] %vm216, 0.0
        %224 = vst.msk [vmem:[#allocation2 + $0x38] sm:$0xff] %vm216, 0.0
        %225 = vst.msk [vmem:[#allocation2 + $0x40] sm:$0xff] %vm216, 0.0
        %226 = vst.msk [vmem:[#allocation2 + $0x48] sm:$0xff] %vm216, 0.0
        %227 = vst.msk [vmem:[#allocation2 + $0x50] sm:$0xff] %vm216, 0.0
        %228 = vst.msk [vmem:[#allocation2 + $0x58] sm:$0xff] %vm216, 0.0
        %229 = vst.msk [vmem:[#allocation2 + $0x60] sm:$0xff] %vm216, 0.0
        %230 = vst.msk [vmem:[#allocation2 + $0x68] sm:$0xff] %vm216, 0.0
        %231 = vst.msk [vmem:[#allocation2 + $0x70] sm:$0xff] %vm216, 0.0
        %232 = vst.msk [vmem:[#allocation2 + $0x78] sm:$0xff] %vm216, 0.0
        %233 = vst.msk [vmem:[#allocation2 + $0x80] sm:$0xff] %vm216, 0.0
        %234 = vst.msk [vmem:[#allocation2 + $0x88] sm:$0xff] %vm216, 0.0
        %235 = vst.msk [vmem:[#allocation2 + $0x90] sm:$0xff] %vm216, 0.0
        %236 = vst.msk [vmem:[#allocation2 + $0x98] sm:$0xff] %vm216, 0.0
        %237 = vst.msk [vmem:[#allocation2 + $0xa0] sm:$0xff] %vm216, 0.0
        %238 = vst.msk [vmem:[#allocation2 + $0xa8] sm:$0xff] %vm216, 0.0
        %239 = vst.msk [vmem:[#allocation2 + $0xb0] sm:$0xff] %vm216, 0.0
        %240 = vst.msk [vmem:[#allocation2 + $0xb8] sm:$0xff] %vm216, 0.0
        %241 = vst.msk [vmem:[#allocation2 + $0xc0] sm:$0xff] %vm216, 0.0
        %242 = vst.msk [vmem:[#allocation2 + $0xc8] sm:$0xff] %vm216, 0.0
        %243 = vst.msk [vmem:[#allocation2 + $0xd0] sm:$0xff] %vm216, 0.0
        %244 = vst.msk [vmem:[#allocation2 + $0xd8] sm:$0xff] %vm216, 0.0
        %245 = vst.msk [vmem:[#allocation2 + $0xe0] sm:$0xff] %vm216, 0.0
        %246 = vst.msk [vmem:[#allocation2 + $0xe8] sm:$0xff] %vm216, 0.0
        %247 = vst.msk [vmem:[#allocation2 + $0xf0] sm:$0xff] %vm216, 0.0
        %248 = vst.msk [vmem:[#allocation2 + $0xf8] sm:$0xff] %vm216, 0.0
        %249 = vst.msk [vmem:[#allocation2 + $0x100] sm:$0xff] %vm216, 0.0
        %250 = vst.msk [vmem:[#allocation2 + $0x108] sm:$0xff] %vm216, 0.0
        %251 = vst.msk [vmem:[#allocation2 + $0x110] sm:$0xff] %vm216, 0.0
        %252 = vst.msk [vmem:[#allocation2 + $0x118] sm:$0xff] %vm216, 0.0
        %253 = vst.msk [vmem:[#allocation2 + $0x120] sm:$0xff] %vm216, 0.0
        %254 = vst.msk [vmem:[#allocation2 + $0x128] sm:$0xff] %vm216, 0.0
        %255 = vst.msk [vmem:[#allocation2 + $0x130] sm:$0xff] %vm216, 0.0
        %256 = vst.msk [vmem:[#allocation2 + $0x138] sm:$0xff] %vm216, 0.0
        %257 = vst.msk [vmem:[#allocation2 + $0x140] sm:$0xff] %vm216, 0.0
        %258 = vst.msk [vmem:[#allocation2 + $0x148] sm:$0xff] %vm216, 0.0
        %259 = vst.msk [vmem:[#allocation2 + $0x150] sm:$0xff] %vm216, 0.0
        %260 = vst.msk [vmem:[#allocation2 + $0x158] sm:$0xff] %vm216, 0.0
        %261 = vst.msk [vmem:[#allocation2 + $0x160] sm:$0xff] %vm216, 0.0
        %262 = vst.msk [vmem:[#allocation2 + $0x168] sm:$0xff] %vm216, 0.0
        %263 = vst.msk [vmem:[#allocation2 + $0x170] sm:$0xff] %vm216, 0.0
        %264 = vst.msk [vmem:[#allocation2 + $0x178] sm:$0xff] %vm216, 0.0
        %265 = vst.msk [vmem:[#allocation2 + $0x180] sm:$0xff] %vm216, 0.0
        %266 = vst.msk [vmem:[#allocation2 + $0x188] sm:$0xff] %vm216, 0.0
        %267 = vst.msk [vmem:[#allocation2 + $0x190] sm:$0xff] %vm216, 0.0
        %268 = vst.msk [vmem:[#allocation2 + $0x198] sm:$0xff] %vm216, 0.0
        %269 = vst.msk [vmem:[#allocation2 + $0x1a0] sm:$0xff] %vm216, 0.0
        %270 = vst.msk [vmem:[#allocation2 + $0x1a8] sm:$0xff] %vm216, 0.0
        %271 = vst.msk [vmem:[#allocation2 + $0x1b0] sm:$0xff] %vm216, 0.0
        %272 = vst.msk [vmem:[#allocation2 + $0x1b8] sm:$0xff] %vm216, 0.0
        %273 = vst.msk [vmem:[#allocation2 + $0x1c0] sm:$0xff] %vm216, 0.0
        %274 = vst.msk [vmem:[#allocation2 + $0x1c8] sm:$0xff] %vm216, 0.0
        %275 = vst.msk [vmem:[#allocation2 + $0x1d0] sm:$0xff] %vm216, 0.0
        %276 = vst.msk [vmem:[#allocation2 + $0x1d8] sm:$0xff] %vm216, 0.0
        %277 = vst.msk [vmem:[#allocation2 + $0x1e0] sm:$0xff] %vm216, 0.0
        %278 = vst.msk [vmem:[#allocation2 + $0x1e8] sm:$0xff] %vm216, 0.0
        %279 = vst.msk [vmem:[#allocation2 + $0x1f0] sm:$0xff] %vm216, 0.0
        %280 = vst.msk [vmem:[#allocation2 + $0x1f8] sm:$0xff] %vm216, 0.0
        %281 = vst.msk [vmem:[#allocation2 + $0x200] sm:$0xff] %vm216, 0.0
        %282 = vst.msk [vmem:[#allocation2 + $0x208] sm:$0xff] %vm216, 0.0
        %283 = vst.msk [vmem:[#allocation2 + $0x210] sm:$0xff] %vm216, 0.0
        %284 = vst.msk [vmem:[#allocation2 + $0x218] sm:$0xff] %vm216, 0.0
        %285 = vst.msk [vmem:[#allocation2 + $0x220] sm:$0xff] %vm216, 0.0
        %286 = vst.msk [vmem:[#allocation2 + $0x228] sm:$0xff] %vm216, 0.0
        %287 = vst.msk [vmem:[#allocation2 + $0x230] sm:$0xff] %vm216, 0.0
        %288 = vst.msk [vmem:[#allocation2 + $0x238] sm:$0xff] %vm216, 0.0
        %289 = vst.msk [vmem:[#allocation2 + $0x240] sm:$0xff] %vm216, 0.0
        %290 = vst.msk [vmem:[#allocation2 + $0x248] sm:$0xff] %vm216, 0.0
        %291 = vst.msk [vmem:[#allocation2 + $0x250] sm:$0xff] %vm216, 0.0
        %292 = vst.msk [vmem:[#allocation2 + $0x258] sm:$0xff] %vm216, 0.0
        %293 = vst.msk [vmem:[#allocation2 + $0x260] sm:$0xff] %vm216, 0.0
        %294 = vst.msk [vmem:[#allocation2 + $0x268] sm:$0xff] %vm216, 0.0
        %295 = vst.msk [vmem:[#allocation2 + $0x270] sm:$0xff] %vm216, 0.0
        %296 = vst.msk [vmem:[#allocation2 + $0x278] sm:$0xff] %vm216, 0.0
        %297 = vst.msk [vmem:[#allocation2 + $0x280] sm:$0xff] %vm216, 0.0
        %298 = vst.msk [vmem:[#allocation2 + $0x288] sm:$0xff] %vm216, 0.0
        %299 = vst.msk [vmem:[#allocation2 + $0x290] sm:$0xff] %vm216, 0.0
        %300 = vst.msk [vmem:[#allocation2 + $0x298] sm:$0xff] %vm216, 0.0
        %301 = vst.msk [vmem:[#allocation2 + $0x2a0] sm:$0xff] %vm216, 0.0
        %302 = vst.msk [vmem:[#allocation2 + $0x2a8] sm:$0xff] %vm216, 0.0
        %303 = vst.msk [vmem:[#allocation2 + $0x2b0] sm:$0xff] %vm216, 0.0
        %304 = vst.msk [vmem:[#allocation2 + $0x2b8] sm:$0xff] %vm216, 0.0
        %305 = vst.msk [vmem:[#allocation2 + $0x2c0] sm:$0xff] %vm216, 0.0
        %306 = vst.msk [vmem:[#allocation2 + $0x2c8] sm:$0xff] %vm216, 0.0
        %307 = vst.msk [vmem:[#allocation2 + $0x2d0] sm:$0xff] %vm216, 0.0
        %308 = vst.msk [vmem:[#allocation2 + $0x2d8] sm:$0xff] %vm216, 0.0
        %309 = vst.msk [vmem:[#allocation2 + $0x2e0] sm:$0xff] %vm216, 0.0
        %310 = vst.msk [vmem:[#allocation2 + $0x2e8] sm:$0xff] %vm216, 0.0
        %311 = vst.msk [vmem:[#allocation2 + $0x2f0] sm:$0xff] %vm216, 0.0
        %312 = vst.msk [vmem:[#allocation2 + $0x2f8] sm:$0xff] %vm216, 0.0
        %313 = vst.msk [vmem:[#allocation2 + $0x300] sm:$0xff] %vm216, 0.0
        %314 = vst.msk [vmem:[#allocation2 + $0x308] sm:$0xff] %vm216, 0.0
        %315 = vst.msk [vmem:[#allocation2 + $0x310] sm:$0xff] %vm216, 0.0
        %316 = vst.msk [vmem:[#allocation2 + $0x318] sm:$0xff] %vm216, 0.0
        %317 = vst.msk [vmem:[#allocation2 + $0x320] sm:$0xff] %vm216, 0.0
        %318 = vst.msk [vmem:[#allocation2 + $0x328] sm:$0xff] %vm216, 0.0
        %319 = vst.msk [vmem:[#allocation2 + $0x330] sm:$0xff] %vm216, 0.0
        %320 = vst.msk [vmem:[#allocation2 + $0x338] sm:$0xff] %vm216, 0.0
        %321 = vst.msk [vmem:[#allocation2 + $0x340] sm:$0xff] %vm216, 0.0
        %322 = vst.msk [vmem:[#allocation2 + $0x348] sm:$0xff] %vm216, 0.0
        %323 = vst.msk [vmem:[#allocation2 + $0x350] sm:$0xff] %vm216, 0.0
        %324 = vst.msk [vmem:[#allocation2 + $0x358] sm:$0xff] %vm216, 0.0
        %325 = vst.msk [vmem:[#allocation2 + $0x360] sm:$0xff] %vm216, 0.0
        %326 = vst.msk [vmem:[#allocation2 + $0x368] sm:$0xff] %vm216, 0.0
        %327 = vst.msk [vmem:[#allocation2 + $0x370] sm:$0xff] %vm216, 0.0
        %328 = vst.msk [vmem:[#allocation2 + $0x378] sm:$0xff] %vm216, 0.0
        %329 = vst.msk [vmem:[#allocation2 + $0x380] sm:$0xff] %vm216, 0.0
        %330 = vst.msk [vmem:[#allocation2 + $0x388] sm:$0xff] %vm216, 0.0
        %331 = vst.msk [vmem:[#allocation2 + $0x390] sm:$0xff] %vm216, 0.0
        %332 = vst.msk [vmem:[#allocation2 + $0x398] sm:$0xff] %vm216, 0.0
        %333 = vst.msk [vmem:[#allocation2 + $0x3a0] sm:$0xff] %vm216, 0.0
        %334 = vst.msk [vmem:[#allocation2 + $0x3a8] sm:$0xff] %vm216, 0.0
        %335 = vst.msk [vmem:[#allocation2 + $0x3b0] sm:$0xff] %vm216, 0.0
        %336 = vst.msk [vmem:[#allocation2 + $0x3b8] sm:$0xff] %vm216, 0.0
        %337 = vst.msk [vmem:[#allocation2 + $0x3c0] sm:$0xff] %vm216, 0.0
        %338 = vst.msk [vmem:[#allocation2 + $0x3c8] sm:$0xff] %vm216, 0.0
        %339 = vst.msk [vmem:[#allocation2 + $0x3d0] sm:$0xff] %vm216, 0.0
        %340 = vst.msk [vmem:[#allocation2 + $0x3d8] sm:$0xff] %vm216, 0.0
        %341 = vst.msk [vmem:[#allocation2 + $0x3e0] sm:$0xff] %vm216, 0.0
        %342 = vst.msk [vmem:[#allocation2 + $0x3e8] sm:$0xff] %vm216, 0.0
        %343 = vst.msk [vmem:[#allocation2 + $0x3f0] sm:$0xff] %vm216, 0.0
        %344 = vst.msk [vmem:[#allocation2 + $0x3f8] sm:$0xff] %vm216, 0.0
        %345 = vst.msk [vmem:[#allocation2 + $0x400] sm:$0xff] %vm216, 0.0
        %346 = vst.msk [vmem:[#allocation2 + $0x408] sm:$0xff] %vm216, 0.0
        %347 = vst.msk [vmem:[#allocation2 + $0x410] sm:$0xff] %vm216, 0.0
        %348 = vst.msk [vmem:[#allocation2 + $0x418] sm:$0xff] %vm216, 0.0
        %349 = vst.msk [vmem:[#allocation2 + $0x420] sm:$0xff] %vm216, 0.0
        %350 = vst.msk [vmem:[#allocation2 + $0x428] sm:$0xff] %vm216, 0.0
        %351 = vst.msk [vmem:[#allocation2 + $0x430] sm:$0xff] %vm216, 0.0
        %352 = vst.msk [vmem:[#allocation2 + $0x438] sm:$0xff] %vm216, 0.0
        %353 = vst.msk [vmem:[#allocation2 + $0x440] sm:$0xff] %vm216, 0.0
        %354 = vst.msk [vmem:[#allocation2 + $0x448] sm:$0xff] %vm216, 0.0
        %355 = vst.msk [vmem:[#allocation2 + $0x450] sm:$0xff] %vm216, 0.0
        %356 = vst.msk [vmem:[#allocation2 + $0x458] sm:$0xff] %vm216, 0.0
        %357 = vst.msk [vmem:[#allocation2 + $0x460] sm:$0xff] %vm216, 0.0
        %358 = vst.msk [vmem:[#allocation2 + $0x468] sm:$0xff] %vm216, 0.0
        %359 = vst.msk [vmem:[#allocation2 + $0x470] sm:$0xff] %vm216, 0.0
        %360 = vst.msk [vmem:[#allocation2 + $0x478] sm:$0xff] %vm216, 0.0
        %v361 = vld [vmem:[%s0] sm:$0xff]
        %v362 = vld [vmem:[%s0 + $0x8] sm:$0xff]
        %v363 = vld [vmem:[%s0 + $0x10] sm:$0xff]
        %v364 = vld [vmem:[%s0 + $0x18] sm:$0xff]
        %v365 = vld [vmem:[%s0 + $0x20] sm:$0xff]
        %v366 = vld [vmem:[%s0 + $0x28] sm:$0xff]
        %v367 = vld [vmem:[%s0 + $0x30] sm:$0xff]
        %v368 = vld [vmem:[%s0 + $0x38] sm:$0xff]
        %v369 = vld [vmem:[%s0 + $0x40] sm:$0xff]
        %v370 = vld [vmem:[%s0 + $0x48] sm:$0xff]
        %v371 = vld [vmem:[%s0 + $0x50] sm:$0xff]
        %v372 = vld [vmem:[%s0 + $0x58] sm:$0xff]
        %v373 = vld [vmem:[%s0 + $0x60] sm:$0xff]
        %v374 = vld [vmem:[%s0 + $0x68] sm:$0xff]
        %v375 = vld [vmem:[%s0 + $0x70] sm:$0xff]
        %v376 = vld [vmem:[%s0 + $0x78] sm:$0xff]
        %v377 = vld [vmem:[%s0 + $0x80] sm:$0xff]
        %v378 = vld [vmem:[%s0 + $0x88] sm:$0xff]
        %v379 = vld [vmem:[%s0 + $0x90] sm:$0xff]
        %v380 = vld [vmem:[%s0 + $0x98] sm:$0xff]
        %v381 = vld [vmem:[%s0 + $0xa0] sm:$0xff]
        %v382 = vld [vmem:[%s0 + $0xa8] sm:$0xff]
        %v383 = vld [vmem:[%s0 + $0xb0] sm:$0xff]
        %v384 = vld [vmem:[%s0 + $0xb8] sm:$0xff]
        %v385 = vld [vmem:[%s0 + $0xc0] sm:$0xff]
        %v386 = vld [vmem:[%s0 + $0xc8] sm:$0xff]
        %v387 = vld [vmem:[%s0 + $0xd0] sm:$0xff]
        %v388 = vld [vmem:[%s0 + $0xd8] sm:$0xff]
        %v389 = vld [vmem:[%s0 + $0xe0] sm:$0xff]
        %v390 = vld [vmem:[%s0 + $0xe8] sm:$0xff]
        %v391 = vld [vmem:[%s0 + $0xf0] sm:$0xff]
        %v392 = vld [vmem:[%s0 + $0xf8] sm:$0xff]
        %v393 = vld [vmem:[%s0 + $0x100] sm:$0xff]
        %v394 = vld [vmem:[%s0 + $0x108] sm:$0xff]
        %v395 = vld [vmem:[%s0 + $0x110] sm:$0xff]
        %v396 = vld [vmem:[%s0 + $0x118] sm:$0xff]
        %v397 = vld [vmem:[%s0 + $0x120] sm:$0xff]
        %v398 = vld [vmem:[%s0 + $0x128] sm:$0xff]
        %v399 = vld [vmem:[%s0 + $0x130] sm:$0xff]
        %v400 = vld [vmem:[%s0 + $0x138] sm:$0xff]
        %v401 = vld [vmem:[%s0 + $0x140] sm:$0xff]
        %v402 = vld [vmem:[%s0 + $0x148] sm:$0xff]
        %v403 = vld [vmem:[%s0 + $0x150] sm:$0xff]
        %v404 = vld [vmem:[%s0 + $0x158] sm:$0xff]
        %v405 = vld [vmem:[%s0 + $0x160] sm:$0xff]
        %v406 = vld [vmem:[%s0 + $0x168] sm:$0xff]
        %v407 = vld [vmem:[%s0 + $0x170] sm:$0xff]
        %v408 = vld [vmem:[%s0 + $0x178] sm:$0xff]
        %v409 = vld [vmem:[%s0 + $0x180] sm:$0xff]
        %v410 = vld [vmem:[%s0 + $0x188] sm:$0xff]
        %v411 = vld [vmem:[%s0 + $0x190] sm:$0xff]
        %v412 = vld [vmem:[%s0 + $0x198] sm:$0xff]
        %v413 = vld [vmem:[%s0 + $0x1a0] sm:$0xff]
        %v414 = vld [vmem:[%s0 + $0x1a8] sm:$0xff]
        %v415 = vld [vmem:[%s0 + $0x1b0] sm:$0xff]
        %v416 = vld [vmem:[%s0 + $0x1b8] sm:$0xff]
        %v417 = vld [vmem:[%s0 + $0x1c0] sm:$0xff]
        %v418 = vld [vmem:[%s0 + $0x1c8] sm:$0xff]
        %v419 = vld [vmem:[%s0 + $0x1d0] sm:$0xff]
        %v420 = vld [vmem:[%s0 + $0x1d8] sm:$0xff]
        %v421 = vld [vmem:[%s0 + $0x1e0] sm:$0xff]
        %v422 = vld [vmem:[%s0 + $0x1e8] sm:$0xff]
        %v423 = vld [vmem:[%s0 + $0x1f0] sm:$0xff]
        %v424 = vld [vmem:[%s0 + $0x1f8] sm:$0xff]
        %s425 = scalar_lea.vmem [#allocation2], 32
        %426 = vst.msk [vmem:[%s425 + $0x8] sm:$0xff] %vm216, %v361
        %427 = vst.msk [vmem:[%s425 + $0x10] sm:$0xff] %vm216, %v362
        %428 = vst.msk [vmem:[%s425 + $0x28] sm:$0xff] %vm216, %v363
        %429 = vst.msk [vmem:[%s425 + $0x30] sm:$0xff] %vm216, %v364
        %430 = vst.msk [vmem:[%s425 + $0x48] sm:$0xff] %vm216, %v365
        %431 = vst.msk [vmem:[%s425 + $0x50] sm:$0xff] %vm216, %v366
        %432 = vst.msk [vmem:[%s425 + $0x68] sm:$0xff] %vm216, %v367
        %433 = vst.msk [vmem:[%s425 + $0x70] sm:$0xff] %vm216, %v368
        %434 = vst.msk [vmem:[%s425 + $0x88] sm:$0xff] %vm216, %v369
        %435 = vst.msk [vmem:[%s425 + $0x90] sm:$0xff] %vm216, %v370
        %436 = vst.msk [vmem:[%s425 + $0xa8] sm:$0xff] %vm216, %v371
        %437 = vst.msk [vmem:[%s425 + $0xb0] sm:$0xff] %vm216, %v372
        %438 = vst.msk [vmem:[%s425 + $0xc8] sm:$0xff] %vm216, %v373
        %439 = vst.msk [vmem:[%s425 + $0xd0] sm:$0xff] %vm216, %v374
        %440 = vst.msk [vmem:[%s425 + $0xe8] sm:$0xff] %vm216, %v375
        %441 = vst.msk [vmem:[%s425 + $0xf0] sm:$0xff] %vm216, %v376
        %442 = vst.msk [vmem:[%s425 + $0x108] sm:$0xff] %vm216, %v377
        %443 = vst.msk [vmem:[%s425 + $0x110] sm:$0xff] %vm216, %v378
        %444 = vst.msk [vmem:[%s425 + $0x128] sm:$0xff] %vm216, %v379
        %445 = vst.msk [vmem:[%s425 + $0x130] sm:$0xff] %vm216, %v380
        %446 = vst.msk [vmem:[%s425 + $0x148] sm:$0xff] %vm216, %v381
        %447 = vst.msk [vmem:[%s425 + $0x150] sm:$0xff] %vm216, %v382
        %448 = vst.msk [vmem:[%s425 + $0x168] sm:$0xff] %vm216, %v383
        %449 = vst.msk [vmem:[%s425 + $0x170] sm:$0xff] %vm216, %v384
        %450 = vst.msk [vmem:[%s425 + $0x188] sm:$0xff] %vm216, %v385
        %451 = vst.msk [vmem:[%s425 + $0x190] sm:$0xff] %vm216, %v386
        %452 = vst.msk [vmem:[%s425 + $0x1a8] sm:$0xff] %vm216, %v387
        %453 = vst.msk [vmem:[%s425 + $0x1b0] sm:$0xff] %vm216, %v388
        %454 = vst.msk [vmem:[%s425 + $0x1c8] sm:$0xff] %vm216, %v389
        %455 = vst.msk [vmem:[%s425 + $0x1d0] sm:$0xff] %vm216, %v390
        %456 = vst.msk [vmem:[%s425 + $0x1e8] sm:$0xff] %vm216, %v391
        %457 = vst.msk [vmem:[%s425 + $0x1f0] sm:$0xff] %vm216, %v392
        %458 = vst.msk [vmem:[%s425 + $0x248] sm:$0xff] %vm216, %v393
        %459 = vst.msk [vmem:[%s425 + $0x250] sm:$0xff] %vm216, %v394
        %460 = vst.msk [vmem:[%s425 + $0x268] sm:$0xff] %vm216, %v395
        %461 = vst.msk [vmem:[%s425 + $0x270] sm:$0xff] %vm216, %v396
        %462 = vst.msk [vmem:[%s425 + $0x288] sm:$0xff] %vm216, %v397
        %463 = vst.msk [vmem:[%s425 + $0x290] sm:$0xff] %vm216, %v398
        %464 = vst.msk [vmem:[%s425 + $0x2a8] sm:$0xff] %vm216, %v399
        %465 = vst.msk [vmem:[%s425 + $0x2b0] sm:$0xff] %vm216, %v400
        %466 = vst.msk [vmem:[%s425 + $0x2c8] sm:$0xff] %vm216, %v401
        %467 = vst.msk [vmem:[%s425 + $0x2d0] sm:$0xff] %vm216, %v402
        %468 = vst.msk [vmem:[%s425 + $0x2e8] sm:$0xff] %vm216, %v403
        %469 = vst.msk [vmem:[%s425 + $0x2f0] sm:$0xff] %vm216, %v404
        %470 = vst.msk [vmem:[%s425 + $0x308] sm:$0xff] %vm216, %v405
        %471 = vst.msk [vmem:[%s425 + $0x310] sm:$0xff] %vm216, %v406
        %472 = vst.msk [vmem:[%s425 + $0x328] sm:$0xff] %vm216, %v407
        %473 = vst.msk [vmem:[%s425 + $0x330] sm:$0xff] %vm216, %v408
        %474 = vst.msk [vmem:[%s425 + $0x348] sm:$0xff] %vm216, %v409
        %475 = vst.msk [vmem:[%s425 + $0x350] sm:$0xff] %vm216, %v410
        %476 = vst.msk [vmem:[%s425 + $0x368] sm:$0xff] %vm216, %v411
        %477 = vst.msk [vmem:[%s425 + $0x370] sm:$0xff] %vm216, %v412
        %478 = vst.msk [vmem:[%s425 + $0x388] sm:$0xff] %vm216, %v413
        %479 = vst.msk [vmem:[%s425 + $0x390] sm:$0xff] %vm216, %v414
        %480 = vst.msk [vmem:[%s425 + $0x3a8] sm:$0xff] %vm216, %v415
        %481 = vst.msk [vmem:[%s425 + $0x3b0] sm:$0xff] %vm216, %v416
        %482 = vst.msk [vmem:[%s425 + $0x3c8] sm:$0xff] %vm216, %v417
        %483 = vst.msk [vmem:[%s425 + $0x3d0] sm:$0xff] %vm216, %v418
        %484 = vst.msk [vmem:[%s425 + $0x3e8] sm:$0xff] %vm216, %v419
        %485 = vst.msk [vmem:[%s425 + $0x3f0] sm:$0xff] %vm216, %v420
        %486 = vst.msk [vmem:[%s425 + $0x408] sm:$0xff] %vm216, %v421
        %487 = vst.msk [vmem:[%s425 + $0x410] sm:$0xff] %vm216, %v422
        %488 = vst.msk [vmem:[%s425 + $0x428] sm:$0xff] %vm216, %v423
        %489 = vst.msk [vmem:[%s425 + $0x430] sm:$0xff] %vm216, %v424
      $region40: #{bottleneck_stack_forward.1} parent=35 // pred_fallthru
        _
      %v490 = vld [vmem:[#allocation2 + $0x7] sm:$0xff]
      %v491 = vld [vmem:[#allocation2 + $0xf] sm:$0xff]
      %v492 = vld [vmem:[#allocation2 + $0x27] sm:$0xff]
      %v493 = vld [vmem:[#allocation2 + $0x2f] sm:$0xff]
      %v494 = vld [vmem:[#allocation2 + $0x47] sm:$0xff]
      %v495 = vld [vmem:[#allocation2 + $0x4f] sm:$0xff]
      %v496 = vld [vmem:[#allocation2 + $0x67] sm:$0xff]
      %v497 = vld [vmem:[#allocation2 + $0x6f] sm:$0xff]
      %v498 = vld [vmem:[#allocation2 + $0x87] sm:$0xff]
      %v499 = vld [vmem:[#allocation2 + $0x8f] sm:$0xff]
      %v500 = vld [vmem:[#allocation2 + $0xa7] sm:$0xff]
      %v501 = vld [vmem:[#allocation2 + $0xaf] sm:$0xff]
      %v502 = vld [vmem:[#allocation2 + $0xc7] sm:$0xff]
      %v503 = vld [vmem:[#allocation2 + $0xcf] sm:$0xff]
      %v504 = vld [vmem:[#allocation2 + $0xe7] sm:$0xff]
      %v505 = vld [vmem:[#allocation2 + $0xef] sm:$0xff]
      %v506 = vld [vmem:[#allocation2 + $0x107] sm:$0xff]
      %v507 = vld [vmem:[#allocation2 + $0x10f] sm:$0xff]
      %v508 = vld [vmem:[#allocation2 + $0x127] sm:$0xff]
      %v509 = vld [vmem:[#allocation2 + $0x12f] sm:$0xff]
      %v510 = vld [vmem:[#allocation2 + $0x147] sm:$0xff]
      %v511 = vld [vmem:[#allocation2 + $0x14f] sm:$0xff]
      %v512 = vld [vmem:[#allocation2 + $0x167] sm:$0xff]
      %v513 = vld [vmem:[#allocation2 + $0x16f] sm:$0xff]
      %v514 = vld [vmem:[#allocation2 + $0x187] sm:$0xff]
      %v515 = vld [vmem:[#allocation2 + $0x18f] sm:$0xff]
      %v516 = vld [vmem:[#allocation2 + $0x1a7] sm:$0xff]
      %v517 = vld [vmem:[#allocation2 + $0x1af] sm:$0xff]
      %v518 = vld [vmem:[#allocation2 + $0x1c7] sm:$0xff]
      %v519 = vld [vmem:[#allocation2 + $0x1cf] sm:$0xff]
      %v520 = vld [vmem:[#allocation2 + $0x1e7] sm:$0xff]
      %v521 = vld [vmem:[#allocation2 + $0x1ef] sm:$0xff]
      %v522 = vld [vmem:[#allocation2 + $0x207] sm:$0xff]
      %v523 = vld [vmem:[#allocation2 + $0x20f] sm:$0xff]
      %v524 = vld [vmem:[#allocation2 + $0x227] sm:$0xff]
      %v525 = vld [vmem:[#allocation2 + $0x22f] sm:$0xff]
      %vm526 = vcmask 261120
      %527 = vst.msk [vmem:[#allocation3] sm:$0xff] %vm526, %v490
      %528 = vst.msk [vmem:[#allocation3 + $0x8] sm:$0xff] %vm526, %v491
      %529 = vst.msk [vmem:[#allocation3 + $0x10] sm:$0xff] %vm526, %v492
      %530 = vst.msk [vmem:[#allocation3 + $0x18] sm:$0xff] %vm526, %v493
      %531 = vst.msk [vmem:[#allocation3 + $0x20] sm:$0xff] %vm526, %v494
      %532 = vst.msk [vmem:[#allocation3 + $0x28] sm:$0xff] %vm526, %v495
      %533 = vst.msk [vmem:[#allocation3 + $0x30] sm:$0xff] %vm526, %v496
      %534 = vst.msk [vmem:[#allocation3 + $0x38] sm:$0xff] %vm526, %v497
      %535 = vst.msk [vmem:[#allocation3 + $0x40] sm:$0xff] %vm526, %v498
      %536 = vst.msk [vmem:[#allocation3 + $0x48] sm:$0xff] %vm526, %v499
      %537 = vst.msk [vmem:[#allocation3 + $0x50] sm:$0xff] %vm526, %v500
      %538 = vst.msk [vmem:[#allocation3 + $0x58] sm:$0xff] %vm526, %v501
      %539 = vst.msk [vmem:[#allocation3 + $0x60] sm:$0xff] %vm526, %v502
      %540 = vst.msk [vmem:[#allocation3 + $0x68] sm:$0xff] %vm526, %v503
      %541 = vst.msk [vmem:[#allocation3 + $0x70] sm:$0xff] %vm526, %v504
      %542 = vst.msk [vmem:[#allocation3 + $0x78] sm:$0xff] %vm526, %v505
      %543 = vst.msk [vmem:[#allocation3 + $0x80] sm:$0xff] %vm526, %v506
      %544 = vst.msk [vmem:[#allocation3 + $0x88] sm:$0xff] %vm526, %v507
      %545 = vst.msk [vmem:[#allocation3 + $0x90] sm:$0xff] %vm526, %v508
      %546 = vst.msk [vmem:[#allocation3 + $0x98] sm:$0xff] %vm526, %v509
      %547 = vst.msk [vmem:[#allocation3 + $0xa0] sm:$0xff] %vm526, %v510
      %548 = vst.msk [vmem:[#allocation3 + $0xa8] sm:$0xff] %vm526, %v511
      %549 = vst.msk [vmem:[#allocation3 + $0xb0] sm:$0xff] %vm526, %v512
      %550 = vst.msk [vmem:[#allocation3 + $0xb8] sm:$0xff] %vm526, %v513
      %551 = vst.msk [vmem:[#allocation3 + $0xc0] sm:$0xff] %vm526, %v514
      %552 = vst.msk [vmem:[#allocation3 + $0xc8] sm:$0xff] %vm526, %v515
      %553 = vst.msk [vmem:[#allocation3 + $0xd0] sm:$0xff] %vm526, %v516
      %554 = vst.msk [vmem:[#allocation3 + $0xd8] sm:$0xff] %vm526, %v517
      %555 = vst.msk [vmem:[#allocation3 + $0xe0] sm:$0xff] %vm526, %v518
      %556 = vst.msk [vmem:[#allocation3 + $0xe8] sm:$0xff] %vm526, %v519
      %557 = vst.msk [vmem:[#allocation3 + $0xf0] sm:$0xff] %vm526, %v520
      %558 = vst.msk [vmem:[#allocation3 + $0xf8] sm:$0xff] %vm526, %v521
      %559 = vst.msk [vmem:[#allocation3 + $0x100] sm:$0xff] %vm526, %v522
      %560 = vst.msk [vmem:[#allocation3 + $0x108] sm:$0xff] %vm526, %v523
      %561 = vst.msk [vmem:[#allocation3 + $0x110] sm:$0xff] %vm526, %v524
      %562 = vst.msk [vmem:[#allocation3 + $0x118] sm:$0xff] %vm526, %v525
      %s563 = scalar_lea.vmem [#allocation2], 576
      %v564 = vld [vmem:[%s563 + $0x7] sm:$0xff]
      %v565 = vld [vmem:[%s563 + $0xf] sm:$0xff]
      %v566 = vld [vmem:[%s563 + $0x27] sm:$0xff]
      %v567 = vld [vmem:[%s563 + $0x2f] sm:$0xff]
      %v568 = vld [vmem:[%s563 + $0x47] sm:$0xff]
      %v569 = vld [vmem:[%s563 + $0x4f] sm:$0xff]
      %v570 = vld [vmem:[%s563 + $0x67] sm:$0xff]
      %v571 = vld [vmem:[%s563 + $0x6f] sm:$0xff]
      %v572 = vld [vmem:[%s563 + $0x87] sm:$0xff]
      %v573 = vld [vmem:[%s563 + $0x8f] sm:$0xff]
      %v574 = vld [vmem:[%s563 + $0xa7] sm:$0xff]
      %v575 = vld [vmem:[%s563 + $0xaf] sm:$0xff]
      %v576 = vld [vmem:[%s563 + $0xc7] sm:$0xff]
      %v577 = vld [vmem:[%s563 + $0xcf] sm:$0xff]
      %v578 = vld [vmem:[%s563 + $0xe7] sm:$0xff]
      %v579 = vld [vmem:[%s563 + $0xef] sm:$0xff]
      %v580 = vld [vmem:[%s563 + $0x107] sm:$0xff]
      %v581 = vld [vmem:[%s563 + $0x10f] sm:$0xff]
      %v582 = vld [vmem:[%s563 + $0x127] sm:$0xff]
      %v583 = vld [vmem:[%s563 + $0x12f] sm:$0xff]
      %v584 = vld [vmem:[%s563 + $0x147] sm:$0xff]
      %v585 = vld [vmem:[%s563 + $0x14f] sm:$0xff]
      %v586 = vld [vmem:[%s563 + $0x167] sm:$0xff]
      %v587 = vld [vmem:[%s563 + $0x16f] sm:$0xff]
      %v588 = vld [vmem:[%s563 + $0x187] sm:$0xff]
      %v589 = vld [vmem:[%s563 + $0x18f] sm:$0xff]
      %v590 = vld [vmem:[%s563 + $0x1a7] sm:$0xff]
      %v591 = vld [vmem:[%s563 + $0x1af] sm:$0xff]
      %v592 = vld [vmem:[%s563 + $0x1c7] sm:$0xff]
      %v593 = vld [vmem:[%s563 + $0x1cf] sm:$0xff]
      %v594 = vld [vmem:[%s563 + $0x1e7] sm:$0xff]
      %v595 = vld [vmem:[%s563 + $0x1ef] sm:$0xff]
      %v596 = vld [vmem:[%s563 + $0x207] sm:$0xff]
      %v597 = vld [vmem:[%s563 + $0x20f] sm:$0xff]
      %v598 = vld [vmem:[%s563 + $0x227] sm:$0xff]
      %v599 = vld [vmem:[%s563 + $0x22f] sm:$0xff]
      %s600 = scalar_lea.vmem [#allocation3], 288
      %601 = vst.msk [vmem:[%s600] sm:$0xff] %vm526, %v564
      %602 = vst.msk [vmem:[%s600 + $0x8] sm:$0xff] %vm526, %v565
      %603 = vst.msk [vmem:[%s600 + $0x10] sm:$0xff] %vm526, %v566
      %604 = vst.msk [vmem:[%s600 + $0x18] sm:$0xff] %vm526, %v567
      %605 = vst.msk [vmem:[%s600 + $0x20] sm:$0xff] %vm526, %v568
      %606 = vst.msk [vmem:[%s600 + $0x28] sm:$0xff] %vm526, %v569
      %607 = vst.msk [vmem:[%s600 + $0x30] sm:$0xff] %vm526, %v570
      %608 = vst.msk [vmem:[%s600 + $0x38] sm:$0xff] %vm526, %v571
      %609 = vst.msk [vmem:[%s600 + $0x40] sm:$0xff] %vm526, %v572
      %610 = vst.msk [vmem:[%s600 + $0x48] sm:$0xff] %vm526, %v573
      %611 = vst.msk [vmem:[%s600 + $0x50] sm:$0xff] %vm526, %v574
      %612 = vst.msk [vmem:[%s600 + $0x58] sm:$0xff] %vm526, %v575
      %613 = vst.msk [vmem:[%s600 + $0x60] sm:$0xff] %vm526, %v576
      %614 = vst.msk [vmem:[%s600 + $0x68] sm:$0xff] %vm526, %v577
      %615 = vst.msk [vmem:[%s600 + $0x70] sm:$0xff] %vm526, %v578
      %616 = vst.msk [vmem:[%s600 + $0x78] sm:$0xff] %vm526, %v579
      %617 = vst.msk [vmem:[%s600 + $0x80] sm:$0xff] %vm526, %v580
      %618 = vst.msk [vmem:[%s600 + $0x88] sm:$0xff] %vm526, %v581
      %619 = vst.msk [vmem:[%s600 + $0x90] sm:$0xff] %vm526, %v582
      %620 = vst.msk [vmem:[%s600 + $0x98] sm:$0xff] %vm526, %v583
      %621 = vst.msk [vmem:[%s600 + $0xa0] sm:$0xff] %vm526, %v584
      %622 = vst.msk [vmem:[%s600 + $0xa8] sm:$0xff] %vm526, %v585
      %623 = vst.msk [vmem:[%s600 + $0xb0] sm:$0xff] %vm526, %v586
      %624 = vst.msk [vmem:[%s600 + $0xb8] sm:$0xff] %vm526, %v587
      %625 = vst.msk [vmem:[%s600 + $0xc0] sm:$0xff] %vm526, %v588
      %626 = vst.msk [vmem:[%s600 + $0xc8] sm:$0xff] %vm526, %v589
      %627 = vst.msk [vmem:[%s600 + $0xd0] sm:$0xff] %vm526, %v590
      %628 = vst.msk [vmem:[%s600 + $0xd8] sm:$0xff] %vm526, %v591
      %629 = vst.msk [vmem:[%s600 + $0xe0] sm:$0xff] %vm526, %v592
      %630 = vst.msk [vmem:[%s600 + $0xe8] sm:$0xff] %vm526, %v593
      %631 = vst.msk [vmem:[%s600 + $0xf0] sm:$0xff] %vm526, %v594
      %632 = vst.msk [vmem:[%s600 + $0xf8] sm:$0xff] %vm526, %v595
      %633 = vst.msk [vmem:[%s600 + $0x100] sm:$0xff] %vm526, %v596
      %634 = vst.msk [vmem:[%s600 + $0x108] sm:$0xff] %vm526, %v597
      %635 = vst.msk [vmem:[%s600 + $0x110] sm:$0xff] %vm526, %v598
      %636 = vst.msk [vmem:[%s600 + $0x118] sm:$0xff] %vm526, %v599
      %v637 = vld [vmem:[#allocation2 + $0x9] sm:$0xff]
      %v638 = vld [vmem:[#allocation2 + $0x11] sm:$0xff]
      %v639 = vld [vmem:[#allocation2 + $0x29] sm:$0xff]
      %v640 = vld [vmem:[#allocation2 + $0x31] sm:$0xff]
      %v641 = vld [vmem:[#allocation2 + $0x49] sm:$0xff]
      %v642 = vld [vmem:[#allocation2 + $0x51] sm:$0xff]
      %v643 = vld [vmem:[#allocation2 + $0x69] sm:$0xff]
      %v644 = vld [vmem:[#allocation2 + $0x71] sm:$0xff]
      %v645 = vld [vmem:[#allocation2 + $0x89] sm:$0xff]
      %v646 = vld [vmem:[#allocation2 + $0x91] sm:$0xff]
      %v647 = vld [vmem:[#allocation2 + $0xa9] sm:$0xff]
      %v648 = vld [vmem:[#allocation2 + $0xb1] sm:$0xff]
      %v649 = vld [vmem:[#allocation2 + $0xc9] sm:$0xff]
      %v650 = vld [vmem:[#allocation2 + $0xd1] sm:$0xff]
      %v651 = vld [vmem:[#allocation2 + $0xe9] sm:$0xff]
      %v652 = vld [vmem:[#allocation2 + $0xf1] sm:$0xff]
      %v653 = vld [vmem:[#allocation2 + $0x109] sm:$0xff]
      %v654 = vld [vmem:[#allocation2 + $0x111] sm:$0xff]
      %v655 = vld [vmem:[#allocation2 + $0x129] sm:$0xff]
      %v656 = vld [vmem:[#allocation2 + $0x131] sm:$0xff]
      %v657 = vld [vmem:[#allocation2 + $0x149] sm:$0xff]
      %v658 = vld [vmem:[#allocation2 + $0x151] sm:$0xff]
      %v659 = vld [vmem:[#allocation2 + $0x169] sm:$0xff]
      %v660 = vld [vmem:[#allocation2 + $0x171] sm:$0xff]
      %v661 = vld [vmem:[#allocation2 + $0x189] sm:$0xff]
      %v662 = vld [vmem:[#allocation2 + $0x191] sm:$0xff]
      %v663 = vld [vmem:[#allocation2 + $0x1a9] sm:$0xff]
      %v664 = vld [vmem:[#allocation2 + $0x1b1] sm:$0xff]
      %v665 = vld [vmem:[#allocation2 + $0x1c9] sm:$0xff]
      %v666 = vld [vmem:[#allocation2 + $0x1d1] sm:$0xff]
      %v667 = vld [vmem:[#allocation2 + $0x1e9] sm:$0xff]
      %v668 = vld [vmem:[#allocation2 + $0x1f1] sm:$0xff]
      %v669 = vld [vmem:[#allocation2 + $0x209] sm:$0xff]
      %v670 = vld [vmem:[#allocation2 + $0x211] sm:$0xff]
      %v671 = vld [vmem:[#allocation2 + $0x229] sm:$0xff]
      %v672 = vld [vmem:[#allocation2 + $0x231] sm:$0xff]
      %s673 = scalar_lea.vmem [#allocation3], 576
      %674 = vst.msk [vmem:[%s673] sm:$0xff] %vm526, %v637
      %675 = vst.msk [vmem:[%s673 + $0x8] sm:$0xff] %vm526, %v638
      %676 = vst.msk [vmem:[%s673 + $0x10] sm:$0xff] %vm526, %v639
      %677 = vst.msk [vmem:[%s673 + $0x18] sm:$0xff] %vm526, %v640
      %678 = vst.msk [vmem:[%s673 + $0x20] sm:$0xff] %vm526, %v641
      %679 = vst.msk [vmem:[%s673 + $0x28] sm:$0xff] %vm526, %v642
      %680 = vst.msk [vmem:[%s673 + $0x30] sm:$0xff] %vm526, %v643
      %681 = vst.msk [vmem:[%s673 + $0x38] sm:$0xff] %vm526, %v644
      %682 = vst.msk [vmem:[%s673 + $0x40] sm:$0xff] %vm526, %v645
      %683 = vst.msk [vmem:[%s673 + $0x48] sm:$0xff] %vm526, %v646
      %684 = vst.msk [vmem:[%s673 + $0x50] sm:$0xff] %vm526, %v647
      %685 = vst.msk [vmem:[%s673 + $0x58] sm:$0xff] %vm526, %v648
      %686 = vst.msk [vmem:[%s673 + $0x60] sm:$0xff] %vm526, %v649
      %687 = vst.msk [vmem:[%s673 + $0x68] sm:$0xff] %vm526, %v650
      %688 = vst.msk [vmem:[%s673 + $0x70] sm:$0xff] %vm526, %v651
      %689 = vst.msk [vmem:[%s673 + $0x78] sm:$0xff] %vm526, %v652
      %690 = vst.msk [vmem:[%s673 + $0x80] sm:$0xff] %vm526, %v653
      %691 = vst.msk [vmem:[%s673 + $0x88] sm:$0xff] %vm526, %v654
      %692 = vst.msk [vmem:[%s673 + $0x90] sm:$0xff] %vm526, %v655
      %693 = vst.msk [vmem:[%s673 + $0x98] sm:$0xff] %vm526, %v656
      %694 = vst.msk [vmem:[%s673 + $0xa0] sm:$0xff] %vm526, %v657
      %695 = vst.msk [vmem:[%s673 + $0xa8] sm:$0xff] %vm526, %v658
      %696 = vst.msk [vmem:[%s673 + $0xb0] sm:$0xff] %vm526, %v659
      %697 = vst.msk [vmem:[%s673 + $0xb8] sm:$0xff] %vm526, %v660
      %698 = vst.msk [vmem:[%s673 + $0xc0] sm:$0xff] %vm526, %v661
      %699 = vst.msk [vmem:[%s673 + $0xc8] sm:$0xff] %vm526, %v662
      %700 = vst.msk [vmem:[%s673 + $0xd0] sm:$0xff] %vm526, %v663
      %701 = vst.msk [vmem:[%s673 + $0xd8] sm:$0xff] %vm526, %v664
      %702 = vst.msk [vmem:[%s673 + $0xe0] sm:$0xff] %vm526, %v665
      %703 = vst.msk [vmem:[%s673 + $0xe8] sm:$0xff] %vm526, %v666
      %704 = vst.msk [vmem:[%s673 + $0xf0] sm:$0xff] %vm526, %v667
      %705 = vst.msk [vmem:[%s673 + $0xf8] sm:$0xff] %vm526, %v668
      %706 = vst.msk [vmem:[%s673 + $0x100] sm:$0xff] %vm526, %v669
      %707 = vst.msk [vmem:[%s673 + $0x108] sm:$0xff] %vm526, %v670
      %708 = vst.msk [vmem:[%s673 + $0x110] sm:$0xff] %vm526, %v671
      %709 = vst.msk [vmem:[%s673 + $0x118] sm:$0xff] %vm526, %v672
      %v710 = vld [vmem:[%s563 + $0x9] sm:$0xff]
      %v711 = vld [vmem:[%s563 + $0x11] sm:$0xff]
      %v712 = vld [vmem:[%s563 + $0x29] sm:$0xff]
      %v713 = vld [vmem:[%s563 + $0x31] sm:$0xff]
      %v714 = vld [vmem:[%s563 + $0x49] sm:$0xff]
      %v715 = vld [vmem:[%s563 + $0x51] sm:$0xff]
      %v716 = vld [vmem:[%s563 + $0x69] sm:$0xff]
      %v717 = vld [vmem:[%s563 + $0x71] sm:$0xff]
      %v718 = vld [vmem:[%s563 + $0x89] sm:$0xff]
      %v719 = vld [vmem:[%s563 + $0x91] sm:$0xff]
      %v720 = vld [vmem:[%s563 + $0xa9] sm:$0xff]
      %v721 = vld [vmem:[%s563 + $0xb1] sm:$0xff]
      %v722 = vld [vmem:[%s563 + $0xc9] sm:$0xff]
      %v723 = vld [vmem:[%s563 + $0xd1] sm:$0xff]
      %v724 = vld [vmem:[%s563 + $0xe9] sm:$0xff]
      %v725 = vld [vmem:[%s563 + $0xf1] sm:$0xff]
      %v726 = vld [vmem:[%s563 + $0x109] sm:$0xff]
      %v727 = vld [vmem:[%s563 + $0x111] sm:$0xff]
      %v728 = vld [vmem:[%s563 + $0x129] sm:$0xff]
      %v729 = vld [vmem:[%s563 + $0x131] sm:$0xff]
      %v730 = vld [vmem:[%s563 + $0x149] sm:$0xff]
      %v731 = vld [vmem:[%s563 + $0x151] sm:$0xff]
      %v732 = vld [vmem:[%s563 + $0x169] sm:$0xff]
      %v733 = vld [vmem:[%s563 + $0x171] sm:$0xff]
      %v734 = vld [vmem:[%s563 + $0x189] sm:$0xff]
      %v735 = vld [vmem:[%s563 + $0x191] sm:$0xff]
      %v736 = vld [vmem:[%s563 + $0x1a9] sm:$0xff]
      %v737 = vld [vmem:[%s563 + $0x1b1] sm:$0xff]
      %v738 = vld [vmem:[%s563 + $0x1c9] sm:$0xff]
      %v739 = vld [vmem:[%s563 + $0x1d1] sm:$0xff]
      %v740 = vld [vmem:[%s563 + $0x1e9] sm:$0xff]
      %v741 = vld [vmem:[%s563 + $0x1f1] sm:$0xff]
      %v742 = vld [vmem:[%s563 + $0x209] sm:$0xff]
      %v743 = vld [vmem:[%s563 + $0x211] sm:$0xff]
      %v744 = vld [vmem:[%s563 + $0x229] sm:$0xff]
      %v745 = vld [vmem:[%s563 + $0x231] sm:$0xff]
      %s746 = scalar_lea.vmem [#allocation3], 864
      %747 = vst.msk [vmem:[%s746] sm:$0xff] %vm526, %v710
      %748 = vst.msk [vmem:[%s746 + $0x8] sm:$0xff] %vm526, %v711
      %749 = vst.msk [vmem:[%s746 + $0x10] sm:$0xff] %vm526, %v712
      %750 = vst.msk [vmem:[%s746 + $0x18] sm:$0xff] %vm526, %v713
      %751 = vst.msk [vmem:[%s746 + $0x20] sm:$0xff] %vm526, %v714
      %752 = vst.msk [vmem:[%s746 + $0x28] sm:$0xff] %vm526, %v715
      %753 = vst.msk [vmem:[%s746 + $0x30] sm:$0xff] %vm526, %v716
      %754 = vst.msk [vmem:[%s746 + $0x38] sm:$0xff] %vm526, %v717
      %755 = vst.msk [vmem:[%s746 + $0x40] sm:$0xff] %vm526, %v718
      %756 = vst.msk [vmem:[%s746 + $0x48] sm:$0xff] %vm526, %v719
      %757 = vst.msk [vmem:[%s746 + $0x50] sm:$0xff] %vm526, %v720
      %758 = vst.msk [vmem:[%s746 + $0x58] sm:$0xff] %vm526, %v721
      %759 = vst.msk [vmem:[%s746 + $0x60] sm:$0xff] %vm526, %v722
      %760 = vst.msk [vmem:[%s746 + $0x68] sm:$0xff] %vm526, %v723
      %761 = vst.msk [vmem:[%s746 + $0x70] sm:$0xff] %vm526, %v724
      %762 = vst.msk [vmem:[%s746 + $0x78] sm:$0xff] %vm526, %v725
      %763 = vst.msk [vmem:[%s746 + $0x80] sm:$0xff] %vm526, %v726
      %764 = vst.msk [vmem:[%s746 + $0x88] sm:$0xff] %vm526, %v727
      %765 = vst.msk [vmem:[%s746 + $0x90] sm:$0xff] %vm526, %v728
      %766 = vst.msk [vmem:[%s746 + $0x98] sm:$0xff] %vm526, %v729
      %767 = vst.msk [vmem:[%s746 + $0xa0] sm:$0xff] %vm526, %v730
      %768 = vst.msk [vmem:[%s746 + $0xa8] sm:$0xff] %vm526, %v731
      %769 = vst.msk [vmem:[%s746 + $0xb0] sm:$0xff] %vm526, %v732
      %770 = vst.msk [vmem:[%s746 + $0xb8] sm:$0xff] %vm526, %v733
      %771 = vst.msk [vmem:[%s746 + $0xc0] sm:$0xff] %vm526, %v734
      %772 = vst.msk [vmem:[%s746 + $0xc8] sm:$0xff] %vm526, %v735
      %773 = vst.msk [vmem:[%s746 + $0xd0] sm:$0xff] %vm526, %v736
      %774 = vst.msk [vmem:[%s746 + $0xd8] sm:$0xff] %vm526, %v737
      %775 = vst.msk [vmem:[%s746 + $0xe0] sm:$0xff] %vm526, %v738
      %776 = vst.msk [vmem:[%s746 + $0xe8] sm:$0xff] %vm526, %v739
      %777 = vst.msk [vmem:[%s746 + $0xf0] sm:$0xff] %vm526, %v740
      %778 = vst.msk [vmem:[%s746 + $0xf8] sm:$0xff] %vm526, %v741
      %779 = vst.msk [vmem:[%s746 + $0x100] sm:$0xff] %vm526, %v742
      %780 = vst.msk [vmem:[%s746 + $0x108] sm:$0xff] %vm526, %v743
      %781 = vst.msk [vmem:[%s746 + $0x110] sm:$0xff] %vm526, %v744
      %782 = vst.msk [vmem:[%s746 + $0x118] sm:$0xff] %vm526, %v745
      %p783 = scmp.eq.s32.totalorder %s15, 3
      // Predicated region
      $region41: #{bottleneck_stack_forward.1} parent=35 // pred_check
        %p784 = pneg %p783
      $region42: #{bottleneck_stack_forward.1} parent=35 // pred_check_branch
        %786 = sbr.rel (%p784) target = $region44
      $region43: #{bottleneck_stack_forward.1} parent=35 // pred_region
        %s787 = scalar_lea.vmem [#allocation2], 32
        %v788 = vld [vmem:[%s787 + $0x8] sm:$0xff]
        %v789 = vld [vmem:[%s787 + $0x10] sm:$0xff]
        %v790 = vld [vmem:[%s787 + $0x28] sm:$0xff]
        %v791 = vld [vmem:[%s787 + $0x30] sm:$0xff]
        %v792 = vld [vmem:[%s787 + $0x48] sm:$0xff]
        %v793 = vld [vmem:[%s787 + $0x50] sm:$0xff]
        %v794 = vld [vmem:[%s787 + $0x68] sm:$0xff]
        %v795 = vld [vmem:[%s787 + $0x70] sm:$0xff]
        %v796 = vld [vmem:[%s787 + $0x88] sm:$0xff]
        %v797 = vld [vmem:[%s787 + $0x90] sm:$0xff]
        %v798 = vld [vmem:[%s787 + $0xa8] sm:$0xff]
        %v799 = vld [vmem:[%s787 + $0xb0] sm:$0xff]
        %v800 = vld [vmem:[%s787 + $0xc8] sm:$0xff]
        %v801 = vld [vmem:[%s787 + $0xd0] sm:$0xff]
        %v802 = vld [vmem:[%s787 + $0xe8] sm:$0xff]
        %v803 = vld [vmem:[%s787 + $0xf0] sm:$0xff]
        %v804 = vld [vmem:[%s787 + $0x108] sm:$0xff]
        %v805 = vld [vmem:[%s787 + $0x110] sm:$0xff]
        %v806 = vld [vmem:[%s787 + $0x128] sm:$0xff]
        %v807 = vld [vmem:[%s787 + $0x130] sm:$0xff]
        %v808 = vld [vmem:[%s787 + $0x148] sm:$0xff]
        %v809 = vld [vmem:[%s787 + $0x150] sm:$0xff]
        %v810 = vld [vmem:[%s787 + $0x168] sm:$0xff]
        %v811 = vld [vmem:[%s787 + $0x170] sm:$0xff]
        %v812 = vld [vmem:[%s787 + $0x188] sm:$0xff]
        %v813 = vld [vmem:[%s787 + $0x190] sm:$0xff]
        %v814 = vld [vmem:[%s787 + $0x1a8] sm:$0xff]
        %v815 = vld [vmem:[%s787 + $0x1b0] sm:$0xff]
        %v816 = vld [vmem:[%s787 + $0x1c8] sm:$0xff]
        %v817 = vld [vmem:[%s787 + $0x1d0] sm:$0xff]
        %v818 = vld [vmem:[%s787 + $0x1e8] sm:$0xff]
        %v819 = vld [vmem:[%s787 + $0x1f0] sm:$0xff]
        %v820 = vld [vmem:[%s787 + $0x248] sm:$0xff]
        %v821 = vld [vmem:[%s787 + $0x250] sm:$0xff]
        %v822 = vld [vmem:[%s787 + $0x268] sm:$0xff]
        %v823 = vld [vmem:[%s787 + $0x270] sm:$0xff]
        %v824 = vld [vmem:[%s787 + $0x288] sm:$0xff]
        %v825 = vld [vmem:[%s787 + $0x290] sm:$0xff]
        %v826 = vld [vmem:[%s787 + $0x2a8] sm:$0xff]
        %v827 = vld [vmem:[%s787 + $0x2b0] sm:$0xff]
        %v828 = vld [vmem:[%s787 + $0x2c8] sm:$0xff]
        %v829 = vld [vmem:[%s787 + $0x2d0] sm:$0xff]
        %v830 = vld [vmem:[%s787 + $0x2e8] sm:$0xff]
        %v831 = vld [vmem:[%s787 + $0x2f0] sm:$0xff]
        %v832 = vld [vmem:[%s787 + $0x308] sm:$0xff]
        %v833 = vld [vmem:[%s787 + $0x310] sm:$0xff]
        %v834 = vld [vmem:[%s787 + $0x328] sm:$0xff]
        %v835 = vld [vmem:[%s787 + $0x330] sm:$0xff]
        %v836 = vld [vmem:[%s787 + $0x348] sm:$0xff]
        %v837 = vld [vmem:[%s787 + $0x350] sm:$0xff]
        %v838 = vld [vmem:[%s787 + $0x368] sm:$0xff]
        %v839 = vld [vmem:[%s787 + $0x370] sm:$0xff]
        %v840 = vld [vmem:[%s787 + $0x388] sm:$0xff]
        %v841 = vld [vmem:[%s787 + $0x390] sm:$0xff]
        %v842 = vld [vmem:[%s787 + $0x3a8] sm:$0xff]
        %v843 = vld [vmem:[%s787 + $0x3b0] sm:$0xff]
        %v844 = vld [vmem:[%s787 + $0x3c8] sm:$0xff]
        %v845 = vld [vmem:[%s787 + $0x3d0] sm:$0xff]
        %v846 = vld [vmem:[%s787 + $0x3e8] sm:$0xff]
        %v847 = vld [vmem:[%s787 + $0x3f0] sm:$0xff]
        %v848 = vld [vmem:[%s787 + $0x408] sm:$0xff]
        %v849 = vld [vmem:[%s787 + $0x410] sm:$0xff]
        %v850 = vld [vmem:[%s787 + $0x428] sm:$0xff]
        %v851 = vld [vmem:[%s787 + $0x430] sm:$0xff]
        %852 = vst.msk [vmem:[#allocation5] sm:$0xff] %vm526, %v788
        %853 = vst.msk [vmem:[#allocation5 + $0x8] sm:$0xff] %vm526, %v789
        %854 = vst.msk [vmem:[#allocation5 + $0x10] sm:$0xff] %vm526, %v790
        %855 = vst.msk [vmem:[#allocation5 + $0x18] sm:$0xff] %vm526, %v791
        %856 = vst.msk [vmem:[#allocation5 + $0x20] sm:$0xff] %vm526, %v792
        %857 = vst.msk [vmem:[#allocation5 + $0x28] sm:$0xff] %vm526, %v793
        %858 = vst.msk [vmem:[#allocation5 + $0x30] sm:$0xff] %vm526, %v794
        %859 = vst.msk [vmem:[#allocation5 + $0x38] sm:$0xff] %vm526, %v795
        %860 = vst.msk [vmem:[#allocation5 + $0x40] sm:$0xff] %vm526, %v796
        %861 = vst.msk [vmem:[#allocation5 + $0x48] sm:$0xff] %vm526, %v797
        %862 = vst.msk [vmem:[#allocation5 + $0x50] sm:$0xff] %vm526, %v798
        %863 = vst.msk [vmem:[#allocation5 + $0x58] sm:$0xff] %vm526, %v799
        %864 = vst.msk [vmem:[#allocation5 + $0x60] sm:$0xff] %vm526, %v800
        %865 = vst.msk [vmem:[#allocation5 + $0x68] sm:$0xff] %vm526, %v801
        %866 = vst.msk [vmem:[#allocation5 + $0x70] sm:$0xff] %vm526, %v802
        %867 = vst.msk [vmem:[#allocation5 + $0x78] sm:$0xff] %vm526, %v803
        %868 = vst.msk [vmem:[#allocation5 + $0x80] sm:$0xff] %vm526, %v804
        %869 = vst.msk [vmem:[#allocation5 + $0x88] sm:$0xff] %vm526, %v805
        %870 = vst.msk [vmem:[#allocation5 + $0x90] sm:$0xff] %vm526, %v806
        %871 = vst.msk [vmem:[#allocation5 + $0x98] sm:$0xff] %vm526, %v807
        %872 = vst.msk [vmem:[#allocation5 + $0xa0] sm:$0xff] %vm526, %v808
        %873 = vst.msk [vmem:[#allocation5 + $0xa8] sm:$0xff] %vm526, %v809
        %874 = vst.msk [vmem:[#allocation5 + $0xb0] sm:$0xff] %vm526, %v810
        %875 = vst.msk [vmem:[#allocation5 + $0xb8] sm:$0xff] %vm526, %v811
        %876 = vst.msk [vmem:[#allocation5 + $0xc0] sm:$0xff] %vm526, %v812
        %877 = vst.msk [vmem:[#allocation5 + $0xc8] sm:$0xff] %vm526, %v813
        %878 = vst.msk [vmem:[#allocation5 + $0xd0] sm:$0xff] %vm526, %v814
        %879 = vst.msk [vmem:[#allocation5 + $0xd8] sm:$0xff] %vm526, %v815
        %880 = vst.msk [vmem:[#allocation5 + $0xe0] sm:$0xff] %vm526, %v816
        %881 = vst.msk [vmem:[#allocation5 + $0xe8] sm:$0xff] %vm526, %v817
        %882 = vst.msk [vmem:[#allocation5 + $0xf0] sm:$0xff] %vm526, %v818
        %883 = vst.msk [vmem:[#allocation5 + $0xf8] sm:$0xff] %vm526, %v819
        %884 = vst.msk [vmem:[#allocation5 + $0x100] sm:$0xff] %vm526, %v820
        %885 = vst.msk [vmem:[#allocation5 + $0x108] sm:$0xff] %vm526, %v821
        %886 = vst.msk [vmem:[#allocation5 + $0x110] sm:$0xff] %vm526, %v822
        %887 = vst.msk [vmem:[#allocation5 + $0x118] sm:$0xff] %vm526, %v823
        %888 = vst.msk [vmem:[#allocation5 + $0x120] sm:$0xff] %vm526, %v824
        %889 = vst.msk [vmem:[#allocation5 + $0x128] sm:$0xff] %vm526, %v825
        %890 = vst.msk [vmem:[#allocation5 + $0x130] sm:$0xff] %vm526, %v826
        %891 = vst.msk [vmem:[#allocation5 + $0x138] sm:$0xff] %vm526, %v827
        %892 = vst.msk [vmem:[#allocation5 + $0x140] sm:$0xff] %vm526, %v828
        %893 = vst.msk [vmem:[#allocation5 + $0x148] sm:$0xff] %vm526, %v829
        %894 = vst.msk [vmem:[#allocation5 + $0x150] sm:$0xff] %vm526, %v830
        %895 = vst.msk [vmem:[#allocation5 + $0x158] sm:$0xff] %vm526, %v831
        %896 = vst.msk [vmem:[#allocation5 + $0x160] sm:$0xff] %vm526, %v832
        %897 = vst.msk [vmem:[#allocation5 + $0x168] sm:$0xff] %vm526, %v833
        %898 = vst.msk [vmem:[#allocation5 + $0x170] sm:$0xff] %vm526, %v834
        %899 = vst.msk [vmem:[#allocation5 + $0x178] sm:$0xff] %vm526, %v835
        %900 = vst.msk [vmem:[#allocation5 + $0x180] sm:$0xff] %vm526, %v836
        %901 = vst.msk [vmem:[#allocation5 + $0x188] sm:$0xff] %vm526, %v837
        %902 = vst.msk [vmem:[#allocation5 + $0x190] sm:$0xff] %vm526, %v838
        %903 = vst.msk [vmem:[#allocation5 + $0x198] sm:$0xff] %vm526, %v839
        %904 = vst.msk [vmem:[#allocation5 + $0x1a0] sm:$0xff] %vm526, %v840
        %905 = vst.msk [vmem:[#allocation5 + $0x1a8] sm:$0xff] %vm526, %v841
        %906 = vst.msk [vmem:[#allocation5 + $0x1b0] sm:$0xff] %vm526, %v842
        %907 = vst.msk [vmem:[#allocation5 + $0x1b8] sm:$0xff] %vm526, %v843
        %908 = vst.msk [vmem:[#allocation5 + $0x1c0] sm:$0xff] %vm526, %v844
        %909 = vst.msk [vmem:[#allocation5 + $0x1c8] sm:$0xff] %vm526, %v845
        %910 = vst.msk [vmem:[#allocation5 + $0x1d0] sm:$0xff] %vm526, %v846
        %911 = vst.msk [vmem:[#allocation5 + $0x1d8] sm:$0xff] %vm526, %v847
        %912 = vst.msk [vmem:[#allocation5 + $0x1e0] sm:$0xff] %vm526, %v848
        %913 = vst.msk [vmem:[#allocation5 + $0x1e8] sm:$0xff] %vm526, %v849
        %914 = vst.msk [vmem:[#allocation5 + $0x1f0] sm:$0xff] %vm526, %v850
        %915 = vst.msk [vmem:[#allocation5 + $0x1f8] sm:$0xff] %vm526, %v851
      $region44: #{bottleneck_stack_forward.1} parent=35 // pred_fallthru
        _
      %v916 = vld [vmem:[#allocation3] sm:$0xff]
      %v917 = vld [vmem:[#allocation3 + $0x8] sm:$0xff]
      %v918 = vld [vmem:[#allocation3 + $0x10] sm:$0xff]
      %v919 = vld [vmem:[#allocation3 + $0x18] sm:$0xff]
      %v920 = vld [vmem:[#allocation3 + $0x20] sm:$0xff]
      %v921 = vld [vmem:[#allocation3 + $0x28] sm:$0xff]
      %v922 = vld [vmem:[#allocation3 + $0x30] sm:$0xff]
      %v923 = vld [vmem:[#allocation3 + $0x38] sm:$0xff]
      %v924 = vld [vmem:[#allocation3 + $0x40] sm:$0xff]
      %v925 = vld [vmem:[#allocation3 + $0x48] sm:$0xff]
      %v926 = vld [vmem:[#allocation3 + $0x50] sm:$0xff]
      %v927 = vld [vmem:[#allocation3 + $0x58] sm:$0xff]
      %v928 = vld [vmem:[#allocation3 + $0x60] sm:$0xff]
      %v929 = vld [vmem:[#allocation3 + $0x68] sm:$0xff]
      %v930 = vld [vmem:[#allocation3 + $0x70] sm:$0xff]
      %v931 = vld [vmem:[#allocation3 + $0x78] sm:$0xff]
      %v932 = vld [vmem:[#allocation3 + $0x80] sm:$0xff]
      %v933 = vld [vmem:[#allocation3 + $0x88] sm:$0xff]
      %v934 = vld [vmem:[#allocation3 + $0x90] sm:$0xff]
      %v935 = vld [vmem:[#allocation3 + $0x98] sm:$0xff]
      %v936 = vld [vmem:[#allocation3 + $0xa0] sm:$0xff]
      %v937 = vld [vmem:[#allocation3 + $0xa8] sm:$0xff]
      %v938 = vld [vmem:[#allocation3 + $0xb0] sm:$0xff]
      %v939 = vld [vmem:[#allocation3 + $0xb8] sm:$0xff]
      %v940 = vld [vmem:[#allocation3 + $0xc0] sm:$0xff]
      %v941 = vld [vmem:[#allocation3 + $0xc8] sm:$0xff]
      %v942 = vld [vmem:[#allocation3 + $0xd0] sm:$0xff]
      %v943 = vld [vmem:[#allocation3 + $0xd8] sm:$0xff]
      %v944 = vld [vmem:[#allocation3 + $0xe0] sm:$0xff]
      %v945 = vld [vmem:[#allocation3 + $0xe8] sm:$0xff]
      %v946 = vld [vmem:[#allocation3 + $0xf0] sm:$0xff]
      %v947 = vld [vmem:[#allocation3 + $0xf8] sm:$0xff]
      %v948 = vpack.c.bf16 %v917, %v916
      %v949 = vpack.c.bf16 %v919, %v918
      %v950 = vpack.c.bf16 %v921, %v920
      %v951 = vpack.c.bf16 %v923, %v922
      %v952 = vpack.c.bf16 %v925, %v924
      %v953 = vpack.c.bf16 %v927, %v926
      %v954 = vpack.c.bf16 %v929, %v928
      %v955 = vpack.c.bf16 %v931, %v930
      %v956 = vpack.c.bf16 %v933, %v932
      %v957 = vpack.c.bf16 %v935, %v934
      %v958 = vpack.c.bf16 %v937, %v936
      %v959 = vpack.c.bf16 %v939, %v938
      %v960 = vpack.c.bf16 %v941, %v940
      %v961 = vpack.c.bf16 %v943, %v942
      %v962 = vpack.c.bf16 %v945, %v944
      %v963 = vpack.c.bf16 %v947, %v946
      %v964 = vld [vmem:[%s204] sm:$0xf]
      %v965 = vld [vmem:[%s204 + $0x4] sm:$0xf]
      %v966 = vld [vmem:[%s204 + $0x8] sm:$0xf]
      %v967 = vld [vmem:[%s204 + $0xc] sm:$0xf]
      %v968 = vld [vmem:[#allocation2 + $0x8] sm:$0xff]
      %v969 = vld [vmem:[#allocation2 + $0x10] sm:$0xff]
      %v970 = vld [vmem:[#allocation2 + $0x28] sm:$0xff]
      %v971 = vld [vmem:[#allocation2 + $0x30] sm:$0xff]
      %v972 = vld [vmem:[#allocation2 + $0x48] sm:$0xff]
      %v973 = vld [vmem:[#allocation2 + $0x50] sm:$0xff]
      %v974 = vld [vmem:[#allocation2 + $0x68] sm:$0xff]
      %v975 = vld [vmem:[#allocation2 + $0x70] sm:$0xff]
      %v976 = vld [vmem:[#allocation2 + $0x88] sm:$0xff]
      %v977 = vld [vmem:[#allocation2 + $0x90] sm:$0xff]
      %v978 = vld [vmem:[#allocation2 + $0xa8] sm:$0xff]
      %v979 = vld [vmem:[#allocation2 + $0xb0] sm:$0xff]
      %v980 = vld [vmem:[#allocation2 + $0xc8] sm:$0xff]
      %v981 = vld [vmem:[#allocation2 + $0xd0] sm:$0xff]
      %v982 = vld [vmem:[#allocation2 + $0xe8] sm:$0xff]
      %v983 = vld [vmem:[#allocation2 + $0xf0] sm:$0xff]
      %v984 = vld [vmem:[#allocation2 + $0x108] sm:$0xff]
      %v985 = vld [vmem:[#allocation2 + $0x110] sm:$0xff]
      %v986 = vld [vmem:[#allocation2 + $0x128] sm:$0xff]
      %v987 = vld [vmem:[#allocation2 + $0x130] sm:$0xff]
      %v988 = vld [vmem:[#allocation2 + $0x148] sm:$0xff]
      %v989 = vld [vmem:[#allocation2 + $0x150] sm:$0xff]
      %v990 = vld [vmem:[#allocation2 + $0x168] sm:$0xff]
      %v991 = vld [vmem:[#allocation2 + $0x170] sm:$0xff]
      %v992 = vld [vmem:[#allocation2 + $0x188] sm:$0xff]
      %v993 = vld [vmem:[#allocation2 + $0x190] sm:$0xff]
      %v994 = vld [vmem:[#allocation2 + $0x1a8] sm:$0xff]
      %v995 = vld [vmem:[#allocation2 + $0x1b0] sm:$0xff]
      %v996 = vld [vmem:[#allocation2 + $0x1c8] sm:$0xff]
      %v997 = vld [vmem:[#allocation2 + $0x1d0] sm:$0xff]
      %v998 = vld [vmem:[#allocation2 + $0x1e8] sm:$0xff]
      %v999 = vld [vmem:[#allocation2 + $0x1f0] sm:$0xff]
      %v1000 = vpack.c.bf16 %v969, %v968
      %v1001 = vpack.c.bf16 %v971, %v970
      %v1002 = vpack.c.bf16 %v973, %v972
      %v1003 = vpack.c.bf16 %v975, %v974
      %v1004 = vpack.c.bf16 %v977, %v976
      %v1005 = vpack.c.bf16 %v979, %v978
      %v1006 = vpack.c.bf16 %v981, %v980
      %v1007 = vpack.c.bf16 %v983, %v982
      %v1008 = vpack.c.bf16 %v985, %v984
      %v1009 = vpack.c.bf16 %v987, %v986
      %v1010 = vpack.c.bf16 %v989, %v988
      %v1011 = vpack.c.bf16 %v991, %v990
      %v1012 = vpack.c.bf16 %v993, %v992
      %v1013 = vpack.c.bf16 %v995, %v994
      %v1014 = vpack.c.bf16 %v997, %v996
      %v1015 = vpack.c.bf16 %v999, %v998
      %s1016 = scalar_lea.vmem %s204, 16
      %v1017 = vld [vmem:[%s1016] sm:$0xf]
      %v1018 = vld [vmem:[%s1016 + $0x4] sm:$0xf]
      %v1019 = vld [vmem:[%s1016 + $0x8] sm:$0xf]
      %v1020 = vld [vmem:[%s1016 + $0xc] sm:$0xf]
      %v1025 = vunpack.c.l.b16 %v1017
      %v1026 = vunpack.c.l.b16 %v1018
      %v1027 = vunpack.c.l.b16 %v1019
      %v1028 = vunpack.c.l.b16 %v1020
      %v1029 = vpack.c.b16 %v1026, %v1025
      %v1030 = vpack.c.b16 %v1028, %v1027
      %v1034 = vsel %vm526, %v1000, 0
      %v1037 = vsel %vm526, %v1001, 0
      %v1040 = vsel %vm526, %v1002, 0
      %v1043 = vsel %vm526, %v1003, 0
      %v1046 = vsel %vm526, %v1004, 0
      %v1049 = vsel %vm526, %v1005, 0
      %v1052 = vsel %vm526, %v1006, 0
      %v1055 = vsel %vm526, %v1007, 0
      %v1058 = vsel %vm526, %v1008, 0
      %v1061 = vsel %vm526, %v1009, 0
      %v1064 = vsel %vm526, %v1010, 0
      %v1067 = vsel %vm526, %v1011, 0
      %v1070 = vsel %vm526, %v1012, 0
      %v1073 = vsel %vm526, %v1013, 0
      %v1076 = vsel %vm526, %v1014, 0
      %v1079 = vsel %vm526, %v1015, 0
      %1081 = vmatprep.subr.bf16.mxu0 0
      %1082 = vmatpush1.bf16.msra.mxu0 %v1029
      %1083 = vmatprep.subr.bf16.mxu0 0
      %1084 = vmatpush1.bf16.msra.mxu0 %v1030
      %1085 = vmatprep.subr.bf16.mxu0 0
      %1086 = vmatpush1.bf16.msra.mxu0 0
      %1087 = vmatprep.subr.bf16.mxu0 0
      %1088 = vmatpush1.bf16.msra.mxu0 0
      %1089 = vmatprep.subr.bf16.mxu0 0
      %1090 = vmatpush1.bf16.msra.mxu0 0
      %1091 = vmatprep.subr.bf16.mxu0 0
      %1092 = vmatpush1.bf16.msra.mxu0 0
      %1093 = vmatprep.subr.bf16.mxu0 0
      %1094 = vmatpush1.bf16.msra.mxu0 0
      %1095 = vmatprep.subr.bf16.mxu0 0
      %1096 = vmatpush1.bf16.msra.mxu0 0
      %1097 = vmatprep.subr.bf16.mxu0 0
      %1098 = vmatpush1.bf16.msra.mxu0 0
      %1099 = vmatprep.subr.bf16.mxu0 0
      %1100 = vmatpush1.bf16.msra.mxu0 0
      %1101 = vmatprep.subr.bf16.mxu0 0
      %1102 = vmatpush1.bf16.msra.mxu0 0
      %1103 = vmatprep.subr.bf16.mxu0 0
      %1104 = vmatpush1.bf16.msra.mxu0 0
      %1105 = vmatprep.subr.bf16.mxu0 0
      %1106 = vmatpush1.bf16.msra.mxu0 0
      %1107 = vmatprep.subr.bf16.mxu0 0
      %1108 = vmatpush1.bf16.msra.mxu0 0
      %1109 = vmatprep.subr.bf16.mxu0 0
      %1110 = vmatpush1.bf16.msra.mxu0 0
      %1111 = vmatprep.subr.bf16.mxu0 0
      %1112 = vmatpush1.bf16.msra.mxu0 0
      %1113 = vmatprep.mubr.bf16.mxu0 0
      %1114 = vmatmul.mubr.bf16.gmra.mrb[0].mxu0 %v1034
      %v1115 = vpop.f32.mrb[0].mxu0
      %v1116 = vadd.f32 0.0, %v1115
      %v1117 = vpop.f32.mrb[0].mxu0
      %v1118 = vpop.f32.mrb[0].mxu0
      %v1119 = vadd.f32 0.0, %v1118
      %v1120 = vpop.f32.mrb[0].mxu0
      %1121 = vmatprep.mubr.bf16.mxu0 0
      %1122 = vmatmul.mubr.bf16.gmra.mrb[0].mxu0 %v1037
      %v1123 = vpop.f32.mrb[0].mxu0
      %v1124 = vadd.f32 0.0, %v1123
      %v1125 = vpop.f32.mrb[0].mxu0
      %v1126 = vpop.f32.mrb[0].mxu0
      %v1127 = vadd.f32 0.0, %v1126
      %v1128 = vpop.f32.mrb[0].mxu0
      %1129 = vmatprep.mubr.bf16.mxu0 0
      %1130 = vmatmul.mubr.bf16.gmra.mrb[0].mxu0 %v1040
      %v1131 = vpop.f32.mrb[0].mxu0
      %v1132 = vadd.f32 0.0, %v1131
      %v1133 = vpop.f32.mrb[0].mxu0
      %v1134 = vpop.f32.mrb[0].mxu0
      %v1135 = vadd.f32 0.0, %v1134
      %v1136 = vpop.f32.mrb[0].mxu0
      %1137 = vmatprep.mubr.bf16.mxu0 0
      %1138 = vmatmul.mubr.bf16.gmra.mrb[0].mxu0 %v1043
      %v1139 = vpop.f32.mrb[0].mxu0
      %v1140 = vadd.f32 0.0, %v1139
      %v1141 = vpop.f32.mrb[0].mxu0
      %v1142 = vpop.f32.mrb[0].mxu0
      %v1143 = vadd.f32 0.0, %v1142
      %v1144 = vpop.f32.mrb[0].mxu0
      %1145 = vmatprep.mubr.bf16.mxu0 0
      %1146 = vmatmul.mubr.bf16.gmra.mrb[0].mxu0 %v1046
      %v1147 = vpop.f32.mrb[0].mxu0
      %v1148 = vadd.f32 0.0, %v1147
      %v1149 = vpop.f32.mrb[0].mxu0
      %v1150 = vpop.f32.mrb[0].mxu0
      %v1151 = vadd.f32 0.0, %v1150
      %v1152 = vpop.f32.mrb[0].mxu0
      %1153 = vmatprep.mubr.bf16.mxu0 0
      %1154 = vmatmul.mubr.bf16.gmra.mrb[0].mxu0 %v1049
      %v1155 = vpop.f32.mrb[0].mxu0
      %v1156 = vadd.f32 0.0, %v1155
      %v1157 = vpop.f32.mrb[0].mxu0
      %v1158 = vpop.f32.mrb[0].mxu0
      %v1159 = vadd.f32 0.0, %v1158
      %v1160 = vpop.f32.mrb[0].mxu0
      %1161 = vmatprep.mubr.bf16.mxu0 0
      %1162 = vmatmul.mubr.bf16.gmra.mrb[0].mxu0 %v1052
      %v1163 = vpop.f32.mrb[0].mxu0
      %v1164 = vadd.f32 0.0, %v1163
      %v1165 = vpop.f32.mrb[0].mxu0
      %v1166 = vpop.f32.mrb[0].mxu0
      %v1167 = vadd.f32 0.0, %v1166
      %v1168 = vpop.f32.mrb[0].mxu0
      %1169 = vmatprep.mubr.bf16.mxu0 0
      %1170 = vmatmul.mubr.bf16.gmra.mrb[0].mxu0 %v1055
      %v1171 = vpop.f32.mrb[0].mxu0
      %v1172 = vadd.f32 0.0, %v1171
      %v1173 = vpop.f32.mrb[0].mxu0
      %v1174 = vpop.f32.mrb[0].mxu0
      %v1175 = vadd.f32 0.0, %v1174
      %v1176 = vpop.f32.mrb[0].mxu0
      %1177 = vmatprep.mubr.bf16.mxu0 0
      %1178 = vmatmul.mubr.bf16.gmra.mrb[0].mxu0 %v1058
      %v1179 = vpop.f32.mrb[0].mxu0
      %v1180 = vadd.f32 0.0, %v1179
      %v1181 = vpop.f32.mrb[0].mxu0
      %v1182 = vpop.f32.mrb[0].mxu0
      %v1183 = vadd.f32 0.0, %v1182
      %v1184 = vpop.f32.mrb[0].mxu0
      %1185 = vmatprep.mubr.bf16.mxu0 0
      %1186 = vmatmul.mubr.bf16.gmra.mrb[0].mxu0 %v1061
      %v1187 = vpop.f32.mrb[0].mxu0
      %v1188 = vadd.f32 0.0, %v1187
      %v1189 = vpop.f32.mrb[0].mxu0
      %v1190 = vpop.f32.mrb[0].mxu0
      %v1191 = vadd.f32 0.0, %v1190
      %v1192 = vpop.f32.mrb[0].mxu0
      %1193 = vmatprep.mubr.bf16.mxu0 0
      %1194 = vmatmul.mubr.bf16.gmra.mrb[0].mxu0 %v1064
      %v1195 = vpop.f32.mrb[0].mxu0
      %v1196 = vadd.f32 0.0, %v1195
      %v1197 = vpop.f32.mrb[0].mxu0
      %v1198 = vpop.f32.mrb[0].mxu0
      %v1199 = vadd.f32 0.0, %v1198
      %v1200 = vpop.f32.mrb[0].mxu0
      %1201 = vmatprep.mubr.bf16.mxu0 0
      %1202 = vmatmul.mubr.bf16.gmra.mrb[0].mxu0 %v1067
      %v1203 = vpop.f32.mrb[0].mxu0
      %v1204 = vadd.f32 0.0, %v1203
      %v1205 = vpop.f32.mrb[0].mxu0
      %v1206 = vpop.f32.mrb[0].mxu0
      %v1207 = vadd.f32 0.0, %v1206
      %v1208 = vpop.f32.mrb[0].mxu0
      %1209 = vmatprep.mubr.bf16.mxu0 0
      %1210 = vmatmul.mubr.bf16.gmra.mrb[0].mxu0 %v1070
      %v1211 = vpop.f32.mrb[0].mxu0
      %v1212 = vadd.f32 0.0, %v1211
      %v1213 = vpop.f32.mrb[0].mxu0
      %v1214 = vpop.f32.mrb[0].mxu0
      %v1215 = vadd.f32 0.0, %v1214
      %v1216 = vpop.f32.mrb[0].mxu0
      %1217 = vmatprep.mubr.bf16.mxu0 0
      %1218 = vmatmul.mubr.bf16.gmra.mrb[0].mxu0 %v1073
      %v1219 = vpop.f32.mrb[0].mxu0
      %v1220 = vadd.f32 0.0, %v1219
      %v1221 = vpop.f32.mrb[0].mxu0
      %v1222 = vpop.f32.mrb[0].mxu0
      %v1223 = vadd.f32 0.0, %v1222
      %v1224 = vpop.f32.mrb[0].mxu0
      %1225 = vmatprep.mubr.bf16.mxu0 0
      %1226 = vmatmul.mubr.bf16.gmra.mrb[0].mxu0 %v1076
      %v1227 = vpop.f32.mrb[0].mxu0
      %v1228 = vadd.f32 0.0, %v1227
      %v1229 = vpop.f32.mrb[0].mxu0
      %v1230 = vpop.f32.mrb[0].mxu0
      %v1231 = vadd.f32 0.0, %v1230
      %v1232 = vpop.f32.mrb[0].mxu0
      %1233 = vmatprep.mubr.bf16.mxu0 0
      %1234 = vmatmul.mubr.bf16.gmra.mrb[0].mxu0 %v1079
      %v1235 = vpop.f32.mrb[0].mxu0
      %v1236 = vadd.f32 0.0, %v1235
      %v1237 = vpop.f32.mrb[0].mxu0
      %v1238 = vpop.f32.mrb[0].mxu0
      %v1239 = vadd.f32 0.0, %v1238
      %v1240 = vpop.f32.mrb[0].mxu0
      %1241 = vdwg.mxu0
      %v1246 = vunpack.c.l.b16 %v964
      %v1247 = vunpack.c.l.b16 %v965
      %v1248 = vunpack.c.l.b16 %v966
      %v1249 = vunpack.c.l.b16 %v967
      %v1250 = vpack.c.b16 %v1247, %v1246
      %v1251 = vpack.c.b16 %v1249, %v1248
      %v1255 = vsel %vm526, %v948, 0
      %v1258 = vsel %vm526, %v949, 0
      %v1261 = vsel %vm526, %v950, 0
      %v1264 = vsel %vm526, %v951, 0
      %v1267 = vsel %vm526, %v952, 0
      %v1270 = vsel %vm526, %v953, 0
      %v1273 = vsel %vm526, %v954, 0
      %v1276 = vsel %vm526, %v955, 0
      %v1279 = vsel %vm526, %v956, 0
      %v1282 = vsel %vm526, %v957, 0
      %v1285 = vsel %vm526, %v958, 0
      %v1288 = vsel %vm526, %v959, 0
      %v1291 = vsel %vm526, %v960, 0
      %v1294 = vsel %vm526, %v961, 0
      %v1297 = vsel %vm526, %v962, 0
      %v1300 = vsel %vm526, %v963, 0
      %1302 = vmatprep.subr.bf16.mxu0 0
      %1303 = vmatpush1.bf16.msra.mxu0 %v1250
      %1304 = vmatprep.subr.bf16.mxu0 0
      %1305 = vmatpush1.bf16.msra.mxu0 %v1251
      %1306 = vmatprep.subr.bf16.mxu0 0
      %1307 = vmatpush1.bf16.msra.mxu0 0
      %1308 = vmatprep.subr.bf16.mxu0 0
      %1309 = vmatpush1.bf16.msra.mxu0 0
      %1310 = vmatprep.subr.bf16.mxu0 0
      %1311 = vmatpush1.bf16.msra.mxu0 0
      %1312 = vmatprep.subr.bf16.mxu0 0
      %1313 = vmatpush1.bf16.msra.mxu0 0
      %1314 = vmatprep.subr.bf16.mxu0 0
      %1315 = vmatpush1.bf16.msra.mxu0 0
      %1316 = vmatprep.subr.bf16.mxu0 0
      %1317 = vmatpush1.bf16.msra.mxu0 0
      %1318 = vmatprep.subr.bf16.mxu0 0
      %1319 = vmatpush1.bf16.msra.mxu0 0
      %1320 = vmatprep.subr.bf16.mxu0 0
      %1321 = vmatpush1.bf16.msra.mxu0 0
      %1322 = vmatprep.subr.bf16.mxu0 0
      %1323 = vmatpush1.bf16.msra.mxu0 0
      %1324 = vmatprep.subr.bf16.mxu0 0
      %1325 = vmatpush1.bf16.msra.mxu0 0
      %1326 = vmatprep.subr.bf16.mxu0 0
      %1327 = vmatpush1.bf16.msra.mxu0 0
      %1328 = vmatprep.subr.bf16.mxu0 0
      %1329 = vmatpush1.bf16.msra.mxu0 0
      %1330 = vmatprep.subr.bf16.mxu0 0
      %1331 = vmatpush1.bf16.msra.mxu0 0
      %1332 = vmatprep.subr.bf16.mxu0 0
      %1333 = vmatpush1.bf16.msra.mxu0 0
      %1334 = vmatprep.mubr.bf16.mxu0 0
      %1335 = vmatmul.mubr.bf16.gmra.mrb[0].mxu0 %v1255
      %v1336 = vpop.f32.mrb[0].mxu0
      %v1337 = vadd.f32 %v1116, %v1336
      %v1338 = vpop.f32.mrb[0].mxu0
      %v1339 = vpop.f32.mrb[0].mxu0
      %v1340 = vadd.f32 %v1119, %v1339
      %v1341 = vpop.f32.mrb[0].mxu0
      %1342 = vmatprep.mubr.bf16.mxu0 0
      %1343 = vmatmul.mubr.bf16.gmra.mrb[0].mxu0 %v1258
      %v1344 = vpop.f32.mrb[0].mxu0
      %v1345 = vadd.f32 %v1124, %v1344
      %v1346 = vpop.f32.mrb[0].mxu0
      %v1347 = vpop.f32.mrb[0].mxu0
      %v1348 = vadd.f32 %v1127, %v1347
      %v1349 = vpop.f32.mrb[0].mxu0
      %1350 = vmatprep.mubr.bf16.mxu0 0
      %1351 = vmatmul.mubr.bf16.gmra.mrb[0].mxu0 %v1261
      %v1352 = vpop.f32.mrb[0].mxu0
      %v1353 = vadd.f32 %v1132, %v1352
      %v1354 = vpop.f32.mrb[0].mxu0
      %v1355 = vpop.f32.mrb[0].mxu0
      %v1356 = vadd.f32 %v1135, %v1355
      %v1357 = vpop.f32.mrb[0].mxu0
      %1358 = vmatprep.mubr.bf16.mxu0 0
      %1359 = vmatmul.mubr.bf16.gmra.mrb[0].mxu0 %v1264
      %v1360 = vpop.f32.mrb[0].mxu0
      %v1361 = vadd.f32 %v1140, %v1360
      %v1362 = vpop.f32.mrb[0].mxu0
      %v1363 = vpop.f32.mrb[0].mxu0
      %v1364 = vadd.f32 %v1143, %v1363
      %v1365 = vpop.f32.mrb[0].mxu0
      %1366 = vmatprep.mubr.bf16.mxu0 0
      %1367 = vmatmul.mubr.bf16.gmra.mrb[0].mxu0 %v1267
      %v1368 = vpop.f32.mrb[0].mxu0
      %v1369 = vadd.f32 %v1148, %v1368
      %v1370 = vpop.f32.mrb[0].mxu0
      %v1371 = vpop.f32.mrb[0].mxu0
      %v1372 = vadd.f32 %v1151, %v1371
      %v1373 = vpop.f32.mrb[0].mxu0
      %1374 = vmatprep.mubr.bf16.mxu0 0
      %1375 = vmatmul.mubr.bf16.gmra.mrb[0].mxu0 %v1270
      %v1376 = vpop.f32.mrb[0].mxu0
      %v1377 = vadd.f32 %v1156, %v1376
      %v1378 = vpop.f32.mrb[0].mxu0
      %v1379 = vpop.f32.mrb[0].mxu0
      %v1380 = vadd.f32 %v1159, %v1379
      %v1381 = vpop.f32.mrb[0].mxu0
      %1382 = vmatprep.mubr.bf16.mxu0 0
      %1383 = vmatmul.mubr.bf16.gmra.mrb[0].mxu0 %v1273
      %v1384 = vpop.f32.mrb[0].mxu0
      %v1385 = vadd.f32 %v1164, %v1384
      %v1386 = vpop.f32.mrb[0].mxu0
      %v1387 = vpop.f32.mrb[0].mxu0
      %v1388 = vadd.f32 %v1167, %v1387
      %v1389 = vpop.f32.mrb[0].mxu0
      %1390 = vmatprep.mubr.bf16.mxu0 0
      %1391 = vmatmul.mubr.bf16.gmra.mrb[0].mxu0 %v1276
      %v1392 = vpop.f32.mrb[0].mxu0
      %v1393 = vadd.f32 %v1172, %v1392
      %v1394 = vpop.f32.mrb[0].mxu0
      %v1395 = vpop.f32.mrb[0].mxu0
      %v1396 = vadd.f32 %v1175, %v1395
      %v1397 = vpop.f32.mrb[0].mxu0
      %1398 = vmatprep.mubr.bf16.mxu0 0
      %1399 = vmatmul.mubr.bf16.gmra.mrb[0].mxu0 %v1279
      %v1400 = vpop.f32.mrb[0].mxu0
      %v1401 = vadd.f32 %v1180, %v1400
      %v1402 = vpop.f32.mrb[0].mxu0
      %v1403 = vpop.f32.mrb[0].mxu0
      %v1404 = vadd.f32 %v1183, %v1403
      %v1405 = vpop.f32.mrb[0].mxu0
      %1406 = vmatprep.mubr.bf16.mxu0 0
      %1407 = vmatmul.mubr.bf16.gmra.mrb[0].mxu0 %v1282
      %v1408 = vpop.f32.mrb[0].mxu0
      %v1409 = vadd.f32 %v1188, %v1408
      %v1410 = vpop.f32.mrb[0].mxu0
      %v1411 = vpop.f32.mrb[0].mxu0
      %v1412 = vadd.f32 %v1191, %v1411
      %v1413 = vpop.f32.mrb[0].mxu0
      %1414 = vmatprep.mubr.bf16.mxu0 0
      %1415 = vmatmul.mubr.bf16.gmra.mrb[0].mxu0 %v1285
      %v1416 = vpop.f32.mrb[0].mxu0
      %v1417 = vadd.f32 %v1196, %v1416
      %v1418 = vpop.f32.mrb[0].mxu0
      %v1419 = vpop.f32.mrb[0].mxu0
      %v1420 = vadd.f32 %v1199, %v1419
      %v1421 = vpop.f32.mrb[0].mxu0
      %1422 = vmatprep.mubr.bf16.mxu0 0
      %1423 = vmatmul.mubr.bf16.gmra.mrb[0].mxu0 %v1288
      %v1424 = vpop.f32.mrb[0].mxu0
      %v1425 = vadd.f32 %v1204, %v1424
      %v1426 = vpop.f32.mrb[0].mxu0
      %v1427 = vpop.f32.mrb[0].mxu0
      %v1428 = vadd.f32 %v1207, %v1427
      %v1429 = vpop.f32.mrb[0].mxu0
      %1430 = vmatprep.mubr.bf16.mxu0 0
      %1431 = vmatmul.mubr.bf16.gmra.mrb[0].mxu0 %v1291
      %v1432 = vpop.f32.mrb[0].mxu0
      %v1433 = vadd.f32 %v1212, %v1432
      %v1434 = vpop.f32.mrb[0].mxu0
      %v1435 = vpop.f32.mrb[0].mxu0
      %v1436 = vadd.f32 %v1215, %v1435
      %v1437 = vpop.f32.mrb[0].mxu0
      %1438 = vmatprep.mubr.bf16.mxu0 0
      %1439 = vmatmul.mubr.bf16.gmra.mrb[0].mxu0 %v1294
      %v1440 = vpop.f32.mrb[0].mxu0
      %v1441 = vadd.f32 %v1220, %v1440
      %v1442 = vpop.f32.mrb[0].mxu0
      %v1443 = vpop.f32.mrb[0].mxu0
      %v1444 = vadd.f32 %v1223, %v1443
      %v1445 = vpop.f32.mrb[0].mxu0
      %1446 = vmatprep.mubr.bf16.mxu0 0
      %1447 = vmatmul.mubr.bf16.gmra.mrb[0].mxu0 %v1297
      %v1448 = vpop.f32.mrb[0].mxu0
      %v1449 = vadd.f32 %v1228, %v1448
      %v1450 = vpop.f32.mrb[0].mxu0
      %v1451 = vpop.f32.mrb[0].mxu0
      %v1452 = vadd.f32 %v1231, %v1451
      %v1453 = vpop.f32.mrb[0].mxu0
      %1454 = vmatprep.mubr.bf16.mxu0 0
      %1455 = vmatmul.mubr.bf16.gmra.mrb[0].mxu0 %v1300
      %v1456 = vpop.f32.mrb[0].mxu0
      %v1457 = vadd.f32 %v1236, %v1456
      %v1458 = vpop.f32.mrb[0].mxu0
      %v1459 = vpop.f32.mrb[0].mxu0
      %v1460 = vadd.f32 %v1239, %v1459
      %v1461 = vpop.f32.mrb[0].mxu0
      %1462 = vdwg.mxu0
      %v1463 = vld [vmem:[%s673] sm:$0xff]
      %v1464 = vld [vmem:[%s673 + $0x8] sm:$0xff]
      %v1465 = vld [vmem:[%s673 + $0x10] sm:$0xff]
      %v1466 = vld [vmem:[%s673 + $0x18] sm:$0xff]
      %v1467 = vld [vmem:[%s673 + $0x20] sm:$0xff]
      %v1468 = vld [vmem:[%s673 + $0x28] sm:$0xff]
      %v1469 = vld [vmem:[%s673 + $0x30] sm:$0xff]
      %v1470 = vld [vmem:[%s673 + $0x38] sm:$0xff]
      %v1471 = vld [vmem:[%s673 + $0x40] sm:$0xff]
      %v1472 = vld [vmem:[%s673 + $0x48] sm:$0xff]
      %v1473 = vld [vmem:[%s673 + $0x50] sm:$0xff]
      %v1474 = vld [vmem:[%s673 + $0x58] sm:$0xff]
      %v1475 = vld [vmem:[%s673 + $0x60] sm:$0xff]
      %v1476 = vld [vmem:[%s673 + $0x68] sm:$0xff]
      %v1477 = vld [vmem:[%s673 + $0x70] sm:$0xff]
      %v1478 = vld [vmem:[%s673 + $0x78] sm:$0xff]
      %v1479 = vld [vmem:[%s673 + $0x80] sm:$0xff]
      %v1480 = vld [vmem:[%s673 + $0x88] sm:$0xff]
      %v1481 = vld [vmem:[%s673 + $0x90] sm:$0xff]
      %v1482 = vld [vmem:[%s673 + $0x98] sm:$0xff]
      %v1483 = vld [vmem:[%s673 + $0xa0] sm:$0xff]
      %v1484 = vld [vmem:[%s673 + $0xa8] sm:$0xff]
      %v1485 = vld [vmem:[%s673 + $0xb0] sm:$0xff]
      %v1486 = vld [vmem:[%s673 + $0xb8] sm:$0xff]
      %v1487 = vld [vmem:[%s673 + $0xc0] sm:$0xff]
      %v1488 = vld [vmem:[%s673 + $0xc8] sm:$0xff]
      %v1489 = vld [vmem:[%s673 + $0xd0] sm:$0xff]
      %v1490 = vld [vmem:[%s673 + $0xd8] sm:$0xff]
      %v1491 = vld [vmem:[%s673 + $0xe0] sm:$0xff]
      %v1492 = vld [vmem:[%s673 + $0xe8] sm:$0xff]
      %v1493 = vld [vmem:[%s673 + $0xf0] sm:$0xff]
      %v1494 = vld [vmem:[%s673 + $0xf8] sm:$0xff]
      %v1495 = vpack.c.bf16 %v1464, %v1463
      %v1496 = vpack.c.bf16 %v1466, %v1465
      %v1497 = vpack.c.bf16 %v1468, %v1467
      %v1498 = vpack.c.bf16 %v1470, %v1469
      %v1499 = vpack.c.bf16 %v1472, %v1471
      %v1500 = vpack.c.bf16 %v1474, %v1473
      %v1501 = vpack.c.bf16 %v1476, %v1475
      %v1502 = vpack.c.bf16 %v1478, %v1477
      %v1503 = vpack.c.bf16 %v1480, %v1479
      %v1504 = vpack.c.bf16 %v1482, %v1481
      %v1505 = vpack.c.bf16 %v1484, %v1483
      %v1506 = vpack.c.bf16 %v1486, %v1485
      %v1507 = vpack.c.bf16 %v1488, %v1487
      %v1508 = vpack.c.bf16 %v1490, %v1489
      %v1509 = vpack.c.bf16 %v1492, %v1491
      %v1510 = vpack.c.bf16 %v1494, %v1493
      %s1511 = scalar_lea.vmem %s204, 32
      %v1512 = vld [vmem:[%s1511] sm:$0xf]
      %v1513 = vld [vmem:[%s1511 + $0x4] sm:$0xf]
      %v1514 = vld [vmem:[%s1511 + $0x8] sm:$0xf]
      %v1515 = vld [vmem:[%s1511 + $0xc] sm:$0xf]
      %v1520 = vunpack.c.l.b16 %v1512
      %v1521 = vunpack.c.l.b16 %v1513
      %v1522 = vunpack.c.l.b16 %v1514
      %v1523 = vunpack.c.l.b16 %v1515
      %v1524 = vpack.c.b16 %v1521, %v1520
      %v1525 = vpack.c.b16 %v1523, %v1522
      %v1529 = vsel %vm526, %v1495, 0
      %v1532 = vsel %vm526, %v1496, 0
      %v1535 = vsel %vm526, %v1497, 0
      %v1538 = vsel %vm526, %v1498, 0
      %v1541 = vsel %vm526, %v1499, 0
      %v1544 = vsel %vm526, %v1500, 0
      %v1547 = vsel %vm526, %v1501, 0
      %v1550 = vsel %vm526, %v1502, 0
      %v1553 = vsel %vm526, %v1503, 0
      %v1556 = vsel %vm526, %v1504, 0
      %v1559 = vsel %vm526, %v1505, 0
      %v1562 = vsel %vm526, %v1506, 0
      %v1565 = vsel %vm526, %v1507, 0
      %v1568 = vsel %vm526, %v1508, 0
      %v1571 = vsel %vm526, %v1509, 0
      %v1574 = vsel %vm526, %v1510, 0
      %1576 = vmatprep.subr.bf16.mxu0 0
      %1577 = vmatpush1.bf16.msra.mxu0 %v1524
      %1578 = vmatprep.subr.bf16.mxu0 0
      %1579 = vmatpush1.bf16.msra.mxu0 %v1525
      %1580 = vmatprep.subr.bf16.mxu0 0
      %1581 = vmatpush1.bf16.msra.mxu0 0
      %1582 = vmatprep.subr.bf16.mxu0 0
      %1583 = vmatpush1.bf16.msra.mxu0 0
      %1584 = vmatprep.subr.bf16.mxu0 0
      %1585 = vmatpush1.bf16.msra.mxu0 0
      %1586 = vmatprep.subr.bf16.mxu0 0
      %1587 = vmatpush1.bf16.msra.mxu0 0
      %1588 = vmatprep.subr.bf16.mxu0 0
      %1589 = vmatpush1.bf16.msra.mxu0 0
      %1590 = vmatprep.subr.bf16.mxu0 0
      %1591 = vmatpush1.bf16.msra.mxu0 0
      %1592 = vmatprep.subr.bf16.mxu0 0
      %1593 = vmatpush1.bf16.msra.mxu0 0
      %1594 = vmatprep.subr.bf16.mxu0 0
      %1595 = vmatpush1.bf16.msra.mxu0 0
      %1596 = vmatprep.subr.bf16.mxu0 0
      %1597 = vmatpush1.bf16.msra.mxu0 0
      %1598 = vmatprep.subr.bf16.mxu0 0
      %1599 = vmatpush1.bf16.msra.mxu0 0
      %1600 = vmatprep.subr.bf16.mxu0 0
      %1601 = vmatpush1.bf16.msra.mxu0 0
      %1602 = vmatprep.subr.bf16.mxu0 0
      %1603 = vmatpush1.bf16.msra.mxu0 0
      %1604 = vmatprep.subr.bf16.mxu0 0
      %1605 = vmatpush1.bf16.msra.mxu0 0
      %1606 = vmatprep.subr.bf16.mxu0 0
      %1607 = vmatpush1.bf16.msra.mxu0 0
      %1608 = vmatprep.mubr.bf16.mxu0 0
      %1609 = vmatmul.mubr.bf16.gmra.mrb[0].mxu0 %v1529
      %v1610 = vpop.f32.mrb[0].mxu0
      %v1611 = vadd.f32 0.0, %v1610
      %v1612 = vpop.f32.mrb[0].mxu0
      %v1613 = vpop.f32.mrb[0].mxu0
      %v1614 = vadd.f32 0.0, %v1613
      %v1615 = vpop.f32.mrb[0].mxu0
      %1616 = vmatprep.mubr.bf16.mxu0 0
      %1617 = vmatmul.mubr.bf16.gmra.mrb[0].mxu0 %v1532
      %v1618 = vpop.f32.mrb[0].mxu0
      %v1619 = vadd.f32 0.0, %v1618
      %v1620 = vpop.f32.mrb[0].mxu0
      %v1621 = vpop.f32.mrb[0].mxu0
      %v1622 = vadd.f32 0.0, %v1621
      %v1623 = vpop.f32.mrb[0].mxu0
      %1624 = vmatprep.mubr.bf16.mxu0 0
      %1625 = vmatmul.mubr.bf16.gmra.mrb[0].mxu0 %v1535
      %v1626 = vpop.f32.mrb[0].mxu0
      %v1627 = vadd.f32 0.0, %v1626
      %v1628 = vpop.f32.mrb[0].mxu0
      %v1629 = vpop.f32.mrb[0].mxu0
      %v1630 = vadd.f32 0.0, %v1629
      %v1631 = vpop.f32.mrb[0].mxu0
      %1632 = vmatprep.mubr.bf16.mxu0 0
      %1633 = vmatmul.mubr.bf16.gmra.mrb[0].mxu0 %v1538
      %v1634 = vpop.f32.mrb[0].mxu0
      %v1635 = vadd.f32 0.0, %v1634
      %v1636 = vpop.f32.mrb[0].mxu0
      %v1637 = vpop.f32.mrb[0].mxu0
      %v1638 = vadd.f32 0.0, %v1637
      %v1639 = vpop.f32.mrb[0].mxu0
      %1640 = vmatprep.mubr.bf16.mxu0 0
      %1641 = vmatmul.mubr.bf16.gmra.mrb[0].mxu0 %v1541
      %v1642 = vpop.f32.mrb[0].mxu0
      %v1643 = vadd.f32 0.0, %v1642
      %v1644 = vpop.f32.mrb[0].mxu0
      %v1645 = vpop.f32.mrb[0].mxu0
      %v1646 = vadd.f32 0.0, %v1645
      %v1647 = vpop.f32.mrb[0].mxu0
      %1648 = vmatprep.mubr.bf16.mxu0 0
      %1649 = vmatmul.mubr.bf16.gmra.mrb[0].mxu0 %v1544
      %v1650 = vpop.f32.mrb[0].mxu0
      %v1651 = vadd.f32 0.0, %v1650
      %v1652 = vpop.f32.mrb[0].mxu0
      %v1653 = vpop.f32.mrb[0].mxu0
      %v1654 = vadd.f32 0.0, %v1653
      %v1655 = vpop.f32.mrb[0].mxu0
      %1656 = vmatprep.mubr.bf16.mxu0 0
      %1657 = vmatmul.mubr.bf16.gmra.mrb[0].mxu0 %v1547
      %v1658 = vpop.f32.mrb[0].mxu0
      %v1659 = vadd.f32 0.0, %v1658
      %v1660 = vpop.f32.mrb[0].mxu0
      %v1661 = vpop.f32.mrb[0].mxu0
      %v1662 = vadd.f32 0.0, %v1661
      %v1663 = vpop.f32.mrb[0].mxu0
      %1664 = vmatprep.mubr.bf16.mxu0 0
      %1665 = vmatmul.mubr.bf16.gmra.mrb[0].mxu0 %v1550
      %v1666 = vpop.f32.mrb[0].mxu0
      %v1667 = vadd.f32 0.0, %v1666
      %v1668 = vpop.f32.mrb[0].mxu0
      %v1669 = vpop.f32.mrb[0].mxu0
      %v1670 = vadd.f32 0.0, %v1669
      %v1671 = vpop.f32.mrb[0].mxu0
      %1672 = vmatprep.mubr.bf16.mxu0 0
      %1673 = vmatmul.mubr.bf16.gmra.mrb[0].mxu0 %v1553
      %v1674 = vpop.f32.mrb[0].mxu0
      %v1675 = vadd.f32 0.0, %v1674
      %v1676 = vpop.f32.mrb[0].mxu0
      %v1677 = vpop.f32.mrb[0].mxu0
      %v1678 = vadd.f32 0.0, %v1677
      %v1679 = vpop.f32.mrb[0].mxu0
      %1680 = vmatprep.mubr.bf16.mxu0 0
      %1681 = vmatmul.mubr.bf16.gmra.mrb[0].mxu0 %v1556
      %v1682 = vpop.f32.mrb[0].mxu0
      %v1683 = vadd.f32 0.0, %v1682
      %v1684 = vpop.f32.mrb[0].mxu0
      %v1685 = vpop.f32.mrb[0].mxu0
      %v1686 = vadd.f32 0.0, %v1685
      %v1687 = vpop.f32.mrb[0].mxu0
      %1688 = vmatprep.mubr.bf16.mxu0 0
      %1689 = vmatmul.mubr.bf16.gmra.mrb[0].mxu0 %v1559
      %v1690 = vpop.f32.mrb[0].mxu0
      %v1691 = vadd.f32 0.0, %v1690
      %v1692 = vpop.f32.mrb[0].mxu0
      %v1693 = vpop.f32.mrb[0].mxu0
      %v1694 = vadd.f32 0.0, %v1693
      %v1695 = vpop.f32.mrb[0].mxu0
      %1696 = vmatprep.mubr.bf16.mxu0 0
      %1697 = vmatmul.mubr.bf16.gmra.mrb[0].mxu0 %v1562
      %v1698 = vpop.f32.mrb[0].mxu0
      %v1699 = vadd.f32 0.0, %v1698
      %v1700 = vpop.f32.mrb[0].mxu0
      %v1701 = vpop.f32.mrb[0].mxu0
      %v1702 = vadd.f32 0.0, %v1701
      %v1703 = vpop.f32.mrb[0].mxu0
      %1704 = vmatprep.mubr.bf16.mxu0 0
      %1705 = vmatmul.mubr.bf16.gmra.mrb[0].mxu0 %v1565
      %v1706 = vpop.f32.mrb[0].mxu0
      %v1707 = vadd.f32 0.0, %v1706
      %v1708 = vpop.f32.mrb[0].mxu0
      %v1709 = vpop.f32.mrb[0].mxu0
      %v1710 = vadd.f32 0.0, %v1709
      %v1711 = vpop.f32.mrb[0].mxu0
      %1712 = vmatprep.mubr.bf16.mxu0 0
      %1713 = vmatmul.mubr.bf16.gmra.mrb[0].mxu0 %v1568
      %v1714 = vpop.f32.mrb[0].mxu0
      %v1715 = vadd.f32 0.0, %v1714
      %v1716 = vpop.f32.mrb[0].mxu0
      %v1717 = vpop.f32.mrb[0].mxu0
      %v1718 = vadd.f32 0.0, %v1717
      %v1719 = vpop.f32.mrb[0].mxu0
      %1720 = vmatprep.mubr.bf16.mxu0 0
      %1721 = vmatmul.mubr.bf16.gmra.mrb[0].mxu0 %v1571
      %v1722 = vpop.f32.mrb[0].mxu0
      %v1723 = vadd.f32 0.0, %v1722
      %v1724 = vpop.f32.mrb[0].mxu0
      %v1725 = vpop.f32.mrb[0].mxu0
      %v1726 = vadd.f32 0.0, %v1725
      %v1727 = vpop.f32.mrb[0].mxu0
      %1728 = vmatprep.mubr.bf16.mxu0 0
      %1729 = vmatmul.mubr.bf16.gmra.mrb[0].mxu0 %v1574
      %v1730 = vpop.f32.mrb[0].mxu0
      %v1731 = vadd.f32 0.0, %v1730
      %v1732 = vpop.f32.mrb[0].mxu0
      %v1733 = vpop.f32.mrb[0].mxu0
      %v1734 = vadd.f32 0.0, %v1733
      %v1735 = vpop.f32.mrb[0].mxu0
      %1736 = vdwg.mxu0
      %v1737 = vadd.f32 %v1337, %v1611
      %v1738 = vadd.f32 %v1340, %v1614
      %v1739 = vadd.f32 %v1345, %v1619
      %v1740 = vadd.f32 %v1348, %v1622
      %v1741 = vadd.f32 %v1353, %v1627
      %v1742 = vadd.f32 %v1356, %v1630
      %v1743 = vadd.f32 %v1361, %v1635
      %v1744 = vadd.f32 %v1364, %v1638
      %v1745 = vadd.f32 %v1369, %v1643
      %v1746 = vadd.f32 %v1372, %v1646
      %v1747 = vadd.f32 %v1377, %v1651
      %v1748 = vadd.f32 %v1380, %v1654
      %v1749 = vadd.f32 %v1385, %v1659
      %v1750 = vadd.f32 %v1388, %v1662
      %v1751 = vadd.f32 %v1393, %v1667
      %v1752 = vadd.f32 %v1396, %v1670
      %v1753 = vadd.f32 %v1401, %v1675
      %v1754 = vadd.f32 %v1404, %v1678
      %v1755 = vadd.f32 %v1409, %v1683
      %v1756 = vadd.f32 %v1412, %v1686
      %v1757 = vadd.f32 %v1417, %v1691
      %v1758 = vadd.f32 %v1420, %v1694
      %v1759 = vadd.f32 %v1425, %v1699
      %v1760 = vadd.f32 %v1428, %v1702
      %v1761 = vadd.f32 %v1433, %v1707
      %v1762 = vadd.f32 %v1436, %v1710
      %v1763 = vadd.f32 %v1441, %v1715
      %v1764 = vadd.f32 %v1444, %v1718
      %v1765 = vadd.f32 %v1449, %v1723
      %v1766 = vadd.f32 %v1452, %v1726
      %v1767 = vadd.f32 %v1457, %v1731
      %v1768 = vadd.f32 %v1460, %v1734
      %s1769 = scalar_lea.vmem [#allocation3], 16
      %v1770 = vld [vmem:[%s1769] sm:$0xff]
      %v1771 = vld [vmem:[%s1769 + $0x8] sm:$0xff]
      %v1772 = vld [vmem:[%s1769 + $0x10] sm:$0xff]
      %v1773 = vld [vmem:[%s1769 + $0x18] sm:$0xff]
      %v1774 = vld [vmem:[%s1769 + $0x20] sm:$0xff]
      %v1775 = vld [vmem:[%s1769 + $0x28] sm:$0xff]
      %v1776 = vld [vmem:[%s1769 + $0x30] sm:$0xff]
      %v1777 = vld [vmem:[%s1769 + $0x38] sm:$0xff]
      %v1778 = vld [vmem:[%s1769 + $0x40] sm:$0xff]
      %v1779 = vld [vmem:[%s1769 + $0x48] sm:$0xff]
      %v1780 = vld [vmem:[%s1769 + $0x50] sm:$0xff]
      %v1781 = vld [vmem:[%s1769 + $0x58] sm:$0xff]
      %v1782 = vld [vmem:[%s1769 + $0x60] sm:$0xff]
      %v1783 = vld [vmem:[%s1769 + $0x68] sm:$0xff]
      %v1784 = vld [vmem:[%s1769 + $0x70] sm:$0xff]
      %v1785 = vld [vmem:[%s1769 + $0x78] sm:$0xff]
      %v1786 = vld [vmem:[%s1769 + $0x80] sm:$0xff]
      %v1787 = vld [vmem:[%s1769 + $0x88] sm:$0xff]
      %v1788 = vld [vmem:[%s1769 + $0x90] sm:$0xff]
      %v1789 = vld [vmem:[%s1769 + $0x98] sm:$0xff]
      %v1790 = vld [vmem:[%s1769 + $0xa0] sm:$0xff]
      %v1791 = vld [vmem:[%s1769 + $0xa8] sm:$0xff]
      %v1792 = vld [vmem:[%s1769 + $0xb0] sm:$0xff]
      %v1793 = vld [vmem:[%s1769 + $0xb8] sm:$0xff]
      %v1794 = vld [vmem:[%s1769 + $0xc0] sm:$0xff]
      %v1795 = vld [vmem:[%s1769 + $0xc8] sm:$0xff]
      %v1796 = vld [vmem:[%s1769 + $0xd0] sm:$0xff]
      %v1797 = vld [vmem:[%s1769 + $0xd8] sm:$0xff]
      %v1798 = vld [vmem:[%s1769 + $0xe0] sm:$0xff]
      %v1799 = vld [vmem:[%s1769 + $0xe8] sm:$0xff]
      %v1800 = vld [vmem:[%s1769 + $0xf0] sm:$0xff]
      %v1801 = vld [vmem:[%s1769 + $0xf8] sm:$0xff]
      %v1802 = vpack.c.bf16 %v1771, %v1770
      %v1803 = vpack.c.bf16 %v1773, %v1772
      %v1804 = vpack.c.bf16 %v1775, %v1774
      %v1805 = vpack.c.bf16 %v1777, %v1776
      %v1806 = vpack.c.bf16 %v1779, %v1778
      %v1807 = vpack.c.bf16 %v1781, %v1780
      %v1808 = vpack.c.bf16 %v1783, %v1782
      %v1809 = vpack.c.bf16 %v1785, %v1784
      %v1810 = vpack.c.bf16 %v1787, %v1786
      %v1811 = vpack.c.bf16 %v1789, %v1788
      %v1812 = vpack.c.bf16 %v1791, %v1790
      %v1813 = vpack.c.bf16 %v1793, %v1792
      %v1814 = vpack.c.bf16 %v1795, %v1794
      %v1815 = vpack.c.bf16 %v1797, %v1796
      %v1816 = vpack.c.bf16 %v1799, %v1798
      %v1817 = vpack.c.bf16 %v1801, %v1800
      %s1818 = scalar_lea.vmem %s204, 48
      %v1819 = vld [vmem:[%s1818] sm:$0xf]
      %v1820 = vld [vmem:[%s1818 + $0x4] sm:$0xf]
      %v1821 = vld [vmem:[%s1818 + $0x8] sm:$0xf]
      %v1822 = vld [vmem:[%s1818 + $0xc] sm:$0xf]
      %v1827 = vunpack.c.l.b16 %v1819
      %v1828 = vunpack.c.l.b16 %v1820
      %v1829 = vunpack.c.l.b16 %v1821
      %v1830 = vunpack.c.l.b16 %v1822
      %v1831 = vpack.c.b16 %v1828, %v1827
      %v1832 = vpack.c.b16 %v1830, %v1829
      %v1836 = vsel %vm526, %v1802, 0
      %v1839 = vsel %vm526, %v1803, 0
      %v1842 = vsel %vm526, %v1804, 0
      %v1845 = vsel %vm526, %v1805, 0
      %v1848 = vsel %vm526, %v1806, 0
      %v1851 = vsel %vm526, %v1807, 0
      %v1854 = vsel %vm526, %v1808, 0
      %v1857 = vsel %vm526, %v1809, 0
      %v1860 = vsel %vm526, %v1810, 0
      %v1863 = vsel %vm526, %v1811, 0
      %v1866 = vsel %vm526, %v1812, 0
      %v1869 = vsel %vm526, %v1813, 0
      %v1872 = vsel %vm526, %v1814, 0
      %v1875 = vsel %vm526, %v1815, 0
      %v1878 = vsel %vm526, %v1816, 0
      %v1881 = vsel %vm526, %v1817, 0
      %1883 = vmatprep.subr.bf16.mxu0 0
      %1884 = vmatpush1.bf16.msra.mxu0 %v1831
      %1885 = vmatprep.subr.bf16.mxu0 0
      %1886 = vmatpush1.bf16.msra.mxu0 %v1832
      %1887 = vmatprep.subr.bf16.mxu0 0
      %1888 = vmatpush1.bf16.msra.mxu0 0
      %1889 = vmatprep.subr.bf16.mxu0 0
      %1890 = vmatpush1.bf16.msra.mxu0 0
      %1891 = vmatprep.subr.bf16.mxu0 0
      %1892 = vmatpush1.bf16.msra.mxu0 0
      %1893 = vmatprep.subr.bf16.mxu0 0
      %1894 = vmatpush1.bf16.msra.mxu0 0
      %1895 = vmatprep.subr.bf16.mxu0 0
      %1896 = vmatpush1.bf16.msra.mxu0 0
      %1897 = vmatprep.subr.bf16.mxu0 0
      %1898 = vmatpush1.bf16.msra.mxu0 0
      %1899 = vmatprep.subr.bf16.mxu0 0
      %1900 = vmatpush1.bf16.msra.mxu0 0
      %1901 = vmatprep.subr.bf16.mxu0 0
      %1902 = vmatpush1.bf16.msra.mxu0 0
      %1903 = vmatprep.subr.bf16.mxu0 0
      %1904 = vmatpush1.bf16.msra.mxu0 0
      %1905 = vmatprep.subr.bf16.mxu0 0
      %1906 = vmatpush1.bf16.msra.mxu0 0
      %1907 = vmatprep.subr.bf16.mxu0 0
      %1908 = vmatpush1.bf16.msra.mxu0 0
      %1909 = vmatprep.subr.bf16.mxu0 0
      %1910 = vmatpush1.bf16.msra.mxu0 0
      %1911 = vmatprep.subr.bf16.mxu0 0
      %1912 = vmatpush1.bf16.msra.mxu0 0
      %1913 = vmatprep.subr.bf16.mxu0 0
      %1914 = vmatpush1.bf16.msra.mxu0 0
      %1915 = vmatprep.mubr.bf16.mxu0 0
      %1916 = vmatmul.mubr.bf16.gmra.mrb[0].mxu0 %v1836
      %v1917 = vpop.f32.mrb[0].mxu0
      %v1918 = vadd.f32 0.0, %v1917
      %v1919 = vpop.f32.mrb[0].mxu0
      %v1920 = vpop.f32.mrb[0].mxu0
      %v1921 = vadd.f32 0.0, %v1920
      %v1922 = vpop.f32.mrb[0].mxu0
      %1923 = vmatprep.mubr.bf16.mxu0 0
      %1924 = vmatmul.mubr.bf16.gmra.mrb[0].mxu0 %v1839
      %v1925 = vpop.f32.mrb[0].mxu0
      %v1926 = vadd.f32 0.0, %v1925
      %v1927 = vpop.f32.mrb[0].mxu0
      %v1928 = vpop.f32.mrb[0].mxu0
      %v1929 = vadd.f32 0.0, %v1928
      %v1930 = vpop.f32.mrb[0].mxu0
      %1931 = vmatprep.mubr.bf16.mxu0 0
      %1932 = vmatmul.mubr.bf16.gmra.mrb[0].mxu0 %v1842
      %v1933 = vpop.f32.mrb[0].mxu0
      %v1934 = vadd.f32 0.0, %v1933
      %v1935 = vpop.f32.mrb[0].mxu0
      %v1936 = vpop.f32.mrb[0].mxu0
      %v1937 = vadd.f32 0.0, %v1936
      %v1938 = vpop.f32.mrb[0].mxu0
      %1939 = vmatprep.mubr.bf16.mxu0 0
      %1940 = vmatmul.mubr.bf16.gmra.mrb[0].mxu0 %v1845
      %v1941 = vpop.f32.mrb[0].mxu0
      %v1942 = vadd.f32 0.0, %v1941
      %v1943 = vpop.f32.mrb[0].mxu0
      %v1944 = vpop.f32.mrb[0].mxu0
      %v1945 = vadd.f32 0.0, %v1944
      %v1946 = vpop.f32.mrb[0].mxu0
      %1947 = vmatprep.mubr.bf16.mxu0 0
      %1948 = vmatmul.mubr.bf16.gmra.mrb[0].mxu0 %v1848
      %v1949 = vpop.f32.mrb[0].mxu0
      %v1950 = vadd.f32 0.0, %v1949
      %v1951 = vpop.f32.mrb[0].mxu0
      %v1952 = vpop.f32.mrb[0].mxu0
      %v1953 = vadd.f32 0.0, %v1952
      %v1954 = vpop.f32.mrb[0].mxu0
      %1955 = vmatprep.mubr.bf16.mxu0 0
      %1956 = vmatmul.mubr.bf16.gmra.mrb[0].mxu0 %v1851
      %v1957 = vpop.f32.mrb[0].mxu0
      %v1958 = vadd.f32 0.0, %v1957
      %v1959 = vpop.f32.mrb[0].mxu0
      %v1960 = vpop.f32.mrb[0].mxu0
      %v1961 = vadd.f32 0.0, %v1960
      %v1962 = vpop.f32.mrb[0].mxu0
      %1963 = vmatprep.mubr.bf16.mxu0 0
      %1964 = vmatmul.mubr.bf16.gmra.mrb[0].mxu0 %v1854
      %v1965 = vpop.f32.mrb[0].mxu0
      %v1966 = vadd.f32 0.0, %v1965
      %v1967 = vpop.f32.mrb[0].mxu0
      %v1968 = vpop.f32.mrb[0].mxu0
      %v1969 = vadd.f32 0.0, %v1968
      %v1970 = vpop.f32.mrb[0].mxu0
      %1971 = vmatprep.mubr.bf16.mxu0 0
      %1972 = vmatmul.mubr.bf16.gmra.mrb[0].mxu0 %v1857
      %v1973 = vpop.f32.mrb[0].mxu0
      %v1974 = vadd.f32 0.0, %v1973
      %v1975 = vpop.f32.mrb[0].mxu0
      %v1976 = vpop.f32.mrb[0].mxu0
      %v1977 = vadd.f32 0.0, %v1976
      %v1978 = vpop.f32.mrb[0].mxu0
      %1979 = vmatprep.mubr.bf16.mxu0 0
      %1980 = vmatmul.mubr.bf16.gmra.mrb[0].mxu0 %v1860
      %v1981 = vpop.f32.mrb[0].mxu0
      %v1982 = vadd.f32 0.0, %v1981
      %v1983 = vpop.f32.mrb[0].mxu0
      %v1984 = vpop.f32.mrb[0].mxu0
      %v1985 = vadd.f32 0.0, %v1984
      %v1986 = vpop.f32.mrb[0].mxu0
      %1987 = vmatprep.mubr.bf16.mxu0 0
      %1988 = vmatmul.mubr.bf16.gmra.mrb[0].mxu0 %v1863
      %v1989 = vpop.f32.mrb[0].mxu0
      %v1990 = vadd.f32 0.0, %v1989
      %v1991 = vpop.f32.mrb[0].mxu0
      %v1992 = vpop.f32.mrb[0].mxu0
      %v1993 = vadd.f32 0.0, %v1992
      %v1994 = vpop.f32.mrb[0].mxu0
      %1995 = vmatprep.mubr.bf16.mxu0 0
      %1996 = vmatmul.mubr.bf16.gmra.mrb[0].mxu0 %v1866
      %v1997 = vpop.f32.mrb[0].mxu0
      %v1998 = vadd.f32 0.0, %v1997
      %v1999 = vpop.f32.mrb[0].mxu0
      %v2000 = vpop.f32.mrb[0].mxu0
      %v2001 = vadd.f32 0.0, %v2000
      %v2002 = vpop.f32.mrb[0].mxu0
      %2003 = vmatprep.mubr.bf16.mxu0 0
      %2004 = vmatmul.mubr.bf16.gmra.mrb[0].mxu0 %v1869
      %v2005 = vpop.f32.mrb[0].mxu0
      %v2006 = vadd.f32 0.0, %v2005
      %v2007 = vpop.f32.mrb[0].mxu0
      %v2008 = vpop.f32.mrb[0].mxu0
      %v2009 = vadd.f32 0.0, %v2008
      %v2010 = vpop.f32.mrb[0].mxu0
      %2011 = vmatprep.mubr.bf16.mxu0 0
      %2012 = vmatmul.mubr.bf16.gmra.mrb[0].mxu0 %v1872
      %v2013 = vpop.f32.mrb[0].mxu0
      %v2014 = vadd.f32 0.0, %v2013
      %v2015 = vpop.f32.mrb[0].mxu0
      %v2016 = vpop.f32.mrb[0].mxu0
      %v2017 = vadd.f32 0.0, %v2016
      %v2018 = vpop.f32.mrb[0].mxu0
      %2019 = vmatprep.mubr.bf16.mxu0 0
      %2020 = vmatmul.mubr.bf16.gmra.mrb[0].mxu0 %v1875
      %v2021 = vpop.f32.mrb[0].mxu0
      %v2022 = vadd.f32 0.0, %v2021
      %v2023 = vpop.f32.mrb[0].mxu0
      %v2024 = vpop.f32.mrb[0].mxu0
      %v2025 = vadd.f32 0.0, %v2024
      %v2026 = vpop.f32.mrb[0].mxu0
      %2027 = vmatprep.mubr.bf16.mxu0 0
      %2028 = vmatmul.mubr.bf16.gmra.mrb[0].mxu0 %v1878
      %v2029 = vpop.f32.mrb[0].mxu0
      %v2030 = vadd.f32 0.0, %v2029
      %v2031 = vpop.f32.mrb[0].mxu0
      %v2032 = vpop.f32.mrb[0].mxu0
      %v2033 = vadd.f32 0.0, %v2032
      %v2034 = vpop.f32.mrb[0].mxu0
      %2035 = vmatprep.mubr.bf16.mxu0 0
      %2036 = vmatmul.mubr.bf16.gmra.mrb[0].mxu0 %v1881
      %v2037 = vpop.f32.mrb[0].mxu0
      %v2038 = vadd.f32 0.0, %v2037
      %v2039 = vpop.f32.mrb[0].mxu0
      %v2040 = vpop.f32.mrb[0].mxu0
      %v2041 = vadd.f32 0.0, %v2040
      %v2042 = vpop.f32.mrb[0].mxu0
      %2043 = vdwg.mxu0
      %v2044 = vadd.f32 %v1737, %v1918
      %v2045 = vadd.f32 %v1738, %v1921
      %v2046 = vadd.f32 %v1739, %v1926
      %v2047 = vadd.f32 %v1740, %v1929
      %v2048 = vadd.f32 %v1741, %v1934
      %v2049 = vadd.f32 %v1742, %v1937
      %v2050 = vadd.f32 %v1743, %v1942
      %v2051 = vadd.f32 %v1744, %v1945
      %v2052 = vadd.f32 %v1745, %v1950
      %v2053 = vadd.f32 %v1746, %v1953
      %v2054 = vadd.f32 %v1747, %v1958
      %v2055 = vadd.f32 %v1748, %v1961
      %v2056 = vadd.f32 %v1749, %v1966
      %v2057 = vadd.f32 %v1750, %v1969
      %v2058 = vadd.f32 %v1751, %v1974
      %v2059 = vadd.f32 %v1752, %v1977
      %v2060 = vadd.f32 %v1753, %v1982
      %v2061 = vadd.f32 %v1754, %v1985
      %v2062 = vadd.f32 %v1755, %v1990
      %v2063 = vadd.f32 %v1756, %v1993
      %v2064 = vadd.f32 %v1757, %v1998
      %v2065 = vadd.f32 %v1758, %v2001
      %v2066 = vadd.f32 %v1759, %v2006
      %v2067 = vadd.f32 %v1760, %v2009
      %v2068 = vadd.f32 %v1761, %v2014
      %v2069 = vadd.f32 %v1762, %v2017
      %v2070 = vadd.f32 %v1763, %v2022
      %v2071 = vadd.f32 %v1764, %v2025
      %v2072 = vadd.f32 %v1765, %v2030
      %v2073 = vadd.f32 %v1766, %v2033
      %v2074 = vadd.f32 %v1767, %v2038
      %v2075 = vadd.f32 %v1768, %v2041
      %s2076 = scalar_lea.vmem [#allocation2], 32
      %v2077 = vld [vmem:[%s2076 + $0x8] sm:$0xff]
      %v2078 = vld [vmem:[%s2076 + $0x10] sm:$0xff]
      %v2079 = vld [vmem:[%s2076 + $0x28] sm:$0xff]
      %v2080 = vld [vmem:[%s2076 + $0x30] sm:$0xff]
      %v2081 = vld [vmem:[%s2076 + $0x48] sm:$0xff]
      %v2082 = vld [vmem:[%s2076 + $0x50] sm:$0xff]
      %v2083 = vld [vmem:[%s2076 + $0x68] sm:$0xff]
      %v2084 = vld [vmem:[%s2076 + $0x70] sm:$0xff]
      %v2085 = vld [vmem:[%s2076 + $0x88] sm:$0xff]
      %v2086 = vld [vmem:[%s2076 + $0x90] sm:$0xff]
      %v2087 = vld [vmem:[%s2076 + $0xa8] sm:$0xff]
      %v2088 = vld [vmem:[%s2076 + $0xb0] sm:$0xff]
      %v2089 = vld [vmem:[%s2076 + $0xc8] sm:$0xff]
      %v2090 = vld [vmem:[%s2076 + $0xd0] sm:$0xff]
      %v2091 = vld [vmem:[%s2076 + $0xe8] sm:$0xff]
      %v2092 = vld [vmem:[%s2076 + $0xf0] sm:$0xff]
      %v2093 = vld [vmem:[%s2076 + $0x108] sm:$0xff]
      %v2094 = vld [vmem:[%s2076 + $0x110] sm:$0xff]
      %v2095 = vld [vmem:[%s2076 + $0x128] sm:$0xff]
      %v2096 = vld [vmem:[%s2076 + $0x130] sm:$0xff]
      %v2097 = vld [vmem:[%s2076 + $0x148] sm:$0xff]
      %v2098 = vld [vmem:[%s2076 + $0x150] sm:$0xff]
      %v2099 = vld [vmem:[%s2076 + $0x168] sm:$0xff]
      %v2100 = vld [vmem:[%s2076 + $0x170] sm:$0xff]
      %v2101 = vld [vmem:[%s2076 + $0x188] sm:$0xff]
      %v2102 = vld [vmem:[%s2076 + $0x190] sm:$0xff]
      %v2103 = vld [vmem:[%s2076 + $0x1a8] sm:$0xff]
      %v2104 = vld [vmem:[%s2076 + $0x1b0] sm:$0xff]
      %v2105 = vld [vmem:[%s2076 + $0x1c8] sm:$0xff]
      %v2106 = vld [vmem:[%s2076 + $0x1d0] sm:$0xff]
      %v2107 = vld [vmem:[%s2076 + $0x1e8] sm:$0xff]
      %v2108 = vld [vmem:[%s2076 + $0x1f0] sm:$0xff]
      %v2109 = vpack.c.bf16 %v2078, %v2077
      %v2110 = vpack.c.bf16 %v2080, %v2079
      %v2111 = vpack.c.bf16 %v2082, %v2081
      %v2112 = vpack.c.bf16 %v2084, %v2083
      %v2113 = vpack.c.bf16 %v2086, %v2085
      %v2114 = vpack.c.bf16 %v2088, %v2087
      %v2115 = vpack.c.bf16 %v2090, %v2089
      %v2116 = vpack.c.bf16 %v2092, %v2091
      %v2117 = vpack.c.bf16 %v2094, %v2093
      %v2118 = vpack.c.bf16 %v2096, %v2095
      %v2119 = vpack.c.bf16 %v2098, %v2097
      %v2120 = vpack.c.bf16 %v2100, %v2099
      %v2121 = vpack.c.bf16 %v2102, %v2101
      %v2122 = vpack.c.bf16 %v2104, %v2103
      %v2123 = vpack.c.bf16 %v2106, %v2105
      %v2124 = vpack.c.bf16 %v2108, %v2107
      %s2125 = scalar_lea.vmem %s204, 64
      %v2126 = vld [vmem:[%s2125] sm:$0xf]
      %v2127 = vld [vmem:[%s2125 + $0x4] sm:$0xf]
      %v2128 = vld [vmem:[%s2125 + $0x8] sm:$0xf]
      %v2129 = vld [vmem:[%s2125 + $0xc] sm:$0xf]
      %v2134 = vunpack.c.l.b16 %v2126
      %v2135 = vunpack.c.l.b16 %v2127
      %v2136 = vunpack.c.l.b16 %v2128
      %v2137 = vunpack.c.l.b16 %v2129
      %v2138 = vpack.c.b16 %v2135, %v2134
      %v2139 = vpack.c.b16 %v2137, %v2136
      %v2143 = vsel %vm526, %v2109, 0
      %v2146 = vsel %vm526, %v2110, 0
      %v2149 = vsel %vm526, %v2111, 0
      %v2152 = vsel %vm526, %v2112, 0
      %v2155 = vsel %vm526, %v2113, 0
      %v2158 = vsel %vm526, %v2114, 0
      %v2161 = vsel %vm526, %v2115, 0
      %v2164 = vsel %vm526, %v2116, 0
      %v2167 = vsel %vm526, %v2117, 0
      %v2170 = vsel %vm526, %v2118, 0
      %v2173 = vsel %vm526, %v2119, 0
      %v2176 = vsel %vm526, %v2120, 0
      %v2179 = vsel %vm526, %v2121, 0
      %v2182 = vsel %vm526, %v2122, 0
      %v2185 = vsel %vm526, %v2123, 0
      %v2188 = vsel %vm526, %v2124, 0
      %2190 = vmatprep.subr.bf16.mxu0 0
      %2191 = vmatpush1.bf16.msra.mxu0 %v2138
      %2192 = vmatprep.subr.bf16.mxu0 0
      %2193 = vmatpush1.bf16.msra.mxu0 %v2139
      %2194 = vmatprep.subr.bf16.mxu0 0
      %2195 = vmatpush1.bf16.msra.mxu0 0
      %2196 = vmatprep.subr.bf16.mxu0 0
      %2197 = vmatpush1.bf16.msra.mxu0 0
      %2198 = vmatprep.subr.bf16.mxu0 0
      %2199 = vmatpush1.bf16.msra.mxu0 0
      %2200 = vmatprep.subr.bf16.mxu0 0
      %2201 = vmatpush1.bf16.msra.mxu0 0
      %2202 = vmatprep.subr.bf16.mxu0 0
      %2203 = vmatpush1.bf16.msra.mxu0 0
      %2204 = vmatprep.subr.bf16.mxu0 0
      %2205 = vmatpush1.bf16.msra.mxu0 0
      %2206 = vmatprep.subr.bf16.mxu0 0
      %2207 = vmatpush1.bf16.msra.mxu0 0
      %2208 = vmatprep.subr.bf16.mxu0 0
      %2209 = vmatpush1.bf16.msra.mxu0 0
      %2210 = vmatprep.subr.bf16.mxu0 0
      %2211 = vmatpush1.bf16.msra.mxu0 0
      %2212 = vmatprep.subr.bf16.mxu0 0
      %2213 = vmatpush1.bf16.msra.mxu0 0
      %2214 = vmatprep.subr.bf16.mxu0 0
      %2215 = vmatpush1.bf16.msra.mxu0 0
      %2216 = vmatprep.subr.bf16.mxu0 0
      %2217 = vmatpush1.bf16.msra.mxu0 0
      %2218 = vmatprep.subr.bf16.mxu0 0
      %2219 = vmatpush1.bf16.msra.mxu0 0
      %2220 = vmatprep.subr.bf16.mxu0 0
      %2221 = vmatpush1.bf16.msra.mxu0 0
      %2222 = vmatprep.mubr.bf16.mxu0 0
      %2223 = vmatmul.mubr.bf16.gmra.mrb[0].mxu0 %v2143
      %v2224 = vpop.f32.mrb[0].mxu0
      %v2225 = vadd.f32 0.0, %v2224
      %v2226 = vpop.f32.mrb[0].mxu0
      %v2227 = vpop.f32.mrb[0].mxu0
      %v2228 = vadd.f32 0.0, %v2227
      %v2229 = vpop.f32.mrb[0].mxu0
      %2230 = vmatprep.mubr.bf16.mxu0 0
      %2231 = vmatmul.mubr.bf16.gmra.mrb[0].mxu0 %v2146
      %v2232 = vpop.f32.mrb[0].mxu0
      %v2233 = vadd.f32 0.0, %v2232
      %v2234 = vpop.f32.mrb[0].mxu0
      %v2235 = vpop.f32.mrb[0].mxu0
      %v2236 = vadd.f32 0.0, %v2235
      %v2237 = vpop.f32.mrb[0].mxu0
      %2238 = vmatprep.mubr.bf16.mxu0 0
      %2239 = vmatmul.mubr.bf16.gmra.mrb[0].mxu0 %v2149
      %v2240 = vpop.f32.mrb[0].mxu0
      %v2241 = vadd.f32 0.0, %v2240
      %v2242 = vpop.f32.mrb[0].mxu0
      %v2243 = vpop.f32.mrb[0].mxu0
      %v2244 = vadd.f32 0.0, %v2243
      %v2245 = vpop.f32.mrb[0].mxu0
      %2246 = vmatprep.mubr.bf16.mxu0 0
      %2247 = vmatmul.mubr.bf16.gmra.mrb[0].mxu0 %v2152
      %v2248 = vpop.f32.mrb[0].mxu0
      %v2249 = vadd.f32 0.0, %v2248
      %v2250 = vpop.f32.mrb[0].mxu0
      %v2251 = vpop.f32.mrb[0].mxu0
      %v2252 = vadd.f32 0.0, %v2251
      %v2253 = vpop.f32.mrb[0].mxu0
      %2254 = vmatprep.mubr.bf16.mxu0 0
      %2255 = vmatmul.mubr.bf16.gmra.mrb[0].mxu0 %v2155
      %v2256 = vpop.f32.mrb[0].mxu0
      %v2257 = vadd.f32 0.0, %v2256
      %v2258 = vpop.f32.mrb[0].mxu0
      %v2259 = vpop.f32.mrb[0].mxu0
      %v2260 = vadd.f32 0.0, %v2259
      %v2261 = vpop.f32.mrb[0].mxu0
      %2262 = vmatprep.mubr.bf16.mxu0 0
      %2263 = vmatmul.mubr.bf16.gmra.mrb[0].mxu0 %v2158
      %v2264 = vpop.f32.mrb[0].mxu0
      %v2265 = vadd.f32 0.0, %v2264
      %v2266 = vpop.f32.mrb[0].mxu0
      %v2267 = vpop.f32.mrb[0].mxu0
      %v2268 = vadd.f32 0.0, %v2267
      %v2269 = vpop.f32.mrb[0].mxu0
      %2270 = vmatprep.mubr.bf16.mxu0 0
      %2271 = vmatmul.mubr.bf16.gmra.mrb[0].mxu0 %v2161
      %v2272 = vpop.f32.mrb[0].mxu0
      %v2273 = vadd.f32 0.0, %v2272
      %v2274 = vpop.f32.mrb[0].mxu0
      %v2275 = vpop.f32.mrb[0].mxu0
      %v2276 = vadd.f32 0.0, %v2275
      %v2277 = vpop.f32.mrb[0].mxu0
      %2278 = vmatprep.mubr.bf16.mxu0 0
      %2279 = vmatmul.mubr.bf16.gmra.mrb[0].mxu0 %v2164
      %v2280 = vpop.f32.mrb[0].mxu0
      %v2281 = vadd.f32 0.0, %v2280
      %v2282 = vpop.f32.mrb[0].mxu0
      %v2283 = vpop.f32.mrb[0].mxu0
      %v2284 = vadd.f32 0.0, %v2283
      %v2285 = vpop.f32.mrb[0].mxu0
      %2286 = vmatprep.mubr.bf16.mxu0 0
      %2287 = vmatmul.mubr.bf16.gmra.mrb[0].mxu0 %v2167
      %v2288 = vpop.f32.mrb[0].mxu0
      %v2289 = vadd.f32 0.0, %v2288
      %v2290 = vpop.f32.mrb[0].mxu0
      %v2291 = vpop.f32.mrb[0].mxu0
      %v2292 = vadd.f32 0.0, %v2291
      %v2293 = vpop.f32.mrb[0].mxu0
      %2294 = vmatprep.mubr.bf16.mxu0 0
      %2295 = vmatmul.mubr.bf16.gmra.mrb[0].mxu0 %v2170
      %v2296 = vpop.f32.mrb[0].mxu0
      %v2297 = vadd.f32 0.0, %v2296
      %v2298 = vpop.f32.mrb[0].mxu0
      %v2299 = vpop.f32.mrb[0].mxu0
      %v2300 = vadd.f32 0.0, %v2299
      %v2301 = vpop.f32.mrb[0].mxu0
      %2302 = vmatprep.mubr.bf16.mxu0 0
      %2303 = vmatmul.mubr.bf16.gmra.mrb[0].mxu0 %v2173
      %v2304 = vpop.f32.mrb[0].mxu0
      %v2305 = vadd.f32 0.0, %v2304
      %v2306 = vpop.f32.mrb[0].mxu0
      %v2307 = vpop.f32.mrb[0].mxu0
      %v2308 = vadd.f32 0.0, %v2307
      %v2309 = vpop.f32.mrb[0].mxu0
      %2310 = vmatprep.mubr.bf16.mxu0 0
      %2311 = vmatmul.mubr.bf16.gmra.mrb[0].mxu0 %v2176
      %v2312 = vpop.f32.mrb[0].mxu0
      %v2313 = vadd.f32 0.0, %v2312
      %v2314 = vpop.f32.mrb[0].mxu0
      %v2315 = vpop.f32.mrb[0].mxu0
      %v2316 = vadd.f32 0.0, %v2315
      %v2317 = vpop.f32.mrb[0].mxu0
      %2318 = vmatprep.mubr.bf16.mxu0 0
      %2319 = vmatmul.mubr.bf16.gmra.mrb[0].mxu0 %v2179
      %v2320 = vpop.f32.mrb[0].mxu0
      %v2321 = vadd.f32 0.0, %v2320
      %v2322 = vpop.f32.mrb[0].mxu0
      %v2323 = vpop.f32.mrb[0].mxu0
      %v2324 = vadd.f32 0.0, %v2323
      %v2325 = vpop.f32.mrb[0].mxu0
      %2326 = vmatprep.mubr.bf16.mxu0 0
      %2327 = vmatmul.mubr.bf16.gmra.mrb[0].mxu0 %v2182
      %v2328 = vpop.f32.mrb[0].mxu0
      %v2329 = vadd.f32 0.0, %v2328
      %v2330 = vpop.f32.mrb[0].mxu0
      %v2331 = vpop.f32.mrb[0].mxu0
      %v2332 = vadd.f32 0.0, %v2331
      %v2333 = vpop.f32.mrb[0].mxu0
      %2334 = vmatprep.mubr.bf16.mxu0 0
      %2335 = vmatmul.mubr.bf16.gmra.mrb[0].mxu0 %v2185
      %v2336 = vpop.f32.mrb[0].mxu0
      %v2337 = vadd.f32 0.0, %v2336
      %v2338 = vpop.f32.mrb[0].mxu0
      %v2339 = vpop.f32.mrb[0].mxu0
      %v2340 = vadd.f32 0.0, %v2339
      %v2341 = vpop.f32.mrb[0].mxu0
      %2342 = vmatprep.mubr.bf16.mxu0 0
      %2343 = vmatmul.mubr.bf16.gmra.mrb[0].mxu0 %v2188
      %v2344 = vpop.f32.mrb[0].mxu0
      %v2345 = vadd.f32 0.0, %v2344
      %v2346 = vpop.f32.mrb[0].mxu0
      %v2347 = vpop.f32.mrb[0].mxu0
      %v2348 = vadd.f32 0.0, %v2347
      %v2349 = vpop.f32.mrb[0].mxu0
      %2350 = vdwg.mxu0
      %v2351 = vadd.f32 %v2044, %v2225
      %v2352 = vadd.f32 %v2045, %v2228
      %v2353 = vadd.f32 %v2046, %v2233
      %v2354 = vadd.f32 %v2047, %v2236
      %v2355 = vadd.f32 %v2048, %v2241
      %v2356 = vadd.f32 %v2049, %v2244
      %v2357 = vadd.f32 %v2050, %v2249
      %v2358 = vadd.f32 %v2051, %v2252
      %v2359 = vadd.f32 %v2052, %v2257
      %v2360 = vadd.f32 %v2053, %v2260
      %v2361 = vadd.f32 %v2054, %v2265
      %v2362 = vadd.f32 %v2055, %v2268
      %v2363 = vadd.f32 %v2056, %v2273
      %v2364 = vadd.f32 %v2057, %v2276
      %v2365 = vadd.f32 %v2058, %v2281
      %v2366 = vadd.f32 %v2059, %v2284
      %v2367 = vadd.f32 %v2060, %v2289
      %v2368 = vadd.f32 %v2061, %v2292
      %v2369 = vadd.f32 %v2062, %v2297
      %v2370 = vadd.f32 %v2063, %v2300
      %v2371 = vadd.f32 %v2064, %v2305
      %v2372 = vadd.f32 %v2065, %v2308
      %v2373 = vadd.f32 %v2066, %v2313
      %v2374 = vadd.f32 %v2067, %v2316
      %v2375 = vadd.f32 %v2068, %v2321
      %v2376 = vadd.f32 %v2069, %v2324
      %v2377 = vadd.f32 %v2070, %v2329
      %v2378 = vadd.f32 %v2071, %v2332
      %v2379 = vadd.f32 %v2072, %v2337
      %v2380 = vadd.f32 %v2073, %v2340
      %v2381 = vadd.f32 %v2074, %v2345
      %v2382 = vadd.f32 %v2075, %v2348
      %s2383 = scalar_lea.vmem [#allocation3], 592
      %v2384 = vld [vmem:[%s2383] sm:$0xff]
      %v2385 = vld [vmem:[%s2383 + $0x8] sm:$0xff]
      %v2386 = vld [vmem:[%s2383 + $0x10] sm:$0xff]
      %v2387 = vld [vmem:[%s2383 + $0x18] sm:$0xff]
      %v2388 = vld [vmem:[%s2383 + $0x20] sm:$0xff]
      %v2389 = vld [vmem:[%s2383 + $0x28] sm:$0xff]
      %v2390 = vld [vmem:[%s2383 + $0x30] sm:$0xff]
      %v2391 = vld [vmem:[%s2383 + $0x38] sm:$0xff]
      %v2392 = vld [vmem:[%s2383 + $0x40] sm:$0xff]
      %v2393 = vld [vmem:[%s2383 + $0x48] sm:$0xff]
      %v2394 = vld [vmem:[%s2383 + $0x50] sm:$0xff]
      %v2395 = vld [vmem:[%s2383 + $0x58] sm:$0xff]
      %v2396 = vld [vmem:[%s2383 + $0x60] sm:$0xff]
      %v2397 = vld [vmem:[%s2383 + $0x68] sm:$0xff]
      %v2398 = vld [vmem:[%s2383 + $0x70] sm:$0xff]
      %v2399 = vld [vmem:[%s2383 + $0x78] sm:$0xff]
      %v2400 = vld [vmem:[%s2383 + $0x80] sm:$0xff]
      %v2401 = vld [vmem:[%s2383 + $0x88] sm:$0xff]
      %v2402 = vld [vmem:[%s2383 + $0x90] sm:$0xff]
      %v2403 = vld [vmem:[%s2383 + $0x98] sm:$0xff]
      %v2404 = vld [vmem:[%s2383 + $0xa0] sm:$0xff]
      %v2405 = vld [vmem:[%s2383 + $0xa8] sm:$0xff]
      %v2406 = vld [vmem:[%s2383 + $0xb0] sm:$0xff]
      %v2407 = vld [vmem:[%s2383 + $0xb8] sm:$0xff]
      %v2408 = vld [vmem:[%s2383 + $0xc0] sm:$0xff]
      %v2409 = vld [vmem:[%s2383 + $0xc8] sm:$0xff]
      %v2410 = vld [vmem:[%s2383 + $0xd0] sm:$0xff]
      %v2411 = vld [vmem:[%s2383 + $0xd8] sm:$0xff]
      %v2412 = vld [vmem:[%s2383 + $0xe0] sm:$0xff]
      %v2413 = vld [vmem:[%s2383 + $0xe8] sm:$0xff]
      %v2414 = vld [vmem:[%s2383 + $0xf0] sm:$0xff]
      %v2415 = vld [vmem:[%s2383 + $0xf8] sm:$0xff]
      %v2416 = vpack.c.bf16 %v2385, %v2384
      %v2417 = vpack.c.bf16 %v2387, %v2386
      %v2418 = vpack.c.bf16 %v2389, %v2388
      %v2419 = vpack.c.bf16 %v2391, %v2390
      %v2420 = vpack.c.bf16 %v2393, %v2392
      %v2421 = vpack.c.bf16 %v2395, %v2394
      %v2422 = vpack.c.bf16 %v2397, %v2396
      %v2423 = vpack.c.bf16 %v2399, %v2398
      %v2424 = vpack.c.bf16 %v2401, %v2400
      %v2425 = vpack.c.bf16 %v2403, %v2402
      %v2426 = vpack.c.bf16 %v2405, %v2404
      %v2427 = vpack.c.bf16 %v2407, %v2406
      %v2428 = vpack.c.bf16 %v2409, %v2408
      %v2429 = vpack.c.bf16 %v2411, %v2410
      %v2430 = vpack.c.bf16 %v2413, %v2412
      %v2431 = vpack.c.bf16 %v2415, %v2414
      %s2432 = scalar_lea.vmem %s204, 80
      %v2433 = vld [vmem:[%s2432] sm:$0xf]
      %v2434 = vld [vmem:[%s2432 + $0x4] sm:$0xf]
      %v2435 = vld [vmem:[%s2432 + $0x8] sm:$0xf]
      %v2436 = vld [vmem:[%s2432 + $0xc] sm:$0xf]
      %v2441 = vunpack.c.l.b16 %v2433
      %v2442 = vunpack.c.l.b16 %v2434
      %v2443 = vunpack.c.l.b16 %v2435
      %v2444 = vunpack.c.l.b16 %v2436
      %v2445 = vpack.c.b16 %v2442, %v2441
      %v2446 = vpack.c.b16 %v2444, %v2443
      %v2450 = vsel %vm526, %v2416, 0
      %v2453 = vsel %vm526, %v2417, 0
      %v2456 = vsel %vm526, %v2418, 0
      %v2459 = vsel %vm526, %v2419, 0
      %v2462 = vsel %vm526, %v2420, 0
      %v2465 = vsel %vm526, %v2421, 0
      %v2468 = vsel %vm526, %v2422, 0
      %v2471 = vsel %vm526, %v2423, 0
      %v2474 = vsel %vm526, %v2424, 0
      %v2477 = vsel %vm526, %v2425, 0
      %v2480 = vsel %vm526, %v2426, 0
      %v2483 = vsel %vm526, %v2427, 0
      %v2486 = vsel %vm526, %v2428, 0
      %v2489 = vsel %vm526, %v2429, 0
      %v2492 = vsel %vm526, %v2430, 0
      %v2495 = vsel %vm526, %v2431, 0
      %2497 = vmatprep.subr.bf16.mxu0 0
      %2498 = vmatpush1.bf16.msra.mxu0 %v2445
      %2499 = vmatprep.subr.bf16.mxu0 0
      %2500 = vmatpush1.bf16.msra.mxu0 %v2446
      %2501 = vmatprep.subr.bf16.mxu0 0
      %2502 = vmatpush1.bf16.msra.mxu0 0
      %2503 = vmatprep.subr.bf16.mxu0 0
      %2504 = vmatpush1.bf16.msra.mxu0 0
      %2505 = vmatprep.subr.bf16.mxu0 0
      %2506 = vmatpush1.bf16.msra.mxu0 0
      %2507 = vmatprep.subr.bf16.mxu0 0
      %2508 = vmatpush1.bf16.msra.mxu0 0
      %2509 = vmatprep.subr.bf16.mxu0 0
      %2510 = vmatpush1.bf16.msra.mxu0 0
      %2511 = vmatprep.subr.bf16.mxu0 0
      %2512 = vmatpush1.bf16.msra.mxu0 0
      %2513 = vmatprep.subr.bf16.mxu0 0
      %2514 = vmatpush1.bf16.msra.mxu0 0
      %2515 = vmatprep.subr.bf16.mxu0 0
      %2516 = vmatpush1.bf16.msra.mxu0 0
      %2517 = vmatprep.subr.bf16.mxu0 0
      %2518 = vmatpush1.bf16.msra.mxu0 0
      %2519 = vmatprep.subr.bf16.mxu0 0
      %2520 = vmatpush1.bf16.msra.mxu0 0
      %2521 = vmatprep.subr.bf16.mxu0 0
      %2522 = vmatpush1.bf16.msra.mxu0 0
      %2523 = vmatprep.subr.bf16.mxu0 0
      %2524 = vmatpush1.bf16.msra.mxu0 0
      %2525 = vmatprep.subr.bf16.mxu0 0
      %2526 = vmatpush1.bf16.msra.mxu0 0
      %2527 = vmatprep.subr.bf16.mxu0 0
      %2528 = vmatpush1.bf16.msra.mxu0 0
      %2529 = vmatprep.mubr.bf16.mxu0 0
      %2530 = vmatmul.mubr.bf16.gmra.mrb[0].mxu0 %v2450
      %v2531 = vpop.f32.mrb[0].mxu0
      %v2532 = vadd.f32 0.0, %v2531
      %v2533 = vpop.f32.mrb[0].mxu0
      %v2534 = vpop.f32.mrb[0].mxu0
      %v2535 = vadd.f32 0.0, %v2534
      %v2536 = vpop.f32.mrb[0].mxu0
      %2537 = vmatprep.mubr.bf16.mxu0 0
      %2538 = vmatmul.mubr.bf16.gmra.mrb[0].mxu0 %v2453
      %v2539 = vpop.f32.mrb[0].mxu0
      %v2540 = vadd.f32 0.0, %v2539
      %v2541 = vpop.f32.mrb[0].mxu0
      %v2542 = vpop.f32.mrb[0].mxu0
      %v2543 = vadd.f32 0.0, %v2542
      %v2544 = vpop.f32.mrb[0].mxu0
      %2545 = vmatprep.mubr.bf16.mxu0 0
      %2546 = vmatmul.mubr.bf16.gmra.mrb[0].mxu0 %v2456
      %v2547 = vpop.f32.mrb[0].mxu0
      %v2548 = vadd.f32 0.0, %v2547
      %v2549 = vpop.f32.mrb[0].mxu0
      %v2550 = vpop.f32.mrb[0].mxu0
      %v2551 = vadd.f32 0.0, %v2550
      %v2552 = vpop.f32.mrb[0].mxu0
      %2553 = vmatprep.mubr.bf16.mxu0 0
      %2554 = vmatmul.mubr.bf16.gmra.mrb[0].mxu0 %v2459
      %v2555 = vpop.f32.mrb[0].mxu0
      %v2556 = vadd.f32 0.0, %v2555
      %v2557 = vpop.f32.mrb[0].mxu0
      %v2558 = vpop.f32.mrb[0].mxu0
      %v2559 = vadd.f32 0.0, %v2558
      %v2560 = vpop.f32.mrb[0].mxu0
      %2561 = vmatprep.mubr.bf16.mxu0 0
      %2562 = vmatmul.mubr.bf16.gmra.mrb[0].mxu0 %v2462
      %v2563 = vpop.f32.mrb[0].mxu0
      %v2564 = vadd.f32 0.0, %v2563
      %v2565 = vpop.f32.mrb[0].mxu0
      %v2566 = vpop.f32.mrb[0].mxu0
      %v2567 = vadd.f32 0.0, %v2566
      %v2568 = vpop.f32.mrb[0].mxu0
      %2569 = vmatprep.mubr.bf16.mxu0 0
      %2570 = vmatmul.mubr.bf16.gmra.mrb[0].mxu0 %v2465
      %v2571 = vpop.f32.mrb[0].mxu0
      %v2572 = vadd.f32 0.0, %v2571
      %v2573 = vpop.f32.mrb[0].mxu0
      %v2574 = vpop.f32.mrb[0].mxu0
      %v2575 = vadd.f32 0.0, %v2574
      %v2576 = vpop.f32.mrb[0].mxu0
      %2577 = vmatprep.mubr.bf16.mxu0 0
      %2578 = vmatmul.mubr.bf16.gmra.mrb[0].mxu0 %v2468
      %v2579 = vpop.f32.mrb[0].mxu0
      %v2580 = vadd.f32 0.0, %v2579
      %v2581 = vpop.f32.mrb[0].mxu0
      %v2582 = vpop.f32.mrb[0].mxu0
      %v2583 = vadd.f32 0.0, %v2582
      %v2584 = vpop.f32.mrb[0].mxu0
      %2585 = vmatprep.mubr.bf16.mxu0 0
      %2586 = vmatmul.mubr.bf16.gmra.mrb[0].mxu0 %v2471
      %v2587 = vpop.f32.mrb[0].mxu0
      %v2588 = vadd.f32 0.0, %v2587
      %v2589 = vpop.f32.mrb[0].mxu0
      %v2590 = vpop.f32.mrb[0].mxu0
      %v2591 = vadd.f32 0.0, %v2590
      %v2592 = vpop.f32.mrb[0].mxu0
      %2593 = vmatprep.mubr.bf16.mxu0 0
      %2594 = vmatmul.mubr.bf16.gmra.mrb[0].mxu0 %v2474
      %v2595 = vpop.f32.mrb[0].mxu0
      %v2596 = vadd.f32 0.0, %v2595
      %v2597 = vpop.f32.mrb[0].mxu0
      %v2598 = vpop.f32.mrb[0].mxu0
      %v2599 = vadd.f32 0.0, %v2598
      %v2600 = vpop.f32.mrb[0].mxu0
      %2601 = vmatprep.mubr.bf16.mxu0 0
      %2602 = vmatmul.mubr.bf16.gmra.mrb[0].mxu0 %v2477
      %v2603 = vpop.f32.mrb[0].mxu0
      %v2604 = vadd.f32 0.0, %v2603
      %v2605 = vpop.f32.mrb[0].mxu0
      %v2606 = vpop.f32.mrb[0].mxu0
      %v2607 = vadd.f32 0.0, %v2606
      %v2608 = vpop.f32.mrb[0].mxu0
      %2609 = vmatprep.mubr.bf16.mxu0 0
      %2610 = vmatmul.mubr.bf16.gmra.mrb[0].mxu0 %v2480
      %v2611 = vpop.f32.mrb[0].mxu0
      %v2612 = vadd.f32 0.0, %v2611
      %v2613 = vpop.f32.mrb[0].mxu0
      %v2614 = vpop.f32.mrb[0].mxu0
      %v2615 = vadd.f32 0.0, %v2614
      %v2616 = vpop.f32.mrb[0].mxu0
      %2617 = vmatprep.mubr.bf16.mxu0 0
      %2618 = vmatmul.mubr.bf16.gmra.mrb[0].mxu0 %v2483
      %v2619 = vpop.f32.mrb[0].mxu0
      %v2620 = vadd.f32 0.0, %v2619
      %v2621 = vpop.f32.mrb[0].mxu0
      %v2622 = vpop.f32.mrb[0].mxu0
      %v2623 = vadd.f32 0.0, %v2622
      %v2624 = vpop.f32.mrb[0].mxu0
      %2625 = vmatprep.mubr.bf16.mxu0 0
      %2626 = vmatmul.mubr.bf16.gmra.mrb[0].mxu0 %v2486
      %v2627 = vpop.f32.mrb[0].mxu0
      %v2628 = vadd.f32 0.0, %v2627
      %v2629 = vpop.f32.mrb[0].mxu0
      %v2630 = vpop.f32.mrb[0].mxu0
      %v2631 = vadd.f32 0.0, %v2630
      %v2632 = vpop.f32.mrb[0].mxu0
      %2633 = vmatprep.mubr.bf16.mxu0 0
      %2634 = vmatmul.mubr.bf16.gmra.mrb[0].mxu0 %v2489
      %v2635 = vpop.f32.mrb[0].mxu0
      %v2636 = vadd.f32 0.0, %v2635
      %v2637 = vpop.f32.mrb[0].mxu0
      %v2638 = vpop.f32.mrb[0].mxu0
      %v2639 = vadd.f32 0.0, %v2638
      %v2640 = vpop.f32.mrb[0].mxu0
      %2641 = vmatprep.mubr.bf16.mxu0 0
      %2642 = vmatmul.mubr.bf16.gmra.mrb[0].mxu0 %v2492
      %v2643 = vpop.f32.mrb[0].mxu0
      %v2644 = vadd.f32 0.0, %v2643
      %v2645 = vpop.f32.mrb[0].mxu0
      %v2646 = vpop.f32.mrb[0].mxu0
      %v2647 = vadd.f32 0.0, %v2646
      %v2648 = vpop.f32.mrb[0].mxu0
      %2649 = vmatprep.mubr.bf16.mxu0 0
      %2650 = vmatmul.mubr.bf16.gmra.mrb[0].mxu0 %v2495
      %v2651 = vpop.f32.mrb[0].mxu0
      %v2652 = vadd.f32 0.0, %v2651
      %v2653 = vpop.f32.mrb[0].mxu0
      %v2654 = vpop.f32.mrb[0].mxu0
      %v2655 = vadd.f32 0.0, %v2654
      %v2656 = vpop.f32.mrb[0].mxu0
      %2657 = vdwg.mxu0
      %v2658 = vadd.f32 %v2351, %v2532
      %v2659 = vadd.f32 %v2352, %v2535
      %v2660 = vadd.f32 %v2353, %v2540
      %v2661 = vadd.f32 %v2354, %v2543
      %v2662 = vadd.f32 %v2355, %v2548
      %v2663 = vadd.f32 %v2356, %v2551
      %v2664 = vadd.f32 %v2357, %v2556
      %v2665 = vadd.f32 %v2358, %v2559
      %v2666 = vadd.f32 %v2359, %v2564
      %v2667 = vadd.f32 %v2360, %v2567
      %v2668 = vadd.f32 %v2361, %v2572
      %v2669 = vadd.f32 %v2362, %v2575
      %v2670 = vadd.f32 %v2363, %v2580
      %v2671 = vadd.f32 %v2364, %v2583
      %v2672 = vadd.f32 %v2365, %v2588
      %v2673 = vadd.f32 %v2366, %v2591
      %v2674 = vadd.f32 %v2367, %v2596
      %v2675 = vadd.f32 %v2368, %v2599
      %v2676 = vadd.f32 %v2369, %v2604
      %v2677 = vadd.f32 %v2370, %v2607
      %v2678 = vadd.f32 %v2371, %v2612
      %v2679 = vadd.f32 %v2372, %v2615
      %v2680 = vadd.f32 %v2373, %v2620
      %v2681 = vadd.f32 %v2374, %v2623
      %v2682 = vadd.f32 %v2375, %v2628
      %v2683 = vadd.f32 %v2376, %v2631
      %v2684 = vadd.f32 %v2377, %v2636
      %v2685 = vadd.f32 %v2378, %v2639
      %v2686 = vadd.f32 %v2379, %v2644
      %v2687 = vadd.f32 %v2380, %v2647
      %v2688 = vadd.f32 %v2381, %v2652
      %v2689 = vadd.f32 %v2382, %v2655
      %s2690 = scalar_lea.vmem [#allocation3], 32
      %v2691 = vld [vmem:[%s2690] sm:$0xff]
      %v2692 = vld [vmem:[%s2690 + $0x8] sm:$0xff]
      %v2693 = vld [vmem:[%s2690 + $0x10] sm:$0xff]
      %v2694 = vld [vmem:[%s2690 + $0x18] sm:$0xff]
      %v2695 = vld [vmem:[%s2690 + $0x20] sm:$0xff]
      %v2696 = vld [vmem:[%s2690 + $0x28] sm:$0xff]
      %v2697 = vld [vmem:[%s2690 + $0x30] sm:$0xff]
      %v2698 = vld [vmem:[%s2690 + $0x38] sm:$0xff]
      %v2699 = vld [vmem:[%s2690 + $0x40] sm:$0xff]
      %v2700 = vld [vmem:[%s2690 + $0x48] sm:$0xff]
      %v2701 = vld [vmem:[%s2690 + $0x50] sm:$0xff]
      %v2702 = vld [vmem:[%s2690 + $0x58] sm:$0xff]
      %v2703 = vld [vmem:[%s2690 + $0x60] sm:$0xff]
      %v2704 = vld [vmem:[%s2690 + $0x68] sm:$0xff]
      %v2705 = vld [vmem:[%s2690 + $0x70] sm:$0xff]
      %v2706 = vld [vmem:[%s2690 + $0x78] sm:$0xff]
      %v2707 = vld [vmem:[%s2690 + $0x80] sm:$0xff]
      %v2708 = vld [vmem:[%s2690 + $0x88] sm:$0xff]
      %v2709 = vld [vmem:[%s2690 + $0x90] sm:$0xff]
      %v2710 = vld [vmem:[%s2690 + $0x98] sm:$0xff]
      %v2711 = vld [vmem:[%s2690 + $0xa0] sm:$0xff]
      %v2712 = vld [vmem:[%s2690 + $0xa8] sm:$0xff]
      %v2713 = vld [vmem:[%s2690 + $0xb0] sm:$0xff]
      %v2714 = vld [vmem:[%s2690 + $0xb8] sm:$0xff]
      %v2715 = vld [vmem:[%s2690 + $0xc0] sm:$0xff]
      %v2716 = vld [vmem:[%s2690 + $0xc8] sm:$0xff]
      %v2717 = vld [vmem:[%s2690 + $0xd0] sm:$0xff]
      %v2718 = vld [vmem:[%s2690 + $0xd8] sm:$0xff]
      %v2719 = vld [vmem:[%s2690 + $0xe0] sm:$0xff]
      %v2720 = vld [vmem:[%s2690 + $0xe8] sm:$0xff]
      %v2721 = vld [vmem:[%s2690 + $0xf0] sm:$0xff]
      %v2722 = vld [vmem:[%s2690 + $0xf8] sm:$0xff]
      %v2723 = vpack.c.bf16 %v2692, %v2691
      %v2724 = vpack.c.bf16 %v2694, %v2693
      %v2725 = vpack.c.bf16 %v2696, %v2695
      %v2726 = vpack.c.bf16 %v2698, %v2697
      %v2727 = vpack.c.bf16 %v2700, %v2699
      %v2728 = vpack.c.bf16 %v2702, %v2701
      %v2729 = vpack.c.bf16 %v2704, %v2703
      %v2730 = vpack.c.bf16 %v2706, %v2705
      %v2731 = vpack.c.bf16 %v2708, %v2707
      %v2732 = vpack.c.bf16 %v2710, %v2709
      %v2733 = vpack.c.bf16 %v2712, %v2711
      %v2734 = vpack.c.bf16 %v2714, %v2713
      %v2735 = vpack.c.bf16 %v2716, %v2715
      %v2736 = vpack.c.bf16 %v2718, %v2717
      %v2737 = vpack.c.bf16 %v2720, %v2719
      %v2738 = vpack.c.bf16 %v2722, %v2721
      %s2739 = scalar_lea.vmem %s204, 96
      %v2740 = vld [vmem:[%s2739] sm:$0xf]
      %v2741 = vld [vmem:[%s2739 + $0x4] sm:$0xf]
      %v2742 = vld [vmem:[%s2739 + $0x8] sm:$0xf]
      %v2743 = vld [vmem:[%s2739 + $0xc] sm:$0xf]
      %v2748 = vunpack.c.l.b16 %v2740
      %v2749 = vunpack.c.l.b16 %v2741
      %v2750 = vunpack.c.l.b16 %v2742
      %v2751 = vunpack.c.l.b16 %v2743
      %v2752 = vpack.c.b16 %v2749, %v2748
      %v2753 = vpack.c.b16 %v2751, %v2750
      %v2757 = vsel %vm526, %v2723, 0
      %v2760 = vsel %vm526, %v2724, 0
      %v2763 = vsel %vm526, %v2725, 0
      %v2766 = vsel %vm526, %v2726, 0
      %v2769 = vsel %vm526, %v2727, 0
      %v2772 = vsel %vm526, %v2728, 0
      %v2775 = vsel %vm526, %v2729, 0
      %v2778 = vsel %vm526, %v2730, 0
      %v2781 = vsel %vm526, %v2731, 0
      %v2784 = vsel %vm526, %v2732, 0
      %v2787 = vsel %vm526, %v2733, 0
      %v2790 = vsel %vm526, %v2734, 0
      %v2793 = vsel %vm526, %v2735, 0
      %v2796 = vsel %vm526, %v2736, 0
      %v2799 = vsel %vm526, %v2737, 0
      %v2802 = vsel %vm526, %v2738, 0
      %2804 = vmatprep.subr.bf16.mxu0 0
      %2805 = vmatpush1.bf16.msra.mxu0 %v2752
      %2806 = vmatprep.subr.bf16.mxu0 0
      %2807 = vmatpush1.bf16.msra.mxu0 %v2753
      %2808 = vmatprep.subr.bf16.mxu0 0
      %2809 = vmatpush1.bf16.msra.mxu0 0
      %2810 = vmatprep.subr.bf16.mxu0 0
      %2811 = vmatpush1.bf16.msra.mxu0 0
      %2812 = vmatprep.subr.bf16.mxu0 0
      %2813 = vmatpush1.bf16.msra.mxu0 0
      %2814 = vmatprep.subr.bf16.mxu0 0
      %2815 = vmatpush1.bf16.msra.mxu0 0
      %2816 = vmatprep.subr.bf16.mxu0 0
      %2817 = vmatpush1.bf16.msra.mxu0 0
      %2818 = vmatprep.subr.bf16.mxu0 0
      %2819 = vmatpush1.bf16.msra.mxu0 0
      %2820 = vmatprep.subr.bf16.mxu0 0
      %2821 = vmatpush1.bf16.msra.mxu0 0
      %2822 = vmatprep.subr.bf16.mxu0 0
      %2823 = vmatpush1.bf16.msra.mxu0 0
      %2824 = vmatprep.subr.bf16.mxu0 0
      %2825 = vmatpush1.bf16.msra.mxu0 0
      %2826 = vmatprep.subr.bf16.mxu0 0
      %2827 = vmatpush1.bf16.msra.mxu0 0
      %2828 = vmatprep.subr.bf16.mxu0 0
      %2829 = vmatpush1.bf16.msra.mxu0 0
      %2830 = vmatprep.subr.bf16.mxu0 0
      %2831 = vmatpush1.bf16.msra.mxu0 0
      %2832 = vmatprep.subr.bf16.mxu0 0
      %2833 = vmatpush1.bf16.msra.mxu0 0
      %2834 = vmatprep.subr.bf16.mxu0 0
      %2835 = vmatpush1.bf16.msra.mxu0 0
      %2836 = vmatprep.mubr.bf16.mxu0 0
      %2837 = vmatmul.mubr.bf16.gmra.mrb[0].mxu0 %v2757
      %v2838 = vpop.f32.mrb[0].mxu0
      %v2839 = vadd.f32 0.0, %v2838
      %v2840 = vpop.f32.mrb[0].mxu0
      %v2841 = vpop.f32.mrb[0].mxu0
      %v2842 = vadd.f32 0.0, %v2841
      %v2843 = vpop.f32.mrb[0].mxu0
      %2844 = vmatprep.mubr.bf16.mxu0 0
      %2845 = vmatmul.mubr.bf16.gmra.mrb[0].mxu0 %v2760
      %v2846 = vpop.f32.mrb[0].mxu0
      %v2847 = vadd.f32 0.0, %v2846
      %v2848 = vpop.f32.mrb[0].mxu0
      %v2849 = vpop.f32.mrb[0].mxu0
      %v2850 = vadd.f32 0.0, %v2849
      %v2851 = vpop.f32.mrb[0].mxu0
      %2852 = vmatprep.mubr.bf16.mxu0 0
      %2853 = vmatmul.mubr.bf16.gmra.mrb[0].mxu0 %v2763
      %v2854 = vpop.f32.mrb[0].mxu0
      %v2855 = vadd.f32 0.0, %v2854
      %v2856 = vpop.f32.mrb[0].mxu0
      %v2857 = vpop.f32.mrb[0].mxu0
      %v2858 = vadd.f32 0.0, %v2857
      %v2859 = vpop.f32.mrb[0].mxu0
      %2860 = vmatprep.mubr.bf16.mxu0 0
      %2861 = vmatmul.mubr.bf16.gmra.mrb[0].mxu0 %v2766
      %v2862 = vpop.f32.mrb[0].mxu0
      %v2863 = vadd.f32 0.0, %v2862
      %v2864 = vpop.f32.mrb[0].mxu0
      %v2865 = vpop.f32.mrb[0].mxu0
      %v2866 = vadd.f32 0.0, %v2865
      %v2867 = vpop.f32.mrb[0].mxu0
      %2868 = vmatprep.mubr.bf16.mxu0 0
      %2869 = vmatmul.mubr.bf16.gmra.mrb[0].mxu0 %v2769
      %v2870 = vpop.f32.mrb[0].mxu0
      %v2871 = vadd.f32 0.0, %v2870
      %v2872 = vpop.f32.mrb[0].mxu0
      %v2873 = vpop.f32.mrb[0].mxu0
      %v2874 = vadd.f32 0.0, %v2873
      %v2875 = vpop.f32.mrb[0].mxu0
      %2876 = vmatprep.mubr.bf16.mxu0 0
      %2877 = vmatmul.mubr.bf16.gmra.mrb[0].mxu0 %v2772
      %v2878 = vpop.f32.mrb[0].mxu0
      %v2879 = vadd.f32 0.0, %v2878
      %v2880 = vpop.f32.mrb[0].mxu0
      %v2881 = vpop.f32.mrb[0].mxu0
      %v2882 = vadd.f32 0.0, %v2881
      %v2883 = vpop.f32.mrb[0].mxu0
      %2884 = vmatprep.mubr.bf16.mxu0 0
      %2885 = vmatmul.mubr.bf16.gmra.mrb[0].mxu0 %v2775
      %v2886 = vpop.f32.mrb[0].mxu0
      %v2887 = vadd.f32 0.0, %v2886
      %v2888 = vpop.f32.mrb[0].mxu0
      %v2889 = vpop.f32.mrb[0].mxu0
      %v2890 = vadd.f32 0.0, %v2889
      %v2891 = vpop.f32.mrb[0].mxu0
      %2892 = vmatprep.mubr.bf16.mxu0 0
      %2893 = vmatmul.mubr.bf16.gmra.mrb[0].mxu0 %v2778
      %v2894 = vpop.f32.mrb[0].mxu0
      %v2895 = vadd.f32 0.0, %v2894
      %v2896 = vpop.f32.mrb[0].mxu0
      %v2897 = vpop.f32.mrb[0].mxu0
      %v2898 = vadd.f32 0.0, %v2897
      %v2899 = vpop.f32.mrb[0].mxu0
      %2900 = vmatprep.mubr.bf16.mxu0 0
      %2901 = vmatmul.mubr.bf16.gmra.mrb[0].mxu0 %v2781
      %v2902 = vpop.f32.mrb[0].mxu0
      %v2903 = vadd.f32 0.0, %v2902
      %v2904 = vpop.f32.mrb[0].mxu0
      %v2905 = vpop.f32.mrb[0].mxu0
      %v2906 = vadd.f32 0.0, %v2905
      %v2907 = vpop.f32.mrb[0].mxu0
      %2908 = vmatprep.mubr.bf16.mxu0 0
      %2909 = vmatmul.mubr.bf16.gmra.mrb[0].mxu0 %v2784
      %v2910 = vpop.f32.mrb[0].mxu0
      %v2911 = vadd.f32 0.0, %v2910
      %v2912 = vpop.f32.mrb[0].mxu0
      %v2913 = vpop.f32.mrb[0].mxu0
      %v2914 = vadd.f32 0.0, %v2913
      %v2915 = vpop.f32.mrb[0].mxu0
      %2916 = vmatprep.mubr.bf16.mxu0 0
      %2917 = vmatmul.mubr.bf16.gmra.mrb[0].mxu0 %v2787
      %v2918 = vpop.f32.mrb[0].mxu0
      %v2919 = vadd.f32 0.0, %v2918
      %v2920 = vpop.f32.mrb[0].mxu0
      %v2921 = vpop.f32.mrb[0].mxu0
      %v2922 = vadd.f32 0.0, %v2921
      %v2923 = vpop.f32.mrb[0].mxu0
      %2924 = vmatprep.mubr.bf16.mxu0 0
      %2925 = vmatmul.mubr.bf16.gmra.mrb[0].mxu0 %v2790
      %v2926 = vpop.f32.mrb[0].mxu0
      %v2927 = vadd.f32 0.0, %v2926
      %v2928 = vpop.f32.mrb[0].mxu0
      %v2929 = vpop.f32.mrb[0].mxu0
      %v2930 = vadd.f32 0.0, %v2929
      %v2931 = vpop.f32.mrb[0].mxu0
      %2932 = vmatprep.mubr.bf16.mxu0 0
      %2933 = vmatmul.mubr.bf16.gmra.mrb[0].mxu0 %v2793
      %v2934 = vpop.f32.mrb[0].mxu0
      %v2935 = vadd.f32 0.0, %v2934
      %v2936 = vpop.f32.mrb[0].mxu0
      %v2937 = vpop.f32.mrb[0].mxu0
      %v2938 = vadd.f32 0.0, %v2937
      %v2939 = vpop.f32.mrb[0].mxu0
      %2940 = vmatprep.mubr.bf16.mxu0 0
      %2941 = vmatmul.mubr.bf16.gmra.mrb[0].mxu0 %v2796
      %v2942 = vpop.f32.mrb[0].mxu0
      %v2943 = vadd.f32 0.0, %v2942
      %v2944 = vpop.f32.mrb[0].mxu0
      %v2945 = vpop.f32.mrb[0].mxu0
      %v2946 = vadd.f32 0.0, %v2945
      %v2947 = vpop.f32.mrb[0].mxu0
      %2948 = vmatprep.mubr.bf16.mxu0 0
      %2949 = vmatmul.mubr.bf16.gmra.mrb[0].mxu0 %v2799
      %v2950 = vpop.f32.mrb[0].mxu0
      %v2951 = vadd.f32 0.0, %v2950
      %v2952 = vpop.f32.mrb[0].mxu0
      %v2953 = vpop.f32.mrb[0].mxu0
      %v2954 = vadd.f32 0.0, %v2953
      %v2955 = vpop.f32.mrb[0].mxu0
      %2956 = vmatprep.mubr.bf16.mxu0 0
      %2957 = vmatmul.mubr.bf16.gmra.mrb[0].mxu0 %v2802
      %v2958 = vpop.f32.mrb[0].mxu0
      %v2959 = vadd.f32 0.0, %v2958
      %v2960 = vpop.f32.mrb[0].mxu0
      %v2961 = vpop.f32.mrb[0].mxu0
      %v2962 = vadd.f32 0.0, %v2961
      %v2963 = vpop.f32.mrb[0].mxu0
      %2964 = vdwg.mxu0
      %v2965 = vadd.f32 %v2658, %v2839
      %v2966 = vadd.f32 %v2659, %v2842
      %v2967 = vadd.f32 %v2660, %v2847
      %v2968 = vadd.f32 %v2661, %v2850
      %v2969 = vadd.f32 %v2662, %v2855
      %v2970 = vadd.f32 %v2663, %v2858
      %v2971 = vadd.f32 %v2664, %v2863
      %v2972 = vadd.f32 %v2665, %v2866
      %v2973 = vadd.f32 %v2666, %v2871
      %v2974 = vadd.f32 %v2667, %v2874
      %v2975 = vadd.f32 %v2668, %v2879
      %v2976 = vadd.f32 %v2669, %v2882
      %v2977 = vadd.f32 %v2670, %v2887
      %v2978 = vadd.f32 %v2671, %v2890
      %v2979 = vadd.f32 %v2672, %v2895
      %v2980 = vadd.f32 %v2673, %v2898
      %v2981 = vadd.f32 %v2674, %v2903
      %v2982 = vadd.f32 %v2675, %v2906
      %v2983 = vadd.f32 %v2676, %v2911
      %v2984 = vadd.f32 %v2677, %v2914
      %v2985 = vadd.f32 %v2678, %v2919
      %v2986 = vadd.f32 %v2679, %v2922
      %v2987 = vadd.f32 %v2680, %v2927
      %v2988 = vadd.f32 %v2681, %v2930
      %v2989 = vadd.f32 %v2682, %v2935
      %v2990 = vadd.f32 %v2683, %v2938
      %v2991 = vadd.f32 %v2684, %v2943
      %v2992 = vadd.f32 %v2685, %v2946
      %v2993 = vadd.f32 %v2686, %v2951
      %v2994 = vadd.f32 %v2687, %v2954
      %v2995 = vadd.f32 %v2688, %v2959
      %v2996 = vadd.f32 %v2689, %v2962
      %s2997 = scalar_lea.vmem [#allocation2], 64
      %v2998 = vld [vmem:[%s2997 + $0x8] sm:$0xff]
      %v2999 = vld [vmem:[%s2997 + $0x10] sm:$0xff]
      %v3000 = vld [vmem:[%s2997 + $0x28] sm:$0xff]
      %v3001 = vld [vmem:[%s2997 + $0x30] sm:$0xff]
      %v3002 = vld [vmem:[%s2997 + $0x48] sm:$0xff]
      %v3003 = vld [vmem:[%s2997 + $0x50] sm:$0xff]
      %v3004 = vld [vmem:[%s2997 + $0x68] sm:$0xff]
      %v3005 = vld [vmem:[%s2997 + $0x70] sm:$0xff]
      %v3006 = vld [vmem:[%s2997 + $0x88] sm:$0xff]
      %v3007 = vld [vmem:[%s2997 + $0x90] sm:$0xff]
      %v3008 = vld [vmem:[%s2997 + $0xa8] sm:$0xff]
      %v3009 = vld [vmem:[%s2997 + $0xb0] sm:$0xff]
      %v3010 = vld [vmem:[%s2997 + $0xc8] sm:$0xff]
      %v3011 = vld [vmem:[%s2997 + $0xd0] sm:$0xff]
      %v3012 = vld [vmem:[%s2997 + $0xe8] sm:$0xff]
      %v3013 = vld [vmem:[%s2997 + $0xf0] sm:$0xff]
      %v3014 = vld [vmem:[%s2997 + $0x108] sm:$0xff]
      %v3015 = vld [vmem:[%s2997 + $0x110] sm:$0xff]
      %v3016 = vld [vmem:[%s2997 + $0x128] sm:$0xff]
      %v3017 = vld [vmem:[%s2997 + $0x130] sm:$0xff]
      %v3018 = vld [vmem:[%s2997 + $0x148] sm:$0xff]
      %v3019 = vld [vmem:[%s2997 + $0x150] sm:$0xff]
      %v3020 = vld [vmem:[%s2997 + $0x168] sm:$0xff]
      %v3021 = vld [vmem:[%s2997 + $0x170] sm:$0xff]
      %v3022 = vld [vmem:[%s2997 + $0x188] sm:$0xff]
      %v3023 = vld [vmem:[%s2997 + $0x190] sm:$0xff]
      %v3024 = vld [vmem:[%s2997 + $0x1a8] sm:$0xff]
      %v3025 = vld [vmem:[%s2997 + $0x1b0] sm:$0xff]
      %v3026 = vld [vmem:[%s2997 + $0x1c8] sm:$0xff]
      %v3027 = vld [vmem:[%s2997 + $0x1d0] sm:$0xff]
      %v3028 = vld [vmem:[%s2997 + $0x1e8] sm:$0xff]
      %v3029 = vld [vmem:[%s2997 + $0x1f0] sm:$0xff]
      %v3030 = vpack.c.bf16 %v2999, %v2998
      %v3031 = vpack.c.bf16 %v3001, %v3000
      %v3032 = vpack.c.bf16 %v3003, %v3002
      %v3033 = vpack.c.bf16 %v3005, %v3004
      %v3034 = vpack.c.bf16 %v3007, %v3006
      %v3035 = vpack.c.bf16 %v3009, %v3008
      %v3036 = vpack.c.bf16 %v3011, %v3010
      %v3037 = vpack.c.bf16 %v3013, %v3012
      %v3038 = vpack.c.bf16 %v3015, %v3014
      %v3039 = vpack.c.bf16 %v3017, %v3016
      %v3040 = vpack.c.bf16 %v3019, %v3018
      %v3041 = vpack.c.bf16 %v3021, %v3020
      %v3042 = vpack.c.bf16 %v3023, %v3022
      %v3043 = vpack.c.bf16 %v3025, %v3024
      %v3044 = vpack.c.bf16 %v3027, %v3026
      %v3045 = vpack.c.bf16 %v3029, %v3028
      %s3046 = scalar_lea.vmem %s204, 112
      %v3047 = vld [vmem:[%s3046] sm:$0xf]
      %v3048 = vld [vmem:[%s3046 + $0x4] sm:$0xf]
      %v3049 = vld [vmem:[%s3046 + $0x8] sm:$0xf]
      %v3050 = vld [vmem:[%s3046 + $0xc] sm:$0xf]
      %v3055 = vunpack.c.l.b16 %v3047
      %v3056 = vunpack.c.l.b16 %v3048
      %v3057 = vunpack.c.l.b16 %v3049
      %v3058 = vunpack.c.l.b16 %v3050
      %v3059 = vpack.c.b16 %v3056, %v3055
      %v3060 = vpack.c.b16 %v3058, %v3057
      %v3064 = vsel %vm526, %v3030, 0
      %v3067 = vsel %vm526, %v3031, 0
      %v3070 = vsel %vm526, %v3032, 0
      %v3073 = vsel %vm526, %v3033, 0
      %v3076 = vsel %vm526, %v3034, 0
      %v3079 = vsel %vm526, %v3035, 0
      %v3082 = vsel %vm526, %v3036, 0
      %v3085 = vsel %vm526, %v3037, 0
      %v3088 = vsel %vm526, %v3038, 0
      %v3091 = vsel %vm526, %v3039, 0
      %v3094 = vsel %vm526, %v3040, 0
      %v3097 = vsel %vm526, %v3041, 0
      %v3100 = vsel %vm526, %v3042, 0
      %v3103 = vsel %vm526, %v3043, 0
      %v3106 = vsel %vm526, %v3044, 0
      %v3109 = vsel %vm526, %v3045, 0
      %3111 = vmatprep.subr.bf16.mxu0 0
      %3112 = vmatpush1.bf16.msra.mxu0 %v3059
      %3113 = vmatprep.subr.bf16.mxu0 0
      %3114 = vmatpush1.bf16.msra.mxu0 %v3060
      %3115 = vmatprep.subr.bf16.mxu0 0
      %3116 = vmatpush1.bf16.msra.mxu0 0
      %3117 = vmatprep.subr.bf16.mxu0 0
      %3118 = vmatpush1.bf16.msra.mxu0 0
      %3119 = vmatprep.subr.bf16.mxu0 0
      %3120 = vmatpush1.bf16.msra.mxu0 0
      %3121 = vmatprep.subr.bf16.mxu0 0
      %3122 = vmatpush1.bf16.msra.mxu0 0
      %3123 = vmatprep.subr.bf16.mxu0 0
      %3124 = vmatpush1.bf16.msra.mxu0 0
      %3125 = vmatprep.subr.bf16.mxu0 0
      %3126 = vmatpush1.bf16.msra.mxu0 0
      %3127 = vmatprep.subr.bf16.mxu0 0
      %3128 = vmatpush1.bf16.msra.mxu0 0
      %3129 = vmatprep.subr.bf16.mxu0 0
      %3130 = vmatpush1.bf16.msra.mxu0 0
      %3131 = vmatprep.subr.bf16.mxu0 0
      %3132 = vmatpush1.bf16.msra.mxu0 0
      %3133 = vmatprep.subr.bf16.mxu0 0
      %3134 = vmatpush1.bf16.msra.mxu0 0
      %3135 = vmatprep.subr.bf16.mxu0 0
      %3136 = vmatpush1.bf16.msra.mxu0 0
      %3137 = vmatprep.subr.bf16.mxu0 0
      %3138 = vmatpush1.bf16.msra.mxu0 0
      %3139 = vmatprep.subr.bf16.mxu0 0
      %3140 = vmatpush1.bf16.msra.mxu0 0
      %3141 = vmatprep.subr.bf16.mxu0 0
      %3142 = vmatpush1.bf16.msra.mxu0 0
      %3143 = vmatprep.mubr.bf16.mxu0 0
      %3144 = vmatmul.mubr.bf16.gmra.mrb[0].mxu0 %v3064
      %v3145 = vpop.f32.mrb[0].mxu0
      %v3146 = vadd.f32 0.0, %v3145
      %v3147 = vpop.f32.mrb[0].mxu0
      %v3148 = vpop.f32.mrb[0].mxu0
      %v3149 = vadd.f32 0.0, %v3148
      %v3150 = vpop.f32.mrb[0].mxu0
      %3151 = vmatprep.mubr.bf16.mxu0 0
      %3152 = vmatmul.mubr.bf16.gmra.mrb[0].mxu0 %v3067
      %v3153 = vpop.f32.mrb[0].mxu0
      %v3154 = vadd.f32 0.0, %v3153
      %v3155 = vpop.f32.mrb[0].mxu0
      %v3156 = vpop.f32.mrb[0].mxu0
      %v3157 = vadd.f32 0.0, %v3156
      %v3158 = vpop.f32.mrb[0].mxu0
      %3159 = vmatprep.mubr.bf16.mxu0 0
      %3160 = vmatmul.mubr.bf16.gmra.mrb[0].mxu0 %v3070
      %v3161 = vpop.f32.mrb[0].mxu0
      %v3162 = vadd.f32 0.0, %v3161
      %v3163 = vpop.f32.mrb[0].mxu0
      %v3164 = vpop.f32.mrb[0].mxu0
      %v3165 = vadd.f32 0.0, %v3164
      %v3166 = vpop.f32.mrb[0].mxu0
      %3167 = vmatprep.mubr.bf16.mxu0 0
      %3168 = vmatmul.mubr.bf16.gmra.mrb[0].mxu0 %v3073
      %v3169 = vpop.f32.mrb[0].mxu0
      %v3170 = vadd.f32 0.0, %v3169
      %v3171 = vpop.f32.mrb[0].mxu0
      %v3172 = vpop.f32.mrb[0].mxu0
      %v3173 = vadd.f32 0.0, %v3172
      %v3174 = vpop.f32.mrb[0].mxu0
      %3175 = vmatprep.mubr.bf16.mxu0 0
      %3176 = vmatmul.mubr.bf16.gmra.mrb[0].mxu0 %v3076
      %v3177 = vpop.f32.mrb[0].mxu0
      %v3178 = vadd.f32 0.0, %v3177
      %v3179 = vpop.f32.mrb[0].mxu0
      %v3180 = vpop.f32.mrb[0].mxu0
      %v3181 = vadd.f32 0.0, %v3180
      %v3182 = vpop.f32.mrb[0].mxu0
      %3183 = vmatprep.mubr.bf16.mxu0 0
      %3184 = vmatmul.mubr.bf16.gmra.mrb[0].mxu0 %v3079
      %v3185 = vpop.f32.mrb[0].mxu0
      %v3186 = vadd.f32 0.0, %v3185
      %v3187 = vpop.f32.mrb[0].mxu0
      %v3188 = vpop.f32.mrb[0].mxu0
      %v3189 = vadd.f32 0.0, %v3188
      %v3190 = vpop.f32.mrb[0].mxu0
      %3191 = vmatprep.mubr.bf16.mxu0 0
      %3192 = vmatmul.mubr.bf16.gmra.mrb[0].mxu0 %v3082
      %v3193 = vpop.f32.mrb[0].mxu0
      %v3194 = vadd.f32 0.0, %v3193
      %v3195 = vpop.f32.mrb[0].mxu0
      %v3196 = vpop.f32.mrb[0].mxu0
      %v3197 = vadd.f32 0.0, %v3196
      %v3198 = vpop.f32.mrb[0].mxu0
      %3199 = vmatprep.mubr.bf16.mxu0 0
      %3200 = vmatmul.mubr.bf16.gmra.mrb[0].mxu0 %v3085
      %v3201 = vpop.f32.mrb[0].mxu0
      %v3202 = vadd.f32 0.0, %v3201
      %v3203 = vpop.f32.mrb[0].mxu0
      %v3204 = vpop.f32.mrb[0].mxu0
      %v3205 = vadd.f32 0.0, %v3204
      %v3206 = vpop.f32.mrb[0].mxu0
      %3207 = vmatprep.mubr.bf16.mxu0 0
      %3208 = vmatmul.mubr.bf16.gmra.mrb[0].mxu0 %v3088
      %v3209 = vpop.f32.mrb[0].mxu0
      %v3210 = vadd.f32 0.0, %v3209
      %v3211 = vpop.f32.mrb[0].mxu0
      %v3212 = vpop.f32.mrb[0].mxu0
      %v3213 = vadd.f32 0.0, %v3212
      %v3214 = vpop.f32.mrb[0].mxu0
      %3215 = vmatprep.mubr.bf16.mxu0 0
      %3216 = vmatmul.mubr.bf16.gmra.mrb[0].mxu0 %v3091
      %v3217 = vpop.f32.mrb[0].mxu0
      %v3218 = vadd.f32 0.0, %v3217
      %v3219 = vpop.f32.mrb[0].mxu0
      %v3220 = vpop.f32.mrb[0].mxu0
      %v3221 = vadd.f32 0.0, %v3220
      %v3222 = vpop.f32.mrb[0].mxu0
      %3223 = vmatprep.mubr.bf16.mxu0 0
      %3224 = vmatmul.mubr.bf16.gmra.mrb[0].mxu0 %v3094
      %v3225 = vpop.f32.mrb[0].mxu0
      %v3226 = vadd.f32 0.0, %v3225
      %v3227 = vpop.f32.mrb[0].mxu0
      %v3228 = vpop.f32.mrb[0].mxu0
      %v3229 = vadd.f32 0.0, %v3228
      %v3230 = vpop.f32.mrb[0].mxu0
      %3231 = vmatprep.mubr.bf16.mxu0 0
      %3232 = vmatmul.mubr.bf16.gmra.mrb[0].mxu0 %v3097
      %v3233 = vpop.f32.mrb[0].mxu0
      %v3234 = vadd.f32 0.0, %v3233
      %v3235 = vpop.f32.mrb[0].mxu0
      %v3236 = vpop.f32.mrb[0].mxu0
      %v3237 = vadd.f32 0.0, %v3236
      %v3238 = vpop.f32.mrb[0].mxu0
      %3239 = vmatprep.mubr.bf16.mxu0 0
      %3240 = vmatmul.mubr.bf16.gmra.mrb[0].mxu0 %v3100
      %v3241 = vpop.f32.mrb[0].mxu0
      %v3242 = vadd.f32 0.0, %v3241
      %v3243 = vpop.f32.mrb[0].mxu0
      %v3244 = vpop.f32.mrb[0].mxu0
      %v3245 = vadd.f32 0.0, %v3244
      %v3246 = vpop.f32.mrb[0].mxu0
      %3247 = vmatprep.mubr.bf16.mxu0 0
      %3248 = vmatmul.mubr.bf16.gmra.mrb[0].mxu0 %v3103
      %v3249 = vpop.f32.mrb[0].mxu0
      %v3250 = vadd.f32 0.0, %v3249
      %v3251 = vpop.f32.mrb[0].mxu0
      %v3252 = vpop.f32.mrb[0].mxu0
      %v3253 = vadd.f32 0.0, %v3252
      %v3254 = vpop.f32.mrb[0].mxu0
      %3255 = vmatprep.mubr.bf16.mxu0 0
      %3256 = vmatmul.mubr.bf16.gmra.mrb[0].mxu0 %v3106
      %v3257 = vpop.f32.mrb[0].mxu0
      %v3258 = vadd.f32 0.0, %v3257
      %v3259 = vpop.f32.mrb[0].mxu0
      %v3260 = vpop.f32.mrb[0].mxu0
      %v3261 = vadd.f32 0.0, %v3260
      %v3262 = vpop.f32.mrb[0].mxu0
      %3263 = vmatprep.mubr.bf16.mxu0 0
      %3264 = vmatmul.mubr.bf16.gmra.mrb[0].mxu0 %v3109
      %v3265 = vpop.f32.mrb[0].mxu0
      %v3266 = vadd.f32 0.0, %v3265
      %v3267 = vpop.f32.mrb[0].mxu0
      %v3268 = vpop.f32.mrb[0].mxu0
      %v3269 = vadd.f32 0.0, %v3268
      %v3270 = vpop.f32.mrb[0].mxu0
      %3271 = vdwg.mxu0
      %v3272 = vadd.f32 %v2965, %v3146
      %v3273 = vadd.f32 %v2966, %v3149
      %v3274 = vadd.f32 %v2967, %v3154
      %v3275 = vadd.f32 %v2968, %v3157
      %v3276 = vadd.f32 %v2969, %v3162
      %v3277 = vadd.f32 %v2970, %v3165
      %v3278 = vadd.f32 %v2971, %v3170
      %v3279 = vadd.f32 %v2972, %v3173
      %v3280 = vadd.f32 %v2973, %v3178
      %v3281 = vadd.f32 %v2974, %v3181
      %v3282 = vadd.f32 %v2975, %v3186
      %v3283 = vadd.f32 %v2976, %v3189
      %v3284 = vadd.f32 %v2977, %v3194
      %v3285 = vadd.f32 %v2978, %v3197
      %v3286 = vadd.f32 %v2979, %v3202
      %v3287 = vadd.f32 %v2980, %v3205
      %v3288 = vadd.f32 %v2981, %v3210
      %v3289 = vadd.f32 %v2982, %v3213
      %v3290 = vadd.f32 %v2983, %v3218
      %v3291 = vadd.f32 %v2984, %v3221
      %v3292 = vadd.f32 %v2985, %v3226
      %v3293 = vadd.f32 %v2986, %v3229
      %v3294 = vadd.f32 %v2987, %v3234
      %v3295 = vadd.f32 %v2988, %v3237
      %v3296 = vadd.f32 %v2989, %v3242
      %v3297 = vadd.f32 %v2990, %v3245
      %v3298 = vadd.f32 %v2991, %v3250
      %v3299 = vadd.f32 %v2992, %v3253
      %v3300 = vadd.f32 %v2993, %v3258
      %v3301 = vadd.f32 %v2994, %v3261
      %v3302 = vadd.f32 %v2995, %v3266
      %v3303 = vadd.f32 %v2996, %v3269
      %s3304 = scalar_lea.vmem [#allocation3], 608
      %v3305 = vld [vmem:[%s3304] sm:$0xff]
      %v3306 = vld [vmem:[%s3304 + $0x8] sm:$0xff]
      %v3307 = vld [vmem:[%s3304 + $0x10] sm:$0xff]
      %v3308 = vld [vmem:[%s3304 + $0x18] sm:$0xff]
      %v3309 = vld [vmem:[%s3304 + $0x20] sm:$0xff]
      %v3310 = vld [vmem:[%s3304 + $0x28] sm:$0xff]
      %v3311 = vld [vmem:[%s3304 + $0x30] sm:$0xff]
      %v3312 = vld [vmem:[%s3304 + $0x38] sm:$0xff]
      %v3313 = vld [vmem:[%s3304 + $0x40] sm:$0xff]
      %v3314 = vld [vmem:[%s3304 + $0x48] sm:$0xff]
      %v3315 = vld [vmem:[%s3304 + $0x50] sm:$0xff]
      %v3316 = vld [vmem:[%s3304 + $0x58] sm:$0xff]
      %v3317 = vld [vmem:[%s3304 + $0x60] sm:$0xff]
      %v3318 = vld [vmem:[%s3304 + $0x68] sm:$0xff]
      %v3319 = vld [vmem:[%s3304 + $0x70] sm:$0xff]
      %v3320 = vld [vmem:[%s3304 + $0x78] sm:$0xff]
      %v3321 = vld [vmem:[%s3304 + $0x80] sm:$0xff]
      %v3322 = vld [vmem:[%s3304 + $0x88] sm:$0xff]
      %v3323 = vld [vmem:[%s3304 + $0x90] sm:$0xff]
      %v3324 = vld [vmem:[%s3304 + $0x98] sm:$0xff]
      %v3325 = vld [vmem:[%s3304 + $0xa0] sm:$0xff]
      %v3326 = vld [vmem:[%s3304 + $0xa8] sm:$0xff]
      %v3327 = vld [vmem:[%s3304 + $0xb0] sm:$0xff]
      %v3328 = vld [vmem:[%s3304 + $0xb8] sm:$0xff]
      %v3329 = vld [vmem:[%s3304 + $0xc0] sm:$0xff]
      %v3330 = vld [vmem:[%s3304 + $0xc8] sm:$0xff]
      %v3331 = vld [vmem:[%s3304 + $0xd0] sm:$0xff]
      %v3332 = vld [vmem:[%s3304 + $0xd8] sm:$0xff]
      %v3333 = vld [vmem:[%s3304 + $0xe0] sm:$0xff]
      %v3334 = vld [vmem:[%s3304 + $0xe8] sm:$0xff]
      %v3335 = vld [vmem:[%s3304 + $0xf0] sm:$0xff]
      %v3336 = vld [vmem:[%s3304 + $0xf8] sm:$0xff]
      %v3337 = vpack.c.bf16 %v3306, %v3305
      %v3338 = vpack.c.bf16 %v3308, %v3307
      %v3339 = vpack.c.bf16 %v3310, %v3309
      %v3340 = vpack.c.bf16 %v3312, %v3311
      %v3341 = vpack.c.bf16 %v3314, %v3313
      %v3342 = vpack.c.bf16 %v3316, %v3315
      %v3343 = vpack.c.bf16 %v3318, %v3317
      %v3344 = vpack.c.bf16 %v3320, %v3319
      %v3345 = vpack.c.bf16 %v3322, %v3321
      %v3346 = vpack.c.bf16 %v3324, %v3323
      %v3347 = vpack.c.bf16 %v3326, %v3325
      %v3348 = vpack.c.bf16 %v3328, %v3327
      %v3349 = vpack.c.bf16 %v3330, %v3329
      %v3350 = vpack.c.bf16 %v3332, %v3331
      %v3351 = vpack.c.bf16 %v3334, %v3333
      %v3352 = vpack.c.bf16 %v3336, %v3335
      %s3353 = scalar_lea.vmem %s204, 128
      %v3354 = vld [vmem:[%s3353] sm:$0xf]
      %v3355 = vld [vmem:[%s3353 + $0x4] sm:$0xf]
      %v3356 = vld [vmem:[%s3353 + $0x8] sm:$0xf]
      %v3357 = vld [vmem:[%s3353 + $0xc] sm:$0xf]
      %v3362 = vunpack.c.l.b16 %v3354
      %v3363 = vunpack.c.l.b16 %v3355
      %v3364 = vunpack.c.l.b16 %v3356
      %v3365 = vunpack.c.l.b16 %v3357
      %v3366 = vpack.c.b16 %v3363, %v3362
      %v3367 = vpack.c.b16 %v3365, %v3364
      %v3371 = vsel %vm526, %v3337, 0
      %v3374 = vsel %vm526, %v3338, 0
      %v3377 = vsel %vm526, %v3339, 0
      %v3380 = vsel %vm526, %v3340, 0
      %v3383 = vsel %vm526, %v3341, 0
      %v3386 = vsel %vm526, %v3342, 0
      %v3389 = vsel %vm526, %v3343, 0
      %v3392 = vsel %vm526, %v3344, 0
      %v3395 = vsel %vm526, %v3345, 0
      %v3398 = vsel %vm526, %v3346, 0
      %v3401 = vsel %vm526, %v3347, 0
      %v3404 = vsel %vm526, %v3348, 0
      %v3407 = vsel %vm526, %v3349, 0
      %v3410 = vsel %vm526, %v3350, 0
      %v3413 = vsel %vm526, %v3351, 0
      %v3416 = vsel %vm526, %v3352, 0
      %3418 = vmatprep.subr.bf16.mxu0 0
      %3419 = vmatpush1.bf16.msra.mxu0 %v3366
      %3420 = vmatprep.subr.bf16.mxu0 0
      %3421 = vmatpush1.bf16.msra.mxu0 %v3367
      %3422 = vmatprep.subr.bf16.mxu0 0
      %3423 = vmatpush1.bf16.msra.mxu0 0
      %3424 = vmatprep.subr.bf16.mxu0 0
      %3425 = vmatpush1.bf16.msra.mxu0 0
      %3426 = vmatprep.subr.bf16.mxu0 0
      %3427 = vmatpush1.bf16.msra.mxu0 0
      %3428 = vmatprep.subr.bf16.mxu0 0
      %3429 = vmatpush1.bf16.msra.mxu0 0
      %3430 = vmatprep.subr.bf16.mxu0 0
      %3431 = vmatpush1.bf16.msra.mxu0 0
      %3432 = vmatprep.subr.bf16.mxu0 0
      %3433 = vmatpush1.bf16.msra.mxu0 0
      %3434 = vmatprep.subr.bf16.mxu0 0
      %3435 = vmatpush1.bf16.msra.mxu0 0
      %3436 = vmatprep.subr.bf16.mxu0 0
      %3437 = vmatpush1.bf16.msra.mxu0 0
      %3438 = vmatprep.subr.bf16.mxu0 0
      %3439 = vmatpush1.bf16.msra.mxu0 0
      %3440 = vmatprep.subr.bf16.mxu0 0
      %3441 = vmatpush1.bf16.msra.mxu0 0
      %3442 = vmatprep.subr.bf16.mxu0 0
      %3443 = vmatpush1.bf16.msra.mxu0 0
      %3444 = vmatprep.subr.bf16.mxu0 0
      %3445 = vmatpush1.bf16.msra.mxu0 0
      %3446 = vmatprep.subr.bf16.mxu0 0
      %3447 = vmatpush1.bf16.msra.mxu0 0
      %3448 = vmatprep.subr.bf16.mxu0 0
      %3449 = vmatpush1.bf16.msra.mxu0 0
      %3450 = vmatprep.mubr.bf16.mxu0 0
      %3451 = vmatmul.mubr.bf16.gmra.mrb[0].mxu0 %v3371
      %v3452 = vpop.f32.mrb[0].mxu0
      %v3453 = vadd.f32 0.0, %v3452
      %v3454 = vpop.f32.mrb[0].mxu0
      %v3455 = vpop.f32.mrb[0].mxu0
      %v3456 = vadd.f32 0.0, %v3455
      %v3457 = vpop.f32.mrb[0].mxu0
      %3458 = vmatprep.mubr.bf16.mxu0 0
      %3459 = vmatmul.mubr.bf16.gmra.mrb[0].mxu0 %v3374
      %v3460 = vpop.f32.mrb[0].mxu0
      %v3461 = vadd.f32 0.0, %v3460
      %v3462 = vpop.f32.mrb[0].mxu0
      %v3463 = vpop.f32.mrb[0].mxu0
      %v3464 = vadd.f32 0.0, %v3463
      %v3465 = vpop.f32.mrb[0].mxu0
      %3466 = vmatprep.mubr.bf16.mxu0 0
      %3467 = vmatmul.mubr.bf16.gmra.mrb[0].mxu0 %v3377
      %v3468 = vpop.f32.mrb[0].mxu0
      %v3469 = vadd.f32 0.0, %v3468
      %v3470 = vpop.f32.mrb[0].mxu0
      %v3471 = vpop.f32.mrb[0].mxu0
      %v3472 = vadd.f32 0.0, %v3471
      %v3473 = vpop.f32.mrb[0].mxu0
      %3474 = vmatprep.mubr.bf16.mxu0 0
      %3475 = vmatmul.mubr.bf16.gmra.mrb[0].mxu0 %v3380
      %v3476 = vpop.f32.mrb[0].mxu0
      %v3477 = vadd.f32 0.0, %v3476
      %v3478 = vpop.f32.mrb[0].mxu0
      %v3479 = vpop.f32.mrb[0].mxu0
      %v3480 = vadd.f32 0.0, %v3479
      %v3481 = vpop.f32.mrb[0].mxu0
      %3482 = vmatprep.mubr.bf16.mxu0 0
      %3483 = vmatmul.mubr.bf16.gmra.mrb[0].mxu0 %v3383
      %v3484 = vpop.f32.mrb[0].mxu0
      %v3485 = vadd.f32 0.0, %v3484
      %v3486 = vpop.f32.mrb[0].mxu0
      %v3487 = vpop.f32.mrb[0].mxu0
      %v3488 = vadd.f32 0.0, %v3487
      %v3489 = vpop.f32.mrb[0].mxu0
      %3490 = vmatprep.mubr.bf16.mxu0 0
      %3491 = vmatmul.mubr.bf16.gmra.mrb[0].mxu0 %v3386
      %v3492 = vpop.f32.mrb[0].mxu0
      %v3493 = vadd.f32 0.0, %v3492
      %v3494 = vpop.f32.mrb[0].mxu0
      %v3495 = vpop.f32.mrb[0].mxu0
      %v3496 = vadd.f32 0.0, %v3495
      %v3497 = vpop.f32.mrb[0].mxu0
      %3498 = vmatprep.mubr.bf16.mxu0 0
      %3499 = vmatmul.mubr.bf16.gmra.mrb[0].mxu0 %v3389
      %v3500 = vpop.f32.mrb[0].mxu0
      %v3501 = vadd.f32 0.0, %v3500
      %v3502 = vpop.f32.mrb[0].mxu0
      %v3503 = vpop.f32.mrb[0].mxu0
      %v3504 = vadd.f32 0.0, %v3503
      %v3505 = vpop.f32.mrb[0].mxu0
      %3506 = vmatprep.mubr.bf16.mxu0 0
      %3507 = vmatmul.mubr.bf16.gmra.mrb[0].mxu0 %v3392
      %v3508 = vpop.f32.mrb[0].mxu0
      %v3509 = vadd.f32 0.0, %v3508
      %v3510 = vpop.f32.mrb[0].mxu0
      %v3511 = vpop.f32.mrb[0].mxu0
      %v3512 = vadd.f32 0.0, %v3511
      %v3513 = vpop.f32.mrb[0].mxu0
      %3514 = vmatprep.mubr.bf16.mxu0 0
      %3515 = vmatmul.mubr.bf16.gmra.mrb[0].mxu0 %v3395
      %v3516 = vpop.f32.mrb[0].mxu0
      %v3517 = vadd.f32 0.0, %v3516
      %v3518 = vpop.f32.mrb[0].mxu0
      %v3519 = vpop.f32.mrb[0].mxu0
      %v3520 = vadd.f32 0.0, %v3519
      %v3521 = vpop.f32.mrb[0].mxu0
      %3522 = vmatprep.mubr.bf16.mxu0 0
      %3523 = vmatmul.mubr.bf16.gmra.mrb[0].mxu0 %v3398
      %v3524 = vpop.f32.mrb[0].mxu0
      %v3525 = vadd.f32 0.0, %v3524
      %v3526 = vpop.f32.mrb[0].mxu0
      %v3527 = vpop.f32.mrb[0].mxu0
      %v3528 = vadd.f32 0.0, %v3527
      %v3529 = vpop.f32.mrb[0].mxu0
      %3530 = vmatprep.mubr.bf16.mxu0 0
      %3531 = vmatmul.mubr.bf16.gmra.mrb[0].mxu0 %v3401
      %v3532 = vpop.f32.mrb[0].mxu0
      %v3533 = vadd.f32 0.0, %v3532
      %v3534 = vpop.f32.mrb[0].mxu0
      %v3535 = vpop.f32.mrb[0].mxu0
      %v3536 = vadd.f32 0.0, %v3535
      %v3537 = vpop.f32.mrb[0].mxu0
      %3538 = vmatprep.mubr.bf16.mxu0 0
      %3539 = vmatmul.mubr.bf16.gmra.mrb[0].mxu0 %v3404
      %v3540 = vpop.f32.mrb[0].mxu0
      %v3541 = vadd.f32 0.0, %v3540
      %v3542 = vpop.f32.mrb[0].mxu0
      %v3543 = vpop.f32.mrb[0].mxu0
      %v3544 = vadd.f32 0.0, %v3543
      %v3545 = vpop.f32.mrb[0].mxu0
      %3546 = vmatprep.mubr.bf16.mxu0 0
      %3547 = vmatmul.mubr.bf16.gmra.mrb[0].mxu0 %v3407
      %v3548 = vpop.f32.mrb[0].mxu0
      %v3549 = vadd.f32 0.0, %v3548
      %v3550 = vpop.f32.mrb[0].mxu0
      %v3551 = vpop.f32.mrb[0].mxu0
      %v3552 = vadd.f32 0.0, %v3551
      %v3553 = vpop.f32.mrb[0].mxu0
      %3554 = vmatprep.mubr.bf16.mxu0 0
      %3555 = vmatmul.mubr.bf16.gmra.mrb[0].mxu0 %v3410
      %v3556 = vpop.f32.mrb[0].mxu0
      %v3557 = vadd.f32 0.0, %v3556
      %v3558 = vpop.f32.mrb[0].mxu0
      %v3559 = vpop.f32.mrb[0].mxu0
      %v3560 = vadd.f32 0.0, %v3559
      %v3561 = vpop.f32.mrb[0].mxu0
      %3562 = vmatprep.mubr.bf16.mxu0 0
      %3563 = vmatmul.mubr.bf16.gmra.mrb[0].mxu0 %v3413
      %v3564 = vpop.f32.mrb[0].mxu0
      %v3565 = vadd.f32 0.0, %v3564
      %v3566 = vpop.f32.mrb[0].mxu0
      %v3567 = vpop.f32.mrb[0].mxu0
      %v3568 = vadd.f32 0.0, %v3567
      %v3569 = vpop.f32.mrb[0].mxu0
      %3570 = vmatprep.mubr.bf16.mxu0 0
      %3571 = vmatmul.mubr.bf16.gmra.mrb[0].mxu0 %v3416
      %v3572 = vpop.f32.mrb[0].mxu0
      %v3573 = vadd.f32 0.0, %v3572
      %v3574 = vpop.f32.mrb[0].mxu0
      %v3575 = vpop.f32.mrb[0].mxu0
      %v3576 = vadd.f32 0.0, %v3575
      %v3577 = vpop.f32.mrb[0].mxu0
      %3578 = vdwg.mxu0
      %v3579 = vadd.f32 %v3272, %v3453
      %v3580 = vadd.f32 %v3273, %v3456
      %v3581 = vadd.f32 %v3274, %v3461
      %v3582 = vadd.f32 %v3275, %v3464
      %v3583 = vadd.f32 %v3276, %v3469
      %v3584 = vadd.f32 %v3277, %v3472
      %v3585 = vadd.f32 %v3278, %v3477
      %v3586 = vadd.f32 %v3279, %v3480
      %v3587 = vadd.f32 %v3280, %v3485
      %v3588 = vadd.f32 %v3281, %v3488
      %v3589 = vadd.f32 %v3282, %v3493
      %v3590 = vadd.f32 %v3283, %v3496
      %v3591 = vadd.f32 %v3284, %v3501
      %v3592 = vadd.f32 %v3285, %v3504
      %v3593 = vadd.f32 %v3286, %v3509
      %v3594 = vadd.f32 %v3287, %v3512
      %v3595 = vadd.f32 %v3288, %v3517
      %v3596 = vadd.f32 %v3289, %v3520
      %v3597 = vadd.f32 %v3290, %v3525
      %v3598 = vadd.f32 %v3291, %v3528
      %v3599 = vadd.f32 %v3292, %v3533
      %v3600 = vadd.f32 %v3293, %v3536
      %v3601 = vadd.f32 %v3294, %v3541
      %v3602 = vadd.f32 %v3295, %v3544
      %v3603 = vadd.f32 %v3296, %v3549
      %v3604 = vadd.f32 %v3297, %v3552
      %v3605 = vadd.f32 %v3298, %v3557
      %v3606 = vadd.f32 %v3299, %v3560
      %v3607 = vadd.f32 %v3300, %v3565
      %v3608 = vadd.f32 %v3301, %v3568
      %v3609 = vadd.f32 %v3302, %v3573
      %v3610 = vadd.f32 %v3303, %v3576
      %v3611 = vsel %vm526, %v3579, 0.0
      %v3612 = vsel %vm526, %v3580, 0.0
      %v3613 = vadd.f32 %v3611, %v3612
      %v3614 = vsel %vm526, %v3581, 0.0
      %v3615 = vadd.f32 %v3613, %v3614
      %v3616 = vsel %vm526, %v3582, 0.0
      %v3617 = vadd.f32 %v3615, %v3616
      %v3618 = vsel %vm526, %v3583, 0.0
      %v3619 = vadd.f32 %v3617, %v3618
      %v3620 = vsel %vm526, %v3584, 0.0
      %v3621 = vadd.f32 %v3619, %v3620
      %v3622 = vsel %vm526, %v3585, 0.0
      %v3623 = vadd.f32 %v3621, %v3622
      %v3624 = vsel %vm526, %v3586, 0.0
      %v3625 = vadd.f32 %v3623, %v3624
      %v3626 = vsel %vm526, %v3587, 0.0
      %v3627 = vadd.f32 %v3625, %v3626
      %v3628 = vsel %vm526, %v3588, 0.0
      %v3629 = vadd.f32 %v3627, %v3628
      %v3630 = vsel %vm526, %v3589, 0.0
      %v3631 = vadd.f32 %v3629, %v3630
      %v3632 = vsel %vm526, %v3590, 0.0
      %v3633 = vadd.f32 %v3631, %v3632
      %v3634 = vsel %vm526, %v3591, 0.0
      %v3635 = vadd.f32 %v3633, %v3634
      %v3636 = vsel %vm526, %v3592, 0.0
      %v3637 = vadd.f32 %v3635, %v3636
      %v3638 = vsel %vm526, %v3593, 0.0
      %v3639 = vadd.f32 %v3637, %v3638
      %v3640 = vsel %vm526, %v3594, 0.0
      %v3641 = vadd.f32 %v3639, %v3640
      %v3642 = vsel %vm526, %v3595, 0.0
      %v3643 = vadd.f32 %v3641, %v3642
      %v3644 = vsel %vm526, %v3596, 0.0
      %v3645 = vadd.f32 %v3643, %v3644
      %v3646 = vsel %vm526, %v3597, 0.0
      %v3647 = vadd.f32 %v3645, %v3646
      %v3648 = vsel %vm526, %v3598, 0.0
      %v3649 = vadd.f32 %v3647, %v3648
      %v3650 = vsel %vm526, %v3599, 0.0
      %v3651 = vadd.f32 %v3649, %v3650
      %v3652 = vsel %vm526, %v3600, 0.0
      %v3653 = vadd.f32 %v3651, %v3652
      %v3654 = vsel %vm526, %v3601, 0.0
      %v3655 = vadd.f32 %v3653, %v3654
      %v3656 = vsel %vm526, %v3602, 0.0
      %v3657 = vadd.f32 %v3655, %v3656
      %v3658 = vsel %vm526, %v3603, 0.0
      %v3659 = vadd.f32 %v3657, %v3658
      %v3660 = vsel %vm526, %v3604, 0.0
      %v3661 = vadd.f32 %v3659, %v3660
      %v3662 = vsel %vm526, %v3605, 0.0
      %v3663 = vadd.f32 %v3661, %v3662
      %v3664 = vsel %vm526, %v3606, 0.0
      %v3665 = vadd.f32 %v3663, %v3664
      %v3666 = vsel %vm526, %v3607, 0.0
      %v3667 = vadd.f32 %v3665, %v3666
      %v3668 = vsel %vm526, %v3608, 0.0
      %v3669 = vadd.f32 %v3667, %v3668
      %v3670 = vsel %vm526, %v3609, 0.0
      %v3671 = vadd.f32 %v3669, %v3670
      %v3672 = vsel %vm526, %v3610, 0.0
      %v3673 = vadd.f32 %v3671, %v3672
      %v3674 = vrot.slane %v3673, 4
      %v3675 = vadd.f32 %v3673, %v3674
      %v3676 = vrot.slane %v3675, 2
      %v3677 = vadd.f32 %v3675, %v3676
      %v3678 = vrot.slane %v3677, 1
      %v3679 = vadd.f32 %v3677, %v3678
      %v3680 = vadd.f32 %v3679, 0.0
      %v3681 = vmul.f32 %v3579, %v3579
      %v3682 = vmul.f32 %v3580, %v3580
      %v3683 = vmul.f32 %v3581, %v3581
      %v3684 = vmul.f32 %v3582, %v3582
      %v3685 = vmul.f32 %v3583, %v3583
      %v3686 = vmul.f32 %v3584, %v3584
      %v3687 = vmul.f32 %v3585, %v3585
      %v3688 = vmul.f32 %v3586, %v3586
      %v3689 = vmul.f32 %v3587, %v3587
      %v3690 = vmul.f32 %v3588, %v3588
      %v3691 = vmul.f32 %v3589, %v3589
      %v3692 = vmul.f32 %v3590, %v3590
      %v3693 = vmul.f32 %v3591, %v3591
      %v3694 = vmul.f32 %v3592, %v3592
      %v3695 = vmul.f32 %v3593, %v3593
      %v3696 = vmul.f32 %v3594, %v3594
      %v3697 = vmul.f32 %v3595, %v3595
      %v3698 = vmul.f32 %v3596, %v3596
      %v3699 = vmul.f32 %v3597, %v3597
      %v3700 = vmul.f32 %v3598, %v3598
      %v3701 = vmul.f32 %v3599, %v3599
      %v3702 = vmul.f32 %v3600, %v3600
      %v3703 = vmul.f32 %v3601, %v3601
      %v3704 = vmul.f32 %v3602, %v3602
      %v3705 = vmul.f32 %v3603, %v3603
      %v3706 = vmul.f32 %v3604, %v3604
      %v3707 = vmul.f32 %v3605, %v3605
      %v3708 = vmul.f32 %v3606, %v3606
      %v3709 = vmul.f32 %v3607, %v3607
      %v3710 = vmul.f32 %v3608, %v3608
      %v3711 = vmul.f32 %v3609, %v3609
      %v3712 = vmul.f32 %v3610, %v3610
      %v3713 = vsel %vm526, %v3681, 0.0
      %v3714 = vsel %vm526, %v3682, 0.0
      %v3715 = vadd.f32 %v3713, %v3714
      %v3716 = vsel %vm526, %v3683, 0.0
      %v3717 = vadd.f32 %v3715, %v3716
      %v3718 = vsel %vm526, %v3684, 0.0
      %v3719 = vadd.f32 %v3717, %v3718
      %v3720 = vsel %vm526, %v3685, 0.0
      %v3721 = vadd.f32 %v3719, %v3720
      %v3722 = vsel %vm526, %v3686, 0.0
      %v3723 = vadd.f32 %v3721, %v3722
      %v3724 = vsel %vm526, %v3687, 0.0
      %v3725 = vadd.f32 %v3723, %v3724
      %v3726 = vsel %vm526, %v3688, 0.0
      %v3727 = vadd.f32 %v3725, %v3726
      %v3728 = vsel %vm526, %v3689, 0.0
      %v3729 = vadd.f32 %v3727, %v3728
      %v3730 = vsel %vm526, %v3690, 0.0
      %v3731 = vadd.f32 %v3729, %v3730
      %v3732 = vsel %vm526, %v3691, 0.0
      %v3733 = vadd.f32 %v3731, %v3732
      %v3734 = vsel %vm526, %v3692, 0.0
      %v3735 = vadd.f32 %v3733, %v3734
      %v3736 = vsel %vm526, %v3693, 0.0
      %v3737 = vadd.f32 %v3735, %v3736
      %v3738 = vsel %vm526, %v3694, 0.0
      %v3739 = vadd.f32 %v3737, %v3738
      %v3740 = vsel %vm526, %v3695, 0.0
      %v3741 = vadd.f32 %v3739, %v3740
      %v3742 = vsel %vm526, %v3696, 0.0
      %v3743 = vadd.f32 %v3741, %v3742
      %v3744 = vsel %vm526, %v3697, 0.0
      %v3745 = vadd.f32 %v3743, %v3744
      %v3746 = vsel %vm526, %v3698, 0.0
      %v3747 = vadd.f32 %v3745, %v3746
      %v3748 = vsel %vm526, %v3699, 0.0
      %v3749 = vadd.f32 %v3747, %v3748
      %v3750 = vsel %vm526, %v3700, 0.0
      %v3751 = vadd.f32 %v3749, %v3750
      %v3752 = vsel %vm526, %v3701, 0.0
      %v3753 = vadd.f32 %v3751, %v3752
      %v3754 = vsel %vm526, %v3702, 0.0
      %v3755 = vadd.f32 %v3753, %v3754
      %v3756 = vsel %vm526, %v3703, 0.0
      %v3757 = vadd.f32 %v3755, %v3756
      %v3758 = vsel %vm526, %v3704, 0.0
      %v3759 = vadd.f32 %v3757, %v3758
      %v3760 = vsel %vm526, %v3705, 0.0
      %v3761 = vadd.f32 %v3759, %v3760
      %v3762 = vsel %vm526, %v3706, 0.0
      %v3763 = vadd.f32 %v3761, %v3762
      %v3764 = vsel %vm526, %v3707, 0.0
      %v3765 = vadd.f32 %v3763, %v3764
      %v3766 = vsel %vm526, %v3708, 0.0
      %v3767 = vadd.f32 %v3765, %v3766
      %v3768 = vsel %vm526, %v3709, 0.0
      %v3769 = vadd.f32 %v3767, %v3768
      %v3770 = vsel %vm526, %v3710, 0.0
      %v3771 = vadd.f32 %v3769, %v3770
      %v3772 = vsel %vm526, %v3711, 0.0
      %v3773 = vadd.f32 %v3771, %v3772
      %v3774 = vsel %vm526, %v3712, 0.0
      %v3775 = vadd.f32 %v3773, %v3774
      %v3776 = vrot.slane %v3775, 4
      %v3777 = vadd.f32 %v3775, %v3776
      %v3778 = vrot.slane %v3777, 2
      %v3779 = vadd.f32 %v3777, %v3778
      %v3780 = vrot.slane %v3779, 1
      %v3781 = vadd.f32 %v3779, %v3780
      %v3782 = vadd.f32 %v3781, 0.0
      %3783 = vst.msk [vmem:[#allocation4] sm:$0xff] %vm526, %v3579
      %3784 = vst.msk [vmem:[#allocation4 + $0x8] sm:$0xff] %vm526, %v3580
      %3785 = vst.msk [vmem:[#allocation4 + $0x10] sm:$0xff] %vm526, %v3581
      %3786 = vst.msk [vmem:[#allocation4 + $0x18] sm:$0xff] %vm526, %v3582
      %3787 = vst.msk [vmem:[#allocation4 + $0x20] sm:$0xff] %vm526, %v3583
      %3788 = vst.msk [vmem:[#allocation4 + $0x28] sm:$0xff] %vm526, %v3584
      %3789 = vst.msk [vmem:[#allocation4 + $0x30] sm:$0xff] %vm526, %v3585
      %3790 = vst.msk [vmem:[#allocation4 + $0x38] sm:$0xff] %vm526, %v3586
      %3791 = vst.msk [vmem:[#allocation4 + $0x40] sm:$0xff] %vm526, %v3587
      %3792 = vst.msk [vmem:[#allocation4 + $0x48] sm:$0xff] %vm526, %v3588
      %3793 = vst.msk [vmem:[#allocation4 + $0x50] sm:$0xff] %vm526, %v3589
      %3794 = vst.msk [vmem:[#allocation4 + $0x58] sm:$0xff] %vm526, %v3590
      %3795 = vst.msk [vmem:[#allocation4 + $0x60] sm:$0xff] %vm526, %v3591
      %3796 = vst.msk [vmem:[#allocation4 + $0x68] sm:$0xff] %vm526, %v3592
      %3797 = vst.msk [vmem:[#allocation4 + $0x70] sm:$0xff] %vm526, %v3593
      %3798 = vst.msk [vmem:[#allocation4 + $0x78] sm:$0xff] %vm526, %v3594
      %3799 = vst.msk [vmem:[#allocation4 + $0x80] sm:$0xff] %vm526, %v3595
      %3800 = vst.msk [vmem:[#allocation4 + $0x88] sm:$0xff] %vm526, %v3596
      %3801 = vst.msk [vmem:[#allocation4 + $0x90] sm:$0xff] %vm526, %v3597
      %3802 = vst.msk [vmem:[#allocation4 + $0x98] sm:$0xff] %vm526, %v3598
      %3803 = vst.msk [vmem:[#allocation4 + $0xa0] sm:$0xff] %vm526, %v3599
      %3804 = vst.msk [vmem:[#allocation4 + $0xa8] sm:$0xff] %vm526, %v3600
      %3805 = vst.msk [vmem:[#allocation4 + $0xb0] sm:$0xff] %vm526, %v3601
      %3806 = vst.msk [vmem:[#allocation4 + $0xb8] sm:$0xff] %vm526, %v3602
      %3807 = vst.msk [vmem:[#allocation4 + $0xc0] sm:$0xff] %vm526, %v3603
      %3808 = vst.msk [vmem:[#allocation4 + $0xc8] sm:$0xff] %vm526, %v3604
      %3809 = vst.msk [vmem:[#allocation4 + $0xd0] sm:$0xff] %vm526, %v3605
      %3810 = vst.msk [vmem:[#allocation4 + $0xd8] sm:$0xff] %vm526, %v3606
      %3811 = vst.msk [vmem:[#allocation4 + $0xe0] sm:$0xff] %vm526, %v3607
      %3812 = vst.msk [vmem:[#allocation4 + $0xe8] sm:$0xff] %vm526, %v3608
      %3813 = vst.msk [vmem:[#allocation4 + $0xf0] sm:$0xff] %vm526, %v3609
      %3814 = vst.msk [vmem:[#allocation4 + $0xf8] sm:$0xff] %vm526, %v3610
      %v3815 = vld [vmem:[%s600] sm:$0xff]
      %v3816 = vld [vmem:[%s600 + $0x8] sm:$0xff]
      %v3817 = vld [vmem:[%s600 + $0x10] sm:$0xff]
      %v3818 = vld [vmem:[%s600 + $0x18] sm:$0xff]
      %v3819 = vld [vmem:[%s600 + $0x20] sm:$0xff]
      %v3820 = vld [vmem:[%s600 + $0x28] sm:$0xff]
      %v3821 = vld [vmem:[%s600 + $0x30] sm:$0xff]
      %v3822 = vld [vmem:[%s600 + $0x38] sm:$0xff]
      %v3823 = vld [vmem:[%s600 + $0x40] sm:$0xff]
      %v3824 = vld [vmem:[%s600 + $0x48] sm:$0xff]
      %v3825 = vld [vmem:[%s600 + $0x50] sm:$0xff]
      %v3826 = vld [vmem:[%s600 + $0x58] sm:$0xff]
      %v3827 = vld [vmem:[%s600 + $0x60] sm:$0xff]
      %v3828 = vld [vmem:[%s600 + $0x68] sm:$0xff]
      %v3829 = vld [vmem:[%s600 + $0x70] sm:$0xff]
      %v3830 = vld [vmem:[%s600 + $0x78] sm:$0xff]
      %v3831 = vld [vmem:[%s600 + $0x80] sm:$0xff]
      %v3832 = vld [vmem:[%s600 + $0x88] sm:$0xff]
      %v3833 = vld [vmem:[%s600 + $0x90] sm:$0xff]
      %v3834 = vld [vmem:[%s600 + $0x98] sm:$0xff]
      %v3835 = vld [vmem:[%s600 + $0xa0] sm:$0xff]
      %v3836 = vld [vmem:[%s600 + $0xa8] sm:$0xff]
      %v3837 = vld [vmem:[%s600 + $0xb0] sm:$0xff]
      %v3838 = vld [vmem:[%s600 + $0xb8] sm:$0xff]
      %v3839 = vld [vmem:[%s600 + $0xc0] sm:$0xff]
      %v3840 = vld [vmem:[%s600 + $0xc8] sm:$0xff]
      %v3841 = vld [vmem:[%s600 + $0xd0] sm:$0xff]
      %v3842 = vld [vmem:[%s600 + $0xd8] sm:$0xff]
      %v3843 = vld [vmem:[%s600 + $0xe0] sm:$0xff]
      %v3844 = vld [vmem:[%s600 + $0xe8] sm:$0xff]
      %v3845 = vld [vmem:[%s600 + $0xf0] sm:$0xff]
      %v3846 = vld [vmem:[%s600 + $0xf8] sm:$0xff]
      %v3847 = vpack.c.bf16 %v3816, %v3815
      %v3848 = vpack.c.bf16 %v3818, %v3817
      %v3849 = vpack.c.bf16 %v3820, %v3819
      %v3850 = vpack.c.bf16 %v3822, %v3821
      %v3851 = vpack.c.bf16 %v3824, %v3823
      %v3852 = vpack.c.bf16 %v3826, %v3825
      %v3853 = vpack.c.bf16 %v3828, %v3827
      %v3854 = vpack.c.bf16 %v3830, %v3829
      %v3855 = vpack.c.bf16 %v3832, %v3831
      %v3856 = vpack.c.bf16 %v3834, %v3833
      %v3857 = vpack.c.bf16 %v3836, %v3835
      %v3858 = vpack.c.bf16 %v3838, %v3837
      %v3859 = vpack.c.bf16 %v3840, %v3839
      %v3860 = vpack.c.bf16 %v3842, %v3841
      %v3861 = vpack.c.bf16 %v3844, %v3843
      %v3862 = vpack.c.bf16 %v3846, %v3845
      %v3863 = vld [vmem:[%s204] sm:$0xf]
      %v3864 = vld [vmem:[%s204 + $0x4] sm:$0xf]
      %v3865 = vld [vmem:[%s204 + $0x8] sm:$0xf]
      %v3866 = vld [vmem:[%s204 + $0xc] sm:$0xf]
      %v3867 = vld [vmem:[%s563 + $0x8] sm:$0xff]
      %v3868 = vld [vmem:[%s563 + $0x10] sm:$0xff]
      %v3869 = vld [vmem:[%s563 + $0x28] sm:$0xff]
      %v3870 = vld [vmem:[%s563 + $0x30] sm:$0xff]
      %v3871 = vld [vmem:[%s563 + $0x48] sm:$0xff]
      %v3872 = vld [vmem:[%s563 + $0x50] sm:$0xff]
      %v3873 = vld [vmem:[%s563 + $0x68] sm:$0xff]
      %v3874 = vld [vmem:[%s563 + $0x70] sm:$0xff]
      %v3875 = vld [vmem:[%s563 + $0x88] sm:$0xff]
      %v3876 = vld [vmem:[%s563 + $0x90] sm:$0xff]
      %v3877 = vld [vmem:[%s563 + $0xa8] sm:$0xff]
      %v3878 = vld [vmem:[%s563 + $0xb0] sm:$0xff]
      %v3879 = vld [vmem:[%s563 + $0xc8] sm:$0xff]
      %v3880 = vld [vmem:[%s563 + $0xd0] sm:$0xff]
      %v3881 = vld [vmem:[%s563 + $0xe8] sm:$0xff]
      %v3882 = vld [vmem:[%s563 + $0xf0] sm:$0xff]
      %v3883 = vld [vmem:[%s563 + $0x108] sm:$0xff]
      %v3884 = vld [vmem:[%s563 + $0x110] sm:$0xff]
      %v3885 = vld [vmem:[%s563 + $0x128] sm:$0xff]
      %v3886 = vld [vmem:[%s563 + $0x130] sm:$0xff]
      %v3887 = vld [vmem:[%s563 + $0x148] sm:$0xff]
      %v3888 = vld [vmem:[%s563 + $0x150] sm:$0xff]
      %v3889 = vld [vmem:[%s563 + $0x168] sm:$0xff]
      %v3890 = vld [vmem:[%s563 + $0x170] sm:$0xff]
      %v3891 = vld [vmem:[%s563 + $0x188] sm:$0xff]
      %v3892 = vld [vmem:[%s563 + $0x190] sm:$0xff]
      %v3893 = vld [vmem:[%s563 + $0x1a8] sm:$0xff]
      %v3894 = vld [vmem:[%s563 + $0x1b0] sm:$0xff]
      %v3895 = vld [vmem:[%s563 + $0x1c8] sm:$0xff]
      %v3896 = vld [vmem:[%s563 + $0x1d0] sm:$0xff]
      %v3897 = vld [vmem:[%s563 + $0x1e8] sm:$0xff]
      %v3898 = vld [vmem:[%s563 + $0x1f0] sm:$0xff]
      %v3899 = vpack.c.bf16 %v3868, %v3867
      %v3900 = vpack.c.bf16 %v3870, %v3869
      %v3901 = vpack.c.bf16 %v3872, %v3871
      %v3902 = vpack.c.bf16 %v3874, %v3873
      %v3903 = vpack.c.bf16 %v3876, %v3875
      %v3904 = vpack.c.bf16 %v3878, %v3877
      %v3905 = vpack.c.bf16 %v3880, %v3879
      %v3906 = vpack.c.bf16 %v3882, %v3881
      %v3907 = vpack.c.bf16 %v3884, %v3883
      %v3908 = vpack.c.bf16 %v3886, %v3885
      %v3909 = vpack.c.bf16 %v3888, %v3887
      %v3910 = vpack.c.bf16 %v3890, %v3889
      %v3911 = vpack.c.bf16 %v3892, %v3891
      %v3912 = vpack.c.bf16 %v3894, %v3893
      %v3913 = vpack.c.bf16 %v3896, %v3895
      %v3914 = vpack.c.bf16 %v3898, %v3897
      %v3915 = vld [vmem:[%s1016] sm:$0xf]
      %v3916 = vld [vmem:[%s1016 + $0x4] sm:$0xf]
      %v3917 = vld [vmem:[%s1016 + $0x8] sm:$0xf]
      %v3918 = vld [vmem:[%s1016 + $0xc] sm:$0xf]
      %v3923 = vunpack.c.l.b16 %v3915
      %v3924 = vunpack.c.l.b16 %v3916
      %v3925 = vunpack.c.l.b16 %v3917
      %v3926 = vunpack.c.l.b16 %v3918
      %v3927 = vpack.c.b16 %v3924, %v3923
      %v3928 = vpack.c.b16 %v3926, %v3925
      %v3932 = vsel %vm526, %v3899, 0
      %v3935 = vsel %vm526, %v3900, 0
      %v3938 = vsel %vm526, %v3901, 0
      %v3941 = vsel %vm526, %v3902, 0
      %v3944 = vsel %vm526, %v3903, 0
      %v3947 = vsel %vm526, %v3904, 0
      %v3950 = vsel %vm526, %v3905, 0
      %v3953 = vsel %vm526, %v3906, 0
      %v3956 = vsel %vm526, %v3907, 0
      %v3959 = vsel %vm526, %v3908, 0
      %v3962 = vsel %vm526, %v3909, 0
      %v3965 = vsel %vm526, %v3910, 0
      %v3968 = vsel %vm526, %v3911, 0
      %v3971 = vsel %vm526, %v3912, 0
      %v3974 = vsel %vm526, %v3913, 0
      %v3977 = vsel %vm526, %v3914, 0
      %3979 = vmatprep.subr.bf16.mxu0 0
      %3980 = vmatpush1.bf16.msra.mxu0 %v3927
      %3981 = vmatprep.subr.bf16.mxu0 0
      %3982 = vmatpush1.bf16.msra.mxu0 %v3928
      %3983 = vmatprep.subr.bf16.mxu0 0
      %3984 = vmatpush1.bf16.msra.mxu0 0
      %3985 = vmatprep.subr.bf16.mxu0 0
      %3986 = vmatpush1.bf16.msra.mxu0 0
      %3987 = vmatprep.subr.bf16.mxu0 0
      %3988 = vmatpush1.bf16.msra.mxu0 0
      %3989 = vmatprep.subr.bf16.mxu0 0
      %3990 = vmatpush1.bf16.msra.mxu0 0
      %3991 = vmatprep.subr.bf16.mxu0 0
      %3992 = vmatpush1.bf16.msra.mxu0 0
      %3993 = vmatprep.subr.bf16.mxu0 0
      %3994 = vmatpush1.bf16.msra.mxu0 0
      %3995 = vmatprep.subr.bf16.mxu0 0
      %3996 = vmatpush1.bf16.msra.mxu0 0
      %3997 = vmatprep.subr.bf16.mxu0 0
      %3998 = vmatpush1.bf16.msra.mxu0 0
      %3999 = vmatprep.subr.bf16.mxu0 0
      %4000 = vmatpush1.bf16.msra.mxu0 0
      %4001 = vmatprep.subr.bf16.mxu0 0
      %4002 = vmatpush1.bf16.msra.mxu0 0
      %4003 = vmatprep.subr.bf16.mxu0 0
      %4004 = vmatpush1.bf16.msra.mxu0 0
      %4005 = vmatprep.subr.bf16.mxu0 0
      %4006 = vmatpush1.bf16.msra.mxu0 0
      %4007 = vmatprep.subr.bf16.mxu0 0
      %4008 = vmatpush1.bf16.msra.mxu0 0
      %4009 = vmatprep.subr.bf16.mxu0 0
      %4010 = vmatpush1.bf16.msra.mxu0 0
      %4011 = vmatprep.mubr.bf16.mxu0 0
      %4012 = vmatmul.mubr.bf16.gmra.mrb[0].mxu0 %v3932
      %v4013 = vpop.f32.mrb[0].mxu0
      %v4014 = vadd.f32 0.0, %v4013
      %v4015 = vpop.f32.mrb[0].mxu0
      %v4016 = vpop.f32.mrb[0].mxu0
      %v4017 = vadd.f32 0.0, %v4016
      %v4018 = vpop.f32.mrb[0].mxu0
      %4019 = vmatprep.mubr.bf16.mxu0 0
      %4020 = vmatmul.mubr.bf16.gmra.mrb[0].mxu0 %v3935
      %v4021 = vpop.f32.mrb[0].mxu0
      %v4022 = vadd.f32 0.0, %v4021
      %v4023 = vpop.f32.mrb[0].mxu0
      %v4024 = vpop.f32.mrb[0].mxu0
      %v4025 = vadd.f32 0.0, %v4024
      %v4026 = vpop.f32.mrb[0].mxu0
      %4027 = vmatprep.mubr.bf16.mxu0 0
      %4028 = vmatmul.mubr.bf16.gmra.mrb[0].mxu0 %v3938
      %v4029 = vpop.f32.mrb[0].mxu0
      %v4030 = vadd.f32 0.0, %v4029
      %v4031 = vpop.f32.mrb[0].mxu0
      %v4032 = vpop.f32.mrb[0].mxu0
      %v4033 = vadd.f32 0.0, %v4032
      %v4034 = vpop.f32.mrb[0].mxu0
      %4035 = vmatprep.mubr.bf16.mxu0 0
      %4036 = vmatmul.mubr.bf16.gmra.mrb[0].mxu0 %v3941
      %v4037 = vpop.f32.mrb[0].mxu0
      %v4038 = vadd.f32 0.0, %v4037
      %v4039 = vpop.f32.mrb[0].mxu0
      %v4040 = vpop.f32.mrb[0].mxu0
      %v4041 = vadd.f32 0.0, %v4040
      %v4042 = vpop.f32.mrb[0].mxu0
      %4043 = vmatprep.mubr.bf16.mxu0 0
      %4044 = vmatmul.mubr.bf16.gmra.mrb[0].mxu0 %v3944
      %v4045 = vpop.f32.mrb[0].mxu0
      %v4046 = vadd.f32 0.0, %v4045
      %v4047 = vpop.f32.mrb[0].mxu0
      %v4048 = vpop.f32.mrb[0].mxu0
      %v4049 = vadd.f32 0.0, %v4048
      %v4050 = vpop.f32.mrb[0].mxu0
      %4051 = vmatprep.mubr.bf16.mxu0 0
      %4052 = vmatmul.mubr.bf16.gmra.mrb[0].mxu0 %v3947
      %v4053 = vpop.f32.mrb[0].mxu0
      %v4054 = vadd.f32 0.0, %v4053
      %v4055 = vpop.f32.mrb[0].mxu0
      %v4056 = vpop.f32.mrb[0].mxu0
      %v4057 = vadd.f32 0.0, %v4056
      %v4058 = vpop.f32.mrb[0].mxu0
      %4059 = vmatprep.mubr.bf16.mxu0 0
      %4060 = vmatmul.mubr.bf16.gmra.mrb[0].mxu0 %v3950
      %v4061 = vpop.f32.mrb[0].mxu0
      %v4062 = vadd.f32 0.0, %v4061
      %v4063 = vpop.f32.mrb[0].mxu0
      %v4064 = vpop.f32.mrb[0].mxu0
      %v4065 = vadd.f32 0.0, %v4064
      %v4066 = vpop.f32.mrb[0].mxu0
      %4067 = vmatprep.mubr.bf16.mxu0 0
      %4068 = vmatmul.mubr.bf16.gmra.mrb[0].mxu0 %v3953
      %v4069 = vpop.f32.mrb[0].mxu0
      %v4070 = vadd.f32 0.0, %v4069
      %v4071 = vpop.f32.mrb[0].mxu0
      %v4072 = vpop.f32.mrb[0].mxu0
      %v4073 = vadd.f32 0.0, %v4072
      %v4074 = vpop.f32.mrb[0].mxu0
      %4075 = vmatprep.mubr.bf16.mxu0 0
      %4076 = vmatmul.mubr.bf16.gmra.mrb[0].mxu0 %v3956
      %v4077 = vpop.f32.mrb[0].mxu0
      %v4078 = vadd.f32 0.0, %v4077
      %v4079 = vpop.f32.mrb[0].mxu0
      %v4080 = vpop.f32.mrb[0].mxu0
      %v4081 = vadd.f32 0.0, %v4080
      %v4082 = vpop.f32.mrb[0].mxu0
      %4083 = vmatprep.mubr.bf16.mxu0 0
      %4084 = vmatmul.mubr.bf16.gmra.mrb[0].mxu0 %v3959
      %v4085 = vpop.f32.mrb[0].mxu0
      %v4086 = vadd.f32 0.0, %v4085
      %v4087 = vpop.f32.mrb[0].mxu0
      %v4088 = vpop.f32.mrb[0].mxu0
      %v4089 = vadd.f32 0.0, %v4088
      %v4090 = vpop.f32.mrb[0].mxu0
      %4091 = vmatprep.mubr.bf16.mxu0 0
      %4092 = vmatmul.mubr.bf16.gmra.mrb[0].mxu0 %v3962
      %v4093 = vpop.f32.mrb[0].mxu0
      %v4094 = vadd.f32 0.0, %v4093
      %v4095 = vpop.f32.mrb[0].mxu0
      %v4096 = vpop.f32.mrb[0].mxu0
      %v4097 = vadd.f32 0.0, %v4096
      %v4098 = vpop.f32.mrb[0].mxu0
      %4099 = vmatprep.mubr.bf16.mxu0 0
      %4100 = vmatmul.mubr.bf16.gmra.mrb[0].mxu0 %v3965
      %v4101 = vpop.f32.mrb[0].mxu0
      %v4102 = vadd.f32 0.0, %v4101
      %v4103 = vpop.f32.mrb[0].mxu0
      %v4104 = vpop.f32.mrb[0].mxu0
      %v4105 = vadd.f32 0.0, %v4104
      %v4106 = vpop.f32.mrb[0].mxu0
      %4107 = vmatprep.mubr.bf16.mxu0 0
      %4108 = vmatmul.mubr.bf16.gmra.mrb[0].mxu0 %v3968
      %v4109 = vpop.f32.mrb[0].mxu0
      %v4110 = vadd.f32 0.0, %v4109
      %v4111 = vpop.f32.mrb[0].mxu0
      %v4112 = vpop.f32.mrb[0].mxu0
      %v4113 = vadd.f32 0.0, %v4112
      %v4114 = vpop.f32.mrb[0].mxu0
      %4115 = vmatprep.mubr.bf16.mxu0 0
      %4116 = vmatmul.mubr.bf16.gmra.mrb[0].mxu0 %v3971
      %v4117 = vpop.f32.mrb[0].mxu0
      %v4118 = vadd.f32 0.0, %v4117
      %v4119 = vpop.f32.mrb[0].mxu0
      %v4120 = vpop.f32.mrb[0].mxu0
      %v4121 = vadd.f32 0.0, %v4120
      %v4122 = vpop.f32.mrb[0].mxu0
      %4123 = vmatprep.mubr.bf16.mxu0 0
      %4124 = vmatmul.mubr.bf16.gmra.mrb[0].mxu0 %v3974
      %v4125 = vpop.f32.mrb[0].mxu0
      %v4126 = vadd.f32 0.0, %v4125
      %v4127 = vpop.f32.mrb[0].mxu0
      %v4128 = vpop.f32.mrb[0].mxu0
      %v4129 = vadd.f32 0.0, %v4128
      %v4130 = vpop.f32.mrb[0].mxu0
      %4131 = vmatprep.mubr.bf16.mxu0 0
      %4132 = vmatmul.mubr.bf16.gmra.mrb[0].mxu0 %v3977
      %v4133 = vpop.f32.mrb[0].mxu0
      %v4134 = vadd.f32 0.0, %v4133
      %v4135 = vpop.f32.mrb[0].mxu0
      %v4136 = vpop.f32.mrb[0].mxu0
      %v4137 = vadd.f32 0.0, %v4136
      %v4138 = vpop.f32.mrb[0].mxu0
      %4139 = vdwg.mxu0
      %v4144 = vunpack.c.l.b16 %v3863
      %v4145 = vunpack.c.l.b16 %v3864
      %v4146 = vunpack.c.l.b16 %v3865
      %v4147 = vunpack.c.l.b16 %v3866
      %v4148 = vpack.c.b16 %v4145, %v4144
      %v4149 = vpack.c.b16 %v4147, %v4146
      %v4153 = vsel %vm526, %v3847, 0
      %v4156 = vsel %vm526, %v3848, 0
      %v4159 = vsel %vm526, %v3849, 0
      %v4162 = vsel %vm526, %v3850, 0
      %v4165 = vsel %vm526, %v3851, 0
      %v4168 = vsel %vm526, %v3852, 0
      %v4171 = vsel %vm526, %v3853, 0
      %v4174 = vsel %vm526, %v3854, 0
      %v4177 = vsel %vm526, %v3855, 0
      %v4180 = vsel %vm526, %v3856, 0
      %v4183 = vsel %vm526, %v3857, 0
      %v4186 = vsel %vm526, %v3858, 0
      %v4189 = vsel %vm526, %v3859, 0
      %v4192 = vsel %vm526, %v3860, 0
      %v4195 = vsel %vm526, %v3861, 0
      %v4198 = vsel %vm526, %v3862, 0
      %4200 = vmatprep.subr.bf16.mxu0 0
      %4201 = vmatpush1.bf16.msra.mxu0 %v4148
      %4202 = vmatprep.subr.bf16.mxu0 0
      %4203 = vmatpush1.bf16.msra.mxu0 %v4149
      %4204 = vmatprep.subr.bf16.mxu0 0
      %4205 = vmatpush1.bf16.msra.mxu0 0
      %4206 = vmatprep.subr.bf16.mxu0 0
      %4207 = vmatpush1.bf16.msra.mxu0 0
      %4208 = vmatprep.subr.bf16.mxu0 0
      %4209 = vmatpush1.bf16.msra.mxu0 0
      %4210 = vmatprep.subr.bf16.mxu0 0
      %4211 = vmatpush1.bf16.msra.mxu0 0
      %4212 = vmatprep.subr.bf16.mxu0 0
      %4213 = vmatpush1.bf16.msra.mxu0 0
      %4214 = vmatprep.subr.bf16.mxu0 0
      %4215 = vmatpush1.bf16.msra.mxu0 0
      %4216 = vmatprep.subr.bf16.mxu0 0
      %4217 = vmatpush1.bf16.msra.mxu0 0
      %4218 = vmatprep.subr.bf16.mxu0 0
      %4219 = vmatpush1.bf16.msra.mxu0 0
      %4220 = vmatprep.subr.bf16.mxu0 0
      %4221 = vmatpush1.bf16.msra.mxu0 0
      %4222 = vmatprep.subr.bf16.mxu0 0
      %4223 = vmatpush1.bf16.msra.mxu0 0
      %4224 = vmatprep.subr.bf16.mxu0 0
      %4225 = vmatpush1.bf16.msra.mxu0 0
      %4226 = vmatprep.subr.bf16.mxu0 0
      %4227 = vmatpush1.bf16.msra.mxu0 0
      %4228 = vmatprep.subr.bf16.mxu0 0
      %4229 = vmatpush1.bf16.msra.mxu0 0
      %4230 = vmatprep.subr.bf16.mxu0 0
      %4231 = vmatpush1.bf16.msra.mxu0 0
      %4232 = vmatprep.mubr.bf16.mxu0 0
      %4233 = vmatmul.mubr.bf16.gmra.mrb[0].mxu0 %v4153
      %v4234 = vpop.f32.mrb[0].mxu0
      %v4235 = vadd.f32 %v4014, %v4234
      %v4236 = vpop.f32.mrb[0].mxu0
      %v4237 = vpop.f32.mrb[0].mxu0
      %v4238 = vadd.f32 %v4017, %v4237
      %v4239 = vpop.f32.mrb[0].mxu0
      %4240 = vmatprep.mubr.bf16.mxu0 0
      %4241 = vmatmul.mubr.bf16.gmra.mrb[0].mxu0 %v4156
      %v4242 = vpop.f32.mrb[0].mxu0
      %v4243 = vadd.f32 %v4022, %v4242
      %v4244 = vpop.f32.mrb[0].mxu0
      %v4245 = vpop.f32.mrb[0].mxu0
      %v4246 = vadd.f32 %v4025, %v4245
      %v4247 = vpop.f32.mrb[0].mxu0
      %4248 = vmatprep.mubr.bf16.mxu0 0
      %4249 = vmatmul.mubr.bf16.gmra.mrb[0].mxu0 %v4159
      %v4250 = vpop.f32.mrb[0].mxu0
      %v4251 = vadd.f32 %v4030, %v4250
      %v4252 = vpop.f32.mrb[0].mxu0
      %v4253 = vpop.f32.mrb[0].mxu0
      %v4254 = vadd.f32 %v4033, %v4253
      %v4255 = vpop.f32.mrb[0].mxu0
      %4256 = vmatprep.mubr.bf16.mxu0 0
      %4257 = vmatmul.mubr.bf16.gmra.mrb[0].mxu0 %v4162
      %v4258 = vpop.f32.mrb[0].mxu0
      %v4259 = vadd.f32 %v4038, %v4258
      %v4260 = vpop.f32.mrb[0].mxu0
      %v4261 = vpop.f32.mrb[0].mxu0
      %v4262 = vadd.f32 %v4041, %v4261
      %v4263 = vpop.f32.mrb[0].mxu0
      %4264 = vmatprep.mubr.bf16.mxu0 0
      %4265 = vmatmul.mubr.bf16.gmra.mrb[0].mxu0 %v4165
      %v4266 = vpop.f32.mrb[0].mxu0
      %v4267 = vadd.f32 %v4046, %v4266
      %v4268 = vpop.f32.mrb[0].mxu0
      %v4269 = vpop.f32.mrb[0].mxu0
      %v4270 = vadd.f32 %v4049, %v4269
      %v4271 = vpop.f32.mrb[0].mxu0
      %4272 = vmatprep.mubr.bf16.mxu0 0
      %4273 = vmatmul.mubr.bf16.gmra.mrb[0].mxu0 %v4168
      %v4274 = vpop.f32.mrb[0].mxu0
      %v4275 = vadd.f32 %v4054, %v4274
      %v4276 = vpop.f32.mrb[0].mxu0
      %v4277 = vpop.f32.mrb[0].mxu0
      %v4278 = vadd.f32 %v4057, %v4277
      %v4279 = vpop.f32.mrb[0].mxu0
      %4280 = vmatprep.mubr.bf16.mxu0 0
      %4281 = vmatmul.mubr.bf16.gmra.mrb[0].mxu0 %v4171
      %v4282 = vpop.f32.mrb[0].mxu0
      %v4283 = vadd.f32 %v4062, %v4282
      %v4284 = vpop.f32.mrb[0].mxu0
      %v4285 = vpop.f32.mrb[0].mxu0
      %v4286 = vadd.f32 %v4065, %v4285
      %v4287 = vpop.f32.mrb[0].mxu0
      %4288 = vmatprep.mubr.bf16.mxu0 0
      %4289 = vmatmul.mubr.bf16.gmra.mrb[0].mxu0 %v4174
      %v4290 = vpop.f32.mrb[0].mxu0
      %v4291 = vadd.f32 %v4070, %v4290
      %v4292 = vpop.f32.mrb[0].mxu0
      %v4293 = vpop.f32.mrb[0].mxu0
      %v4294 = vadd.f32 %v4073, %v4293
      %v4295 = vpop.f32.mrb[0].mxu0
      %4296 = vmatprep.mubr.bf16.mxu0 0
      %4297 = vmatmul.mubr.bf16.gmra.mrb[0].mxu0 %v4177
      %v4298 = vpop.f32.mrb[0].mxu0
      %v4299 = vadd.f32 %v4078, %v4298
      %v4300 = vpop.f32.mrb[0].mxu0
      %v4301 = vpop.f32.mrb[0].mxu0
      %v4302 = vadd.f32 %v4081, %v4301
      %v4303 = vpop.f32.mrb[0].mxu0
      %4304 = vmatprep.mubr.bf16.mxu0 0
      %4305 = vmatmul.mubr.bf16.gmra.mrb[0].mxu0 %v4180
      %v4306 = vpop.f32.mrb[0].mxu0
      %v4307 = vadd.f32 %v4086, %v4306
      %v4308 = vpop.f32.mrb[0].mxu0
      %v4309 = vpop.f32.mrb[0].mxu0
      %v4310 = vadd.f32 %v4089, %v4309
      %v4311 = vpop.f32.mrb[0].mxu0
      %4312 = vmatprep.mubr.bf16.mxu0 0
      %4313 = vmatmul.mubr.bf16.gmra.mrb[0].mxu0 %v4183
      %v4314 = vpop.f32.mrb[0].mxu0
      %v4315 = vadd.f32 %v4094, %v4314
      %v4316 = vpop.f32.mrb[0].mxu0
      %v4317 = vpop.f32.mrb[0].mxu0
      %v4318 = vadd.f32 %v4097, %v4317
      %v4319 = vpop.f32.mrb[0].mxu0
      %4320 = vmatprep.mubr.bf16.mxu0 0
      %4321 = vmatmul.mubr.bf16.gmra.mrb[0].mxu0 %v4186
      %v4322 = vpop.f32.mrb[0].mxu0
      %v4323 = vadd.f32 %v4102, %v4322
      %v4324 = vpop.f32.mrb[0].mxu0
      %v4325 = vpop.f32.mrb[0].mxu0
      %v4326 = vadd.f32 %v4105, %v4325
      %v4327 = vpop.f32.mrb[0].mxu0
      %4328 = vmatprep.mubr.bf16.mxu0 0
      %4329 = vmatmul.mubr.bf16.gmra.mrb[0].mxu0 %v4189
      %v4330 = vpop.f32.mrb[0].mxu0
      %v4331 = vadd.f32 %v4110, %v4330
      %v4332 = vpop.f32.mrb[0].mxu0
      %v4333 = vpop.f32.mrb[0].mxu0
      %v4334 = vadd.f32 %v4113, %v4333
      %v4335 = vpop.f32.mrb[0].mxu0
      %4336 = vmatprep.mubr.bf16.mxu0 0
      %4337 = vmatmul.mubr.bf16.gmra.mrb[0].mxu0 %v4192
      %v4338 = vpop.f32.mrb[0].mxu0
      %v4339 = vadd.f32 %v4118, %v4338
      %v4340 = vpop.f32.mrb[0].mxu0
      %v4341 = vpop.f32.mrb[0].mxu0
      %v4342 = vadd.f32 %v4121, %v4341
      %v4343 = vpop.f32.mrb[0].mxu0
      %4344 = vmatprep.mubr.bf16.mxu0 0
      %4345 = vmatmul.mubr.bf16.gmra.mrb[0].mxu0 %v4195
      %v4346 = vpop.f32.mrb[0].mxu0
      %v4347 = vadd.f32 %v4126, %v4346
      %v4348 = vpop.f32.mrb[0].mxu0
      %v4349 = vpop.f32.mrb[0].mxu0
      %v4350 = vadd.f32 %v4129, %v4349
      %v4351 = vpop.f32.mrb[0].mxu0
      %4352 = vmatprep.mubr.bf16.mxu0 0
      %4353 = vmatmul.mubr.bf16.gmra.mrb[0].mxu0 %v4198
      %v4354 = vpop.f32.mrb[0].mxu0
      %v4355 = vadd.f32 %v4134, %v4354
      %v4356 = vpop.f32.mrb[0].mxu0
      %v4357 = vpop.f32.mrb[0].mxu0
      %v4358 = vadd.f32 %v4137, %v4357
      %v4359 = vpop.f32.mrb[0].mxu0
      %4360 = vdwg.mxu0
      %v4361 = vld [vmem:[%s746] sm:$0xff]
      %v4362 = vld [vmem:[%s746 + $0x8] sm:$0xff]
      %v4363 = vld [vmem:[%s746 + $0x10] sm:$0xff]
      %v4364 = vld [vmem:[%s746 + $0x18] sm:$0xff]
      %v4365 = vld [vmem:[%s746 + $0x20] sm:$0xff]
      %v4366 = vld [vmem:[%s746 + $0x28] sm:$0xff]
      %v4367 = vld [vmem:[%s746 + $0x30] sm:$0xff]
      %v4368 = vld [vmem:[%s746 + $0x38] sm:$0xff]
      %v4369 = vld [vmem:[%s746 + $0x40] sm:$0xff]
      %v4370 = vld [vmem:[%s746 + $0x48] sm:$0xff]
      %v4371 = vld [vmem:[%s746 + $0x50] sm:$0xff]
      %v4372 = vld [vmem:[%s746 + $0x58] sm:$0xff]
      %v4373 = vld [vmem:[%s746 + $0x60] sm:$0xff]
      %v4374 = vld [vmem:[%s746 + $0x68] sm:$0xff]
      %v4375 = vld [vmem:[%s746 + $0x70] sm:$0xff]
      %v4376 = vld [vmem:[%s746 + $0x78] sm:$0xff]
      %v4377 = vld [vmem:[%s746 + $0x80] sm:$0xff]
      %v4378 = vld [vmem:[%s746 + $0x88] sm:$0xff]
      %v4379 = vld [vmem:[%s746 + $0x90] sm:$0xff]
      %v4380 = vld [vmem:[%s746 + $0x98] sm:$0xff]
      %v4381 = vld [vmem:[%s746 + $0xa0] sm:$0xff]
      %v4382 = vld [vmem:[%s746 + $0xa8] sm:$0xff]
      %v4383 = vld [vmem:[%s746 + $0xb0] sm:$0xff]
      %v4384 = vld [vmem:[%s746 + $0xb8] sm:$0xff]
      %v4385 = vld [vmem:[%s746 + $0xc0] sm:$0xff]
      %v4386 = vld [vmem:[%s746 + $0xc8] sm:$0xff]
      %v4387 = vld [vmem:[%s746 + $0xd0] sm:$0xff]
      %v4388 = vld [vmem:[%s746 + $0xd8] sm:$0xff]
      %v4389 = vld [vmem:[%s746 + $0xe0] sm:$0xff]
      %v4390 = vld [vmem:[%s746 + $0xe8] sm:$0xff]
      %v4391 = vld [vmem:[%s746 + $0xf0] sm:$0xff]
      %v4392 = vld [vmem:[%s746 + $0xf8] sm:$0xff]
      %v4393 = vpack.c.bf16 %v4362, %v4361
      %v4394 = vpack.c.bf16 %v4364, %v4363
      %v4395 = vpack.c.bf16 %v4366, %v4365
      %v4396 = vpack.c.bf16 %v4368, %v4367
      %v4397 = vpack.c.bf16 %v4370, %v4369
      %v4398 = vpack.c.bf16 %v4372, %v4371
      %v4399 = vpack.c.bf16 %v4374, %v4373
      %v4400 = vpack.c.bf16 %v4376, %v4375
      %v4401 = vpack.c.bf16 %v4378, %v4377
      %v4402 = vpack.c.bf16 %v4380, %v4379
      %v4403 = vpack.c.bf16 %v4382, %v4381
      %v4404 = vpack.c.bf16 %v4384, %v4383
      %v4405 = vpack.c.bf16 %v4386, %v4385
      %v4406 = vpack.c.bf16 %v4388, %v4387
      %v4407 = vpack.c.bf16 %v4390, %v4389
      %v4408 = vpack.c.bf16 %v4392, %v4391
      %v4409 = vld [vmem:[%s1511] sm:$0xf]
      %v4410 = vld [vmem:[%s1511 + $0x4] sm:$0xf]
      %v4411 = vld [vmem:[%s1511 + $0x8] sm:$0xf]
      %v4412 = vld [vmem:[%s1511 + $0xc] sm:$0xf]
      %v4417 = vunpack.c.l.b16 %v4409
      %v4418 = vunpack.c.l.b16 %v4410
      %v4419 = vunpack.c.l.b16 %v4411
      %v4420 = vunpack.c.l.b16 %v4412
      %v4421 = vpack.c.b16 %v4418, %v4417
      %v4422 = vpack.c.b16 %v4420, %v4419
      %v4426 = vsel %vm526, %v4393, 0
      %v4429 = vsel %vm526, %v4394, 0
      %v4432 = vsel %vm526, %v4395, 0
      %v4435 = vsel %vm526, %v4396, 0
      %v4438 = vsel %vm526, %v4397, 0
      %v4441 = vsel %vm526, %v4398, 0
      %v4444 = vsel %vm526, %v4399, 0
      %v4447 = vsel %vm526, %v4400, 0
      %v4450 = vsel %vm526, %v4401, 0
      %v4453 = vsel %vm526, %v4402, 0
      %v4456 = vsel %vm526, %v4403, 0
      %v4459 = vsel %vm526, %v4404, 0
      %v4462 = vsel %vm526, %v4405, 0
      %v4465 = vsel %vm526, %v4406, 0
      %v4468 = vsel %vm526, %v4407, 0
      %v4471 = vsel %vm526, %v4408, 0
      %4473 = vmatprep.subr.bf16.mxu0 0
      %4474 = vmatpush1.bf16.msra.mxu0 %v4421
      %4475 = vmatprep.subr.bf16.mxu0 0
      %4476 = vmatpush1.bf16.msra.mxu0 %v4422
      %4477 = vmatprep.subr.bf16.mxu0 0
      %4478 = vmatpush1.bf16.msra.mxu0 0
      %4479 = vmatprep.subr.bf16.mxu0 0
      %4480 = vmatpush1.bf16.msra.mxu0 0
      %4481 = vmatprep.subr.bf16.mxu0 0
      %4482 = vmatpush1.bf16.msra.mxu0 0
      %4483 = vmatprep.subr.bf16.mxu0 0
      %4484 = vmatpush1.bf16.msra.mxu0 0
      %4485 = vmatprep.subr.bf16.mxu0 0
      %4486 = vmatpush1.bf16.msra.mxu0 0
      %4487 = vmatprep.subr.bf16.mxu0 0
      %4488 = vmatpush1.bf16.msra.mxu0 0
      %4489 = vmatprep.subr.bf16.mxu0 0
      %4490 = vmatpush1.bf16.msra.mxu0 0
      %4491 = vmatprep.subr.bf16.mxu0 0
      %4492 = vmatpush1.bf16.msra.mxu0 0
      %4493 = vmatprep.subr.bf16.mxu0 0
      %4494 = vmatpush1.bf16.msra.mxu0 0
      %4495 = vmatprep.subr.bf16.mxu0 0
      %4496 = vmatpush1.bf16.msra.mxu0 0
      %4497 = vmatprep.subr.bf16.mxu0 0
      %4498 = vmatpush1.bf16.msra.mxu0 0
      %4499 = vmatprep.subr.bf16.mxu0 0
      %4500 = vmatpush1.bf16.msra.mxu0 0
      %4501 = vmatprep.subr.bf16.mxu0 0
      %4502 = vmatpush1.bf16.msra.mxu0 0
      %4503 = vmatprep.subr.bf16.mxu0 0
      %4504 = vmatpush1.bf16.msra.mxu0 0
      %4505 = vmatprep.mubr.bf16.mxu0 0
      %4506 = vmatmul.mubr.bf16.gmra.mrb[0].mxu0 %v4426
      %v4507 = vpop.f32.mrb[0].mxu0
      %v4508 = vadd.f32 0.0, %v4507
      %v4509 = vpop.f32.mrb[0].mxu0
      %v4510 = vpop.f32.mrb[0].mxu0
      %v4511 = vadd.f32 0.0, %v4510
      %v4512 = vpop.f32.mrb[0].mxu0
      %4513 = vmatprep.mubr.bf16.mxu0 0
      %4514 = vmatmul.mubr.bf16.gmra.mrb[0].mxu0 %v4429
      %v4515 = vpop.f32.mrb[0].mxu0
      %v4516 = vadd.f32 0.0, %v4515
      %v4517 = vpop.f32.mrb[0].mxu0
      %v4518 = vpop.f32.mrb[0].mxu0
      %v4519 = vadd.f32 0.0, %v4518
      %v4520 = vpop.f32.mrb[0].mxu0
      %4521 = vmatprep.mubr.bf16.mxu0 0
      %4522 = vmatmul.mubr.bf16.gmra.mrb[0].mxu0 %v4432
      %v4523 = vpop.f32.mrb[0].mxu0
      %v4524 = vadd.f32 0.0, %v4523
      %v4525 = vpop.f32.mrb[0].mxu0
      %v4526 = vpop.f32.mrb[0].mxu0
      %v4527 = vadd.f32 0.0, %v4526
      %v4528 = vpop.f32.mrb[0].mxu0
      %4529 = vmatprep.mubr.bf16.mxu0 0
      %4530 = vmatmul.mubr.bf16.gmra.mrb[0].mxu0 %v4435
      %v4531 = vpop.f32.mrb[0].mxu0
      %v4532 = vadd.f32 0.0, %v4531
      %v4533 = vpop.f32.mrb[0].mxu0
      %v4534 = vpop.f32.mrb[0].mxu0
      %v4535 = vadd.f32 0.0, %v4534
      %v4536 = vpop.f32.mrb[0].mxu0
      %4537 = vmatprep.mubr.bf16.mxu0 0
      %4538 = vmatmul.mubr.bf16.gmra.mrb[0].mxu0 %v4438
      %v4539 = vpop.f32.mrb[0].mxu0
      %v4540 = vadd.f32 0.0, %v4539
      %v4541 = vpop.f32.mrb[0].mxu0
      %v4542 = vpop.f32.mrb[0].mxu0
      %v4543 = vadd.f32 0.0, %v4542
      %v4544 = vpop.f32.mrb[0].mxu0
      %4545 = vmatprep.mubr.bf16.mxu0 0
      %4546 = vmatmul.mubr.bf16.gmra.mrb[0].mxu0 %v4441
      %v4547 = vpop.f32.mrb[0].mxu0
      %v4548 = vadd.f32 0.0, %v4547
      %v4549 = vpop.f32.mrb[0].mxu0
      %v4550 = vpop.f32.mrb[0].mxu0
      %v4551 = vadd.f32 0.0, %v4550
      %v4552 = vpop.f32.mrb[0].mxu0
      %4553 = vmatprep.mubr.bf16.mxu0 0
      %4554 = vmatmul.mubr.bf16.gmra.mrb[0].mxu0 %v4444
      %v4555 = vpop.f32.mrb[0].mxu0
      %v4556 = vadd.f32 0.0, %v4555
      %v4557 = vpop.f32.mrb[0].mxu0
      %v4558 = vpop.f32.mrb[0].mxu0
      %v4559 = vadd.f32 0.0, %v4558
      %v4560 = vpop.f32.mrb[0].mxu0
      %4561 = vmatprep.mubr.bf16.mxu0 0
      %4562 = vmatmul.mubr.bf16.gmra.mrb[0].mxu0 %v4447
      %v4563 = vpop.f32.mrb[0].mxu0
      %v4564 = vadd.f32 0.0, %v4563
      %v4565 = vpop.f32.mrb[0].mxu0
      %v4566 = vpop.f32.mrb[0].mxu0
      %v4567 = vadd.f32 0.0, %v4566
      %v4568 = vpop.f32.mrb[0].mxu0
      %4569 = vmatprep.mubr.bf16.mxu0 0
      %4570 = vmatmul.mubr.bf16.gmra.mrb[0].mxu0 %v4450
      %v4571 = vpop.f32.mrb[0].mxu0
      %v4572 = vadd.f32 0.0, %v4571
      %v4573 = vpop.f32.mrb[0].mxu0
      %v4574 = vpop.f32.mrb[0].mxu0
      %v4575 = vadd.f32 0.0, %v4574
      %v4576 = vpop.f32.mrb[0].mxu0
      %4577 = vmatprep.mubr.bf16.mxu0 0
      %4578 = vmatmul.mubr.bf16.gmra.mrb[0].mxu0 %v4453
      %v4579 = vpop.f32.mrb[0].mxu0
      %v4580 = vadd.f32 0.0, %v4579
      %v4581 = vpop.f32.mrb[0].mxu0
      %v4582 = vpop.f32.mrb[0].mxu0
      %v4583 = vadd.f32 0.0, %v4582
      %v4584 = vpop.f32.mrb[0].mxu0
      %4585 = vmatprep.mubr.bf16.mxu0 0
      %4586 = vmatmul.mubr.bf16.gmra.mrb[0].mxu0 %v4456
      %v4587 = vpop.f32.mrb[0].mxu0
      %v4588 = vadd.f32 0.0, %v4587
      %v4589 = vpop.f32.mrb[0].mxu0
      %v4590 = vpop.f32.mrb[0].mxu0
      %v4591 = vadd.f32 0.0, %v4590
      %v4592 = vpop.f32.mrb[0].mxu0
      %4593 = vmatprep.mubr.bf16.mxu0 0
      %4594 = vmatmul.mubr.bf16.gmra.mrb[0].mxu0 %v4459
      %v4595 = vpop.f32.mrb[0].mxu0
      %v4596 = vadd.f32 0.0, %v4595
      %v4597 = vpop.f32.mrb[0].mxu0
      %v4598 = vpop.f32.mrb[0].mxu0
      %v4599 = vadd.f32 0.0, %v4598
      %v4600 = vpop.f32.mrb[0].mxu0
      %4601 = vmatprep.mubr.bf16.mxu0 0
      %4602 = vmatmul.mubr.bf16.gmra.mrb[0].mxu0 %v4462
      %v4603 = vpop.f32.mrb[0].mxu0
      %v4604 = vadd.f32 0.0, %v4603
      %v4605 = vpop.f32.mrb[0].mxu0
      %v4606 = vpop.f32.mrb[0].mxu0
      %v4607 = vadd.f32 0.0, %v4606
      %v4608 = vpop.f32.mrb[0].mxu0
      %4609 = vmatprep.mubr.bf16.mxu0 0
      %4610 = vmatmul.mubr.bf16.gmra.mrb[0].mxu0 %v4465
      %v4611 = vpop.f32.mrb[0].mxu0
      %v4612 = vadd.f32 0.0, %v4611
      %v4613 = vpop.f32.mrb[0].mxu0
      %v4614 = vpop.f32.mrb[0].mxu0
      %v4615 = vadd.f32 0.0, %v4614
      %v4616 = vpop.f32.mrb[0].mxu0
      %4617 = vmatprep.mubr.bf16.mxu0 0
      %4618 = vmatmul.mubr.bf16.gmra.mrb[0].mxu0 %v4468
      %v4619 = vpop.f32.mrb[0].mxu0
      %v4620 = vadd.f32 0.0, %v4619
      %v4621 = vpop.f32.mrb[0].mxu0
      %v4622 = vpop.f32.mrb[0].mxu0
      %v4623 = vadd.f32 0.0, %v4622
      %v4624 = vpop.f32.mrb[0].mxu0
      %4625 = vmatprep.mubr.bf16.mxu0 0
      %4626 = vmatmul.mubr.bf16.gmra.mrb[0].mxu0 %v4471
      %v4627 = vpop.f32.mrb[0].mxu0
      %v4628 = vadd.f32 0.0, %v4627
      %v4629 = vpop.f32.mrb[0].mxu0
      %v4630 = vpop.f32.mrb[0].mxu0
      %v4631 = vadd.f32 0.0, %v4630
      %v4632 = vpop.f32.mrb[0].mxu0
      %4633 = vdwg.mxu0
      %v4634 = vadd.f32 %v4235, %v4508
      %v4635 = vadd.f32 %v4238, %v4511
      %v4636 = vadd.f32 %v4243, %v4516
      %v4637 = vadd.f32 %v4246, %v4519
      %v4638 = vadd.f32 %v4251, %v4524
      %v4639 = vadd.f32 %v4254, %v4527
      %v4640 = vadd.f32 %v4259, %v4532
      %v4641 = vadd.f32 %v4262, %v4535
      %v4642 = vadd.f32 %v4267, %v4540
      %v4643 = vadd.f32 %v4270, %v4543
      %v4644 = vadd.f32 %v4275, %v4548
      %v4645 = vadd.f32 %v4278, %v4551
      %v4646 = vadd.f32 %v4283, %v4556
      %v4647 = vadd.f32 %v4286, %v4559
      %v4648 = vadd.f32 %v4291, %v4564
      %v4649 = vadd.f32 %v4294, %v4567
      %v4650 = vadd.f32 %v4299, %v4572
      %v4651 = vadd.f32 %v4302, %v4575
      %v4652 = vadd.f32 %v4307, %v4580
      %v4653 = vadd.f32 %v4310, %v4583
      %v4654 = vadd.f32 %v4315, %v4588
      %v4655 = vadd.f32 %v4318, %v4591
      %v4656 = vadd.f32 %v4323, %v4596
      %v4657 = vadd.f32 %v4326, %v4599
      %v4658 = vadd.f32 %v4331, %v4604
      %v4659 = vadd.f32 %v4334, %v4607
      %v4660 = vadd.f32 %v4339, %v4612
      %v4661 = vadd.f32 %v4342, %v4615
      %v4662 = vadd.f32 %v4347, %v4620
      %v4663 = vadd.f32 %v4350, %v4623
      %v4664 = vadd.f32 %v4355, %v4628
      %v4665 = vadd.f32 %v4358, %v4631
      %s4666 = scalar_lea.vmem [#allocation3], 304
      %v4667 = vld [vmem:[%s4666] sm:$0xff]
      %v4668 = vld [vmem:[%s4666 + $0x8] sm:$0xff]
      %v4669 = vld [vmem:[%s4666 + $0x10] sm:$0xff]
      %v4670 = vld [vmem:[%s4666 + $0x18] sm:$0xff]
      %v4671 = vld [vmem:[%s4666 + $0x20] sm:$0xff]
      %v4672 = vld [vmem:[%s4666 + $0x28] sm:$0xff]
      %v4673 = vld [vmem:[%s4666 + $0x30] sm:$0xff]
      %v4674 = vld [vmem:[%s4666 + $0x38] sm:$0xff]
      %v4675 = vld [vmem:[%s4666 + $0x40] sm:$0xff]
      %v4676 = vld [vmem:[%s4666 + $0x48] sm:$0xff]
      %v4677 = vld [vmem:[%s4666 + $0x50] sm:$0xff]
      %v4678 = vld [vmem:[%s4666 + $0x58] sm:$0xff]
      %v4679 = vld [vmem:[%s4666 + $0x60] sm:$0xff]
      %v4680 = vld [vmem:[%s4666 + $0x68] sm:$0xff]
      %v4681 = vld [vmem:[%s4666 + $0x70] sm:$0xff]
      %v4682 = vld [vmem:[%s4666 + $0x78] sm:$0xff]
      %v4683 = vld [vmem:[%s4666 + $0x80] sm:$0xff]
      %v4684 = vld [vmem:[%s4666 + $0x88] sm:$0xff]
      %v4685 = vld [vmem:[%s4666 + $0x90] sm:$0xff]
      %v4686 = vld [vmem:[%s4666 + $0x98] sm:$0xff]
      %v4687 = vld [vmem:[%s4666 + $0xa0] sm:$0xff]
      %v4688 = vld [vmem:[%s4666 + $0xa8] sm:$0xff]
      %v4689 = vld [vmem:[%s4666 + $0xb0] sm:$0xff]
      %v4690 = vld [vmem:[%s4666 + $0xb8] sm:$0xff]
      %v4691 = vld [vmem:[%s4666 + $0xc0] sm:$0xff]
      %v4692 = vld [vmem:[%s4666 + $0xc8] sm:$0xff]
      %v4693 = vld [vmem:[%s4666 + $0xd0] sm:$0xff]
      %v4694 = vld [vmem:[%s4666 + $0xd8] sm:$0xff]
      %v4695 = vld [vmem:[%s4666 + $0xe0] sm:$0xff]
      %v4696 = vld [vmem:[%s4666 + $0xe8] sm:$0xff]
      %v4697 = vld [vmem:[%s4666 + $0xf0] sm:$0xff]
      %v4698 = vld [vmem:[%s4666 + $0xf8] sm:$0xff]
      %v4699 = vpack.c.bf16 %v4668, %v4667
      %v4700 = vpack.c.bf16 %v4670, %v4669
      %v4701 = vpack.c.bf16 %v4672, %v4671
      %v4702 = vpack.c.bf16 %v4674, %v4673
      %v4703 = vpack.c.bf16 %v4676, %v4675
      %v4704 = vpack.c.bf16 %v4678, %v4677
      %v4705 = vpack.c.bf16 %v4680, %v4679
      %v4706 = vpack.c.bf16 %v4682, %v4681
      %v4707 = vpack.c.bf16 %v4684, %v4683
      %v4708 = vpack.c.bf16 %v4686, %v4685
      %v4709 = vpack.c.bf16 %v4688, %v4687
      %v4710 = vpack.c.bf16 %v4690, %v4689
      %v4711 = vpack.c.bf16 %v4692, %v4691
      %v4712 = vpack.c.bf16 %v4694, %v4693
      %v4713 = vpack.c.bf16 %v4696, %v4695
      %v4714 = vpack.c.bf16 %v4698, %v4697
      %v4715 = vld [vmem:[%s1818] sm:$0xf]
      %v4716 = vld [vmem:[%s1818 + $0x4] sm:$0xf]
      %v4717 = vld [vmem:[%s1818 + $0x8] sm:$0xf]
      %v4718 = vld [vmem:[%s1818 + $0xc] sm:$0xf]
      %v4723 = vunpack.c.l.b16 %v4715
      %v4724 = vunpack.c.l.b16 %v4716
      %v4725 = vunpack.c.l.b16 %v4717
      %v4726 = vunpack.c.l.b16 %v4718
      %v4727 = vpack.c.b16 %v4724, %v4723
      %v4728 = vpack.c.b16 %v4726, %v4725
      %v4732 = vsel %vm526, %v4699, 0
      %v4735 = vsel %vm526, %v4700, 0
      %v4738 = vsel %vm526, %v4701, 0
      %v4741 = vsel %vm526, %v4702, 0
      %v4744 = vsel %vm526, %v4703, 0
      %v4747 = vsel %vm526, %v4704, 0
      %v4750 = vsel %vm526, %v4705, 0
      %v4753 = vsel %vm526, %v4706, 0
      %v4756 = vsel %vm526, %v4707, 0
      %v4759 = vsel %vm526, %v4708, 0
      %v4762 = vsel %vm526, %v4709, 0
      %v4765 = vsel %vm526, %v4710, 0
      %v4768 = vsel %vm526, %v4711, 0
      %v4771 = vsel %vm526, %v4712, 0
      %v4774 = vsel %vm526, %v4713, 0
      %v4777 = vsel %vm526, %v4714, 0
      %4779 = vmatprep.subr.bf16.mxu0 0
      %4780 = vmatpush1.bf16.msra.mxu0 %v4727
      %4781 = vmatprep.subr.bf16.mxu0 0
      %4782 = vmatpush1.bf16.msra.mxu0 %v4728
      %4783 = vmatprep.subr.bf16.mxu0 0
      %4784 = vmatpush1.bf16.msra.mxu0 0
      %4785 = vmatprep.subr.bf16.mxu0 0
      %4786 = vmatpush1.bf16.msra.mxu0 0
      %4787 = vmatprep.subr.bf16.mxu0 0
      %4788 = vmatpush1.bf16.msra.mxu0 0
      %4789 = vmatprep.subr.bf16.mxu0 0
      %4790 = vmatpush1.bf16.msra.mxu0 0
      %4791 = vmatprep.subr.bf16.mxu0 0
      %4792 = vmatpush1.bf16.msra.mxu0 0
      %4793 = vmatprep.subr.bf16.mxu0 0
      %4794 = vmatpush1.bf16.msra.mxu0 0
      %4795 = vmatprep.subr.bf16.mxu0 0
      %4796 = vmatpush1.bf16.msra.mxu0 0
      %4797 = vmatprep.subr.bf16.mxu0 0
      %4798 = vmatpush1.bf16.msra.mxu0 0
      %4799 = vmatprep.subr.bf16.mxu0 0
      %4800 = vmatpush1.bf16.msra.mxu0 0
      %4801 = vmatprep.subr.bf16.mxu0 0
      %4802 = vmatpush1.bf16.msra.mxu0 0
      %4803 = vmatprep.subr.bf16.mxu0 0
      %4804 = vmatpush1.bf16.msra.mxu0 0
      %4805 = vmatprep.subr.bf16.mxu0 0
      %4806 = vmatpush1.bf16.msra.mxu0 0
      %4807 = vmatprep.subr.bf16.mxu0 0
      %4808 = vmatpush1.bf16.msra.mxu0 0
      %4809 = vmatprep.subr.bf16.mxu0 0
      %4810 = vmatpush1.bf16.msra.mxu0 0
      %4811 = vmatprep.mubr.bf16.mxu0 0
      %4812 = vmatmul.mubr.bf16.gmra.mrb[0].mxu0 %v4732
      %v4813 = vpop.f32.mrb[0].mxu0
      %v4814 = vadd.f32 0.0, %v4813
      %v4815 = vpop.f32.mrb[0].mxu0
      %v4816 = vpop.f32.mrb[0].mxu0
      %v4817 = vadd.f32 0.0, %v4816
      %v4818 = vpop.f32.mrb[0].mxu0
      %4819 = vmatprep.mubr.bf16.mxu0 0
      %4820 = vmatmul.mubr.bf16.gmra.mrb[0].mxu0 %v4735
      %v4821 = vpop.f32.mrb[0].mxu0
      %v4822 = vadd.f32 0.0, %v4821
      %v4823 = vpop.f32.mrb[0].mxu0
      %v4824 = vpop.f32.mrb[0].mxu0
      %v4825 = vadd.f32 0.0, %v4824
      %v4826 = vpop.f32.mrb[0].mxu0
      %4827 = vmatprep.mubr.bf16.mxu0 0
      %4828 = vmatmul.mubr.bf16.gmra.mrb[0].mxu0 %v4738
      %v4829 = vpop.f32.mrb[0].mxu0
      %v4830 = vadd.f32 0.0, %v4829
      %v4831 = vpop.f32.mrb[0].mxu0
      %v4832 = vpop.f32.mrb[0].mxu0
      %v4833 = vadd.f32 0.0, %v4832
      %v4834 = vpop.f32.mrb[0].mxu0
      %4835 = vmatprep.mubr.bf16.mxu0 0
      %4836 = vmatmul.mubr.bf16.gmra.mrb[0].mxu0 %v4741
      %v4837 = vpop.f32.mrb[0].mxu0
      %v4838 = vadd.f32 0.0, %v4837
      %v4839 = vpop.f32.mrb[0].mxu0
      %v4840 = vpop.f32.mrb[0].mxu0
      %v4841 = vadd.f32 0.0, %v4840
      %v4842 = vpop.f32.mrb[0].mxu0
      %4843 = vmatprep.mubr.bf16.mxu0 0
      %4844 = vmatmul.mubr.bf16.gmra.mrb[0].mxu0 %v4744
      %v4845 = vpop.f32.mrb[0].mxu0
      %v4846 = vadd.f32 0.0, %v4845
      %v4847 = vpop.f32.mrb[0].mxu0
      %v4848 = vpop.f32.mrb[0].mxu0
      %v4849 = vadd.f32 0.0, %v4848
      %v4850 = vpop.f32.mrb[0].mxu0
      %4851 = vmatprep.mubr.bf16.mxu0 0
      %4852 = vmatmul.mubr.bf16.gmra.mrb[0].mxu0 %v4747
      %v4853 = vpop.f32.mrb[0].mxu0
      %v4854 = vadd.f32 0.0, %v4853
      %v4855 = vpop.f32.mrb[0].mxu0
      %v4856 = vpop.f32.mrb[0].mxu0
      %v4857 = vadd.f32 0.0, %v4856
      %v4858 = vpop.f32.mrb[0].mxu0
      %4859 = vmatprep.mubr.bf16.mxu0 0
      %4860 = vmatmul.mubr.bf16.gmra.mrb[0].mxu0 %v4750
      %v4861 = vpop.f32.mrb[0].mxu0
      %v4862 = vadd.f32 0.0, %v4861
      %v4863 = vpop.f32.mrb[0].mxu0
      %v4864 = vpop.f32.mrb[0].mxu0
      %v4865 = vadd.f32 0.0, %v4864
      %v4866 = vpop.f32.mrb[0].mxu0
      %4867 = vmatprep.mubr.bf16.mxu0 0
      %4868 = vmatmul.mubr.bf16.gmra.mrb[0].mxu0 %v4753
      %v4869 = vpop.f32.mrb[0].mxu0
      %v4870 = vadd.f32 0.0, %v4869
      %v4871 = vpop.f32.mrb[0].mxu0
      %v4872 = vpop.f32.mrb[0].mxu0
      %v4873 = vadd.f32 0.0, %v4872
      %v4874 = vpop.f32.mrb[0].mxu0
      %4875 = vmatprep.mubr.bf16.mxu0 0
      %4876 = vmatmul.mubr.bf16.gmra.mrb[0].mxu0 %v4756
      %v4877 = vpop.f32.mrb[0].mxu0
      %v4878 = vadd.f32 0.0, %v4877
      %v4879 = vpop.f32.mrb[0].mxu0
      %v4880 = vpop.f32.mrb[0].mxu0
      %v4881 = vadd.f32 0.0, %v4880
      %v4882 = vpop.f32.mrb[0].mxu0
      %4883 = vmatprep.mubr.bf16.mxu0 0
      %4884 = vmatmul.mubr.bf16.gmra.mrb[0].mxu0 %v4759
      %v4885 = vpop.f32.mrb[0].mxu0
      %v4886 = vadd.f32 0.0, %v4885
      %v4887 = vpop.f32.mrb[0].mxu0
      %v4888 = vpop.f32.mrb[0].mxu0
      %v4889 = vadd.f32 0.0, %v4888
      %v4890 = vpop.f32.mrb[0].mxu0
      %4891 = vmatprep.mubr.bf16.mxu0 0
      %4892 = vmatmul.mubr.bf16.gmra.mrb[0].mxu0 %v4762
      %v4893 = vpop.f32.mrb[0].mxu0
      %v4894 = vadd.f32 0.0, %v4893
      %v4895 = vpop.f32.mrb[0].mxu0
      %v4896 = vpop.f32.mrb[0].mxu0
      %v4897 = vadd.f32 0.0, %v4896
      %v4898 = vpop.f32.mrb[0].mxu0
      %4899 = vmatprep.mubr.bf16.mxu0 0
      %4900 = vmatmul.mubr.bf16.gmra.mrb[0].mxu0 %v4765
      %v4901 = vpop.f32.mrb[0].mxu0
      %v4902 = vadd.f32 0.0, %v4901
      %v4903 = vpop.f32.mrb[0].mxu0
      %v4904 = vpop.f32.mrb[0].mxu0
      %v4905 = vadd.f32 0.0, %v4904
      %v4906 = vpop.f32.mrb[0].mxu0
      %4907 = vmatprep.mubr.bf16.mxu0 0
      %4908 = vmatmul.mubr.bf16.gmra.mrb[0].mxu0 %v4768
      %v4909 = vpop.f32.mrb[0].mxu0
      %v4910 = vadd.f32 0.0, %v4909
      %v4911 = vpop.f32.mrb[0].mxu0
      %v4912 = vpop.f32.mrb[0].mxu0
      %v4913 = vadd.f32 0.0, %v4912
      %v4914 = vpop.f32.mrb[0].mxu0
      %4915 = vmatprep.mubr.bf16.mxu0 0
      %4916 = vmatmul.mubr.bf16.gmra.mrb[0].mxu0 %v4771
      %v4917 = vpop.f32.mrb[0].mxu0
      %v4918 = vadd.f32 0.0, %v4917
      %v4919 = vpop.f32.mrb[0].mxu0
      %v4920 = vpop.f32.mrb[0].mxu0
      %v4921 = vadd.f32 0.0, %v4920
      %v4922 = vpop.f32.mrb[0].mxu0
      %4923 = vmatprep.mubr.bf16.mxu0 0
      %4924 = vmatmul.mubr.bf16.gmra.mrb[0].mxu0 %v4774
      %v4925 = vpop.f32.mrb[0].mxu0
      %v4926 = vadd.f32 0.0, %v4925
      %v4927 = vpop.f32.mrb[0].mxu0
      %v4928 = vpop.f32.mrb[0].mxu0
      %v4929 = vadd.f32 0.0, %v4928
      %v4930 = vpop.f32.mrb[0].mxu0
      %4931 = vmatprep.mubr.bf16.mxu0 0
      %4932 = vmatmul.mubr.bf16.gmra.mrb[0].mxu0 %v4777
      %v4933 = vpop.f32.mrb[0].mxu0
      %v4934 = vadd.f32 0.0, %v4933
      %v4935 = vpop.f32.mrb[0].mxu0
      %v4936 = vpop.f32.mrb[0].mxu0
      %v4937 = vadd.f32 0.0, %v4936
      %v4938 = vpop.f32.mrb[0].mxu0
      %4939 = vdwg.mxu0
      %v4940 = vadd.f32 %v4634, %v4814
      %v4941 = vadd.f32 %v4635, %v4817
      %v4942 = vadd.f32 %v4636, %v4822
      %v4943 = vadd.f32 %v4637, %v4825
      %v4944 = vadd.f32 %v4638, %v4830
      %v4945 = vadd.f32 %v4639, %v4833
      %v4946 = vadd.f32 %v4640, %v4838
      %v4947 = vadd.f32 %v4641, %v4841
      %v4948 = vadd.f32 %v4642, %v4846
      %v4949 = vadd.f32 %v4643, %v4849
      %v4950 = vadd.f32 %v4644, %v4854
      %v4951 = vadd.f32 %v4645, %v4857
      %v4952 = vadd.f32 %v4646, %v4862
      %v4953 = vadd.f32 %v4647, %v4865
      %v4954 = vadd.f32 %v4648, %v4870
      %v4955 = vadd.f32 %v4649, %v4873
      %v4956 = vadd.f32 %v4650, %v4878
      %v4957 = vadd.f32 %v4651, %v4881
      %v4958 = vadd.f32 %v4652, %v4886
      %v4959 = vadd.f32 %v4653, %v4889
      %v4960 = vadd.f32 %v4654, %v4894
      %v4961 = vadd.f32 %v4655, %v4897
      %v4962 = vadd.f32 %v4656, %v4902
      %v4963 = vadd.f32 %v4657, %v4905
      %v4964 = vadd.f32 %v4658, %v4910
      %v4965 = vadd.f32 %v4659, %v4913
      %v4966 = vadd.f32 %v4660, %v4918
      %v4967 = vadd.f32 %v4661, %v4921
      %v4968 = vadd.f32 %v4662, %v4926
      %v4969 = vadd.f32 %v4663, %v4929
      %v4970 = vadd.f32 %v4664, %v4934
      %v4971 = vadd.f32 %v4665, %v4937
      %s4972 = scalar_lea.vmem [#allocation2], 608
      %v4973 = vld [vmem:[%s4972 + $0x8] sm:$0xff]
      %v4974 = vld [vmem:[%s4972 + $0x10] sm:$0xff]
      %v4975 = vld [vmem:[%s4972 + $0x28] sm:$0xff]
      %v4976 = vld [vmem:[%s4972 + $0x30] sm:$0xff]
      %v4977 = vld [vmem:[%s4972 + $0x48] sm:$0xff]
      %v4978 = vld [vmem:[%s4972 + $0x50] sm:$0xff]
      %v4979 = vld [vmem:[%s4972 + $0x68] sm:$0xff]
      %v4980 = vld [vmem:[%s4972 + $0x70] sm:$0xff]
      %v4981 = vld [vmem:[%s4972 + $0x88] sm:$0xff]
      %v4982 = vld [vmem:[%s4972 + $0x90] sm:$0xff]
      %v4983 = vld [vmem:[%s4972 + $0xa8] sm:$0xff]
      %v4984 = vld [vmem:[%s4972 + $0xb0] sm:$0xff]
      %v4985 = vld [vmem:[%s4972 + $0xc8] sm:$0xff]
      %v4986 = vld [vmem:[%s4972 + $0xd0] sm:$0xff]
      %v4987 = vld [vmem:[%s4972 + $0xe8] sm:$0xff]
      %v4988 = vld [vmem:[%s4972 + $0xf0] sm:$0xff]
      %v4989 = vld [vmem:[%s4972 + $0x108] sm:$0xff]
      %v4990 = vld [vmem:[%s4972 + $0x110] sm:$0xff]
      %v4991 = vld [vmem:[%s4972 + $0x128] sm:$0xff]
      %v4992 = vld [vmem:[%s4972 + $0x130] sm:$0xff]
      %v4993 = vld [vmem:[%s4972 + $0x148] sm:$0xff]
      %v4994 = vld [vmem:[%s4972 + $0x150] sm:$0xff]
      %v4995 = vld [vmem:[%s4972 + $0x168] sm:$0xff]
      %v4996 = vld [vmem:[%s4972 + $0x170] sm:$0xff]
      %v4997 = vld [vmem:[%s4972 + $0x188] sm:$0xff]
      %v4998 = vld [vmem:[%s4972 + $0x190] sm:$0xff]
      %v4999 = vld [vmem:[%s4972 + $0x1a8] sm:$0xff]
      %v5000 = vld [vmem:[%s4972 + $0x1b0] sm:$0xff]
      %v5001 = vld [vmem:[%s4972 + $0x1c8] sm:$0xff]
      %v5002 = vld [vmem:[%s4972 + $0x1d0] sm:$0xff]
      %v5003 = vld [vmem:[%s4972 + $0x1e8] sm:$0xff]
      %v5004 = vld [vmem:[%s4972 + $0x1f0] sm:$0xff]
      %v5005 = vpack.c.bf16 %v4974, %v4973
      %v5006 = vpack.c.bf16 %v4976, %v4975
      %v5007 = vpack.c.bf16 %v4978, %v4977
      %v5008 = vpack.c.bf16 %v4980, %v4979
      %v5009 = vpack.c.bf16 %v4982, %v4981
      %v5010 = vpack.c.bf16 %v4984, %v4983
      %v5011 = vpack.c.bf16 %v4986, %v4985
      %v5012 = vpack.c.bf16 %v4988, %v4987
      %v5013 = vpack.c.bf16 %v4990, %v4989
      %v5014 = vpack.c.bf16 %v4992, %v4991
      %v5015 = vpack.c.bf16 %v4994, %v4993
      %v5016 = vpack.c.bf16 %v4996, %v4995
      %v5017 = vpack.c.bf16 %v4998, %v4997
      %v5018 = vpack.c.bf16 %v5000, %v4999
      %v5019 = vpack.c.bf16 %v5002, %v5001
      %v5020 = vpack.c.bf16 %v5004, %v5003
      %v5021 = vld [vmem:[%s2125] sm:$0xf]
      %v5022 = vld [vmem:[%s2125 + $0x4] sm:$0xf]
      %v5023 = vld [vmem:[%s2125 + $0x8] sm:$0xf]
      %v5024 = vld [vmem:[%s2125 + $0xc] sm:$0xf]
      %v5029 = vunpack.c.l.b16 %v5021
      %v5030 = vunpack.c.l.b16 %v5022
      %v5031 = vunpack.c.l.b16 %v5023
      %v5032 = vunpack.c.l.b16 %v5024
      %v5033 = vpack.c.b16 %v5030, %v5029
      %v5034 = vpack.c.b16 %v5032, %v5031
      %v5038 = vsel %vm526, %v5005, 0
      %v5041 = vsel %vm526, %v5006, 0
      %v5044 = vsel %vm526, %v5007, 0
      %v5047 = vsel %vm526, %v5008, 0
      %v5050 = vsel %vm526, %v5009, 0
      %v5053 = vsel %vm526, %v5010, 0
      %v5056 = vsel %vm526, %v5011, 0
      %v5059 = vsel %vm526, %v5012, 0
      %v5062 = vsel %vm526, %v5013, 0
      %v5065 = vsel %vm526, %v5014, 0
      %v5068 = vsel %vm526, %v5015, 0
      %v5071 = vsel %vm526, %v5016, 0
      %v5074 = vsel %vm526, %v5017, 0
      %v5077 = vsel %vm526, %v5018, 0
      %v5080 = vsel %vm526, %v5019, 0
      %v5083 = vsel %vm526, %v5020, 0
      %5085 = vmatprep.subr.bf16.mxu0 0
      %5086 = vmatpush1.bf16.msra.mxu0 %v5033
      %5087 = vmatprep.subr.bf16.mxu0 0
      %5088 = vmatpush1.bf16.msra.mxu0 %v5034
      %5089 = vmatprep.subr.bf16.mxu0 0
      %5090 = vmatpush1.bf16.msra.mxu0 0
      %5091 = vmatprep.subr.bf16.mxu0 0
      %5092 = vmatpush1.bf16.msra.mxu0 0
      %5093 = vmatprep.subr.bf16.mxu0 0
      %5094 = vmatpush1.bf16.msra.mxu0 0
      %5095 = vmatprep.subr.bf16.mxu0 0
      %5096 = vmatpush1.bf16.msra.mxu0 0
      %5097 = vmatprep.subr.bf16.mxu0 0
      %5098 = vmatpush1.bf16.msra.mxu0 0
      %5099 = vmatprep.subr.bf16.mxu0 0
      %5100 = vmatpush1.bf16.msra.mxu0 0
      %5101 = vmatprep.subr.bf16.mxu0 0
      %5102 = vmatpush1.bf16.msra.mxu0 0
      %5103 = vmatprep.subr.bf16.mxu0 0
      %5104 = vmatpush1.bf16.msra.mxu0 0
      %5105 = vmatprep.subr.bf16.mxu0 0
      %5106 = vmatpush1.bf16.msra.mxu0 0
      %5107 = vmatprep.subr.bf16.mxu0 0
      %5108 = vmatpush1.bf16.msra.mxu0 0
      %5109 = vmatprep.subr.bf16.mxu0 0
      %5110 = vmatpush1.bf16.msra.mxu0 0
      %5111 = vmatprep.subr.bf16.mxu0 0
      %5112 = vmatpush1.bf16.msra.mxu0 0
      %5113 = vmatprep.subr.bf16.mxu0 0
      %5114 = vmatpush1.bf16.msra.mxu0 0
      %5115 = vmatprep.subr.bf16.mxu0 0
      %5116 = vmatpush1.bf16.msra.mxu0 0
      %5117 = vmatprep.mubr.bf16.mxu0 0
      %5118 = vmatmul.mubr.bf16.gmra.mrb[0].mxu0 %v5038
      %v5119 = vpop.f32.mrb[0].mxu0
      %v5120 = vadd.f32 0.0, %v5119
      %v5121 = vpop.f32.mrb[0].mxu0
      %v5122 = vpop.f32.mrb[0].mxu0
      %v5123 = vadd.f32 0.0, %v5122
      %v5124 = vpop.f32.mrb[0].mxu0
      %5125 = vmatprep.mubr.bf16.mxu0 0
      %5126 = vmatmul.mubr.bf16.gmra.mrb[0].mxu0 %v5041
      %v5127 = vpop.f32.mrb[0].mxu0
      %v5128 = vadd.f32 0.0, %v5127
      %v5129 = vpop.f32.mrb[0].mxu0
      %v5130 = vpop.f32.mrb[0].mxu0
      %v5131 = vadd.f32 0.0, %v5130
      %v5132 = vpop.f32.mrb[0].mxu0
      %5133 = vmatprep.mubr.bf16.mxu0 0
      %5134 = vmatmul.mubr.bf16.gmra.mrb[0].mxu0 %v5044
      %v5135 = vpop.f32.mrb[0].mxu0
      %v5136 = vadd.f32 0.0, %v5135
      %v5137 = vpop.f32.mrb[0].mxu0
      %v5138 = vpop.f32.mrb[0].mxu0
      %v5139 = vadd.f32 0.0, %v5138
      %v5140 = vpop.f32.mrb[0].mxu0
      %5141 = vmatprep.mubr.bf16.mxu0 0
      %5142 = vmatmul.mubr.bf16.gmra.mrb[0].mxu0 %v5047
      %v5143 = vpop.f32.mrb[0].mxu0
      %v5144 = vadd.f32 0.0, %v5143
      %v5145 = vpop.f32.mrb[0].mxu0
      %v5146 = vpop.f32.mrb[0].mxu0
      %v5147 = vadd.f32 0.0, %v5146
      %v5148 = vpop.f32.mrb[0].mxu0
      %5149 = vmatprep.mubr.bf16.mxu0 0
      %5150 = vmatmul.mubr.bf16.gmra.mrb[0].mxu0 %v5050
      %v5151 = vpop.f32.mrb[0].mxu0
      %v5152 = vadd.f32 0.0, %v5151
      %v5153 = vpop.f32.mrb[0].mxu0
      %v5154 = vpop.f32.mrb[0].mxu0
      %v5155 = vadd.f32 0.0, %v5154
      %v5156 = vpop.f32.mrb[0].mxu0
      %5157 = vmatprep.mubr.bf16.mxu0 0
      %5158 = vmatmul.mubr.bf16.gmra.mrb[0].mxu0 %v5053
      %v5159 = vpop.f32.mrb[0].mxu0
      %v5160 = vadd.f32 0.0, %v5159
      %v5161 = vpop.f32.mrb[0].mxu0
      %v5162 = vpop.f32.mrb[0].mxu0
      %v5163 = vadd.f32 0.0, %v5162
      %v5164 = vpop.f32.mrb[0].mxu0
      %5165 = vmatprep.mubr.bf16.mxu0 0
      %5166 = vmatmul.mubr.bf16.gmra.mrb[0].mxu0 %v5056
      %v5167 = vpop.f32.mrb[0].mxu0
      %v5168 = vadd.f32 0.0, %v5167
      %v5169 = vpop.f32.mrb[0].mxu0
      %v5170 = vpop.f32.mrb[0].mxu0
      %v5171 = vadd.f32 0.0, %v5170
      %v5172 = vpop.f32.mrb[0].mxu0
      %5173 = vmatprep.mubr.bf16.mxu0 0
      %5174 = vmatmul.mubr.bf16.gmra.mrb[0].mxu0 %v5059
      %v5175 = vpop.f32.mrb[0].mxu0
      %v5176 = vadd.f32 0.0, %v5175
      %v5177 = vpop.f32.mrb[0].mxu0
      %v5178 = vpop.f32.mrb[0].mxu0
      %v5179 = vadd.f32 0.0, %v5178
      %v5180 = vpop.f32.mrb[0].mxu0
      %5181 = vmatprep.mubr.bf16.mxu0 0
      %5182 = vmatmul.mubr.bf16.gmra.mrb[0].mxu0 %v5062
      %v5183 = vpop.f32.mrb[0].mxu0
      %v5184 = vadd.f32 0.0, %v5183
      %v5185 = vpop.f32.mrb[0].mxu0
      %v5186 = vpop.f32.mrb[0].mxu0
      %v5187 = vadd.f32 0.0, %v5186
      %v5188 = vpop.f32.mrb[0].mxu0
      %5189 = vmatprep.mubr.bf16.mxu0 0
      %5190 = vmatmul.mubr.bf16.gmra.mrb[0].mxu0 %v5065
      %v5191 = vpop.f32.mrb[0].mxu0
      %v5192 = vadd.f32 0.0, %v5191
      %v5193 = vpop.f32.mrb[0].mxu0
      %v5194 = vpop.f32.mrb[0].mxu0
      %v5195 = vadd.f32 0.0, %v5194
      %v5196 = vpop.f32.mrb[0].mxu0
      %5197 = vmatprep.mubr.bf16.mxu0 0
      %5198 = vmatmul.mubr.bf16.gmra.mrb[0].mxu0 %v5068
      %v5199 = vpop.f32.mrb[0].mxu0
      %v5200 = vadd.f32 0.0, %v5199
      %v5201 = vpop.f32.mrb[0].mxu0
      %v5202 = vpop.f32.mrb[0].mxu0
      %v5203 = vadd.f32 0.0, %v5202
      %v5204 = vpop.f32.mrb[0].mxu0
      %5205 = vmatprep.mubr.bf16.mxu0 0
      %5206 = vmatmul.mubr.bf16.gmra.mrb[0].mxu0 %v5071
      %v5207 = vpop.f32.mrb[0].mxu0
      %v5208 = vadd.f32 0.0, %v5207
      %v5209 = vpop.f32.mrb[0].mxu0
      %v5210 = vpop.f32.mrb[0].mxu0
      %v5211 = vadd.f32 0.0, %v5210
      %v5212 = vpop.f32.mrb[0].mxu0
      %5213 = vmatprep.mubr.bf16.mxu0 0
      %5214 = vmatmul.mubr.bf16.gmra.mrb[0].mxu0 %v5074
      %v5215 = vpop.f32.mrb[0].mxu0
      %v5216 = vadd.f32 0.0, %v5215
      %v5217 = vpop.f32.mrb[0].mxu0
      %v5218 = vpop.f32.mrb[0].mxu0
      %v5219 = vadd.f32 0.0, %v5218
      %v5220 = vpop.f32.mrb[0].mxu0
      %5221 = vmatprep.mubr.bf16.mxu0 0
      %5222 = vmatmul.mubr.bf16.gmra.mrb[0].mxu0 %v5077
      %v5223 = vpop.f32.mrb[0].mxu0
      %v5224 = vadd.f32 0.0, %v5223
      %v5225 = vpop.f32.mrb[0].mxu0
      %v5226 = vpop.f32.mrb[0].mxu0
      %v5227 = vadd.f32 0.0, %v5226
      %v5228 = vpop.f32.mrb[0].mxu0
      %5229 = vmatprep.mubr.bf16.mxu0 0
      %5230 = vmatmul.mubr.bf16.gmra.mrb[0].mxu0 %v5080
      %v5231 = vpop.f32.mrb[0].mxu0
      %v5232 = vadd.f32 0.0, %v5231
      %v5233 = vpop.f32.mrb[0].mxu0
      %v5234 = vpop.f32.mrb[0].mxu0
      %v5235 = vadd.f32 0.0, %v5234
      %v5236 = vpop.f32.mrb[0].mxu0
      %5237 = vmatprep.mubr.bf16.mxu0 0
      %5238 = vmatmul.mubr.bf16.gmra.mrb[0].mxu0 %v5083
      %v5239 = vpop.f32.mrb[0].mxu0
      %v5240 = vadd.f32 0.0, %v5239
      %v5241 = vpop.f32.mrb[0].mxu0
      %v5242 = vpop.f32.mrb[0].mxu0
      %v5243 = vadd.f32 0.0, %v5242
      %v5244 = vpop.f32.mrb[0].mxu0
      %5245 = vdwg.mxu0
      %v5246 = vadd.f32 %v4940, %v5120
      %v5247 = vadd.f32 %v4941, %v5123
      %v5248 = vadd.f32 %v4942, %v5128
      %v5249 = vadd.f32 %v4943, %v5131
      %v5250 = vadd.f32 %v4944, %v5136
      %v5251 = vadd.f32 %v4945, %v5139
      %v5252 = vadd.f32 %v4946, %v5144
      %v5253 = vadd.f32 %v4947, %v5147
      %v5254 = vadd.f32 %v4948, %v5152
      %v5255 = vadd.f32 %v4949, %v5155
      %v5256 = vadd.f32 %v4950, %v5160
      %v5257 = vadd.f32 %v4951, %v5163
      %v5258 = vadd.f32 %v4952, %v5168
      %v5259 = vadd.f32 %v4953, %v5171
      %v5260 = vadd.f32 %v4954, %v5176
      %v5261 = vadd.f32 %v4955, %v5179
      %v5262 = vadd.f32 %v4956, %v5184
      %v5263 = vadd.f32 %v4957, %v5187
      %v5264 = vadd.f32 %v4958, %v5192
      %v5265 = vadd.f32 %v4959, %v5195
      %v5266 = vadd.f32 %v4960, %v5200
      %v5267 = vadd.f32 %v4961, %v5203
      %v5268 = vadd.f32 %v4962, %v5208
      %v5269 = vadd.f32 %v4963, %v5211
      %v5270 = vadd.f32 %v4964, %v5216
      %v5271 = vadd.f32 %v4965, %v5219
      %v5272 = vadd.f32 %v4966, %v5224
      %v5273 = vadd.f32 %v4967, %v5227
      %v5274 = vadd.f32 %v4968, %v5232
      %v5275 = vadd.f32 %v4969, %v5235
      %v5276 = vadd.f32 %v4970, %v5240
      %v5277 = vadd.f32 %v4971, %v5243
      %s5278 = scalar_lea.vmem [#allocation3], 880
      %v5279 = vld [vmem:[%s5278] sm:$0xff]
      %v5280 = vld [vmem:[%s5278 + $0x8] sm:$0xff]
      %v5281 = vld [vmem:[%s5278 + $0x10] sm:$0xff]
      %v5282 = vld [vmem:[%s5278 + $0x18] sm:$0xff]
      %v5283 = vld [vmem:[%s5278 + $0x20] sm:$0xff]
      %v5284 = vld [vmem:[%s5278 + $0x28] sm:$0xff]
      %v5285 = vld [vmem:[%s5278 + $0x30] sm:$0xff]
      %v5286 = vld [vmem:[%s5278 + $0x38] sm:$0xff]
      %v5287 = vld [vmem:[%s5278 + $0x40] sm:$0xff]
      %v5288 = vld [vmem:[%s5278 + $0x48] sm:$0xff]
      %v5289 = vld [vmem:[%s5278 + $0x50] sm:$0xff]
      %v5290 = vld [vmem:[%s5278 + $0x58] sm:$0xff]
      %v5291 = vld [vmem:[%s5278 + $0x60] sm:$0xff]
      %v5292 = vld [vmem:[%s5278 + $0x68] sm:$0xff]
      %v5293 = vld [vmem:[%s5278 + $0x70] sm:$0xff]
      %v5294 = vld [vmem:[%s5278 + $0x78] sm:$0xff]
      %v5295 = vld [vmem:[%s5278 + $0x80] sm:$0xff]
      %v5296 = vld [vmem:[%s5278 + $0x88] sm:$0xff]
      %v5297 = vld [vmem:[%s5278 + $0x90] sm:$0xff]
      %v5298 = vld [vmem:[%s5278 + $0x98] sm:$0xff]
      %v5299 = vld [vmem:[%s5278 + $0xa0] sm:$0xff]
      %v5300 = vld [vmem:[%s5278 + $0xa8] sm:$0xff]
      %v5301 = vld [vmem:[%s5278 + $0xb0] sm:$0xff]
      %v5302 = vld [vmem:[%s5278 + $0xb8] sm:$0xff]
      %v5303 = vld [vmem:[%s5278 + $0xc0] sm:$0xff]
      %v5304 = vld [vmem:[%s5278 + $0xc8] sm:$0xff]
      %v5305 = vld [vmem:[%s5278 + $0xd0] sm:$0xff]
      %v5306 = vld [vmem:[%s5278 + $0xd8] sm:$0xff]
      %v5307 = vld [vmem:[%s5278 + $0xe0] sm:$0xff]
      %v5308 = vld [vmem:[%s5278 + $0xe8] sm:$0xff]
      %v5309 = vld [vmem:[%s5278 + $0xf0] sm:$0xff]
      %v5310 = vld [vmem:[%s5278 + $0xf8] sm:$0xff]
      %v5311 = vpack.c.bf16 %v5280, %v5279
      %v5312 = vpack.c.bf16 %v5282, %v5281
      %v5313 = vpack.c.bf16 %v5284, %v5283
      %v5314 = vpack.c.bf16 %v5286, %v5285
      %v5315 = vpack.c.bf16 %v5288, %v5287
      %v5316 = vpack.c.bf16 %v5290, %v5289
      %v5317 = vpack.c.bf16 %v5292, %v5291
      %v5318 = vpack.c.bf16 %v5294, %v5293
      %v5319 = vpack.c.bf16 %v5296, %v5295
      %v5320 = vpack.c.bf16 %v5298, %v5297
      %v5321 = vpack.c.bf16 %v5300, %v5299
      %v5322 = vpack.c.bf16 %v5302, %v5301
      %v5323 = vpack.c.bf16 %v5304, %v5303
      %v5324 = vpack.c.bf16 %v5306, %v5305
      %v5325 = vpack.c.bf16 %v5308, %v5307
      %v5326 = vpack.c.bf16 %v5310, %v5309
      %v5327 = vld [vmem:[%s2432] sm:$0xf]
      %v5328 = vld [vmem:[%s2432 + $0x4] sm:$0xf]
      %v5329 = vld [vmem:[%s2432 + $0x8] sm:$0xf]
      %v5330 = vld [vmem:[%s2432 + $0xc] sm:$0xf]
      %v5335 = vunpack.c.l.b16 %v5327
      %v5336 = vunpack.c.l.b16 %v5328
      %v5337 = vunpack.c.l.b16 %v5329
      %v5338 = vunpack.c.l.b16 %v5330
      %v5339 = vpack.c.b16 %v5336, %v5335
      %v5340 = vpack.c.b16 %v5338, %v5337
      %v5344 = vsel %vm526, %v5311, 0
      %v5347 = vsel %vm526, %v5312, 0
      %v5350 = vsel %vm526, %v5313, 0
      %v5353 = vsel %vm526, %v5314, 0
      %v5356 = vsel %vm526, %v5315, 0
      %v5359 = vsel %vm526, %v5316, 0
      %v5362 = vsel %vm526, %v5317, 0
      %v5365 = vsel %vm526, %v5318, 0
      %v5368 = vsel %vm526, %v5319, 0
      %v5371 = vsel %vm526, %v5320, 0
      %v5374 = vsel %vm526, %v5321, 0
      %v5377 = vsel %vm526, %v5322, 0
      %v5380 = vsel %vm526, %v5323, 0
      %v5383 = vsel %vm526, %v5324, 0
      %v5386 = vsel %vm526, %v5325, 0
      %v5389 = vsel %vm526, %v5326, 0
      %5391 = vmatprep.subr.bf16.mxu0 0
      %5392 = vmatpush1.bf16.msra.mxu0 %v5339
      %5393 = vmatprep.subr.bf16.mxu0 0
      %5394 = vmatpush1.bf16.msra.mxu0 %v5340
      %5395 = vmatprep.subr.bf16.mxu0 0
      %5396 = vmatpush1.bf16.msra.mxu0 0
      %5397 = vmatprep.subr.bf16.mxu0 0
      %5398 = vmatpush1.bf16.msra.mxu0 0
      %5399 = vmatprep.subr.bf16.mxu0 0
      %5400 = vmatpush1.bf16.msra.mxu0 0
      %5401 = vmatprep.subr.bf16.mxu0 0
      %5402 = vmatpush1.bf16.msra.mxu0 0
      %5403 = vmatprep.subr.bf16.mxu0 0
      %5404 = vmatpush1.bf16.msra.mxu0 0
      %5405 = vmatprep.subr.bf16.mxu0 0
      %5406 = vmatpush1.bf16.msra.mxu0 0
      %5407 = vmatprep.subr.bf16.mxu0 0
      %5408 = vmatpush1.bf16.msra.mxu0 0
      %5409 = vmatprep.subr.bf16.mxu0 0
      %5410 = vmatpush1.bf16.msra.mxu0 0
      %5411 = vmatprep.subr.bf16.mxu0 0
      %5412 = vmatpush1.bf16.msra.mxu0 0
      %5413 = vmatprep.subr.bf16.mxu0 0
      %5414 = vmatpush1.bf16.msra.mxu0 0
      %5415 = vmatprep.subr.bf16.mxu0 0
      %5416 = vmatpush1.bf16.msra.mxu0 0
      %5417 = vmatprep.subr.bf16.mxu0 0
      %5418 = vmatpush1.bf16.msra.mxu0 0
      %5419 = vmatprep.subr.bf16.mxu0 0
      %5420 = vmatpush1.bf16.msra.mxu0 0
      %5421 = vmatprep.subr.bf16.mxu0 0
      %5422 = vmatpush1.bf16.msra.mxu0 0
      %5423 = vmatprep.mubr.bf16.mxu0 0
      %5424 = vmatmul.mubr.bf16.gmra.mrb[0].mxu0 %v5344
      %v5425 = vpop.f32.mrb[0].mxu0
      %v5426 = vadd.f32 0.0, %v5425
      %v5427 = vpop.f32.mrb[0].mxu0
      %v5428 = vpop.f32.mrb[0].mxu0
      %v5429 = vadd.f32 0.0, %v5428
      %v5430 = vpop.f32.mrb[0].mxu0
      %5431 = vmatprep.mubr.bf16.mxu0 0
      %5432 = vmatmul.mubr.bf16.gmra.mrb[0].mxu0 %v5347
      %v5433 = vpop.f32.mrb[0].mxu0
      %v5434 = vadd.f32 0.0, %v5433
      %v5435 = vpop.f32.mrb[0].mxu0
      %v5436 = vpop.f32.mrb[0].mxu0
      %v5437 = vadd.f32 0.0, %v5436
      %v5438 = vpop.f32.mrb[0].mxu0
      %5439 = vmatprep.mubr.bf16.mxu0 0
      %5440 = vmatmul.mubr.bf16.gmra.mrb[0].mxu0 %v5350
      %v5441 = vpop.f32.mrb[0].mxu0
      %v5442 = vadd.f32 0.0, %v5441
      %v5443 = vpop.f32.mrb[0].mxu0
      %v5444 = vpop.f32.mrb[0].mxu0
      %v5445 = vadd.f32 0.0, %v5444
      %v5446 = vpop.f32.mrb[0].mxu0
      %5447 = vmatprep.mubr.bf16.mxu0 0
      %5448 = vmatmul.mubr.bf16.gmra.mrb[0].mxu0 %v5353
      %v5449 = vpop.f32.mrb[0].mxu0
      %v5450 = vadd.f32 0.0, %v5449
      %v5451 = vpop.f32.mrb[0].mxu0
      %v5452 = vpop.f32.mrb[0].mxu0
      %v5453 = vadd.f32 0.0, %v5452
      %v5454 = vpop.f32.mrb[0].mxu0
      %5455 = vmatprep.mubr.bf16.mxu0 0
      %5456 = vmatmul.mubr.bf16.gmra.mrb[0].mxu0 %v5356
      %v5457 = vpop.f32.mrb[0].mxu0
      %v5458 = vadd.f32 0.0, %v5457
      %v5459 = vpop.f32.mrb[0].mxu0
      %v5460 = vpop.f32.mrb[0].mxu0
      %v5461 = vadd.f32 0.0, %v5460
      %v5462 = vpop.f32.mrb[0].mxu0
      %5463 = vmatprep.mubr.bf16.mxu0 0
      %5464 = vmatmul.mubr.bf16.gmra.mrb[0].mxu0 %v5359
      %v5465 = vpop.f32.mrb[0].mxu0
      %v5466 = vadd.f32 0.0, %v5465
      %v5467 = vpop.f32.mrb[0].mxu0
      %v5468 = vpop.f32.mrb[0].mxu0
      %v5469 = vadd.f32 0.0, %v5468
      %v5470 = vpop.f32.mrb[0].mxu0
      %5471 = vmatprep.mubr.bf16.mxu0 0
      %5472 = vmatmul.mubr.bf16.gmra.mrb[0].mxu0 %v5362
      %v5473 = vpop.f32.mrb[0].mxu0
      %v5474 = vadd.f32 0.0, %v5473
      %v5475 = vpop.f32.mrb[0].mxu0
      %v5476 = vpop.f32.mrb[0].mxu0
      %v5477 = vadd.f32 0.0, %v5476
      %v5478 = vpop.f32.mrb[0].mxu0
      %5479 = vmatprep.mubr.bf16.mxu0 0
      %5480 = vmatmul.mubr.bf16.gmra.mrb[0].mxu0 %v5365
      %v5481 = vpop.f32.mrb[0].mxu0
      %v5482 = vadd.f32 0.0, %v5481
      %v5483 = vpop.f32.mrb[0].mxu0
      %v5484 = vpop.f32.mrb[0].mxu0
      %v5485 = vadd.f32 0.0, %v5484
      %v5486 = vpop.f32.mrb[0].mxu0
      %5487 = vmatprep.mubr.bf16.mxu0 0
      %5488 = vmatmul.mubr.bf16.gmra.mrb[0].mxu0 %v5368
      %v5489 = vpop.f32.mrb[0].mxu0
      %v5490 = vadd.f32 0.0, %v5489
      %v5491 = vpop.f32.mrb[0].mxu0
      %v5492 = vpop.f32.mrb[0].mxu0
      %v5493 = vadd.f32 0.0, %v5492
      %v5494 = vpop.f32.mrb[0].mxu0
      %5495 = vmatprep.mubr.bf16.mxu0 0
      %5496 = vmatmul.mubr.bf16.gmra.mrb[0].mxu0 %v5371
      %v5497 = vpop.f32.mrb[0].mxu0
      %v5498 = vadd.f32 0.0, %v5497
      %v5499 = vpop.f32.mrb[0].mxu0
      %v5500 = vpop.f32.mrb[0].mxu0
      %v5501 = vadd.f32 0.0, %v5500
      %v5502 = vpop.f32.mrb[0].mxu0
      %5503 = vmatprep.mubr.bf16.mxu0 0
      %5504 = vmatmul.mubr.bf16.gmra.mrb[0].mxu0 %v5374
      %v5505 = vpop.f32.mrb[0].mxu0
      %v5506 = vadd.f32 0.0, %v5505
      %v5507 = vpop.f32.mrb[0].mxu0
      %v5508 = vpop.f32.mrb[0].mxu0
      %v5509 = vadd.f32 0.0, %v5508
      %v5510 = vpop.f32.mrb[0].mxu0
      %5511 = vmatprep.mubr.bf16.mxu0 0
      %5512 = vmatmul.mubr.bf16.gmra.mrb[0].mxu0 %v5377
      %v5513 = vpop.f32.mrb[0].mxu0
      %v5514 = vadd.f32 0.0, %v5513
      %v5515 = vpop.f32.mrb[0].mxu0
      %v5516 = vpop.f32.mrb[0].mxu0
      %v5517 = vadd.f32 0.0, %v5516
      %v5518 = vpop.f32.mrb[0].mxu0
      %5519 = vmatprep.mubr.bf16.mxu0 0
      %5520 = vmatmul.mubr.bf16.gmra.mrb[0].mxu0 %v5380
      %v5521 = vpop.f32.mrb[0].mxu0
      %v5522 = vadd.f32 0.0, %v5521
      %v5523 = vpop.f32.mrb[0].mxu0
      %v5524 = vpop.f32.mrb[0].mxu0
      %v5525 = vadd.f32 0.0, %v5524
      %v5526 = vpop.f32.mrb[0].mxu0
      %5527 = vmatprep.mubr.bf16.mxu0 0
      %5528 = vmatmul.mubr.bf16.gmra.mrb[0].mxu0 %v5383
      %v5529 = vpop.f32.mrb[0].mxu0
      %v5530 = vadd.f32 0.0, %v5529
      %v5531 = vpop.f32.mrb[0].mxu0
      %v5532 = vpop.f32.mrb[0].mxu0
      %v5533 = vadd.f32 0.0, %v5532
      %v5534 = vpop.f32.mrb[0].mxu0
      %5535 = vmatprep.mubr.bf16.mxu0 0
      %5536 = vmatmul.mubr.bf16.gmra.mrb[0].mxu0 %v5386
      %v5537 = vpop.f32.mrb[0].mxu0
      %v5538 = vadd.f32 0.0, %v5537
      %v5539 = vpop.f32.mrb[0].mxu0
      %v5540 = vpop.f32.mrb[0].mxu0
      %v5541 = vadd.f32 0.0, %v5540
      %v5542 = vpop.f32.mrb[0].mxu0
      %5543 = vmatprep.mubr.bf16.mxu0 0
      %5544 = vmatmul.mubr.bf16.gmra.mrb[0].mxu0 %v5389
      %v5545 = vpop.f32.mrb[0].mxu0
      %v5546 = vadd.f32 0.0, %v5545
      %v5547 = vpop.f32.mrb[0].mxu0
      %v5548 = vpop.f32.mrb[0].mxu0
      %v5549 = vadd.f32 0.0, %v5548
      %v5550 = vpop.f32.mrb[0].mxu0
      %5551 = vdwg.mxu0
      %v5552 = vadd.f32 %v5246, %v5426
      %v5553 = vadd.f32 %v5247, %v5429
      %v5554 = vadd.f32 %v5248, %v5434
      %v5555 = vadd.f32 %v5249, %v5437
      %v5556 = vadd.f32 %v5250, %v5442
      %v5557 = vadd.f32 %v5251, %v5445
      %v5558 = vadd.f32 %v5252, %v5450
      %v5559 = vadd.f32 %v5253, %v5453
      %v5560 = vadd.f32 %v5254, %v5458
      %v5561 = vadd.f32 %v5255, %v5461
      %v5562 = vadd.f32 %v5256, %v5466
      %v5563 = vadd.f32 %v5257, %v5469
      %v5564 = vadd.f32 %v5258, %v5474
      %v5565 = vadd.f32 %v5259, %v5477
      %v5566 = vadd.f32 %v5260, %v5482
      %v5567 = vadd.f32 %v5261, %v5485
      %v5568 = vadd.f32 %v5262, %v5490
      %v5569 = vadd.f32 %v5263, %v5493
      %v5570 = vadd.f32 %v5264, %v5498
      %v5571 = vadd.f32 %v5265, %v5501
      %v5572 = vadd.f32 %v5266, %v5506
      %v5573 = vadd.f32 %v5267, %v5509
      %v5574 = vadd.f32 %v5268, %v5514
      %v5575 = vadd.f32 %v5269, %v5517
      %v5576 = vadd.f32 %v5270, %v5522
      %v5577 = vadd.f32 %v5271, %v5525
      %v5578 = vadd.f32 %v5272, %v5530
      %v5579 = vadd.f32 %v5273, %v5533
      %v5580 = vadd.f32 %v5274, %v5538
      %v5581 = vadd.f32 %v5275, %v5541
      %v5582 = vadd.f32 %v5276, %v5546
      %v5583 = vadd.f32 %v5277, %v5549
      %s5584 = scalar_lea.vmem [#allocation3], 320
      %v5585 = vld [vmem:[%s5584] sm:$0xff]
      %v5586 = vld [vmem:[%s5584 + $0x8] sm:$0xff]
      %v5587 = vld [vmem:[%s5584 + $0x10] sm:$0xff]
      %v5588 = vld [vmem:[%s5584 + $0x18] sm:$0xff]
      %v5589 = vld [vmem:[%s5584 + $0x20] sm:$0xff]
      %v5590 = vld [vmem:[%s5584 + $0x28] sm:$0xff]
      %v5591 = vld [vmem:[%s5584 + $0x30] sm:$0xff]
      %v5592 = vld [vmem:[%s5584 + $0x38] sm:$0xff]
      %v5593 = vld [vmem:[%s5584 + $0x40] sm:$0xff]
      %v5594 = vld [vmem:[%s5584 + $0x48] sm:$0xff]
      %v5595 = vld [vmem:[%s5584 + $0x50] sm:$0xff]
      %v5596 = vld [vmem:[%s5584 + $0x58] sm:$0xff]
      %v5597 = vld [vmem:[%s5584 + $0x60] sm:$0xff]
      %v5598 = vld [vmem:[%s5584 + $0x68] sm:$0xff]
      %v5599 = vld [vmem:[%s5584 + $0x70] sm:$0xff]
      %v5600 = vld [vmem:[%s5584 + $0x78] sm:$0xff]
      %v5601 = vld [vmem:[%s5584 + $0x80] sm:$0xff]
      %v5602 = vld [vmem:[%s5584 + $0x88] sm:$0xff]
      %v5603 = vld [vmem:[%s5584 + $0x90] sm:$0xff]
      %v5604 = vld [vmem:[%s5584 + $0x98] sm:$0xff]
      %v5605 = vld [vmem:[%s5584 + $0xa0] sm:$0xff]
      %v5606 = vld [vmem:[%s5584 + $0xa8] sm:$0xff]
      %v5607 = vld [vmem:[%s5584 + $0xb0] sm:$0xff]
      %v5608 = vld [vmem:[%s5584 + $0xb8] sm:$0xff]
      %v5609 = vld [vmem:[%s5584 + $0xc0] sm:$0xff]
      %v5610 = vld [vmem:[%s5584 + $0xc8] sm:$0xff]
      %v5611 = vld [vmem:[%s5584 + $0xd0] sm:$0xff]
      %v5612 = vld [vmem:[%s5584 + $0xd8] sm:$0xff]
      %v5613 = vld [vmem:[%s5584 + $0xe0] sm:$0xff]
      %v5614 = vld [vmem:[%s5584 + $0xe8] sm:$0xff]
      %v5615 = vld [vmem:[%s5584 + $0xf0] sm:$0xff]
      %v5616 = vld [vmem:[%s5584 + $0xf8] sm:$0xff]
      %v5617 = vpack.c.bf16 %v5586, %v5585
      %v5618 = vpack.c.bf16 %v5588, %v5587
      %v5619 = vpack.c.bf16 %v5590, %v5589
      %v5620 = vpack.c.bf16 %v5592, %v5591
      %v5621 = vpack.c.bf16 %v5594, %v5593
      %v5622 = vpack.c.bf16 %v5596, %v5595
      %v5623 = vpack.c.bf16 %v5598, %v5597
      %v5624 = vpack.c.bf16 %v5600, %v5599
      %v5625 = vpack.c.bf16 %v5602, %v5601
      %v5626 = vpack.c.bf16 %v5604, %v5603
      %v5627 = vpack.c.bf16 %v5606, %v5605
      %v5628 = vpack.c.bf16 %v5608, %v5607
      %v5629 = vpack.c.bf16 %v5610, %v5609
      %v5630 = vpack.c.bf16 %v5612, %v5611
      %v5631 = vpack.c.bf16 %v5614, %v5613
      %v5632 = vpack.c.bf16 %v5616, %v5615
      %v5633 = vld [vmem:[%s2739] sm:$0xf]
      %v5634 = vld [vmem:[%s2739 + $0x4] sm:$0xf]
      %v5635 = vld [vmem:[%s2739 + $0x8] sm:$0xf]
      %v5636 = vld [vmem:[%s2739 + $0xc] sm:$0xf]
      %v5641 = vunpack.c.l.b16 %v5633
      %v5642 = vunpack.c.l.b16 %v5634
      %v5643 = vunpack.c.l.b16 %v5635
      %v5644 = vunpack.c.l.b16 %v5636
      %v5645 = vpack.c.b16 %v5642, %v5641
      %v5646 = vpack.c.b16 %v5644, %v5643
      %v5650 = vsel %vm526, %v5617, 0
      %v5653 = vsel %vm526, %v5618, 0
      %v5656 = vsel %vm526, %v5619, 0
      %v5659 = vsel %vm526, %v5620, 0
      %v5662 = vsel %vm526, %v5621, 0
      %v5665 = vsel %vm526, %v5622, 0
      %v5668 = vsel %vm526, %v5623, 0
      %v5671 = vsel %vm526, %v5624, 0
      %v5674 = vsel %vm526, %v5625, 0
      %v5677 = vsel %vm526, %v5626, 0
      %v5680 = vsel %vm526, %v5627, 0
      %v5683 = vsel %vm526, %v5628, 0
      %v5686 = vsel %vm526, %v5629, 0
      %v5689 = vsel %vm526, %v5630, 0
      %v5692 = vsel %vm526, %v5631, 0
      %v5695 = vsel %vm526, %v5632, 0
      %5697 = vmatprep.subr.bf16.mxu0 0
      %5698 = vmatpush1.bf16.msra.mxu0 %v5645
      %5699 = vmatprep.subr.bf16.mxu0 0
      %5700 = vmatpush1.bf16.msra.mxu0 %v5646
      %5701 = vmatprep.subr.bf16.mxu0 0
      %5702 = vmatpush1.bf16.msra.mxu0 0
      %5703 = vmatprep.subr.bf16.mxu0 0
      %5704 = vmatpush1.bf16.msra.mxu0 0
      %5705 = vmatprep.subr.bf16.mxu0 0
      %5706 = vmatpush1.bf16.msra.mxu0 0
      %5707 = vmatprep.subr.bf16.mxu0 0
      %5708 = vmatpush1.bf16.msra.mxu0 0
      %5709 = vmatprep.subr.bf16.mxu0 0
      %5710 = vmatpush1.bf16.msra.mxu0 0
      %5711 = vmatprep.subr.bf16.mxu0 0
      %5712 = vmatpush1.bf16.msra.mxu0 0
      %5713 = vmatprep.subr.bf16.mxu0 0
      %5714 = vmatpush1.bf16.msra.mxu0 0
      %5715 = vmatprep.subr.bf16.mxu0 0
      %5716 = vmatpush1.bf16.msra.mxu0 0
      %5717 = vmatprep.subr.bf16.mxu0 0
      %5718 = vmatpush1.bf16.msra.mxu0 0
      %5719 = vmatprep.subr.bf16.mxu0 0
      %5720 = vmatpush1.bf16.msra.mxu0 0
      %5721 = vmatprep.subr.bf16.mxu0 0
      %5722 = vmatpush1.bf16.msra.mxu0 0
      %5723 = vmatprep.subr.bf16.mxu0 0
      %5724 = vmatpush1.bf16.msra.mxu0 0
      %5725 = vmatprep.subr.bf16.mxu0 0
      %5726 = vmatpush1.bf16.msra.mxu0 0
      %5727 = vmatprep.subr.bf16.mxu0 0
      %5728 = vmatpush1.bf16.msra.mxu0 0
      %5729 = vmatprep.mubr.bf16.mxu0 0
      %5730 = vmatmul.mubr.bf16.gmra.mrb[0].mxu0 %v5650
      %v5731 = vpop.f32.mrb[0].mxu0
      %v5732 = vadd.f32 0.0, %v5731
      %v5733 = vpop.f32.mrb[0].mxu0
      %v5734 = vpop.f32.mrb[0].mxu0
      %v5735 = vadd.f32 0.0, %v5734
      %v5736 = vpop.f32.mrb[0].mxu0
      %5737 = vmatprep.mubr.bf16.mxu0 0
      %5738 = vmatmul.mubr.bf16.gmra.mrb[0].mxu0 %v5653
      %v5739 = vpop.f32.mrb[0].mxu0
      %v5740 = vadd.f32 0.0, %v5739
      %v5741 = vpop.f32.mrb[0].mxu0
      %v5742 = vpop.f32.mrb[0].mxu0
      %v5743 = vadd.f32 0.0, %v5742
      %v5744 = vpop.f32.mrb[0].mxu0
      %5745 = vmatprep.mubr.bf16.mxu0 0
      %5746 = vmatmul.mubr.bf16.gmra.mrb[0].mxu0 %v5656
      %v5747 = vpop.f32.mrb[0].mxu0
      %v5748 = vadd.f32 0.0, %v5747
      %v5749 = vpop.f32.mrb[0].mxu0
      %v5750 = vpop.f32.mrb[0].mxu0
      %v5751 = vadd.f32 0.0, %v5750
      %v5752 = vpop.f32.mrb[0].mxu0
      %5753 = vmatprep.mubr.bf16.mxu0 0
      %5754 = vmatmul.mubr.bf16.gmra.mrb[0].mxu0 %v5659
      %v5755 = vpop.f32.mrb[0].mxu0
      %v5756 = vadd.f32 0.0, %v5755
      %v5757 = vpop.f32.mrb[0].mxu0
      %v5758 = vpop.f32.mrb[0].mxu0
      %v5759 = vadd.f32 0.0, %v5758
      %v5760 = vpop.f32.mrb[0].mxu0
      %5761 = vmatprep.mubr.bf16.mxu0 0
      %5762 = vmatmul.mubr.bf16.gmra.mrb[0].mxu0 %v5662
      %v5763 = vpop.f32.mrb[0].mxu0
      %v5764 = vadd.f32 0.0, %v5763
      %v5765 = vpop.f32.mrb[0].mxu0
      %v5766 = vpop.f32.mrb[0].mxu0
      %v5767 = vadd.f32 0.0, %v5766
      %v5768 = vpop.f32.mrb[0].mxu0
      %5769 = vmatprep.mubr.bf16.mxu0 0
      %5770 = vmatmul.mubr.bf16.gmra.mrb[0].mxu0 %v5665
      %v5771 = vpop.f32.mrb[0].mxu0
      %v5772 = vadd.f32 0.0, %v5771
      %v5773 = vpop.f32.mrb[0].mxu0
      %v5774 = vpop.f32.mrb[0].mxu0
      %v5775 = vadd.f32 0.0, %v5774
      %v5776 = vpop.f32.mrb[0].mxu0
      %5777 = vmatprep.mubr.bf16.mxu0 0
      %5778 = vmatmul.mubr.bf16.gmra.mrb[0].mxu0 %v5668
      %v5779 = vpop.f32.mrb[0].mxu0
      %v5780 = vadd.f32 0.0, %v5779
      %v5781 = vpop.f32.mrb[0].mxu0
      %v5782 = vpop.f32.mrb[0].mxu0
      %v5783 = vadd.f32 0.0, %v5782
      %v5784 = vpop.f32.mrb[0].mxu0
      %5785 = vmatprep.mubr.bf16.mxu0 0
      %5786 = vmatmul.mubr.bf16.gmra.mrb[0].mxu0 %v5671
      %v5787 = vpop.f32.mrb[0].mxu0
      %v5788 = vadd.f32 0.0, %v5787
      %v5789 = vpop.f32.mrb[0].mxu0
      %v5790 = vpop.f32.mrb[0].mxu0
      %v5791 = vadd.f32 0.0, %v5790
      %v5792 = vpop.f32.mrb[0].mxu0
      %5793 = vmatprep.mubr.bf16.mxu0 0
      %5794 = vmatmul.mubr.bf16.gmra.mrb[0].mxu0 %v5674
      %v5795 = vpop.f32.mrb[0].mxu0
      %v5796 = vadd.f32 0.0, %v5795
      %v5797 = vpop.f32.mrb[0].mxu0
      %v5798 = vpop.f32.mrb[0].mxu0
      %v5799 = vadd.f32 0.0, %v5798
      %v5800 = vpop.f32.mrb[0].mxu0
      %5801 = vmatprep.mubr.bf16.mxu0 0
      %5802 = vmatmul.mubr.bf16.gmra.mrb[0].mxu0 %v5677
      %v5803 = vpop.f32.mrb[0].mxu0
      %v5804 = vadd.f32 0.0, %v5803
      %v5805 = vpop.f32.mrb[0].mxu0
      %v5806 = vpop.f32.mrb[0].mxu0
      %v5807 = vadd.f32 0.0, %v5806
      %v5808 = vpop.f32.mrb[0].mxu0
      %5809 = vmatprep.mubr.bf16.mxu0 0
      %5810 = vmatmul.mubr.bf16.gmra.mrb[0].mxu0 %v5680
      %v5811 = vpop.f32.mrb[0].mxu0
      %v5812 = vadd.f32 0.0, %v5811
      %v5813 = vpop.f32.mrb[0].mxu0
      %v5814 = vpop.f32.mrb[0].mxu0
      %v5815 = vadd.f32 0.0, %v5814
      %v5816 = vpop.f32.mrb[0].mxu0
      %5817 = vmatprep.mubr.bf16.mxu0 0
      %5818 = vmatmul.mubr.bf16.gmra.mrb[0].mxu0 %v5683
      %v5819 = vpop.f32.mrb[0].mxu0
      %v5820 = vadd.f32 0.0, %v5819
      %v5821 = vpop.f32.mrb[0].mxu0
      %v5822 = vpop.f32.mrb[0].mxu0
      %v5823 = vadd.f32 0.0, %v5822
      %v5824 = vpop.f32.mrb[0].mxu0
      %5825 = vmatprep.mubr.bf16.mxu0 0
      %5826 = vmatmul.mubr.bf16.gmra.mrb[0].mxu0 %v5686
      %v5827 = vpop.f32.mrb[0].mxu0
      %v5828 = vadd.f32 0.0, %v5827
      %v5829 = vpop.f32.mrb[0].mxu0
      %v5830 = vpop.f32.mrb[0].mxu0
      %v5831 = vadd.f32 0.0, %v5830
      %v5832 = vpop.f32.mrb[0].mxu0
      %5833 = vmatprep.mubr.bf16.mxu0 0
      %5834 = vmatmul.mubr.bf16.gmra.mrb[0].mxu0 %v5689
      %v5835 = vpop.f32.mrb[0].mxu0
      %v5836 = vadd.f32 0.0, %v5835
      %v5837 = vpop.f32.mrb[0].mxu0
      %v5838 = vpop.f32.mrb[0].mxu0
      %v5839 = vadd.f32 0.0, %v5838
      %v5840 = vpop.f32.mrb[0].mxu0
      %5841 = vmatprep.mubr.bf16.mxu0 0
      %5842 = vmatmul.mubr.bf16.gmra.mrb[0].mxu0 %v5692
      %v5843 = vpop.f32.mrb[0].mxu0
      %v5844 = vadd.f32 0.0, %v5843
      %v5845 = vpop.f32.mrb[0].mxu0
      %v5846 = vpop.f32.mrb[0].mxu0
      %v5847 = vadd.f32 0.0, %v5846
      %v5848 = vpop.f32.mrb[0].mxu0
      %5849 = vmatprep.mubr.bf16.mxu0 0
      %5850 = vmatmul.mubr.bf16.gmra.mrb[0].mxu0 %v5695
      %v5851 = vpop.f32.mrb[0].mxu0
      %v5852 = vadd.f32 0.0, %v5851
      %v5853 = vpop.f32.mrb[0].mxu0
      %v5854 = vpop.f32.mrb[0].mxu0
      %v5855 = vadd.f32 0.0, %v5854
      %v5856 = vpop.f32.mrb[0].mxu0
      %5857 = vdwg.mxu0
      %v5858 = vadd.f32 %v5552, %v5732
      %v5859 = vadd.f32 %v5553, %v5735
      %v5860 = vadd.f32 %v5554, %v5740
      %v5861 = vadd.f32 %v5555, %v5743
      %v5862 = vadd.f32 %v5556, %v5748
      %v5863 = vadd.f32 %v5557, %v5751
      %v5864 = vadd.f32 %v5558, %v5756
      %v5865 = vadd.f32 %v5559, %v5759
      %v5866 = vadd.f32 %v5560, %v5764
      %v5867 = vadd.f32 %v5561, %v5767
      %v5868 = vadd.f32 %v5562, %v5772
      %v5869 = vadd.f32 %v5563, %v5775
      %v5870 = vadd.f32 %v5564, %v5780
      %v5871 = vadd.f32 %v5565, %v5783
      %v5872 = vadd.f32 %v5566, %v5788
      %v5873 = vadd.f32 %v5567, %v5791
      %v5874 = vadd.f32 %v5568, %v5796
      %v5875 = vadd.f32 %v5569, %v5799
      %v5876 = vadd.f32 %v5570, %v5804
      %v5877 = vadd.f32 %v5571, %v5807
      %v5878 = vadd.f32 %v5572, %v5812
      %v5879 = vadd.f32 %v5573, %v5815
      %v5880 = vadd.f32 %v5574, %v5820
      %v5881 = vadd.f32 %v5575, %v5823
      %v5882 = vadd.f32 %v5576, %v5828
      %v5883 = vadd.f32 %v5577, %v5831
      %v5884 = vadd.f32 %v5578, %v5836
      %v5885 = vadd.f32 %v5579, %v5839
      %v5886 = vadd.f32 %v5580, %v5844
      %v5887 = vadd.f32 %v5581, %v5847
      %v5888 = vadd.f32 %v5582, %v5852
      %v5889 = vadd.f32 %v5583, %v5855
      %s5890 = scalar_lea.vmem [#allocation2], 640
      %v5891 = vld [vmem:[%s5890 + $0x8] sm:$0xff]
      %v5892 = vld [vmem:[%s5890 + $0x10] sm:$0xff]
      %v5893 = vld [vmem:[%s5890 + $0x28] sm:$0xff]
      %v5894 = vld [vmem:[%s5890 + $0x30] sm:$0xff]
      %v5895 = vld [vmem:[%s5890 + $0x48] sm:$0xff]
      %v5896 = vld [vmem:[%s5890 + $0x50] sm:$0xff]
      %v5897 = vld [vmem:[%s5890 + $0x68] sm:$0xff]
      %v5898 = vld [vmem:[%s5890 + $0x70] sm:$0xff]
      %v5899 = vld [vmem:[%s5890 + $0x88] sm:$0xff]
      %v5900 = vld [vmem:[%s5890 + $0x90] sm:$0xff]
      %v5901 = vld [vmem:[%s5890 + $0xa8] sm:$0xff]
      %v5902 = vld [vmem:[%s5890 + $0xb0] sm:$0xff]
      %v5903 = vld [vmem:[%s5890 + $0xc8] sm:$0xff]
      %v5904 = vld [vmem:[%s5890 + $0xd0] sm:$0xff]
      %v5905 = vld [vmem:[%s5890 + $0xe8] sm:$0xff]
      %v5906 = vld [vmem:[%s5890 + $0xf0] sm:$0xff]
      %v5907 = vld [vmem:[%s5890 + $0x108] sm:$0xff]
      %v5908 = vld [vmem:[%s5890 + $0x110] sm:$0xff]
      %v5909 = vld [vmem:[%s5890 + $0x128] sm:$0xff]
      %v5910 = vld [vmem:[%s5890 + $0x130] sm:$0xff]
      %v5911 = vld [vmem:[%s5890 + $0x148] sm:$0xff]
      %v5912 = vld [vmem:[%s5890 + $0x150] sm:$0xff]
      %v5913 = vld [vmem:[%s5890 + $0x168] sm:$0xff]
      %v5914 = vld [vmem:[%s5890 + $0x170] sm:$0xff]
      %v5915 = vld [vmem:[%s5890 + $0x188] sm:$0xff]
      %v5916 = vld [vmem:[%s5890 + $0x190] sm:$0xff]
      %v5917 = vld [vmem:[%s5890 + $0x1a8] sm:$0xff]
      %v5918 = vld [vmem:[%s5890 + $0x1b0] sm:$0xff]
      %v5919 = vld [vmem:[%s5890 + $0x1c8] sm:$0xff]
      %v5920 = vld [vmem:[%s5890 + $0x1d0] sm:$0xff]
      %v5921 = vld [vmem:[%s5890 + $0x1e8] sm:$0xff]
      %v5922 = vld [vmem:[%s5890 + $0x1f0] sm:$0xff]
      %v5923 = vpack.c.bf16 %v5892, %v5891
      %v5924 = vpack.c.bf16 %v5894, %v5893
      %v5925 = vpack.c.bf16 %v5896, %v5895
      %v5926 = vpack.c.bf16 %v5898, %v5897
      %v5927 = vpack.c.bf16 %v5900, %v5899
      %v5928 = vpack.c.bf16 %v5902, %v5901
      %v5929 = vpack.c.bf16 %v5904, %v5903
      %v5930 = vpack.c.bf16 %v5906, %v5905
      %v5931 = vpack.c.bf16 %v5908, %v5907
      %v5932 = vpack.c.bf16 %v5910, %v5909
      %v5933 = vpack.c.bf16 %v5912, %v5911
      %v5934 = vpack.c.bf16 %v5914, %v5913
      %v5935 = vpack.c.bf16 %v5916, %v5915
      %v5936 = vpack.c.bf16 %v5918, %v5917
      %v5937 = vpack.c.bf16 %v5920, %v5919
      %v5938 = vpack.c.bf16 %v5922, %v5921
      %v5939 = vld [vmem:[%s3046] sm:$0xf]
      %v5940 = vld [vmem:[%s3046 + $0x4] sm:$0xf]
      %v5941 = vld [vmem:[%s3046 + $0x8] sm:$0xf]
      %v5942 = vld [vmem:[%s3046 + $0xc] sm:$0xf]
      %v5947 = vunpack.c.l.b16 %v5939
      %v5948 = vunpack.c.l.b16 %v5940
      %v5949 = vunpack.c.l.b16 %v5941
      %v5950 = vunpack.c.l.b16 %v5942
      %v5951 = vpack.c.b16 %v5948, %v5947
      %v5952 = vpack.c.b16 %v5950, %v5949
      %v5956 = vsel %vm526, %v5923, 0
      %v5959 = vsel %vm526, %v5924, 0
      %v5962 = vsel %vm526, %v5925, 0
      %v5965 = vsel %vm526, %v5926, 0
      %v5968 = vsel %vm526, %v5927, 0
      %v5971 = vsel %vm526, %v5928, 0
      %v5974 = vsel %vm526, %v5929, 0
      %v5977 = vsel %vm526, %v5930, 0
      %v5980 = vsel %vm526, %v5931, 0
      %v5983 = vsel %vm526, %v5932, 0
      %v5986 = vsel %vm526, %v5933, 0
      %v5989 = vsel %vm526, %v5934, 0
      %v5992 = vsel %vm526, %v5935, 0
      %v5995 = vsel %vm526, %v5936, 0
      %v5998 = vsel %vm526, %v5937, 0
      %v6001 = vsel %vm526, %v5938, 0
      %6003 = vmatprep.subr.bf16.mxu0 0
      %6004 = vmatpush1.bf16.msra.mxu0 %v5951
      %6005 = vmatprep.subr.bf16.mxu0 0
      %6006 = vmatpush1.bf16.msra.mxu0 %v5952
      %6007 = vmatprep.subr.bf16.mxu0 0
      %6008 = vmatpush1.bf16.msra.mxu0 0
      %6009 = vmatprep.subr.bf16.mxu0 0
      %6010 = vmatpush1.bf16.msra.mxu0 0
      %6011 = vmatprep.subr.bf16.mxu0 0
      %6012 = vmatpush1.bf16.msra.mxu0 0
      %6013 = vmatprep.subr.bf16.mxu0 0
      %6014 = vmatpush1.bf16.msra.mxu0 0
      %6015 = vmatprep.subr.bf16.mxu0 0
      %6016 = vmatpush1.bf16.msra.mxu0 0
      %6017 = vmatprep.subr.bf16.mxu0 0
      %6018 = vmatpush1.bf16.msra.mxu0 0
      %6019 = vmatprep.subr.bf16.mxu0 0
      %6020 = vmatpush1.bf16.msra.mxu0 0
      %6021 = vmatprep.subr.bf16.mxu0 0
      %6022 = vmatpush1.bf16.msra.mxu0 0
      %6023 = vmatprep.subr.bf16.mxu0 0
      %6024 = vmatpush1.bf16.msra.mxu0 0
      %6025 = vmatprep.subr.bf16.mxu0 0
      %6026 = vmatpush1.bf16.msra.mxu0 0
      %6027 = vmatprep.subr.bf16.mxu0 0
      %6028 = vmatpush1.bf16.msra.mxu0 0
      %6029 = vmatprep.subr.bf16.mxu0 0
      %6030 = vmatpush1.bf16.msra.mxu0 0
      %6031 = vmatprep.subr.bf16.mxu0 0
      %6032 = vmatpush1.bf16.msra.mxu0 0
      %6033 = vmatprep.subr.bf16.mxu0 0
      %6034 = vmatpush1.bf16.msra.mxu0 0
      %6035 = vmatprep.mubr.bf16.mxu0 0
      %6036 = vmatmul.mubr.bf16.gmra.mrb[0].mxu0 %v5956
      %v6037 = vpop.f32.mrb[0].mxu0
      %v6038 = vadd.f32 0.0, %v6037
      %v6039 = vpop.f32.mrb[0].mxu0
      %v6040 = vpop.f32.mrb[0].mxu0
      %v6041 = vadd.f32 0.0, %v6040
      %v6042 = vpop.f32.mrb[0].mxu0
      %6043 = vmatprep.mubr.bf16.mxu0 0
      %6044 = vmatmul.mubr.bf16.gmra.mrb[0].mxu0 %v5959
      %v6045 = vpop.f32.mrb[0].mxu0
      %v6046 = vadd.f32 0.0, %v6045
      %v6047 = vpop.f32.mrb[0].mxu0
      %v6048 = vpop.f32.mrb[0].mxu0
      %v6049 = vadd.f32 0.0, %v6048
      %v6050 = vpop.f32.mrb[0].mxu0
      %6051 = vmatprep.mubr.bf16.mxu0 0
      %6052 = vmatmul.mubr.bf16.gmra.mrb[0].mxu0 %v5962
      %v6053 = vpop.f32.mrb[0].mxu0
      %v6054 = vadd.f32 0.0, %v6053
      %v6055 = vpop.f32.mrb[0].mxu0
      %v6056 = vpop.f32.mrb[0].mxu0
      %v6057 = vadd.f32 0.0, %v6056
      %v6058 = vpop.f32.mrb[0].mxu0
      %6059 = vmatprep.mubr.bf16.mxu0 0
      %6060 = vmatmul.mubr.bf16.gmra.mrb[0].mxu0 %v5965
      %v6061 = vpop.f32.mrb[0].mxu0
      %v6062 = vadd.f32 0.0, %v6061
      %v6063 = vpop.f32.mrb[0].mxu0
      %v6064 = vpop.f32.mrb[0].mxu0
      %v6065 = vadd.f32 0.0, %v6064
      %v6066 = vpop.f32.mrb[0].mxu0
      %6067 = vmatprep.mubr.bf16.mxu0 0
      %6068 = vmatmul.mubr.bf16.gmra.mrb[0].mxu0 %v5968
      %v6069 = vpop.f32.mrb[0].mxu0
      %v6070 = vadd.f32 0.0, %v6069
      %v6071 = vpop.f32.mrb[0].mxu0
      %v6072 = vpop.f32.mrb[0].mxu0
      %v6073 = vadd.f32 0.0, %v6072
      %v6074 = vpop.f32.mrb[0].mxu0
      %6075 = vmatprep.mubr.bf16.mxu0 0
      %6076 = vmatmul.mubr.bf16.gmra.mrb[0].mxu0 %v5971
      %v6077 = vpop.f32.mrb[0].mxu0
      %v6078 = vadd.f32 0.0, %v6077
      %v6079 = vpop.f32.mrb[0].mxu0
      %v6080 = vpop.f32.mrb[0].mxu0
      %v6081 = vadd.f32 0.0, %v6080
      %v6082 = vpop.f32.mrb[0].mxu0
      %6083 = vmatprep.mubr.bf16.mxu0 0
      %6084 = vmatmul.mubr.bf16.gmra.mrb[0].mxu0 %v5974
      %v6085 = vpop.f32.mrb[0].mxu0
      %v6086 = vadd.f32 0.0, %v6085
      %v6087 = vpop.f32.mrb[0].mxu0
      %v6088 = vpop.f32.mrb[0].mxu0
      %v6089 = vadd.f32 0.0, %v6088
      %v6090 = vpop.f32.mrb[0].mxu0
      %6091 = vmatprep.mubr.bf16.mxu0 0
      %6092 = vmatmul.mubr.bf16.gmra.mrb[0].mxu0 %v5977
      %v6093 = vpop.f32.mrb[0].mxu0
      %v6094 = vadd.f32 0.0, %v6093
      %v6095 = vpop.f32.mrb[0].mxu0
      %v6096 = vpop.f32.mrb[0].mxu0
      %v6097 = vadd.f32 0.0, %v6096
      %v6098 = vpop.f32.mrb[0].mxu0
      %6099 = vmatprep.mubr.bf16.mxu0 0
      %6100 = vmatmul.mubr.bf16.gmra.mrb[0].mxu0 %v5980
      %v6101 = vpop.f32.mrb[0].mxu0
      %v6102 = vadd.f32 0.0, %v6101
      %v6103 = vpop.f32.mrb[0].mxu0
      %v6104 = vpop.f32.mrb[0].mxu0
      %v6105 = vadd.f32 0.0, %v6104
      %v6106 = vpop.f32.mrb[0].mxu0
      %6107 = vmatprep.mubr.bf16.mxu0 0
      %6108 = vmatmul.mubr.bf16.gmra.mrb[0].mxu0 %v5983
      %v6109 = vpop.f32.mrb[0].mxu0
      %v6110 = vadd.f32 0.0, %v6109
      %v6111 = vpop.f32.mrb[0].mxu0
      %v6112 = vpop.f32.mrb[0].mxu0
      %v6113 = vadd.f32 0.0, %v6112
      %v6114 = vpop.f32.mrb[0].mxu0
      %6115 = vmatprep.mubr.bf16.mxu0 0
      %6116 = vmatmul.mubr.bf16.gmra.mrb[0].mxu0 %v5986
      %v6117 = vpop.f32.mrb[0].mxu0
      %v6118 = vadd.f32 0.0, %v6117
      %v6119 = vpop.f32.mrb[0].mxu0
      %v6120 = vpop.f32.mrb[0].mxu0
      %v6121 = vadd.f32 0.0, %v6120
      %v6122 = vpop.f32.mrb[0].mxu0
      %6123 = vmatprep.mubr.bf16.mxu0 0
      %6124 = vmatmul.mubr.bf16.gmra.mrb[0].mxu0 %v5989
      %v6125 = vpop.f32.mrb[0].mxu0
      %v6126 = vadd.f32 0.0, %v6125
      %v6127 = vpop.f32.mrb[0].mxu0
      %v6128 = vpop.f32.mrb[0].mxu0
      %v6129 = vadd.f32 0.0, %v6128
      %v6130 = vpop.f32.mrb[0].mxu0
      %6131 = vmatprep.mubr.bf16.mxu0 0
      %6132 = vmatmul.mubr.bf16.gmra.mrb[0].mxu0 %v5992
      %v6133 = vpop.f32.mrb[0].mxu0
      %v6134 = vadd.f32 0.0, %v6133
      %v6135 = vpop.f32.mrb[0].mxu0
      %v6136 = vpop.f32.mrb[0].mxu0
      %v6137 = vadd.f32 0.0, %v6136
      %v6138 = vpop.f32.mrb[0].mxu0
      %6139 = vmatprep.mubr.bf16.mxu0 0
      %6140 = vmatmul.mubr.bf16.gmra.mrb[0].mxu0 %v5995
      %v6141 = vpop.f32.mrb[0].mxu0
      %v6142 = vadd.f32 0.0, %v6141
      %v6143 = vpop.f32.mrb[0].mxu0
      %v6144 = vpop.f32.mrb[0].mxu0
      %v6145 = vadd.f32 0.0, %v6144
      %v6146 = vpop.f32.mrb[0].mxu0
      %6147 = vmatprep.mubr.bf16.mxu0 0
      %6148 = vmatmul.mubr.bf16.gmra.mrb[0].mxu0 %v5998
      %v6149 = vpop.f32.mrb[0].mxu0
      %v6150 = vadd.f32 0.0, %v6149
      %v6151 = vpop.f32.mrb[0].mxu0
      %v6152 = vpop.f32.mrb[0].mxu0
      %v6153 = vadd.f32 0.0, %v6152
      %v6154 = vpop.f32.mrb[0].mxu0
      %6155 = vmatprep.mubr.bf16.mxu0 0
      %6156 = vmatmul.mubr.bf16.gmra.mrb[0].mxu0 %v6001
      %v6157 = vpop.f32.mrb[0].mxu0
      %v6158 = vadd.f32 0.0, %v6157
      %v6159 = vpop.f32.mrb[0].mxu0
      %v6160 = vpop.f32.mrb[0].mxu0
      %v6161 = vadd.f32 0.0, %v6160
      %v6162 = vpop.f32.mrb[0].mxu0
      %6163 = vdwg.mxu0
      %v6164 = vadd.f32 %v5858, %v6038
      %v6165 = vadd.f32 %v5859, %v6041
      %v6166 = vadd.f32 %v5860, %v6046
      %v6167 = vadd.f32 %v5861, %v6049
      %v6168 = vadd.f32 %v5862, %v6054
      %v6169 = vadd.f32 %v5863, %v6057
      %v6170 = vadd.f32 %v5864, %v6062
      %v6171 = vadd.f32 %v5865, %v6065
      %v6172 = vadd.f32 %v5866, %v6070
      %v6173 = vadd.f32 %v5867, %v6073
      %v6174 = vadd.f32 %v5868, %v6078
      %v6175 = vadd.f32 %v5869, %v6081
      %v6176 = vadd.f32 %v5870, %v6086
      %v6177 = vadd.f32 %v5871, %v6089
      %v6178 = vadd.f32 %v5872, %v6094
      %v6179 = vadd.f32 %v5873, %v6097
      %v6180 = vadd.f32 %v5874, %v6102
      %v6181 = vadd.f32 %v5875, %v6105
      %v6182 = vadd.f32 %v5876, %v6110
      %v6183 = vadd.f32 %v5877, %v6113
      %v6184 = vadd.f32 %v5878, %v6118
      %v6185 = vadd.f32 %v5879, %v6121
      %v6186 = vadd.f32 %v5880, %v6126
      %v6187 = vadd.f32 %v5881, %v6129
      %v6188 = vadd.f32 %v5882, %v6134
      %v6189 = vadd.f32 %v5883, %v6137
      %v6190 = vadd.f32 %v5884, %v6142
      %v6191 = vadd.f32 %v5885, %v6145
      %v6192 = vadd.f32 %v5886, %v6150
      %v6193 = vadd.f32 %v5887, %v6153
      %v6194 = vadd.f32 %v5888, %v6158
      %v6195 = vadd.f32 %v5889, %v6161
      %s6196 = scalar_lea.vmem [#allocation3], 896
      %v6197 = vld [vmem:[%s6196] sm:$0xff]
      %v6198 = vld [vmem:[%s6196 + $0x8] sm:$0xff]
      %v6199 = vld [vmem:[%s6196 + $0x10] sm:$0xff]
      %v6200 = vld [vmem:[%s6196 + $0x18] sm:$0xff]
      %v6201 = vld [vmem:[%s6196 + $0x20] sm:$0xff]
      %v6202 = vld [vmem:[%s6196 + $0x28] sm:$0xff]
      %v6203 = vld [vmem:[%s6196 + $0x30] sm:$0xff]
      %v6204 = vld [vmem:[%s6196 + $0x38] sm:$0xff]
      %v6205 = vld [vmem:[%s6196 + $0x40] sm:$0xff]
      %v6206 = vld [vmem:[%s6196 + $0x48] sm:$0xff]
      %v6207 = vld [vmem:[%s6196 + $0x50] sm:$0xff]
      %v6208 = vld [vmem:[%s6196 + $0x58] sm:$0xff]
      %v6209 = vld [vmem:[%s6196 + $0x60] sm:$0xff]
      %v6210 = vld [vmem:[%s6196 + $0x68] sm:$0xff]
      %v6211 = vld [vmem:[%s6196 + $0x70] sm:$0xff]
      %v6212 = vld [vmem:[%s6196 + $0x78] sm:$0xff]
      %v6213 = vld [vmem:[%s6196 + $0x80] sm:$0xff]
      %v6214 = vld [vmem:[%s6196 + $0x88] sm:$0xff]
      %v6215 = vld [vmem:[%s6196 + $0x90] sm:$0xff]
      %v6216 = vld [vmem:[%s6196 + $0x98] sm:$0xff]
      %v6217 = vld [vmem:[%s6196 + $0xa0] sm:$0xff]
      %v6218 = vld [vmem:[%s6196 + $0xa8] sm:$0xff]
      %v6219 = vld [vmem:[%s6196 + $0xb0] sm:$0xff]
      %v6220 = vld [vmem:[%s6196 + $0xb8] sm:$0xff]
      %v6221 = vld [vmem:[%s6196 + $0xc0] sm:$0xff]
      %v6222 = vld [vmem:[%s6196 + $0xc8] sm:$0xff]
      %v6223 = vld [vmem:[%s6196 + $0xd0] sm:$0xff]
      %v6224 = vld [vmem:[%s6196 + $0xd8] sm:$0xff]
      %v6225 = vld [vmem:[%s6196 + $0xe0] sm:$0xff]
      %v6226 = vld [vmem:[%s6196 + $0xe8] sm:$0xff]
      %v6227 = vld [vmem:[%s6196 + $0xf0] sm:$0xff]
      %v6228 = vld [vmem:[%s6196 + $0xf8] sm:$0xff]
      %v6229 = vpack.c.bf16 %v6198, %v6197
      %v6230 = vpack.c.bf16 %v6200, %v6199
      %v6231 = vpack.c.bf16 %v6202, %v6201
      %v6232 = vpack.c.bf16 %v6204, %v6203
      %v6233 = vpack.c.bf16 %v6206, %v6205
      %v6234 = vpack.c.bf16 %v6208, %v6207
      %v6235 = vpack.c.bf16 %v6210, %v6209
      %v6236 = vpack.c.bf16 %v6212, %v6211
      %v6237 = vpack.c.bf16 %v6214, %v6213
      %v6238 = vpack.c.bf16 %v6216, %v6215
      %v6239 = vpack.c.bf16 %v6218, %v6217
      %v6240 = vpack.c.bf16 %v6220, %v6219
      %v6241 = vpack.c.bf16 %v6222, %v6221
      %v6242 = vpack.c.bf16 %v6224, %v6223
      %v6243 = vpack.c.bf16 %v6226, %v6225
      %v6244 = vpack.c.bf16 %v6228, %v6227
      %v6245 = vld [vmem:[%s3353] sm:$0xf]
      %v6246 = vld [vmem:[%s3353 + $0x4] sm:$0xf]
      %v6247 = vld [vmem:[%s3353 + $0x8] sm:$0xf]
      %v6248 = vld [vmem:[%s3353 + $0xc] sm:$0xf]
      %v6253 = vunpack.c.l.b16 %v6245
      %v6254 = vunpack.c.l.b16 %v6246
      %v6255 = vunpack.c.l.b16 %v6247
      %v6256 = vunpack.c.l.b16 %v6248
      %v6257 = vpack.c.b16 %v6254, %v6253
      %v6258 = vpack.c.b16 %v6256, %v6255
      %v6262 = vsel %vm526, %v6229, 0
      %v6265 = vsel %vm526, %v6230, 0
      %v6268 = vsel %vm526, %v6231, 0
      %v6271 = vsel %vm526, %v6232, 0
      %v6274 = vsel %vm526, %v6233, 0
      %v6277 = vsel %vm526, %v6234, 0
      %v6280 = vsel %vm526, %v6235, 0
      %v6283 = vsel %vm526, %v6236, 0
      %v6286 = vsel %vm526, %v6237, 0
      %v6289 = vsel %vm526, %v6238, 0
      %v6292 = vsel %vm526, %v6239, 0
      %v6295 = vsel %vm526, %v6240, 0
      %v6298 = vsel %vm526, %v6241, 0
      %v6301 = vsel %vm526, %v6242, 0
      %v6304 = vsel %vm526, %v6243, 0
      %v6307 = vsel %vm526, %v6244, 0
      %6309 = vmatprep.subr.bf16.mxu0 0
      %6310 = vmatpush1.bf16.msra.mxu0 %v6257
      %6311 = vmatprep.subr.bf16.mxu0 0
      %6312 = vmatpush1.bf16.msra.mxu0 %v6258
      %6313 = vmatprep.subr.bf16.mxu0 0
      %6314 = vmatpush1.bf16.msra.mxu0 0
      %6315 = vmatprep.subr.bf16.mxu0 0
      %6316 = vmatpush1.bf16.msra.mxu0 0
      %6317 = vmatprep.subr.bf16.mxu0 0
      %6318 = vmatpush1.bf16.msra.mxu0 0
      %6319 = vmatprep.subr.bf16.mxu0 0
      %6320 = vmatpush1.bf16.msra.mxu0 0
      %6321 = vmatprep.subr.bf16.mxu0 0
      %6322 = vmatpush1.bf16.msra.mxu0 0
      %6323 = vmatprep.subr.bf16.mxu0 0
      %6324 = vmatpush1.bf16.msra.mxu0 0
      %6325 = vmatprep.subr.bf16.mxu0 0
      %6326 = vmatpush1.bf16.msra.mxu0 0
      %6327 = vmatprep.subr.bf16.mxu0 0
      %6328 = vmatpush1.bf16.msra.mxu0 0
      %6329 = vmatprep.subr.bf16.mxu0 0
      %6330 = vmatpush1.bf16.msra.mxu0 0
      %6331 = vmatprep.subr.bf16.mxu0 0
      %6332 = vmatpush1.bf16.msra.mxu0 0
      %6333 = vmatprep.subr.bf16.mxu0 0
      %6334 = vmatpush1.bf16.msra.mxu0 0
      %6335 = vmatprep.subr.bf16.mxu0 0
      %6336 = vmatpush1.bf16.msra.mxu0 0
      %6337 = vmatprep.subr.bf16.mxu0 0
      %6338 = vmatpush1.bf16.msra.mxu0 0
      %6339 = vmatprep.subr.bf16.mxu0 0
      %6340 = vmatpush1.bf16.msra.mxu0 0
      %6341 = vmatprep.mubr.bf16.mxu0 0
      %6342 = vmatmul.mubr.bf16.gmra.mrb[0].mxu0 %v6262
      %v6343 = vpop.f32.mrb[0].mxu0
      %v6344 = vadd.f32 0.0, %v6343
      %v6345 = vpop.f32.mrb[0].mxu0
      %v6346 = vpop.f32.mrb[0].mxu0
      %v6347 = vadd.f32 0.0, %v6346
      %v6348 = vpop.f32.mrb[0].mxu0
      %6349 = vmatprep.mubr.bf16.mxu0 0
      %6350 = vmatmul.mubr.bf16.gmra.mrb[0].mxu0 %v6265
      %v6351 = vpop.f32.mrb[0].mxu0
      %v6352 = vadd.f32 0.0, %v6351
      %v6353 = vpop.f32.mrb[0].mxu0
      %v6354 = vpop.f32.mrb[0].mxu0
      %v6355 = vadd.f32 0.0, %v6354
      %v6356 = vpop.f32.mrb[0].mxu0
      %6357 = vmatprep.mubr.bf16.mxu0 0
      %6358 = vmatmul.mubr.bf16.gmra.mrb[0].mxu0 %v6268
      %v6359 = vpop.f32.mrb[0].mxu0
      %v6360 = vadd.f32 0.0, %v6359
      %v6361 = vpop.f32.mrb[0].mxu0
      %v6362 = vpop.f32.mrb[0].mxu0
      %v6363 = vadd.f32 0.0, %v6362
      %v6364 = vpop.f32.mrb[0].mxu0
      %6365 = vmatprep.mubr.bf16.mxu0 0
      %6366 = vmatmul.mubr.bf16.gmra.mrb[0].mxu0 %v6271
      %v6367 = vpop.f32.mrb[0].mxu0
      %v6368 = vadd.f32 0.0, %v6367
      %v6369 = vpop.f32.mrb[0].mxu0
      %v6370 = vpop.f32.mrb[0].mxu0
      %v6371 = vadd.f32 0.0, %v6370
      %v6372 = vpop.f32.mrb[0].mxu0
      %6373 = vmatprep.mubr.bf16.mxu0 0
      %6374 = vmatmul.mubr.bf16.gmra.mrb[0].mxu0 %v6274
      %v6375 = vpop.f32.mrb[0].mxu0
      %v6376 = vadd.f32 0.0, %v6375
      %v6377 = vpop.f32.mrb[0].mxu0
      %v6378 = vpop.f32.mrb[0].mxu0
      %v6379 = vadd.f32 0.0, %v6378
      %v6380 = vpop.f32.mrb[0].mxu0
      %6381 = vmatprep.mubr.bf16.mxu0 0
      %6382 = vmatmul.mubr.bf16.gmra.mrb[0].mxu0 %v6277
      %v6383 = vpop.f32.mrb[0].mxu0
      %v6384 = vadd.f32 0.0, %v6383
      %v6385 = vpop.f32.mrb[0].mxu0
      %v6386 = vpop.f32.mrb[0].mxu0
      %v6387 = vadd.f32 0.0, %v6386
      %v6388 = vpop.f32.mrb[0].mxu0
      %6389 = vmatprep.mubr.bf16.mxu0 0
      %6390 = vmatmul.mubr.bf16.gmra.mrb[0].mxu0 %v6280
      %v6391 = vpop.f32.mrb[0].mxu0
      %v6392 = vadd.f32 0.0, %v6391
      %v6393 = vpop.f32.mrb[0].mxu0
      %v6394 = vpop.f32.mrb[0].mxu0
      %v6395 = vadd.f32 0.0, %v6394
      %v6396 = vpop.f32.mrb[0].mxu0
      %6397 = vmatprep.mubr.bf16.mxu0 0
      %6398 = vmatmul.mubr.bf16.gmra.mrb[0].mxu0 %v6283
      %v6399 = vpop.f32.mrb[0].mxu0
      %v6400 = vadd.f32 0.0, %v6399
      %v6401 = vpop.f32.mrb[0].mxu0
      %v6402 = vpop.f32.mrb[0].mxu0
      %v6403 = vadd.f32 0.0, %v6402
      %v6404 = vpop.f32.mrb[0].mxu0
      %6405 = vmatprep.mubr.bf16.mxu0 0
      %6406 = vmatmul.mubr.bf16.gmra.mrb[0].mxu0 %v6286
      %v6407 = vpop.f32.mrb[0].mxu0
      %v6408 = vadd.f32 0.0, %v6407
      %v6409 = vpop.f32.mrb[0].mxu0
      %v6410 = vpop.f32.mrb[0].mxu0
      %v6411 = vadd.f32 0.0, %v6410
      %v6412 = vpop.f32.mrb[0].mxu0
      %6413 = vmatprep.mubr.bf16.mxu0 0
      %6414 = vmatmul.mubr.bf16.gmra.mrb[0].mxu0 %v6289
      %v6415 = vpop.f32.mrb[0].mxu0
      %v6416 = vadd.f32 0.0, %v6415
      %v6417 = vpop.f32.mrb[0].mxu0
      %v6418 = vpop.f32.mrb[0].mxu0
      %v6419 = vadd.f32 0.0, %v6418
      %v6420 = vpop.f32.mrb[0].mxu0
      %6421 = vmatprep.mubr.bf16.mxu0 0
      %6422 = vmatmul.mubr.bf16.gmra.mrb[0].mxu0 %v6292
      %v6423 = vpop.f32.mrb[0].mxu0
      %v6424 = vadd.f32 0.0, %v6423
      %v6425 = vpop.f32.mrb[0].mxu0
      %v6426 = vpop.f32.mrb[0].mxu0
      %v6427 = vadd.f32 0.0, %v6426
      %v6428 = vpop.f32.mrb[0].mxu0
      %6429 = vmatprep.mubr.bf16.mxu0 0
      %6430 = vmatmul.mubr.bf16.gmra.mrb[0].mxu0 %v6295
      %v6431 = vpop.f32.mrb[0].mxu0
      %v6432 = vadd.f32 0.0, %v6431
      %v6433 = vpop.f32.mrb[0].mxu0
      %v6434 = vpop.f32.mrb[0].mxu0
      %v6435 = vadd.f32 0.0, %v6434
      %v6436 = vpop.f32.mrb[0].mxu0
      %6437 = vmatprep.mubr.bf16.mxu0 0
      %6438 = vmatmul.mubr.bf16.gmra.mrb[0].mxu0 %v6298
      %v6439 = vpop.f32.mrb[0].mxu0
      %v6440 = vadd.f32 0.0, %v6439
      %v6441 = vpop.f32.mrb[0].mxu0
      %v6442 = vpop.f32.mrb[0].mxu0
      %v6443 = vadd.f32 0.0, %v6442
      %v6444 = vpop.f32.mrb[0].mxu0
      %6445 = vmatprep.mubr.bf16.mxu0 0
      %6446 = vmatmul.mubr.bf16.gmra.mrb[0].mxu0 %v6301
      %v6447 = vpop.f32.mrb[0].mxu0
      %v6448 = vadd.f32 0.0, %v6447
      %v6449 = vpop.f32.mrb[0].mxu0
      %v6450 = vpop.f32.mrb[0].mxu0
      %v6451 = vadd.f32 0.0, %v6450
      %v6452 = vpop.f32.mrb[0].mxu0
      %6453 = vmatprep.mubr.bf16.mxu0 0
      %6454 = vmatmul.mubr.bf16.gmra.mrb[0].mxu0 %v6304
      %v6455 = vpop.f32.mrb[0].mxu0
      %v6456 = vadd.f32 0.0, %v6455
      %v6457 = vpop.f32.mrb[0].mxu0
      %v6458 = vpop.f32.mrb[0].mxu0
      %v6459 = vadd.f32 0.0, %v6458
      %v6460 = vpop.f32.mrb[0].mxu0
      %6461 = vmatprep.mubr.bf16.mxu0 0
      %6462 = vmatmul.mubr.bf16.gmra.mrb[0].mxu0 %v6307
      %v6463 = vpop.f32.mrb[0].mxu0
      %v6464 = vadd.f32 0.0, %v6463
      %v6465 = vpop.f32.mrb[0].mxu0
      %v6466 = vpop.f32.mrb[0].mxu0
      %v6467 = vadd.f32 0.0, %v6466
      %v6468 = vpop.f32.mrb[0].mxu0
      %6469 = vdwg.mxu0
      %v6470 = vadd.f32 %v6164, %v6344
      %v6471 = vadd.f32 %v6165, %v6347
      %v6472 = vadd.f32 %v6166, %v6352
      %v6473 = vadd.f32 %v6167, %v6355
      %v6474 = vadd.f32 %v6168, %v6360
      %v6475 = vadd.f32 %v6169, %v6363
      %v6476 = vadd.f32 %v6170, %v6368
      %v6477 = vadd.f32 %v6171, %v6371
      %v6478 = vadd.f32 %v6172, %v6376
      %v6479 = vadd.f32 %v6173, %v6379
      %v6480 = vadd.f32 %v6174, %v6384
      %v6481 = vadd.f32 %v6175, %v6387
      %v6482 = vadd.f32 %v6176, %v6392
      %v6483 = vadd.f32 %v6177, %v6395
      %v6484 = vadd.f32 %v6178, %v6400
      %v6485 = vadd.f32 %v6179, %v6403
      %v6486 = vadd.f32 %v6180, %v6408
      %v6487 = vadd.f32 %v6181, %v6411
      %v6488 = vadd.f32 %v6182, %v6416
      %v6489 = vadd.f32 %v6183, %v6419
      %v6490 = vadd.f32 %v6184, %v6424
      %v6491 = vadd.f32 %v6185, %v6427
      %v6492 = vadd.f32 %v6186, %v6432
      %v6493 = vadd.f32 %v6187, %v6435
      %v6494 = vadd.f32 %v6188, %v6440
      %v6495 = vadd.f32 %v6189, %v6443
      %v6496 = vadd.f32 %v6190, %v6448
      %v6497 = vadd.f32 %v6191, %v6451
      %v6498 = vadd.f32 %v6192, %v6456
      %v6499 = vadd.f32 %v6193, %v6459
      %v6500 = vadd.f32 %v6194, %v6464
      %v6501 = vadd.f32 %v6195, %v6467
      %v6502 = vsel %vm526, %v6470, 0.0
      %v6503 = vsel %vm526, %v6471, 0.0
      %v6504 = vadd.f32 %v6502, %v6503
      %v6505 = vsel %vm526, %v6472, 0.0
      %v6506 = vadd.f32 %v6504, %v6505
      %v6507 = vsel %vm526, %v6473, 0.0
      %v6508 = vadd.f32 %v6506, %v6507
      %v6509 = vsel %vm526, %v6474, 0.0
      %v6510 = vadd.f32 %v6508, %v6509
      %v6511 = vsel %vm526, %v6475, 0.0
      %v6512 = vadd.f32 %v6510, %v6511
      %v6513 = vsel %vm526, %v6476, 0.0
      %v6514 = vadd.f32 %v6512, %v6513
      %v6515 = vsel %vm526, %v6477, 0.0
      %v6516 = vadd.f32 %v6514, %v6515
      %v6517 = vsel %vm526, %v6478, 0.0
      %v6518 = vadd.f32 %v6516, %v6517
      %v6519 = vsel %vm526, %v6479, 0.0
      %v6520 = vadd.f32 %v6518, %v6519
      %v6521 = vsel %vm526, %v6480, 0.0
      %v6522 = vadd.f32 %v6520, %v6521
      %v6523 = vsel %vm526, %v6481, 0.0
      %v6524 = vadd.f32 %v6522, %v6523
      %v6525 = vsel %vm526, %v6482, 0.0
      %v6526 = vadd.f32 %v6524, %v6525
      %v6527 = vsel %vm526, %v6483, 0.0
      %v6528 = vadd.f32 %v6526, %v6527
      %v6529 = vsel %vm526, %v6484, 0.0
      %v6530 = vadd.f32 %v6528, %v6529
      %v6531 = vsel %vm526, %v6485, 0.0
      %v6532 = vadd.f32 %v6530, %v6531
      %v6533 = vsel %vm526, %v6486, 0.0
      %v6534 = vadd.f32 %v6532, %v6533
      %v6535 = vsel %vm526, %v6487, 0.0
      %v6536 = vadd.f32 %v6534, %v6535
      %v6537 = vsel %vm526, %v6488, 0.0
      %v6538 = vadd.f32 %v6536, %v6537
      %v6539 = vsel %vm526, %v6489, 0.0
      %v6540 = vadd.f32 %v6538, %v6539
      %v6541 = vsel %vm526, %v6490, 0.0
      %v6542 = vadd.f32 %v6540, %v6541
      %v6543 = vsel %vm526, %v6491, 0.0
      %v6544 = vadd.f32 %v6542, %v6543
      %v6545 = vsel %vm526, %v6492, 0.0
      %v6546 = vadd.f32 %v6544, %v6545
      %v6547 = vsel %vm526, %v6493, 0.0
      %v6548 = vadd.f32 %v6546, %v6547
      %v6549 = vsel %vm526, %v6494, 0.0
      %v6550 = vadd.f32 %v6548, %v6549
      %v6551 = vsel %vm526, %v6495, 0.0
      %v6552 = vadd.f32 %v6550, %v6551
      %v6553 = vsel %vm526, %v6496, 0.0
      %v6554 = vadd.f32 %v6552, %v6553
      %v6555 = vsel %vm526, %v6497, 0.0
      %v6556 = vadd.f32 %v6554, %v6555
      %v6557 = vsel %vm526, %v6498, 0.0
      %v6558 = vadd.f32 %v6556, %v6557
      %v6559 = vsel %vm526, %v6499, 0.0
      %v6560 = vadd.f32 %v6558, %v6559
      %v6561 = vsel %vm526, %v6500, 0.0
      %v6562 = vadd.f32 %v6560, %v6561
      %v6563 = vsel %vm526, %v6501, 0.0
      %v6564 = vadd.f32 %v6562, %v6563
      %v6565 = vrot.slane %v6564, 4
      %v6566 = vadd.f32 %v6564, %v6565
      %v6567 = vrot.slane %v6566, 2
      %v6568 = vadd.f32 %v6566, %v6567
      %v6569 = vrot.slane %v6568, 1
      %v6570 = vadd.f32 %v6568, %v6569
      %v6571 = vadd.f32 %v3680, %v6570
      %v6572 = vmul.f32 %v6470, %v6470
      %v6573 = vmul.f32 %v6471, %v6471
      %v6574 = vmul.f32 %v6472, %v6472
      %v6575 = vmul.f32 %v6473, %v6473
      %v6576 = vmul.f32 %v6474, %v6474
      %v6577 = vmul.f32 %v6475, %v6475
      %v6578 = vmul.f32 %v6476, %v6476
      %v6579 = vmul.f32 %v6477, %v6477
      %v6580 = vmul.f32 %v6478, %v6478
      %v6581 = vmul.f32 %v6479, %v6479
      %v6582 = vmul.f32 %v6480, %v6480
      %v6583 = vmul.f32 %v6481, %v6481
      %v6584 = vmul.f32 %v6482, %v6482
      %v6585 = vmul.f32 %v6483, %v6483
      %v6586 = vmul.f32 %v6484, %v6484
      %v6587 = vmul.f32 %v6485, %v6485
      %v6588 = vmul.f32 %v6486, %v6486
      %v6589 = vmul.f32 %v6487, %v6487
      %v6590 = vmul.f32 %v6488, %v6488
      %v6591 = vmul.f32 %v6489, %v6489
      %v6592 = vmul.f32 %v6490, %v6490
      %v6593 = vmul.f32 %v6491, %v6491
      %v6594 = vmul.f32 %v6492, %v6492
      %v6595 = vmul.f32 %v6493, %v6493
      %v6596 = vmul.f32 %v6494, %v6494
      %v6597 = vmul.f32 %v6495, %v6495
      %v6598 = vmul.f32 %v6496, %v6496
      %v6599 = vmul.f32 %v6497, %v6497
      %v6600 = vmul.f32 %v6498, %v6498
      %v6601 = vmul.f32 %v6499, %v6499
      %v6602 = vmul.f32 %v6500, %v6500
      %v6603 = vmul.f32 %v6501, %v6501
      %v6604 = vsel %vm526, %v6572, 0.0
      %v6605 = vsel %vm526, %v6573, 0.0
      %v6606 = vadd.f32 %v6604, %v6605
      %v6607 = vsel %vm526, %v6574, 0.0
      %v6608 = vadd.f32 %v6606, %v6607
      %v6609 = vsel %vm526, %v6575, 0.0
      %v6610 = vadd.f32 %v6608, %v6609
      %v6611 = vsel %vm526, %v6576, 0.0
      %v6612 = vadd.f32 %v6610, %v6611
      %v6613 = vsel %vm526, %v6577, 0.0
      %v6614 = vadd.f32 %v6612, %v6613
      %v6615 = vsel %vm526, %v6578, 0.0
      %v6616 = vadd.f32 %v6614, %v6615
      %v6617 = vsel %vm526, %v6579, 0.0
      %v6618 = vadd.f32 %v6616, %v6617
      %v6619 = vsel %vm526, %v6580, 0.0
      %v6620 = vadd.f32 %v6618, %v6619
      %v6621 = vsel %vm526, %v6581, 0.0
      %v6622 = vadd.f32 %v6620, %v6621
      %v6623 = vsel %vm526, %v6582, 0.0
      %v6624 = vadd.f32 %v6622, %v6623
      %v6625 = vsel %vm526, %v6583, 0.0
      %v6626 = vadd.f32 %v6624, %v6625
      %v6627 = vsel %vm526, %v6584, 0.0
      %v6628 = vadd.f32 %v6626, %v6627
      %v6629 = vsel %vm526, %v6585, 0.0
      %v6630 = vadd.f32 %v6628, %v6629
      %v6631 = vsel %vm526, %v6586, 0.0
      %v6632 = vadd.f32 %v6630, %v6631
      %v6633 = vsel %vm526, %v6587, 0.0
      %v6634 = vadd.f32 %v6632, %v6633
      %v6635 = vsel %vm526, %v6588, 0.0
      %v6636 = vadd.f32 %v6634, %v6635
      %v6637 = vsel %vm526, %v6589, 0.0
      %v6638 = vadd.f32 %v6636, %v6637
      %v6639 = vsel %vm526, %v6590, 0.0
      %v6640 = vadd.f32 %v6638, %v6639
      %v6641 = vsel %vm526, %v6591, 0.0
      %v6642 = vadd.f32 %v6640, %v6641
      %v6643 = vsel %vm526, %v6592, 0.0
      %v6644 = vadd.f32 %v6642, %v6643
      %v6645 = vsel %vm526, %v6593, 0.0
      %v6646 = vadd.f32 %v6644, %v6645
      %v6647 = vsel %vm526, %v6594, 0.0
      %v6648 = vadd.f32 %v6646, %v6647
      %v6649 = vsel %vm526, %v6595, 0.0
      %v6650 = vadd.f32 %v6648, %v6649
      %v6651 = vsel %vm526, %v6596, 0.0
      %v6652 = vadd.f32 %v6650, %v6651
      %v6653 = vsel %vm526, %v6597, 0.0
      %v6654 = vadd.f32 %v6652, %v6653
      %v6655 = vsel %vm526, %v6598, 0.0
      %v6656 = vadd.f32 %v6654, %v6655
      %v6657 = vsel %vm526, %v6599, 0.0
      %v6658 = vadd.f32 %v6656, %v6657
      %v6659 = vsel %vm526, %v6600, 0.0
      %v6660 = vadd.f32 %v6658, %v6659
      %v6661 = vsel %vm526, %v6601, 0.0
      %v6662 = vadd.f32 %v6660, %v6661
      %v6663 = vsel %vm526, %v6602, 0.0
      %v6664 = vadd.f32 %v6662, %v6663
      %v6665 = vsel %vm526, %v6603, 0.0
      %v6666 = vadd.f32 %v6664, %v6665
      %v6667 = vrot.slane %v6666, 4
      %v6668 = vadd.f32 %v6666, %v6667
      %v6669 = vrot.slane %v6668, 2
      %v6670 = vadd.f32 %v6668, %v6669
      %v6671 = vrot.slane %v6670, 1
      %v6672 = vadd.f32 %v6670, %v6671
      %v6673 = vadd.f32 %v3782, %v6672
      %6674 = vst.msk [vmem:[#allocation4 + $0x100] sm:$0xff] %vm526, %v6470
      %6675 = vst.msk [vmem:[#allocation4 + $0x108] sm:$0xff] %vm526, %v6471
      %6676 = vst.msk [vmem:[#allocation4 + $0x110] sm:$0xff] %vm526, %v6472
      %6677 = vst.msk [vmem:[#allocation4 + $0x118] sm:$0xff] %vm526, %v6473
      %6678 = vst.msk [vmem:[#allocation4 + $0x120] sm:$0xff] %vm526, %v6474
      %6679 = vst.msk [vmem:[#allocation4 + $0x128] sm:$0xff] %vm526, %v6475
      %6680 = vst.msk [vmem:[#allocation4 + $0x130] sm:$0xff] %vm526, %v6476
      %6681 = vst.msk [vmem:[#allocation4 + $0x138] sm:$0xff] %vm526, %v6477
      %6682 = vst.msk [vmem:[#allocation4 + $0x140] sm:$0xff] %vm526, %v6478
      %6683 = vst.msk [vmem:[#allocation4 + $0x148] sm:$0xff] %vm526, %v6479
      %6684 = vst.msk [vmem:[#allocation4 + $0x150] sm:$0xff] %vm526, %v6480
      %6685 = vst.msk [vmem:[#allocation4 + $0x158] sm:$0xff] %vm526, %v6481
      %6686 = vst.msk [vmem:[#allocation4 + $0x160] sm:$0xff] %vm526, %v6482
      %6687 = vst.msk [vmem:[#allocation4 + $0x168] sm:$0xff] %vm526, %v6483
      %6688 = vst.msk [vmem:[#allocation4 + $0x170] sm:$0xff] %vm526, %v6484
      %6689 = vst.msk [vmem:[#allocation4 + $0x178] sm:$0xff] %vm526, %v6485
      %6690 = vst.msk [vmem:[#allocation4 + $0x180] sm:$0xff] %vm526, %v6486
      %6691 = vst.msk [vmem:[#allocation4 + $0x188] sm:$0xff] %vm526, %v6487
      %6692 = vst.msk [vmem:[#allocation4 + $0x190] sm:$0xff] %vm526, %v6488
      %6693 = vst.msk [vmem:[#allocation4 + $0x198] sm:$0xff] %vm526, %v6489
      %6694 = vst.msk [vmem:[#allocation4 + $0x1a0] sm:$0xff] %vm526, %v6490
      %6695 = vst.msk [vmem:[#allocation4 + $0x1a8] sm:$0xff] %vm526, %v6491
      %6696 = vst.msk [vmem:[#allocation4 + $0x1b0] sm:$0xff] %vm526, %v6492
      %6697 = vst.msk [vmem:[#allocation4 + $0x1b8] sm:$0xff] %vm526, %v6493
      %6698 = vst.msk [vmem:[#allocation4 + $0x1c0] sm:$0xff] %vm526, %v6494
      %6699 = vst.msk [vmem:[#allocation4 + $0x1c8] sm:$0xff] %vm526, %v6495
      %6700 = vst.msk [vmem:[#allocation4 + $0x1d0] sm:$0xff] %vm526, %v6496
      %6701 = vst.msk [vmem:[#allocation4 + $0x1d8] sm:$0xff] %vm526, %v6497
      %6702 = vst.msk [vmem:[#allocation4 + $0x1e0] sm:$0xff] %vm526, %v6498
      %6703 = vst.msk [vmem:[#allocation4 + $0x1e8] sm:$0xff] %vm526, %v6499
      %6704 = vst.msk [vmem:[#allocation4 + $0x1f0] sm:$0xff] %vm526, %v6500
      %6705 = vst.msk [vmem:[#allocation4 + $0x1f8] sm:$0xff] %vm526, %v6501
      %v6706 = vmul.f32 %v6571, 0.001953125
      %v6707 = vmul.f32 %v6673, 0.001953125
      %v6708 = vmul.f32 %v6706, %v6706
      %v6709 = vsub.f32 %v6707, %v6708
      %v6710 = vld [vmem:[%s207] sm:$0x1]
      %v6711 = vadd.f32 %v6709, 1e-05
      %v6712 = vrsqrt.pop %v6711
      %v6713 = vmul.f32 %v6710, %v6712
      %v6714 = vld [vmem:[%s210] sm:$0x1]
      %v6715 = vmul.f32 %v6706, %v6713
      %v6716 = vsub.f32 %v6714, %v6715
      %v6717 = vld [vmem:[#allocation4] sm:$0xff]
      %v6718 = vld [vmem:[#allocation4 + $0x8] sm:$0xff]
      %v6719 = vld [vmem:[#allocation4 + $0x10] sm:$0xff]
      %v6720 = vld [vmem:[#allocation4 + $0x18] sm:$0xff]
      %v6721 = vld [vmem:[#allocation4 + $0x20] sm:$0xff]
      %v6722 = vld [vmem:[#allocation4 + $0x28] sm:$0xff]
      %v6723 = vld [vmem:[#allocation4 + $0x30] sm:$0xff]
      %v6724 = vld [vmem:[#allocation4 + $0x38] sm:$0xff]
      %v6725 = vld [vmem:[#allocation4 + $0x40] sm:$0xff]
      %v6726 = vld [vmem:[#allocation4 + $0x48] sm:$0xff]
      %v6727 = vld [vmem:[#allocation4 + $0x50] sm:$0xff]
      %v6728 = vld [vmem:[#allocation4 + $0x58] sm:$0xff]
      %v6729 = vld [vmem:[#allocation4 + $0x60] sm:$0xff]
      %v6730 = vld [vmem:[#allocation4 + $0x68] sm:$0xff]
      %v6731 = vld [vmem:[#allocation4 + $0x70] sm:$0xff]
      %v6732 = vld [vmem:[#allocation4 + $0x78] sm:$0xff]
      %v6733 = vld [vmem:[#allocation4 + $0x80] sm:$0xff]
      %v6734 = vld [vmem:[#allocation4 + $0x88] sm:$0xff]
      %v6735 = vld [vmem:[#allocation4 + $0x90] sm:$0xff]
      %v6736 = vld [vmem:[#allocation4 + $0x98] sm:$0xff]
      %v6737 = vld [vmem:[#allocation4 + $0xa0] sm:$0xff]
      %v6738 = vld [vmem:[#allocation4 + $0xa8] sm:$0xff]
      %v6739 = vld [vmem:[#allocation4 + $0xb0] sm:$0xff]
      %v6740 = vld [vmem:[#allocation4 + $0xb8] sm:$0xff]
      %v6741 = vld [vmem:[#allocation4 + $0xc0] sm:$0xff]
      %v6742 = vld [vmem:[#allocation4 + $0xc8] sm:$0xff]
      %v6743 = vld [vmem:[#allocation4 + $0xd0] sm:$0xff]
      %v6744 = vld [vmem:[#allocation4 + $0xd8] sm:$0xff]
      %v6745 = vld [vmem:[#allocation4 + $0xe0] sm:$0xff]
      %v6746 = vld [vmem:[#allocation4 + $0xe8] sm:$0xff]
      %v6747 = vld [vmem:[#allocation4 + $0xf0] sm:$0xff]
      %v6748 = vld [vmem:[#allocation4 + $0xf8] sm:$0xff]
      %v6750 = vlaneseq
      %v6751 = vshrl.u32 %v6750, 7
      %v6752 = vsub.s32 0, %v6751
      %v6753 = vrot.slane %v6713, %v6752
      %v6755 = vmul.f32 %v6717, %v6753
      %v6756 = vmul.f32 %v6718, %v6753
      %v6757 = vmul.f32 %v6719, %v6753
      %v6758 = vmul.f32 %v6720, %v6753
      %v6759 = vmul.f32 %v6721, %v6753
      %v6760 = vmul.f32 %v6722, %v6753
      %v6761 = vmul.f32 %v6723, %v6753
      %v6762 = vmul.f32 %v6724, %v6753
      %v6763 = vmul.f32 %v6725, %v6753
      %v6764 = vmul.f32 %v6726, %v6753
      %v6765 = vmul.f32 %v6727, %v6753
      %v6766 = vmul.f32 %v6728, %v6753
      %v6767 = vmul.f32 %v6729, %v6753
      %v6768 = vmul.f32 %v6730, %v6753
      %v6769 = vmul.f32 %v6731, %v6753
      %v6770 = vmul.f32 %v6732, %v6753
      %v6771 = vmul.f32 %v6733, %v6753
      %v6772 = vmul.f32 %v6734, %v6753
      %v6773 = vmul.f32 %v6735, %v6753
      %v6774 = vmul.f32 %v6736, %v6753
      %v6775 = vmul.f32 %v6737, %v6753
      %v6776 = vmul.f32 %v6738, %v6753
      %v6777 = vmul.f32 %v6739, %v6753
      %v6778 = vmul.f32 %v6740, %v6753
      %v6779 = vmul.f32 %v6741, %v6753
      %v6780 = vmul.f32 %v6742, %v6753
      %v6781 = vmul.f32 %v6743, %v6753
      %v6782 = vmul.f32 %v6744, %v6753
      %v6783 = vmul.f32 %v6745, %v6753
      %v6784 = vmul.f32 %v6746, %v6753
      %v6785 = vmul.f32 %v6747, %v6753
      %v6786 = vmul.f32 %v6748, %v6753
      %v6788 = vlaneseq
      %v6789 = vshrl.u32 %v6788, 7
      %v6790 = vsub.s32 0, %v6789
      %v6791 = vrot.slane %v6716, %v6790
      %v6793 = vadd.f32 %v6755, %v6791
      %v6794 = vadd.f32 %v6756, %v6791
      %v6795 = vadd.f32 %v6757, %v6791
      %v6796 = vadd.f32 %v6758, %v6791
      %v6797 = vadd.f32 %v6759, %v6791
      %v6798 = vadd.f32 %v6760, %v6791
      %v6799 = vadd.f32 %v6761, %v6791
      %v6800 = vadd.f32 %v6762, %v6791
      %v6801 = vadd.f32 %v6763, %v6791
      %v6802 = vadd.f32 %v6764, %v6791
      %v6803 = vadd.f32 %v6765, %v6791
      %v6804 = vadd.f32 %v6766, %v6791
      %v6805 = vadd.f32 %v6767, %v6791
      %v6806 = vadd.f32 %v6768, %v6791
      %v6807 = vadd.f32 %v6769, %v6791
      %v6808 = vadd.f32 %v6770, %v6791
      %v6809 = vadd.f32 %v6771, %v6791
      %v6810 = vadd.f32 %v6772, %v6791
      %v6811 = vadd.f32 %v6773, %v6791
      %v6812 = vadd.f32 %v6774, %v6791
      %v6813 = vadd.f32 %v6775, %v6791
      %v6814 = vadd.f32 %v6776, %v6791
      %v6815 = vadd.f32 %v6777, %v6791
      %v6816 = vadd.f32 %v6778, %v6791
      %v6817 = vadd.f32 %v6779, %v6791
      %v6818 = vadd.f32 %v6780, %v6791
      %v6819 = vadd.f32 %v6781, %v6791
      %v6820 = vadd.f32 %v6782, %v6791
      %v6821 = vadd.f32 %v6783, %v6791
      %v6822 = vadd.f32 %v6784, %v6791
      %v6823 = vadd.f32 %v6785, %v6791
      %v6824 = vadd.f32 %v6786, %v6791
      %v6825 = vmax.f32 %v6793, 0.0
      %v6826 = vmax.f32 %v6794, 0.0
      %v6827 = vmax.f32 %v6795, 0.0
      %v6828 = vmax.f32 %v6796, 0.0
      %v6829 = vmax.f32 %v6797, 0.0
      %v6830 = vmax.f32 %v6798, 0.0
      %v6831 = vmax.f32 %v6799, 0.0
      %v6832 = vmax.f32 %v6800, 0.0
      %v6833 = vmax.f32 %v6801, 0.0
      %v6834 = vmax.f32 %v6802, 0.0
      %v6835 = vmax.f32 %v6803, 0.0
      %v6836 = vmax.f32 %v6804, 0.0
      %v6837 = vmax.f32 %v6805, 0.0
      %v6838 = vmax.f32 %v6806, 0.0
      %v6839 = vmax.f32 %v6807, 0.0
      %v6840 = vmax.f32 %v6808, 0.0
      %v6841 = vmax.f32 %v6809, 0.0
      %v6842 = vmax.f32 %v6810, 0.0
      %v6843 = vmax.f32 %v6811, 0.0
      %v6844 = vmax.f32 %v6812, 0.0
      %v6845 = vmax.f32 %v6813, 0.0
      %v6846 = vmax.f32 %v6814, 0.0
      %v6847 = vmax.f32 %v6815, 0.0
      %v6848 = vmax.f32 %v6816, 0.0
      %v6849 = vmax.f32 %v6817, 0.0
      %v6850 = vmax.f32 %v6818, 0.0
      %v6851 = vmax.f32 %v6819, 0.0
      %v6852 = vmax.f32 %v6820, 0.0
      %v6853 = vmax.f32 %v6821, 0.0
      %v6854 = vmax.f32 %v6822, 0.0
      %v6855 = vmax.f32 %v6823, 0.0
      %v6856 = vmax.f32 %v6824, 0.0
      %6857 = vst.msk [vmem:[%s2076 + $0x8] sm:$0xff] %vm526, %v6825
      %6858 = vst.msk [vmem:[%s2076 + $0x10] sm:$0xff] %vm526, %v6826
      %6859 = vst.msk [vmem:[%s2076 + $0x28] sm:$0xff] %vm526, %v6827
      %6860 = vst.msk [vmem:[%s2076 + $0x30] sm:$0xff] %vm526, %v6828
      %6861 = vst.msk [vmem:[%s2076 + $0x48] sm:$0xff] %vm526, %v6829
      %6862 = vst.msk [vmem:[%s2076 + $0x50] sm:$0xff] %vm526, %v6830
      %6863 = vst.msk [vmem:[%s2076 + $0x68] sm:$0xff] %vm526, %v6831
      %6864 = vst.msk [vmem:[%s2076 + $0x70] sm:$0xff] %vm526, %v6832
      %6865 = vst.msk [vmem:[%s2076 + $0x88] sm:$0xff] %vm526, %v6833
      %6866 = vst.msk [vmem:[%s2076 + $0x90] sm:$0xff] %vm526, %v6834
      %6867 = vst.msk [vmem:[%s2076 + $0xa8] sm:$0xff] %vm526, %v6835
      %6868 = vst.msk [vmem:[%s2076 + $0xb0] sm:$0xff] %vm526, %v6836
      %6869 = vst.msk [vmem:[%s2076 + $0xc8] sm:$0xff] %vm526, %v6837
      %6870 = vst.msk [vmem:[%s2076 + $0xd0] sm:$0xff] %vm526, %v6838
      %6871 = vst.msk [vmem:[%s2076 + $0xe8] sm:$0xff] %vm526, %v6839
      %6872 = vst.msk [vmem:[%s2076 + $0xf0] sm:$0xff] %vm526, %v6840
      %6873 = vst.msk [vmem:[%s2076 + $0x108] sm:$0xff] %vm526, %v6841
      %6874 = vst.msk [vmem:[%s2076 + $0x110] sm:$0xff] %vm526, %v6842
      %6875 = vst.msk [vmem:[%s2076 + $0x128] sm:$0xff] %vm526, %v6843
      %6876 = vst.msk [vmem:[%s2076 + $0x130] sm:$0xff] %vm526, %v6844
      %6877 = vst.msk [vmem:[%s2076 + $0x148] sm:$0xff] %vm526, %v6845
      %6878 = vst.msk [vmem:[%s2076 + $0x150] sm:$0xff] %vm526, %v6846
      %6879 = vst.msk [vmem:[%s2076 + $0x168] sm:$0xff] %vm526, %v6847
      %6880 = vst.msk [vmem:[%s2076 + $0x170] sm:$0xff] %vm526, %v6848
      %6881 = vst.msk [vmem:[%s2076 + $0x188] sm:$0xff] %vm526, %v6849
      %6882 = vst.msk [vmem:[%s2076 + $0x190] sm:$0xff] %vm526, %v6850
      %6883 = vst.msk [vmem:[%s2076 + $0x1a8] sm:$0xff] %vm526, %v6851
      %6884 = vst.msk [vmem:[%s2076 + $0x1b0] sm:$0xff] %vm526, %v6852
      %6885 = vst.msk [vmem:[%s2076 + $0x1c8] sm:$0xff] %vm526, %v6853
      %6886 = vst.msk [vmem:[%s2076 + $0x1d0] sm:$0xff] %vm526, %v6854
      %6887 = vst.msk [vmem:[%s2076 + $0x1e8] sm:$0xff] %vm526, %v6855
      %6888 = vst.msk [vmem:[%s2076 + $0x1f0] sm:$0xff] %vm526, %v6856
      %v6889 = vld [vmem:[#allocation4 + $0x100] sm:$0xff]
      %v6890 = vld [vmem:[#allocation4 + $0x108] sm:$0xff]
      %v6891 = vld [vmem:[#allocation4 + $0x110] sm:$0xff]
      %v6892 = vld [vmem:[#allocation4 + $0x118] sm:$0xff]
      %v6893 = vld [vmem:[#allocation4 + $0x120] sm:$0xff]
      %v6894 = vld [vmem:[#allocation4 + $0x128] sm:$0xff]
      %v6895 = vld [vmem:[#allocation4 + $0x130] sm:$0xff]
      %v6896 = vld [vmem:[#allocation4 + $0x138] sm:$0xff]
      %v6897 = vld [vmem:[#allocation4 + $0x140] sm:$0xff]
      %v6898 = vld [vmem:[#allocation4 + $0x148] sm:$0xff]
      %v6899 = vld [vmem:[#allocation4 + $0x150] sm:$0xff]
      %v6900 = vld [vmem:[#allocation4 + $0x158] sm:$0xff]
      %v6901 = vld [vmem:[#allocation4 + $0x160] sm:$0xff]
      %v6902 = vld [vmem:[#allocation4 + $0x168] sm:$0xff]
      %v6903 = vld [vmem:[#allocation4 + $0x170] sm:$0xff]
      %v6904 = vld [vmem:[#allocation4 + $0x178] sm:$0xff]
      %v6905 = vld [vmem:[#allocation4 + $0x180] sm:$0xff]
      %v6906 = vld [vmem:[#allocation4 + $0x188] sm:$0xff]
      %v6907 = vld [vmem:[#allocation4 + $0x190] sm:$0xff]
      %v6908 = vld [vmem:[#allocation4 + $0x198] sm:$0xff]
      %v6909 = vld [vmem:[#allocation4 + $0x1a0] sm:$0xff]
      %v6910 = vld [vmem:[#allocation4 + $0x1a8] sm:$0xff]
      %v6911 = vld [vmem:[#allocation4 + $0x1b0] sm:$0xff]
      %v6912 = vld [vmem:[#allocation4 + $0x1b8] sm:$0xff]
      %v6913 = vld [vmem:[#allocation4 + $0x1c0] sm:$0xff]
      %v6914 = vld [vmem:[#allocation4 + $0x1c8] sm:$0xff]
      %v6915 = vld [vmem:[#allocation4 + $0x1d0] sm:$0xff]
      %v6916 = vld [vmem:[#allocation4 + $0x1d8] sm:$0xff]
      %v6917 = vld [vmem:[#allocation4 + $0x1e0] sm:$0xff]
      %v6918 = vld [vmem:[#allocation4 + $0x1e8] sm:$0xff]
      %v6919 = vld [vmem:[#allocation4 + $0x1f0] sm:$0xff]
      %v6920 = vld [vmem:[#allocation4 + $0x1f8] sm:$0xff]
      %v6921 = vmul.f32 %v6889, %v6753
      %v6922 = vmul.f32 %v6890, %v6753
      %v6923 = vmul.f32 %v6891, %v6753
      %v6924 = vmul.f32 %v6892, %v6753
      %v6925 = vmul.f32 %v6893, %v6753
      %v6926 = vmul.f32 %v6894, %v6753
      %v6927 = vmul.f32 %v6895, %v6753
      %v6928 = vmul.f32 %v6896, %v6753
      %v6929 = vmul.f32 %v6897, %v6753
      %v6930 = vmul.f32 %v6898, %v6753
      %v6931 = vmul.f32 %v6899, %v6753
      %v6932 = vmul.f32 %v6900, %v6753
      %v6933 = vmul.f32 %v6901, %v6753
      %v6934 = vmul.f32 %v6902, %v6753
      %v6935 = vmul.f32 %v6903, %v6753
      %v6936 = vmul.f32 %v6904, %v6753
      %v6937 = vmul.f32 %v6905, %v6753
      %v6938 = vmul.f32 %v6906, %v6753
      %v6939 = vmul.f32 %v6907, %v6753
      %v6940 = vmul.f32 %v6908, %v6753
      %v6941 = vmul.f32 %v6909, %v6753
      %v6942 = vmul.f32 %v6910, %v6753
      %v6943 = vmul.f32 %v6911, %v6753
      %v6944 = vmul.f32 %v6912, %v6753
      %v6945 = vmul.f32 %v6913, %v6753
      %v6946 = vmul.f32 %v6914, %v6753
      %v6947 = vmul.f32 %v6915, %v6753
      %v6948 = vmul.f32 %v6916, %v6753
      %v6949 = vmul.f32 %v6917, %v6753
      %v6950 = vmul.f32 %v6918, %v6753
      %v6951 = vmul.f32 %v6919, %v6753
      %v6952 = vmul.f32 %v6920, %v6753
      %v6953 = vadd.f32 %v6921, %v6791
      %v6954 = vadd.f32 %v6922, %v6791
      %v6955 = vadd.f32 %v6923, %v6791
      %v6956 = vadd.f32 %v6924, %v6791
      %v6957 = vadd.f32 %v6925, %v6791
      %v6958 = vadd.f32 %v6926, %v6791
      %v6959 = vadd.f32 %v6927, %v6791
      %v6960 = vadd.f32 %v6928, %v6791
      %v6961 = vadd.f32 %v6929, %v6791
      %v6962 = vadd.f32 %v6930, %v6791
      %v6963 = vadd.f32 %v6931, %v6791
      %v6964 = vadd.f32 %v6932, %v6791
      %v6965 = vadd.f32 %v6933, %v6791
      %v6966 = vadd.f32 %v6934, %v6791
      %v6967 = vadd.f32 %v6935, %v6791
      %v6968 = vadd.f32 %v6936, %v6791
      %v6969 = vadd.f32 %v6937, %v6791
      %v6970 = vadd.f32 %v6938, %v6791
      %v6971 = vadd.f32 %v6939, %v6791
      %v6972 = vadd.f32 %v6940, %v6791
      %v6973 = vadd.f32 %v6941, %v6791
      %v6974 = vadd.f32 %v6942, %v6791
      %v6975 = vadd.f32 %v6943, %v6791
      %v6976 = vadd.f32 %v6944, %v6791
      %v6977 = vadd.f32 %v6945, %v6791
      %v6978 = vadd.f32 %v6946, %v6791
      %v6979 = vadd.f32 %v6947, %v6791
      %v6980 = vadd.f32 %v6948, %v6791
      %v6981 = vadd.f32 %v6949, %v6791
      %v6982 = vadd.f32 %v6950, %v6791
      %v6983 = vadd.f32 %v6951, %v6791
      %v6984 = vadd.f32 %v6952, %v6791
      %v6985 = vmax.f32 %v6953, 0.0
      %v6986 = vmax.f32 %v6954, 0.0
      %v6987 = vmax.f32 %v6955, 0.0
      %v6988 = vmax.f32 %v6956, 0.0
      %v6989 = vmax.f32 %v6957, 0.0
      %v6990 = vmax.f32 %v6958, 0.0
      %v6991 = vmax.f32 %v6959, 0.0
      %v6992 = vmax.f32 %v6960, 0.0
      %v6993 = vmax.f32 %v6961, 0.0
      %v6994 = vmax.f32 %v6962, 0.0
      %v6995 = vmax.f32 %v6963, 0.0
      %v6996 = vmax.f32 %v6964, 0.0
      %v6997 = vmax.f32 %v6965, 0.0
      %v6998 = vmax.f32 %v6966, 0.0
      %v6999 = vmax.f32 %v6967, 0.0
      %v7000 = vmax.f32 %v6968, 0.0
      %v7001 = vmax.f32 %v6969, 0.0
      %v7002 = vmax.f32 %v6970, 0.0
      %v7003 = vmax.f32 %v6971, 0.0
      %v7004 = vmax.f32 %v6972, 0.0
      %v7005 = vmax.f32 %v6973, 0.0
      %v7006 = vmax.f32 %v6974, 0.0
      %v7007 = vmax.f32 %v6975, 0.0
      %v7008 = vmax.f32 %v6976, 0.0
      %v7009 = vmax.f32 %v6977, 0.0
      %v7010 = vmax.f32 %v6978, 0.0
      %v7011 = vmax.f32 %v6979, 0.0
      %v7012 = vmax.f32 %v6980, 0.0
      %v7013 = vmax.f32 %v6981, 0.0
      %v7014 = vmax.f32 %v6982, 0.0
      %v7015 = vmax.f32 %v6983, 0.0
      %v7016 = vmax.f32 %v6984, 0.0
      %7017 = vst.msk [vmem:[%s4972 + $0x8] sm:$0xff] %vm526, %v6985
      %7018 = vst.msk [vmem:[%s4972 + $0x10] sm:$0xff] %vm526, %v6986
      %7019 = vst.msk [vmem:[%s4972 + $0x28] sm:$0xff] %vm526, %v6987
      %7020 = vst.msk [vmem:[%s4972 + $0x30] sm:$0xff] %vm526, %v6988
      %7021 = vst.msk [vmem:[%s4972 + $0x48] sm:$0xff] %vm526, %v6989
      %7022 = vst.msk [vmem:[%s4972 + $0x50] sm:$0xff] %vm526, %v6990
      %7023 = vst.msk [vmem:[%s4972 + $0x68] sm:$0xff] %vm526, %v6991
      %7024 = vst.msk [vmem:[%s4972 + $0x70] sm:$0xff] %vm526, %v6992
      %7025 = vst.msk [vmem:[%s4972 + $0x88] sm:$0xff] %vm526, %v6993
      %7026 = vst.msk [vmem:[%s4972 + $0x90] sm:$0xff] %vm526, %v6994
      %7027 = vst.msk [vmem:[%s4972 + $0xa8] sm:$0xff] %vm526, %v6995
      %7028 = vst.msk [vmem:[%s4972 + $0xb0] sm:$0xff] %vm526, %v6996
      %7029 = vst.msk [vmem:[%s4972 + $0xc8] sm:$0xff] %vm526, %v6997
      %7030 = vst.msk [vmem:[%s4972 + $0xd0] sm:$0xff] %vm526, %v6998
      %7031 = vst.msk [vmem:[%s4972 + $0xe8] sm:$0xff] %vm526, %v6999
      %7032 = vst.msk [vmem:[%s4972 + $0xf0] sm:$0xff] %vm526, %v7000
      %7033 = vst.msk [vmem:[%s4972 + $0x108] sm:$0xff] %vm526, %v7001
      %7034 = vst.msk [vmem:[%s4972 + $0x110] sm:$0xff] %vm526, %v7002
      %7035 = vst.msk [vmem:[%s4972 + $0x128] sm:$0xff] %vm526, %v7003
      %7036 = vst.msk [vmem:[%s4972 + $0x130] sm:$0xff] %vm526, %v7004
      %7037 = vst.msk [vmem:[%s4972 + $0x148] sm:$0xff] %vm526, %v7005
      %7038 = vst.msk [vmem:[%s4972 + $0x150] sm:$0xff] %vm526, %v7006
      %7039 = vst.msk [vmem:[%s4972 + $0x168] sm:$0xff] %vm526, %v7007
      %7040 = vst.msk [vmem:[%s4972 + $0x170] sm:$0xff] %vm526, %v7008
      %7041 = vst.msk [vmem:[%s4972 + $0x188] sm:$0xff] %vm526, %v7009
      %7042 = vst.msk [vmem:[%s4972 + $0x190] sm:$0xff] %vm526, %v7010
      %7043 = vst.msk [vmem:[%s4972 + $0x1a8] sm:$0xff] %vm526, %v7011
      %7044 = vst.msk [vmem:[%s4972 + $0x1b0] sm:$0xff] %vm526, %v7012
      %7045 = vst.msk [vmem:[%s4972 + $0x1c8] sm:$0xff] %vm526, %v7013
      %7046 = vst.msk [vmem:[%s4972 + $0x1d0] sm:$0xff] %vm526, %v7014
      %7047 = vst.msk [vmem:[%s4972 + $0x1e8] sm:$0xff] %vm526, %v7015
      %7048 = vst.msk [vmem:[%s4972 + $0x1f0] sm:$0xff] %vm526, %v7016
      %p7049 = scmp.eq.s32.totalorder %s15, 5
      // Predicated region
      $region45: #{bottleneck_stack_forward.1} parent=35 // pred_check
        %p7050 = pneg %p7049
      $region46: #{bottleneck_stack_forward.1} parent=35 // pred_check_branch
        %7052 = sbr.rel (%p7050) target = $region48
      $region47: #{bottleneck_stack_forward.1} parent=35 // pred_region
        %v7053 = vld [vmem:[%s2076 + $0x8] sm:$0xff]
        %v7054 = vld [vmem:[%s2076 + $0x10] sm:$0xff]
        %v7055 = vld [vmem:[%s2076 + $0x28] sm:$0xff]
        %v7056 = vld [vmem:[%s2076 + $0x30] sm:$0xff]
        %v7057 = vld [vmem:[%s2076 + $0x48] sm:$0xff]
        %v7058 = vld [vmem:[%s2076 + $0x50] sm:$0xff]
        %v7059 = vld [vmem:[%s2076 + $0x68] sm:$0xff]
        %v7060 = vld [vmem:[%s2076 + $0x70] sm:$0xff]
        %v7061 = vld [vmem:[%s2076 + $0x88] sm:$0xff]
        %v7062 = vld [vmem:[%s2076 + $0x90] sm:$0xff]
        %v7063 = vld [vmem:[%s2076 + $0xa8] sm:$0xff]
        %v7064 = vld [vmem:[%s2076 + $0xb0] sm:$0xff]
        %v7065 = vld [vmem:[%s2076 + $0xc8] sm:$0xff]
        %v7066 = vld [vmem:[%s2076 + $0xd0] sm:$0xff]
        %v7067 = vld [vmem:[%s2076 + $0xe8] sm:$0xff]
        %v7068 = vld [vmem:[%s2076 + $0xf0] sm:$0xff]
        %v7069 = vld [vmem:[%s2076 + $0x108] sm:$0xff]
        %v7070 = vld [vmem:[%s2076 + $0x110] sm:$0xff]
        %v7071 = vld [vmem:[%s2076 + $0x128] sm:$0xff]
        %v7072 = vld [vmem:[%s2076 + $0x130] sm:$0xff]
        %v7073 = vld [vmem:[%s2076 + $0x148] sm:$0xff]
        %v7074 = vld [vmem:[%s2076 + $0x150] sm:$0xff]
        %v7075 = vld [vmem:[%s2076 + $0x168] sm:$0xff]
        %v7076 = vld [vmem:[%s2076 + $0x170] sm:$0xff]
        %v7077 = vld [vmem:[%s2076 + $0x188] sm:$0xff]
        %v7078 = vld [vmem:[%s2076 + $0x190] sm:$0xff]
        %v7079 = vld [vmem:[%s2076 + $0x1a8] sm:$0xff]
        %v7080 = vld [vmem:[%s2076 + $0x1b0] sm:$0xff]
        %v7081 = vld [vmem:[%s2076 + $0x1c8] sm:$0xff]
        %v7082 = vld [vmem:[%s2076 + $0x1d0] sm:$0xff]
        %v7083 = vld [vmem:[%s2076 + $0x1e8] sm:$0xff]
        %v7084 = vld [vmem:[%s2076 + $0x1f0] sm:$0xff]
        %v7085 = vld [vmem:[#allocation5] sm:$0xff]
        %v7086 = vld [vmem:[#allocation5 + $0x8] sm:$0xff]
        %v7087 = vld [vmem:[#allocation5 + $0x10] sm:$0xff]
        %v7088 = vld [vmem:[#allocation5 + $0x18] sm:$0xff]
        %v7089 = vld [vmem:[#allocation5 + $0x20] sm:$0xff]
        %v7090 = vld [vmem:[#allocation5 + $0x28] sm:$0xff]
        %v7091 = vld [vmem:[#allocation5 + $0x30] sm:$0xff]
        %v7092 = vld [vmem:[#allocation5 + $0x38] sm:$0xff]
        %v7093 = vld [vmem:[#allocation5 + $0x40] sm:$0xff]
        %v7094 = vld [vmem:[#allocation5 + $0x48] sm:$0xff]
        %v7095 = vld [vmem:[#allocation5 + $0x50] sm:$0xff]
        %v7096 = vld [vmem:[#allocation5 + $0x58] sm:$0xff]
        %v7097 = vld [vmem:[#allocation5 + $0x60] sm:$0xff]
        %v7098 = vld [vmem:[#allocation5 + $0x68] sm:$0xff]
        %v7099 = vld [vmem:[#allocation5 + $0x70] sm:$0xff]
        %v7100 = vld [vmem:[#allocation5 + $0x78] sm:$0xff]
        %v7101 = vld [vmem:[#allocation5 + $0x80] sm:$0xff]
        %v7102 = vld [vmem:[#allocation5 + $0x88] sm:$0xff]
        %v7103 = vld [vmem:[#allocation5 + $0x90] sm:$0xff]
        %v7104 = vld [vmem:[#allocation5 + $0x98] sm:$0xff]
        %v7105 = vld [vmem:[#allocation5 + $0xa0] sm:$0xff]
        %v7106 = vld [vmem:[#allocation5 + $0xa8] sm:$0xff]
        %v7107 = vld [vmem:[#allocation5 + $0xb0] sm:$0xff]
        %v7108 = vld [vmem:[#allocation5 + $0xb8] sm:$0xff]
        %v7109 = vld [vmem:[#allocation5 + $0xc0] sm:$0xff]
        %v7110 = vld [vmem:[#allocation5 + $0xc8] sm:$0xff]
        %v7111 = vld [vmem:[#allocation5 + $0xd0] sm:$0xff]
        %v7112 = vld [vmem:[#allocation5 + $0xd8] sm:$0xff]
        %v7113 = vld [vmem:[#allocation5 + $0xe0] sm:$0xff]
        %v7114 = vld [vmem:[#allocation5 + $0xe8] sm:$0xff]
        %v7115 = vld [vmem:[#allocation5 + $0xf0] sm:$0xff]
        %v7116 = vld [vmem:[#allocation5 + $0xf8] sm:$0xff]
        %v7117 = vadd.f32 %v7053, %v7085
        %v7118 = vadd.f32 %v7054, %v7086
        %v7119 = vadd.f32 %v7055, %v7087
        %v7120 = vadd.f32 %v7056, %v7088
        %v7121 = vadd.f32 %v7057, %v7089
        %v7122 = vadd.f32 %v7058, %v7090
        %v7123 = vadd.f32 %v7059, %v7091
        %v7124 = vadd.f32 %v7060, %v7092
        %v7125 = vadd.f32 %v7061, %v7093
        %v7126 = vadd.f32 %v7062, %v7094
        %v7127 = vadd.f32 %v7063, %v7095
        %v7128 = vadd.f32 %v7064, %v7096
        %v7129 = vadd.f32 %v7065, %v7097
        %v7130 = vadd.f32 %v7066, %v7098
        %v7131 = vadd.f32 %v7067, %v7099
        %v7132 = vadd.f32 %v7068, %v7100
        %v7133 = vadd.f32 %v7069, %v7101
        %v7134 = vadd.f32 %v7070, %v7102
        %v7135 = vadd.f32 %v7071, %v7103
        %v7136 = vadd.f32 %v7072, %v7104
        %v7137 = vadd.f32 %v7073, %v7105
        %v7138 = vadd.f32 %v7074, %v7106
        %v7139 = vadd.f32 %v7075, %v7107
        %v7140 = vadd.f32 %v7076, %v7108
        %v7141 = vadd.f32 %v7077, %v7109
        %v7142 = vadd.f32 %v7078, %v7110
        %v7143 = vadd.f32 %v7079, %v7111
        %v7144 = vadd.f32 %v7080, %v7112
        %v7145 = vadd.f32 %v7081, %v7113
        %v7146 = vadd.f32 %v7082, %v7114
        %v7147 = vadd.f32 %v7083, %v7115
        %v7148 = vadd.f32 %v7084, %v7116
        %7149 = vst.msk [vmem:[%s2076 + $0x8] sm:$0xff] %vm526, %v7117
        %7150 = vst.msk [vmem:[%s2076 + $0x10] sm:$0xff] %vm526, %v7118
        %7151 = vst.msk [vmem:[%s2076 + $0x28] sm:$0xff] %vm526, %v7119
        %7152 = vst.msk [vmem:[%s2076 + $0x30] sm:$0xff] %vm526, %v7120
        %7153 = vst.msk [vmem:[%s2076 + $0x48] sm:$0xff] %vm526, %v7121
        %7154 = vst.msk [vmem:[%s2076 + $0x50] sm:$0xff] %vm526, %v7122
        %7155 = vst.msk [vmem:[%s2076 + $0x68] sm:$0xff] %vm526, %v7123
        %7156 = vst.msk [vmem:[%s2076 + $0x70] sm:$0xff] %vm526, %v7124
        %7157 = vst.msk [vmem:[%s2076 + $0x88] sm:$0xff] %vm526, %v7125
        %7158 = vst.msk [vmem:[%s2076 + $0x90] sm:$0xff] %vm526, %v7126
        %7159 = vst.msk [vmem:[%s2076 + $0xa8] sm:$0xff] %vm526, %v7127
        %7160 = vst.msk [vmem:[%s2076 + $0xb0] sm:$0xff] %vm526, %v7128
        %7161 = vst.msk [vmem:[%s2076 + $0xc8] sm:$0xff] %vm526, %v7129
        %7162 = vst.msk [vmem:[%s2076 + $0xd0] sm:$0xff] %vm526, %v7130
        %7163 = vst.msk [vmem:[%s2076 + $0xe8] sm:$0xff] %vm526, %v7131
        %7164 = vst.msk [vmem:[%s2076 + $0xf0] sm:$0xff] %vm526, %v7132
        %7165 = vst.msk [vmem:[%s2076 + $0x108] sm:$0xff] %vm526, %v7133
        %7166 = vst.msk [vmem:[%s2076 + $0x110] sm:$0xff] %vm526, %v7134
        %7167 = vst.msk [vmem:[%s2076 + $0x128] sm:$0xff] %vm526, %v7135
        %7168 = vst.msk [vmem:[%s2076 + $0x130] sm:$0xff] %vm526, %v7136
        %7169 = vst.msk [vmem:[%s2076 + $0x148] sm:$0xff] %vm526, %v7137
        %7170 = vst.msk [vmem:[%s2076 + $0x150] sm:$0xff] %vm526, %v7138
        %7171 = vst.msk [vmem:[%s2076 + $0x168] sm:$0xff] %vm526, %v7139
        %7172 = vst.msk [vmem:[%s2076 + $0x170] sm:$0xff] %vm526, %v7140
        %7173 = vst.msk [vmem:[%s2076 + $0x188] sm:$0xff] %vm526, %v7141
        %7174 = vst.msk [vmem:[%s2076 + $0x190] sm:$0xff] %vm526, %v7142
        %7175 = vst.msk [vmem:[%s2076 + $0x1a8] sm:$0xff] %vm526, %v7143
        %7176 = vst.msk [vmem:[%s2076 + $0x1b0] sm:$0xff] %vm526, %v7144
        %7177 = vst.msk [vmem:[%s2076 + $0x1c8] sm:$0xff] %vm526, %v7145
        %7178 = vst.msk [vmem:[%s2076 + $0x1d0] sm:$0xff] %vm526, %v7146
        %7179 = vst.msk [vmem:[%s2076 + $0x1e8] sm:$0xff] %vm526, %v7147
        %7180 = vst.msk [vmem:[%s2076 + $0x1f0] sm:$0xff] %vm526, %v7148
        %v7181 = vld [vmem:[%s4972 + $0x8] sm:$0xff]
        %v7182 = vld [vmem:[%s4972 + $0x10] sm:$0xff]
        %v7183 = vld [vmem:[%s4972 + $0x28] sm:$0xff]
        %v7184 = vld [vmem:[%s4972 + $0x30] sm:$0xff]
        %v7185 = vld [vmem:[%s4972 + $0x48] sm:$0xff]
        %v7186 = vld [vmem:[%s4972 + $0x50] sm:$0xff]
        %v7187 = vld [vmem:[%s4972 + $0x68] sm:$0xff]
        %v7188 = vld [vmem:[%s4972 + $0x70] sm:$0xff]
        %v7189 = vld [vmem:[%s4972 + $0x88] sm:$0xff]
        %v7190 = vld [vmem:[%s4972 + $0x90] sm:$0xff]
        %v7191 = vld [vmem:[%s4972 + $0xa8] sm:$0xff]
        %v7192 = vld [vmem:[%s4972 + $0xb0] sm:$0xff]
        %v7193 = vld [vmem:[%s4972 + $0xc8] sm:$0xff]
        %v7194 = vld [vmem:[%s4972 + $0xd0] sm:$0xff]
        %v7195 = vld [vmem:[%s4972 + $0xe8] sm:$0xff]
        %v7196 = vld [vmem:[%s4972 + $0xf0] sm:$0xff]
        %v7197 = vld [vmem:[%s4972 + $0x108] sm:$0xff]
        %v7198 = vld [vmem:[%s4972 + $0x110] sm:$0xff]
        %v7199 = vld [vmem:[%s4972 + $0x128] sm:$0xff]
        %v7200 = vld [vmem:[%s4972 + $0x130] sm:$0xff]
        %v7201 = vld [vmem:[%s4972 + $0x148] sm:$0xff]
        %v7202 = vld [vmem:[%s4972 + $0x150] sm:$0xff]
        %v7203 = vld [vmem:[%s4972 + $0x168] sm:$0xff]
        %v7204 = vld [vmem:[%s4972 + $0x170] sm:$0xff]
        %v7205 = vld [vmem:[%s4972 + $0x188] sm:$0xff]
        %v7206 = vld [vmem:[%s4972 + $0x190] sm:$0xff]
        %v7207 = vld [vmem:[%s4972 + $0x1a8] sm:$0xff]
        %v7208 = vld [vmem:[%s4972 + $0x1b0] sm:$0xff]
        %v7209 = vld [vmem:[%s4972 + $0x1c8] sm:$0xff]
        %v7210 = vld [vmem:[%s4972 + $0x1d0] sm:$0xff]
        %v7211 = vld [vmem:[%s4972 + $0x1e8] sm:$0xff]
        %v7212 = vld [vmem:[%s4972 + $0x1f0] sm:$0xff]
        %s7213 = scalar_lea.vmem [#allocation5], 256
        %v7214 = vld [vmem:[%s7213] sm:$0xff]
        %v7215 = vld [vmem:[%s7213 + $0x8] sm:$0xff]
        %v7216 = vld [vmem:[%s7213 + $0x10] sm:$0xff]
        %v7217 = vld [vmem:[%s7213 + $0x18] sm:$0xff]
        %v7218 = vld [vmem:[%s7213 + $0x20] sm:$0xff]
        %v7219 = vld [vmem:[%s7213 + $0x28] sm:$0xff]
        %v7220 = vld [vmem:[%s7213 + $0x30] sm:$0xff]
        %v7221 = vld [vmem:[%s7213 + $0x38] sm:$0xff]
        %v7222 = vld [vmem:[%s7213 + $0x40] sm:$0xff]
        %v7223 = vld [vmem:[%s7213 + $0x48] sm:$0xff]
        %v7224 = vld [vmem:[%s7213 + $0x50] sm:$0xff]
        %v7225 = vld [vmem:[%s7213 + $0x58] sm:$0xff]
        %v7226 = vld [vmem:[%s7213 + $0x60] sm:$0xff]
        %v7227 = vld [vmem:[%s7213 + $0x68] sm:$0xff]
        %v7228 = vld [vmem:[%s7213 + $0x70] sm:$0xff]
        %v7229 = vld [vmem:[%s7213 + $0x78] sm:$0xff]
        %v7230 = vld [vmem:[%s7213 + $0x80] sm:$0xff]
        %v7231 = vld [vmem:[%s7213 + $0x88] sm:$0xff]
        %v7232 = vld [vmem:[%s7213 + $0x90] sm:$0xff]
        %v7233 = vld [vmem:[%s7213 + $0x98] sm:$0xff]
        %v7234 = vld [vmem:[%s7213 + $0xa0] sm:$0xff]
        %v7235 = vld [vmem:[%s7213 + $0xa8] sm:$0xff]
        %v7236 = vld [vmem:[%s7213 + $0xb0] sm:$0xff]
        %v7237 = vld [vmem:[%s7213 + $0xb8] sm:$0xff]
        %v7238 = vld [vmem:[%s7213 + $0xc0] sm:$0xff]
        %v7239 = vld [vmem:[%s7213 + $0xc8] sm:$0xff]
        %v7240 = vld [vmem:[%s7213 + $0xd0] sm:$0xff]
        %v7241 = vld [vmem:[%s7213 + $0xd8] sm:$0xff]
        %v7242 = vld [vmem:[%s7213 + $0xe0] sm:$0xff]
        %v7243 = vld [vmem:[%s7213 + $0xe8] sm:$0xff]
        %v7244 = vld [vmem:[%s7213 + $0xf0] sm:$0xff]
        %v7245 = vld [vmem:[%s7213 + $0xf8] sm:$0xff]
        %v7246 = vadd.f32 %v7181, %v7214
        %v7247 = vadd.f32 %v7182, %v7215
        %v7248 = vadd.f32 %v7183, %v7216
        %v7249 = vadd.f32 %v7184, %v7217
        %v7250 = vadd.f32 %v7185, %v7218
        %v7251 = vadd.f32 %v7186, %v7219
        %v7252 = vadd.f32 %v7187, %v7220
        %v7253 = vadd.f32 %v7188, %v7221
        %v7254 = vadd.f32 %v7189, %v7222
        %v7255 = vadd.f32 %v7190, %v7223
        %v7256 = vadd.f32 %v7191, %v7224
        %v7257 = vadd.f32 %v7192, %v7225
        %v7258 = vadd.f32 %v7193, %v7226
        %v7259 = vadd.f32 %v7194, %v7227
        %v7260 = vadd.f32 %v7195, %v7228
        %v7261 = vadd.f32 %v7196, %v7229
        %v7262 = vadd.f32 %v7197, %v7230
        %v7263 = vadd.f32 %v7198, %v7231
        %v7264 = vadd.f32 %v7199, %v7232
        %v7265 = vadd.f32 %v7200, %v7233
        %v7266 = vadd.f32 %v7201, %v7234
        %v7267 = vadd.f32 %v7202, %v7235
        %v7268 = vadd.f32 %v7203, %v7236
        %v7269 = vadd.f32 %v7204, %v7237
        %v7270 = vadd.f32 %v7205, %v7238
        %v7271 = vadd.f32 %v7206, %v7239
        %v7272 = vadd.f32 %v7207, %v7240
        %v7273 = vadd.f32 %v7208, %v7241
        %v7274 = vadd.f32 %v7209, %v7242
        %v7275 = vadd.f32 %v7210, %v7243
        %v7276 = vadd.f32 %v7211, %v7244
        %v7277 = vadd.f32 %v7212, %v7245
        %7278 = vst.msk [vmem:[%s4972 + $0x8] sm:$0xff] %vm526, %v7246
        %7279 = vst.msk [vmem:[%s4972 + $0x10] sm:$0xff] %vm526, %v7247
        %7280 = vst.msk [vmem:[%s4972 + $0x28] sm:$0xff] %vm526, %v7248
        %7281 = vst.msk [vmem:[%s4972 + $0x30] sm:$0xff] %vm526, %v7249
        %7282 = vst.msk [vmem:[%s4972 + $0x48] sm:$0xff] %vm526, %v7250
        %7283 = vst.msk [vmem:[%s4972 + $0x50] sm:$0xff] %vm526, %v7251
        %7284 = vst.msk [vmem:[%s4972 + $0x68] sm:$0xff] %vm526, %v7252
        %7285 = vst.msk [vmem:[%s4972 + $0x70] sm:$0xff] %vm526, %v7253
        %7286 = vst.msk [vmem:[%s4972 + $0x88] sm:$0xff] %vm526, %v7254
        %7287 = vst.msk [vmem:[%s4972 + $0x90] sm:$0xff] %vm526, %v7255
        %7288 = vst.msk [vmem:[%s4972 + $0xa8] sm:$0xff] %vm526, %v7256
        %7289 = vst.msk [vmem:[%s4972 + $0xb0] sm:$0xff] %vm526, %v7257
        %7290 = vst.msk [vmem:[%s4972 + $0xc8] sm:$0xff] %vm526, %v7258
        %7291 = vst.msk [vmem:[%s4972 + $0xd0] sm:$0xff] %vm526, %v7259
        %7292 = vst.msk [vmem:[%s4972 + $0xe8] sm:$0xff] %vm526, %v7260
        %7293 = vst.msk [vmem:[%s4972 + $0xf0] sm:$0xff] %vm526, %v7261
        %7294 = vst.msk [vmem:[%s4972 + $0x108] sm:$0xff] %vm526, %v7262
        %7295 = vst.msk [vmem:[%s4972 + $0x110] sm:$0xff] %vm526, %v7263
        %7296 = vst.msk [vmem:[%s4972 + $0x128] sm:$0xff] %vm526, %v7264
        %7297 = vst.msk [vmem:[%s4972 + $0x130] sm:$0xff] %vm526, %v7265
        %7298 = vst.msk [vmem:[%s4972 + $0x148] sm:$0xff] %vm526, %v7266
        %7299 = vst.msk [vmem:[%s4972 + $0x150] sm:$0xff] %vm526, %v7267
        %7300 = vst.msk [vmem:[%s4972 + $0x168] sm:$0xff] %vm526, %v7268
        %7301 = vst.msk [vmem:[%s4972 + $0x170] sm:$0xff] %vm526, %v7269
        %7302 = vst.msk [vmem:[%s4972 + $0x188] sm:$0xff] %vm526, %v7270
        %7303 = vst.msk [vmem:[%s4972 + $0x190] sm:$0xff] %vm526, %v7271
        %7304 = vst.msk [vmem:[%s4972 + $0x1a8] sm:$0xff] %vm526, %v7272
        %7305 = vst.msk [vmem:[%s4972 + $0x1b0] sm:$0xff] %vm526, %v7273
        %7306 = vst.msk [vmem:[%s4972 + $0x1c8] sm:$0xff] %vm526, %v7274
        %7307 = vst.msk [vmem:[%s4972 + $0x1d0] sm:$0xff] %vm526, %v7275
        %7308 = vst.msk [vmem:[%s4972 + $0x1e8] sm:$0xff] %vm526, %v7276
        %7309 = vst.msk [vmem:[%s4972 + $0x1f0] sm:$0xff] %vm526, %v7277
      $region48: #{bottleneck_stack_forward.1} parent=35 // pred_fallthru
        _
      %p7310 = scmp.eq.s32.totalorder %s15, 8
      // Predicated region
      $region49: #{bottleneck_stack_forward.1} parent=35 // pred_check
        %p7311 = pneg %p7310
      $region50: #{bottleneck_stack_forward.1} parent=35 // pred_check_branch
        %7313 = sbr.rel (%p7311) target = $region52
      $region51: #{bottleneck_stack_forward.1} parent=35 // pred_region
        %v7314 = vld [vmem:[%s2076 + $0x8] sm:$0xff]
        %v7315 = vld [vmem:[%s2076 + $0x10] sm:$0xff]
        %v7316 = vld [vmem:[%s2076 + $0x28] sm:$0xff]
        %v7317 = vld [vmem:[%s2076 + $0x30] sm:$0xff]
        %v7318 = vld [vmem:[%s2076 + $0x48] sm:$0xff]
        %v7319 = vld [vmem:[%s2076 + $0x50] sm:$0xff]
        %v7320 = vld [vmem:[%s2076 + $0x68] sm:$0xff]
        %v7321 = vld [vmem:[%s2076 + $0x70] sm:$0xff]
        %v7322 = vld [vmem:[%s2076 + $0x88] sm:$0xff]
        %v7323 = vld [vmem:[%s2076 + $0x90] sm:$0xff]
        %v7324 = vld [vmem:[%s2076 + $0xa8] sm:$0xff]
        %v7325 = vld [vmem:[%s2076 + $0xb0] sm:$0xff]
        %v7326 = vld [vmem:[%s2076 + $0xc8] sm:$0xff]
        %v7327 = vld [vmem:[%s2076 + $0xd0] sm:$0xff]
        %v7328 = vld [vmem:[%s2076 + $0xe8] sm:$0xff]
        %v7329 = vld [vmem:[%s2076 + $0xf0] sm:$0xff]
        %v7330 = vld [vmem:[%s2076 + $0x108] sm:$0xff]
        %v7331 = vld [vmem:[%s2076 + $0x110] sm:$0xff]
        %v7332 = vld [vmem:[%s2076 + $0x128] sm:$0xff]
        %v7333 = vld [vmem:[%s2076 + $0x130] sm:$0xff]
        %v7334 = vld [vmem:[%s2076 + $0x148] sm:$0xff]
        %v7335 = vld [vmem:[%s2076 + $0x150] sm:$0xff]
        %v7336 = vld [vmem:[%s2076 + $0x168] sm:$0xff]
        %v7337 = vld [vmem:[%s2076 + $0x170] sm:$0xff]
        %v7338 = vld [vmem:[%s2076 + $0x188] sm:$0xff]
        %v7339 = vld [vmem:[%s2076 + $0x190] sm:$0xff]
        %v7340 = vld [vmem:[%s2076 + $0x1a8] sm:$0xff]
        %v7341 = vld [vmem:[%s2076 + $0x1b0] sm:$0xff]
        %v7342 = vld [vmem:[%s2076 + $0x1c8] sm:$0xff]
        %v7343 = vld [vmem:[%s2076 + $0x1d0] sm:$0xff]
        %v7344 = vld [vmem:[%s2076 + $0x1e8] sm:$0xff]
        %v7345 = vld [vmem:[%s2076 + $0x1f0] sm:$0xff]
        %7346 = vst.msk [vmem:[%s4] sm:$0xff] %vm526, %v7314
        %7347 = vst.msk [vmem:[%s4 + $0x8] sm:$0xff] %vm526, %v7315
        %7348 = vst.msk [vmem:[%s4 + $0x10] sm:$0xff] %vm526, %v7316
        %7349 = vst.msk [vmem:[%s4 + $0x18] sm:$0xff] %vm526, %v7317
        %7350 = vst.msk [vmem:[%s4 + $0x20] sm:$0xff] %vm526, %v7318
        %7351 = vst.msk [vmem:[%s4 + $0x28] sm:$0xff] %vm526, %v7319
        %7352 = vst.msk [vmem:[%s4 + $0x30] sm:$0xff] %vm526, %v7320
        %7353 = vst.msk [vmem:[%s4 + $0x38] sm:$0xff] %vm526, %v7321
        %7354 = vst.msk [vmem:[%s4 + $0x40] sm:$0xff] %vm526, %v7322
        %7355 = vst.msk [vmem:[%s4 + $0x48] sm:$0xff] %vm526, %v7323
        %7356 = vst.msk [vmem:[%s4 + $0x50] sm:$0xff] %vm526, %v7324
        %7357 = vst.msk [vmem:[%s4 + $0x58] sm:$0xff] %vm526, %v7325
        %7358 = vst.msk [vmem:[%s4 + $0x60] sm:$0xff] %vm526, %v7326
        %7359 = vst.msk [vmem:[%s4 + $0x68] sm:$0xff] %vm526, %v7327
        %7360 = vst.msk [vmem:[%s4 + $0x70] sm:$0xff] %vm526, %v7328
        %7361 = vst.msk [vmem:[%s4 + $0x78] sm:$0xff] %vm526, %v7329
        %7362 = vst.msk [vmem:[%s4 + $0x80] sm:$0xff] %vm526, %v7330
        %7363 = vst.msk [vmem:[%s4 + $0x88] sm:$0xff] %vm526, %v7331
        %7364 = vst.msk [vmem:[%s4 + $0x90] sm:$0xff] %vm526, %v7332
        %7365 = vst.msk [vmem:[%s4 + $0x98] sm:$0xff] %vm526, %v7333
        %7366 = vst.msk [vmem:[%s4 + $0xa0] sm:$0xff] %vm526, %v7334
        %7367 = vst.msk [vmem:[%s4 + $0xa8] sm:$0xff] %vm526, %v7335
        %7368 = vst.msk [vmem:[%s4 + $0xb0] sm:$0xff] %vm526, %v7336
        %7369 = vst.msk [vmem:[%s4 + $0xb8] sm:$0xff] %vm526, %v7337
        %7370 = vst.msk [vmem:[%s4 + $0xc0] sm:$0xff] %vm526, %v7338
        %7371 = vst.msk [vmem:[%s4 + $0xc8] sm:$0xff] %vm526, %v7339
        %7372 = vst.msk [vmem:[%s4 + $0xd0] sm:$0xff] %vm526, %v7340
        %7373 = vst.msk [vmem:[%s4 + $0xd8] sm:$0xff] %vm526, %v7341
        %7374 = vst.msk [vmem:[%s4 + $0xe0] sm:$0xff] %vm526, %v7342
        %7375 = vst.msk [vmem:[%s4 + $0xe8] sm:$0xff] %vm526, %v7343
        %7376 = vst.msk [vmem:[%s4 + $0xf0] sm:$0xff] %vm526, %v7344
        %7377 = vst.msk [vmem:[%s4 + $0xf8] sm:$0xff] %vm526, %v7345
        %v7378 = vld [vmem:[%s4972 + $0x8] sm:$0xff]
        %v7379 = vld [vmem:[%s4972 + $0x10] sm:$0xff]
        %v7380 = vld [vmem:[%s4972 + $0x28] sm:$0xff]
        %v7381 = vld [vmem:[%s4972 + $0x30] sm:$0xff]
        %v7382 = vld [vmem:[%s4972 + $0x48] sm:$0xff]
        %v7383 = vld [vmem:[%s4972 + $0x50] sm:$0xff]
        %v7384 = vld [vmem:[%s4972 + $0x68] sm:$0xff]
        %v7385 = vld [vmem:[%s4972 + $0x70] sm:$0xff]
        %v7386 = vld [vmem:[%s4972 + $0x88] sm:$0xff]
        %v7387 = vld [vmem:[%s4972 + $0x90] sm:$0xff]
        %v7388 = vld [vmem:[%s4972 + $0xa8] sm:$0xff]
        %v7389 = vld [vmem:[%s4972 + $0xb0] sm:$0xff]
        %v7390 = vld [vmem:[%s4972 + $0xc8] sm:$0xff]
        %v7391 = vld [vmem:[%s4972 + $0xd0] sm:$0xff]
        %v7392 = vld [vmem:[%s4972 + $0xe8] sm:$0xff]
        %v7393 = vld [vmem:[%s4972 + $0xf0] sm:$0xff]
        %v7394 = vld [vmem:[%s4972 + $0x108] sm:$0xff]
        %v7395 = vld [vmem:[%s4972 + $0x110] sm:$0xff]
        %v7396 = vld [vmem:[%s4972 + $0x128] sm:$0xff]
        %v7397 = vld [vmem:[%s4972 + $0x130] sm:$0xff]
        %v7398 = vld [vmem:[%s4972 + $0x148] sm:$0xff]
        %v7399 = vld [vmem:[%s4972 + $0x150] sm:$0xff]
        %v7400 = vld [vmem:[%s4972 + $0x168] sm:$0xff]
        %v7401 = vld [vmem:[%s4972 + $0x170] sm:$0xff]
        %v7402 = vld [vmem:[%s4972 + $0x188] sm:$0xff]
        %v7403 = vld [vmem:[%s4972 + $0x190] sm:$0xff]
        %v7404 = vld [vmem:[%s4972 + $0x1a8] sm:$0xff]
        %v7405 = vld [vmem:[%s4972 + $0x1b0] sm:$0xff]
        %v7406 = vld [vmem:[%s4972 + $0x1c8] sm:$0xff]
        %v7407 = vld [vmem:[%s4972 + $0x1d0] sm:$0xff]
        %v7408 = vld [vmem:[%s4972 + $0x1e8] sm:$0xff]
        %v7409 = vld [vmem:[%s4972 + $0x1f0] sm:$0xff]
        %s7410 = scalar_lea.vmem %s4, 256
        %7411 = vst.msk [vmem:[%s7410] sm:$0xff] %vm526, %v7378
        %7412 = vst.msk [vmem:[%s7410 + $0x8] sm:$0xff] %vm526, %v7379
        %7413 = vst.msk [vmem:[%s7410 + $0x10] sm:$0xff] %vm526, %v7380
        %7414 = vst.msk [vmem:[%s7410 + $0x18] sm:$0xff] %vm526, %v7381
        %7415 = vst.msk [vmem:[%s7410 + $0x20] sm:$0xff] %vm526, %v7382
        %7416 = vst.msk [vmem:[%s7410 + $0x28] sm:$0xff] %vm526, %v7383
        %7417 = vst.msk [vmem:[%s7410 + $0x30] sm:$0xff] %vm526, %v7384
        %7418 = vst.msk [vmem:[%s7410 + $0x38] sm:$0xff] %vm526, %v7385
        %7419 = vst.msk [vmem:[%s7410 + $0x40] sm:$0xff] %vm526, %v7386
        %7420 = vst.msk [vmem:[%s7410 + $0x48] sm:$0xff] %vm526, %v7387
        %7421 = vst.msk [vmem:[%s7410 + $0x50] sm:$0xff] %vm526, %v7388
        %7422 = vst.msk [vmem:[%s7410 + $0x58] sm:$0xff] %vm526, %v7389
        %7423 = vst.msk [vmem:[%s7410 + $0x60] sm:$0xff] %vm526, %v7390
        %7424 = vst.msk [vmem:[%s7410 + $0x68] sm:$0xff] %vm526, %v7391
        %7425 = vst.msk [vmem:[%s7410 + $0x70] sm:$0xff] %vm526, %v7392
        %7426 = vst.msk [vmem:[%s7410 + $0x78] sm:$0xff] %vm526, %v7393
        %7427 = vst.msk [vmem:[%s7410 + $0x80] sm:$0xff] %vm526, %v7394
        %7428 = vst.msk [vmem:[%s7410 + $0x88] sm:$0xff] %vm526, %v7395
        %7429 = vst.msk [vmem:[%s7410 + $0x90] sm:$0xff] %vm526, %v7396
        %7430 = vst.msk [vmem:[%s7410 + $0x98] sm:$0xff] %vm526, %v7397
        %7431 = vst.msk [vmem:[%s7410 + $0xa0] sm:$0xff] %vm526, %v7398
        %7432 = vst.msk [vmem:[%s7410 + $0xa8] sm:$0xff] %vm526, %v7399
        %7433 = vst.msk [vmem:[%s7410 + $0xb0] sm:$0xff] %vm526, %v7400
        %7434 = vst.msk [vmem:[%s7410 + $0xb8] sm:$0xff] %vm526, %v7401
        %7435 = vst.msk [vmem:[%s7410 + $0xc0] sm:$0xff] %vm526, %v7402
        %7436 = vst.msk [vmem:[%s7410 + $0xc8] sm:$0xff] %vm526, %v7403
        %7437 = vst.msk [vmem:[%s7410 + $0xd0] sm:$0xff] %vm526, %v7404
        %7438 = vst.msk [vmem:[%s7410 + $0xd8] sm:$0xff] %vm526, %v7405
        %7439 = vst.msk [vmem:[%s7410 + $0xe0] sm:$0xff] %vm526, %v7406
        %7440 = vst.msk [vmem:[%s7410 + $0xe8] sm:$0xff] %vm526, %v7407
        %7441 = vst.msk [vmem:[%s7410 + $0xf0] sm:$0xff] %vm526, %v7408
        %7442 = vst.msk [vmem:[%s7410 + $0xf8] sm:$0xff] %vm526, %v7409
      $region52: #{bottleneck_stack_forward.1} parent=35 // pred_fallthru
        _
      // Predicated region
      $region53: #{bottleneck_stack_forward.1} parent=35 // pred_check
        %p7443 = pneg %p127
      $region54: #{bottleneck_stack_forward.1} parent=35 // pred_check_branch
        %7445 = sbr.rel (%p7443) target = $region56
      $region55: #{bottleneck_stack_forward.1} parent=35 // pred_region
        _
      $region56: #{bottleneck_stack_forward.1} parent=35 // pred_fallthru
        _
      // Predicated region
      $region57: #{bottleneck_stack_forward.1} parent=35 // pred_check
        %p7446 = pneg %p127
      $region58: #{bottleneck_stack_forward.1} parent=35 // pred_check_branch
        %7448 = sbr.rel (%p7446) target = $region60
      $region59: #{bottleneck_stack_forward.1} parent=35 // pred_region
        _
      $region60: #{bottleneck_stack_forward.1} parent=35 // pred_fallthru
        _
    $region36: #{bottleneck_stack_forward.1} parent=5 // pred_fallthru
      _
    %p7449 = scmp.le.s32.totalorder 2, %s10
    // Predicated region
    $region61: #{bottleneck_stack_forward.1} parent=5 // pred_check
      %p7450 = pneg %p7449
    $region62: #{bottleneck_stack_forward.1} parent=5 // pred_check_branch
      %7452 = sbr.rel (%p7450) target = $region64
    $region63: #{bottleneck_stack_forward.1} parent=5 // pred_region
      %s7453 = ssub.s32 %s10, 2
    $region64: #{bottleneck_stack_forward.1} parent=5 // pred_fallthru
      _
  $region6: #{bottleneck_stack_forward.1} parent=0 // loop_footer
    %s14 = sadd.s32 1, %s10
  $region7: #{bottleneck_stack_forward.1} parent=0 // loop_footer_branch
    %9 = sbr.rel target = $region3
  $region8: #{bottleneck_stack_forward.1} parent=0 // loop_exit
    _

</llo_original>
